<compile_context>
chip_gen: v7x
topology: tpu7x:2x2x1
jax: 0.10.0
libtpu: 0.0.40
codegen_flags: <defaults>
</compile_context>

<pallas_src>
import jax
import jax.numpy as jnp
from jax.experimental import pallas as pl
from jax.experimental.pallas import tpu as pltpu

LRELU_SLOPE = 0.2
BN_EPS = 1e-5


# ---------------- shared in-kernel math ----------------

def _leaky_relu(x):
    return jnp.where(x > 0, x, LRELU_SLOPE * x)


def _bn_apply(y, gamma, beta):
    # BatchNorm2d (training-mode batch stats over rows == N*H*W), computed as
    # sum / sum-of-squares and folded into one per-channel scale + shift.
    # NOTE: correctness of the batch statistics relies on every block holding
    # ALL m rows (BlockSpec first dim == m). Do not M-tile these layers without
    # restructuring to a two-pass BN.
    inv_rows = 1.0 / y.shape[0]
    mean = jnp.sum(y, axis=0, keepdims=True) * inv_rows
    ex2 = jnp.sum(y * y, axis=0, keepdims=True) * inv_rows
    var = jnp.maximum(ex2 - mean * mean, 0.0)        # guard f32 cancellation
    scale = gamma * jax.lax.rsqrt(var + BN_EPS)
    shift = beta - mean * scale
    return y * scale + shift


# ---------------- Pallas kernels ----------------

def _matmul_lrelu_kernel(cols_ref, w_ref, o_ref):
    y = jnp.dot(cols_ref[...], w_ref[...], preferred_element_type=jnp.float32)
    o_ref[...] = _leaky_relu(y).astype(o_ref.dtype)


def _matmul_bn_lrelu_kernel(cols_ref, w_ref, g_ref, b_ref, o_ref, acc_ref):
    k = pl.program_id(1)

    @pl.when(k == 0)
    def _():
        acc_ref[...] = jnp.zeros_like(acc_ref)

    acc_ref[...] += jnp.dot(cols_ref[...], w_ref[...],
                            preferred_element_type=jnp.float32)

    @pl.when(k == pl.num_programs(1) - 1)
    def _():
        yn = _bn_apply(acc_ref[...], g_ref[...], b_ref[...])
        o_ref[...] = _leaky_relu(yn).astype(o_ref.dtype)


def _matmul_bn_lrelu_head_kernel(cols_ref, w_ref, g_ref, b_ref, w4_ref,
                                 o_ref, acc_ref):
    k = pl.program_id(0)

    @pl.when(k == 0)
    def _():
        acc_ref[...] = jnp.zeros_like(acc_ref)

    acc_ref[...] += jnp.dot(cols_ref[...], w_ref[...],
                            preferred_element_type=jnp.float32)

    @pl.when(k == pl.num_programs(0) - 1)
    def _():
        yn = _leaky_relu(_bn_apply(acc_ref[...], g_ref[...], b_ref[...]))
        rows, nchan = yn.shape                 # (B*16, 512)
        bsz = rows // 16
        # Fused conv(512 -> 1, 4x4, s1, p0) + Sigmoid: per-image dot of the
        # flattened (4*4*512) activation with w4, done as VPU mul + XLU reduce.
        prod = yn.reshape(bsz, 16, nchan) * w4_ref[...]            # (B, 16, C)
        z = jnp.sum(jnp.sum(prod, axis=1), axis=1, keepdims=True)  # (B, 1)
        o_ref[...] = jax.nn.sigmoid(z)


# ---------------- tiling helpers ----------------

def _pick_tile_m(m, cap=2048):
    # Largest multiple of 256 that divides m, capped (m is always B*16*16).
    if m <= cap:
        return m
    t = (cap // 256) * 256
    while m % t != 0:
        t -= 256
    return t


def _cap_tile_k(m, tile_k, k, *, budget_bytes=12 << 20):
    # Keep double-buffered bf16 cols blocks within a per-step VMEM budget so
    # the all-rows-resident BN layers don't blow VMEM at larger batch sizes.
    tile_k = min(tile_k, k)
    while tile_k > 256 and 2 * m * tile_k * 2 > budget_bytes:
        tile_k //= 2
    while k % tile_k != 0 and tile_k > 1:
        tile_k //= 2
    return tile_k


# ---------------- pallas_call wrappers ----------------

def _conv_lrelu(cols, w, *, tile_m=2048):
    m, k = cols.shape
    n = w.shape[1]
    tile_m = _pick_tile_m(m, tile_m)
    assert m % tile_m == 0
    return pl.pallas_call(
        _matmul_lrelu_kernel,
        out_shape=jax.ShapeDtypeStruct((m, n), jnp.bfloat16),
        grid=(m // tile_m,),
        in_specs=[pl.BlockSpec((tile_m, k), lambda i: (i, 0)),
                  pl.BlockSpec((k, n), lambda i: (0, 0))],
        out_specs=pl.BlockSpec((tile_m, n), lambda i: (i, 0)),
        compiler_params=pltpu.CompilerParams(
            dimension_semantics=("parallel",)),
    )(cols, w)


def _conv_bn_lrelu(cols, w, gamma, beta, *, tile_n=128, tile_k=1024):
    m, k = cols.shape
    n = w.shape[1]
    tile_k = _cap_tile_k(m, tile_k, k)
    tile_n = min(tile_n, n)
    assert k % tile_k == 0 and n % tile_n == 0
    return pl.pallas_call(
        _matmul_bn_lrelu_kernel,
        out_shape=jax.ShapeDtypeStruct((m, n), jnp.bfloat16),
        grid=(n // tile_n, k // tile_k),
        in_specs=[pl.BlockSpec((m, tile_k), lambda j, kk: (0, kk)),
                  pl.BlockSpec((tile_k, tile_n), lambda j, kk: (kk, j)),
                  pl.BlockSpec((1, tile_n), lambda j, kk: (0, j)),
                  pl.BlockSpec((1, tile_n), lambda j, kk: (0, j))],
        out_specs=pl.BlockSpec((m, tile_n), lambda j, kk: (0, j)),
        scratch_shapes=[pltpu.VMEM((m, tile_n), jnp.float32)],
        compiler_params=pltpu.CompilerParams(
            dimension_semantics=("parallel", "arbitrary")),
    )(cols, w, gamma, beta)


def _conv_bn_lrelu_sigmoid_head(cols, w, gamma, beta, w4, *, tile_k=2048):
    m, k = cols.shape
    n = w.shape[1]
    assert m % 16 == 0
    bsz = m // 16
    tile_k = _cap_tile_k(m, tile_k, k)
    assert k % tile_k == 0
    return pl.pallas_call(
        _matmul_bn_lrelu_head_kernel,
        out_shape=jax.ShapeDtypeStruct((bsz, 1), jnp.float32),
        grid=(k // tile_k,),
        in_specs=[pl.BlockSpec((m, tile_k), lambda kk: (0, kk)),
                  pl.BlockSpec((tile_k, n), lambda kk: (kk, 0)),
                  pl.BlockSpec((1, n), lambda kk: (0, 0)),
                  pl.BlockSpec((1, n), lambda kk: (0, 0)),
                  pl.BlockSpec((16, n), lambda kk: (0, 0))],
        out_specs=pl.BlockSpec((bsz, 1), lambda kk: (0, 0)),
        scratch_shapes=[pltpu.VMEM((m, n), jnp.float32)],
        compiler_params=pltpu.CompilerParams(
            dimension_semantics=("arbitrary",)),
    )(cols, w, gamma, beta, w4)


# ---------------- glue: im2col (reshape/slice only, XLA) ----------------

def _im2col(x, k, stride, pad):
    # x: (B, H, W, C) -> (B*OH*OW, k*k*C); column ordering (ky, kx, cin),
    # matching conv weights stored HWIO and flattened as (KH*KW*Cin, Cout).
    b, h, w, c = x.shape
    xp = jnp.pad(x, ((0, 0), (pad, pad), (pad, pad), (0, 0)))
    oh = (h + 2 * pad - k) // stride + 1
    ow = (w + 2 * pad - k) // stride + 1
    patches = []
    for ky in range(k):
        for kx in range(k):
            patches.append(
                xp[:, ky:ky + stride * oh:stride, kx:kx + stride * ow:stride, :])
    cols = jnp.stack(patches, axis=3)            # (B, OH, OW, k*k, C)
    return cols.reshape(b * oh * ow, k * k * c), oh, ow


# ---------------- forward pass ----------------

def cnn_discriminator_forward(img_nchw, params):
    # NCHW -> NHWC; bf16 activations between layers (matmul inputs),
    # f32 accumulation + epilogues inside the kernels.
    x = jnp.transpose(img_nchw, (0, 2, 3, 1)).astype(jnp.bfloat16)
    bsz = x.shape[0]

    # conv(3 -> 128, k4, s2, p1) + LeakyReLU(0.2)
    cols, oh, ow = _im2col(x, 4, 2, 1)
    y = _conv_lrelu(cols, params["w1"].reshape(-1, 128).astype(jnp.bfloat16))
    x = y.reshape(bsz, oh, ow, 128)

    # conv(128 -> 256, k4, s2, p1) + BN + LeakyReLU(0.2)
    cols, oh, ow = _im2col(x, 4, 2, 1)
    y = _conv_bn_lrelu(cols,
                       params["w2"].reshape(-1, 256).astype(jnp.bfloat16),
                       params["g2"], params["b2"])
    x = y.reshape(bsz, oh, ow, 256)

    # conv(256 -> 512, k4, s2, p1) + BN + LeakyReLU(0.2)
    #   + fused conv(512 -> 1, k4, s1, p0) + Sigmoid (same kernel epilogue)
    cols, oh, ow = _im2col(x, 4, 2, 1)
    assert oh == 4 and ow == 4
    out = _conv_bn_lrelu_sigmoid_head(
        cols, params["w3"].reshape(-1, 512).astype(jnp.bfloat16),
        params["g3"], params["b3"], params["w4"].reshape(16, 512))
    return out                                   # (B, 1) == .view(-1, 1)


# ---------------- pure-JAX references ----------------

def _ref_forward_f32(img_nchw, params):
    x = jnp.transpose(img_nchw, (0, 2, 3, 1)).astype(jnp.float32)

    def conv(x, w, stride, pad):
        return jax.lax.conv_general_dilated(
            x, w, (stride, stride), [(pad, pad), (pad, pad)],
            dimension_numbers=("NHWC", "HWIO", "NHWC"))

    def bn(x, g, b):
        mean = jnp.mean(x, axis=(0, 1, 2), keepdims=True)
        var = jnp.mean((x - mean) ** 2, axis=(0, 1, 2), keepdims=True)
        return ((x - mean) * jax.lax.rsqrt(var + BN_EPS)
                * g.reshape(1, 1, 1, -1) + b.reshape(1, 1, 1, -1))

    x = _leaky_relu(conv(x, params["w1"], 2, 1))
    x = _leaky_relu(bn(conv(x, params["w2"], 2, 1), params["g2"], params["b2"]))
    x = _leaky_relu(bn(conv(x, params["w3"], 2, 1), params["g3"], params["b3"]))
    x = jax.nn.sigmoid(conv(x, params["w4"], 1, 0))
    return x.reshape(-1, 1)


def _ref_forward_mixed(img_nchw, params):
    # Mirrors the kernels' dtype choices (bf16 matmul inputs, f32 accumulation
    # and epilogues) so the Pallas pipeline can be checked at tight tolerance.
    x = jnp.transpose(img_nchw, (0, 2, 3, 1)).astype(jnp.bfloat16)
    bsz = x.shape[0]

    def conv(x, w, stride, pad):
        return jax.lax.conv_general_dilated(
            x, w.astype(jnp.bfloat16), (stride, stride),
            [(pad, pad), (pad, pad)],
            dimension_numbers=("NHWC", "HWIO", "NHWC"),
            preferred_element_type=jnp.float32)

    def bn(x, g, b):
        mean = jnp.mean(x, axis=(0, 1, 2), keepdims=True)
        var = jnp.maximum(
            jnp.mean(x * x, axis=(0, 1, 2), keepdims=True) - mean * mean, 0.0)
        return ((x - mean) * jax.lax.rsqrt(var + BN_EPS)
                * g.reshape(1, 1, 1, -1) + b.reshape(1, 1, 1, -1))

    x = _leaky_relu(conv(x, params["w1"], 2, 1)).astype(jnp.bfloat16)
    x = _leaky_relu(bn(conv(x, params["w2"], 2, 1),
                       params["g2"], params["b2"])).astype(jnp.bfloat16)
    y3 = _leaky_relu(bn(conv(x, params["w3"], 2, 1),
                        params["g3"], params["b3"]))          # stays f32
    z = jnp.sum(y3.reshape(bsz, -1) * params["w4"].reshape(1, -1),
                axis=1, keepdims=True)
    return jax.nn.sigmoid(z)


if __name__ == "__main__":
    key = jax.random.PRNGKey(0)
    k_img, *kp = jax.random.split(key, 9)

    # Shapes from the PyTorch __init__; conv weights stored HWIO (KH,KW,Cin,Cout).
    params = {
        "w1": 0.05 * jax.random.normal(kp[0], (4, 4, 3, 128), jnp.float32),
        "w2": 0.05 * jax.random.normal(kp[1], (4, 4, 128, 256), jnp.float32),
        "g2": 1.0 + 0.1 * jax.random.normal(kp[2], (1, 256), jnp.float32),
        "b2": 0.1 * jax.random.normal(kp[3], (1, 256), jnp.float32),
        "w3": 0.05 * jax.random.normal(kp[4], (4, 4, 256, 512), jnp.float32),
        "g3": 1.0 + 0.1 * jax.random.normal(kp[5], (1, 512), jnp.float32),
        "b3": 0.1 * jax.random.normal(kp[6], (1, 512), jnp.float32),
        "w4": 0.05 * jax.random.normal(kp[7], (4, 4, 512, 1), jnp.float32),
    }

    # PyTorch-style NCHW input; 32x32 as implied by the conv stack (32->16->8->4->1).
    img = jax.random.normal(k_img, (2, 3, 32, 32), jnp.float32)

    out = jax.block_until_ready(jax.jit(cnn_discriminator_forward)(img, params))
    assert out.shape == (2, 1), out.shape

    ref_mixed = _ref_forward_mixed(img, params)
    err_mixed = float(jnp.max(jnp.abs(out - ref_mixed)))
    assert jnp.allclose(out, ref_mixed, atol=5e-3, rtol=5e-3), \
        f"mismatch vs dtype-matched reference: max abs err {err_mixed}"

    ref_f32 = _ref_forward_f32(img, params)
    err_f32 = float(jnp.max(jnp.abs(out - ref_f32)))
    # Looser bound vs pure-f32 reference: kernels use bf16 matmul inputs.
    assert jnp.allclose(out, ref_f32, atol=5e-2, rtol=5e-2), \
        f"mismatch vs f32 reference: max abs err {err_f32}"

    print("KERNEL_OK")
</pallas_src>

<mosaic_0001>
module attributes {stable_mosaic.version = 11 : i64} {
  func.func @_matmul_lrelu_kernel(%arg0: i32, %arg1: memref<512x48xbf16, #tpu.memory_space<vmem>>, %arg2: memref<48x128xbf16, #tpu.memory_space<vmem>>, %arg3: memref<512x128xbf16, #tpu.memory_space<vmem>>) attributes {dimension_semantics = [#tpu.dimension_semantics<parallel>], iteration_bounds = array<i64: 1>, scalar_prefetch = 0 : i64, scratch_operands = 0 : i64, tpu.core_type = #tpu.core_type<tc>, window_params = [{transform_indices = @transform_0, window_bounds = array<i64: 512, 48>}, {pipeline_mode = #tpu.pipeline_mode<synchronous>, transform_indices = @transform_1, window_bounds = array<i64: 48, 128>}, {transform_indices = @transform_2, window_bounds = array<i64: 512, 128>}]} {
    %c0 = arith.constant 0 : index
    %c0_0 = arith.constant 0 : index
    %0 = vector.load %arg1[%c0, %c0_0] : memref<512x48xbf16, #tpu.memory_space<vmem>>, vector<512x48xbf16>
    %c0_1 = arith.constant 0 : index
    %c0_2 = arith.constant 0 : index
    %1 = vector.load %arg2[%c0_1, %c0_2] : memref<48x128xbf16, #tpu.memory_space<vmem>>, vector<48x128xbf16>
    %cst = arith.constant dense<0.000000e+00> : vector<512x128xf32>
    %2 = tpu.matmul %0, %1, %cst {dimension_numbers = #tpu.dot_dimension_numbers<[1], [0], [0], [1], [0, 0, 1, 1], [], []>} : vector<512x48xbf16>, vector<48x128xbf16>, vector<512x128xf32> -> vector<512x128xf32>
    %cst_3 = arith.constant 0.000000e+00 : f32
    %3 = vector.broadcast %cst_3 : f32 to vector<512x128xf32>
    %4 = arith.cmpf ogt, %2, %3 : vector<512x128xf32>
    %cst_4 = arith.constant 2.000000e-01 : f32
    %5 = vector.broadcast %cst_4 : f32 to vector<512x128xf32>
    %6 = arith.mulf %5, %2 : vector<512x128xf32>
    %7 = arith.select %4, %2, %6 : vector<512x128xi1>, vector<512x128xf32>
    %8 = arith.truncf %7 : vector<512x128xf32> to vector<512x128xbf16>
    %c0_5 = arith.constant 0 : index
    %c0_6 = arith.constant 0 : index
    %9 = vector.load %arg3[%c0_5, %c0_6] : memref<512x128xbf16, #tpu.memory_space<vmem>>, vector<512x128xbf16>
    tpu.vector_store %arg3[%c0_5, %c0_6], %8 {strides = array<i32>} : memref<512x128xbf16, #tpu.memory_space<vmem>>, vector<512x128xbf16>,
    return
  }
  func.func @transform_0(%arg0: i32) -> (i32, i32) {
    %c0_i32 = arith.constant 0 : i32
    %c0_i32_0 = arith.constant 0 : i32
    return %arg0, %c0_i32 : i32, i32
  }
  func.func @transform_1(%arg0: i32) -> (i32, i32) {
    %c0_i32 = arith.constant 0 : i32
    %c0_i32_0 = arith.constant 0 : i32
    %c0_i32_1 = arith.constant 0 : i32
    return %c0_i32, %c0_i32_0 : i32, i32
  }
  func.func @transform_2(%arg0: i32) -> (i32, i32) {
    %c0_i32 = arith.constant 0 : i32
    %c0_i32_0 = arith.constant 0 : i32
    return %arg0, %c0_i32 : i32, i32
  }
}

module attributes {stable_mosaic.version = 11 : i64} {
  func.func @_matmul_bn_lrelu_kernel(%arg0: i32, %arg1: i32, %arg2: memref<128x1024xbf16, #tpu.memory_space<vmem>>, %arg3: memref<1024x128xbf16, #tpu.memory_space<vmem>>, %arg4: memref<1x128xf32, #tpu.memory_space<vmem>>, %arg5: memref<1x128xf32, #tpu.memory_space<vmem>>, %arg6: memref<128x128xbf16, #tpu.memory_space<vmem>>, %arg7: memref<128x128xf32, #tpu.memory_space<vmem>>) attributes {dimension_semantics = [#tpu.dimension_semantics<parallel>, #tpu.dimension_semantics<arbitrary>], iteration_bounds = array<i64: 2, 2>, scalar_prefetch = 0 : i64, scratch_operands = 1 : i64, tpu.core_type = #tpu.core_type<tc>, window_params = [{transform_indices = @transform_0, window_bounds = array<i64: 128, 1024>}, {transform_indices = @transform_1, window_bounds = array<i64: 1024, 128>}, {transform_indices = @transform_2, window_bounds = array<i64: 1, 128>}, {transform_indices = @transform_3, window_bounds = array<i64: 1, 128>}, {transform_indices = @transform_4, window_bounds = array<i64: 128, 128>}]} {
    %c0_i32 = arith.constant 0 : i32
    %0 = arith.cmpi eq, %arg1, %c0_i32 : i32
    %1 = arith.extui %0 : i1 to i32
    %c0_i32_0 = arith.constant 0 : i32
    %2 = arith.cmpi ne, %1, %c0_i32_0 : i32
    scf.if %2 {
      %cst_9 = arith.constant 0.000000e+00 : f32
      %12 = vector.broadcast %cst_9 : f32 to vector<128x128xf32>
      %c0_10 = arith.constant 0 : index
      %c0_11 = arith.constant 0 : index
      %13 = vector.load %arg7[%c0_10, %c0_11] : memref<128x128xf32, #tpu.memory_space<vmem>>, vector<128x128xf32>
      tpu.vector_store %arg7[%c0_10, %c0_11], %12 {strides = array<i32>} : memref<128x128xf32, #tpu.memory_space<vmem>>, vector<128x128xf32>,
    } else {
    }
    %c0 = arith.constant 0 : index
    %c0_1 = arith.constant 0 : index
    %3 = vector.load %arg7[%c0, %c0_1] : memref<128x128xf32, #tpu.memory_space<vmem>>, vector<128x128xf32>
    %c0_2 = arith.constant 0 : index
    %c0_3 = arith.constant 0 : index
    %4 = vector.load %arg2[%c0_2, %c0_3] : memref<128x1024xbf16, #tpu.memory_space<vmem>>, vector<128x1024xbf16>
    %c0_4 = arith.constant 0 : index
    %c0_5 = arith.constant 0 : index
    %5 = vector.load %arg3[%c0_4, %c0_5] : memref<1024x128xbf16, #tpu.memory_space<vmem>>, vector<1024x128xbf16>
    %cst = arith.constant dense<0.000000e+00> : vector<128x128xf32>
    %6 = tpu.matmul %4, %5, %cst {dimension_numbers = #tpu.dot_dimension_numbers<[1], [0], [0], [1], [0, 0, 1, 1], [], []>} : vector<128x1024xbf16>, vector<1024x128xbf16>, vector<128x128xf32> -> vector<128x128xf32>
    %7 = arith.addf %3, %6 : vector<128x128xf32>
    %c0_6 = arith.constant 0 : index
    %c0_7 = arith.constant 0 : index
    %8 = vector.load %arg7[%c0_6, %c0_7] : memref<128x128xf32, #tpu.memory_space<vmem>>, vector<128x128xf32>
    tpu.vector_store %arg7[%c0_6, %c0_7], %7 {strides = array<i32>} : memref<128x128xf32, #tpu.memory_space<vmem>>, vector<128x128xf32>,
    %c1_i32 = arith.constant 1 : i32
    %9 = arith.cmpi eq, %arg1, %c1_i32 : i32
    %10 = arith.extui %9 : i1 to i32
    %c0_i32_8 = arith.constant 0 : i32
    %11 = arith.cmpi ne, %10, %c0_i32_8 : i32
    scf.if %11 {
      %c0_9 = arith.constant 0 : index
      %c0_10 = arith.constant 0 : index
      %12 = vector.load %arg7[%c0_9, %c0_10] : memref<128x128xf32, #tpu.memory_space<vmem>>, vector<128x128xf32>
      %c0_11 = arith.constant 0 : index
      %c0_12 = arith.constant 0 : index
      %13 = vector.load %arg4[%c0_11, %c0_12] : memref<1x128xf32, #tpu.memory_space<vmem>>, vector<1x128xf32>
      %c0_13 = arith.constant 0 : index
      %c0_14 = arith.constant 0 : index
      %14 = vector.load %arg5[%c0_13, %c0_14] : memref<1x128xf32, #tpu.memory_space<vmem>>, vector<1x128xf32>
      %cst_15 = arith.constant dense<0.000000e+00> : vector<128xf32>
      %15 = vector.multi_reduction <add>, %12, %cst_15 [0] : vector<128x128xf32> to vector<128xf32>
      %16 = vector.shape_cast %15 : vector<128xf32> to vector<1x128xf32>
      %cst_16 = arith.constant 7.812500e-03 : f32
      %17 = vector.broadcast %cst_16 : f32 to vector<1x128xf32>
      %18 = arith.mulf %16, %17 : vector<1x128xf32>
      %19 = arith.mulf %12, %12 : vector<128x128xf32>
      %cst_17 = arith.constant dense<0.000000e+00> : vector<128xf32>
      %20 = vector.multi_reduction <add>, %19, %cst_17 [0] : vector<128x128xf32> to vector<128xf32>
      %21 = vector.shape_cast %20 : vector<128xf32> to vector<1x128xf32>
      %cst_18 = arith.constant 7.812500e-03 : f32
      %22 = vector.broadcast %cst_18 : f32 to vector<1x128xf32>
      %23 = arith.mulf %21, %22 : vector<1x128xf32>
      %24 = arith.mulf %18, %18 : vector<1x128xf32>
      %25 = arith.subf %23, %24 : vector<1x128xf32>
      %cst_19 = arith.constant 0.000000e+00 : f32
      %26 = vector.broadcast %cst_19 : f32 to vector<1x128xf32>
      %27 = arith.maximumf %25, %26 : vector<1x128xf32>
      %cst_20 = arith.constant 9.99999974E-6 : f32
      %28 = vector.broadcast %cst_20 : f32 to vector<1x128xf32>
      %29 = arith.addf %27, %28 : vector<1x128xf32>
      %30 = math.rsqrt %29 : vector<1x128xf32>
      %31 = arith.mulf %13, %30 : vector<1x128xf32>
      %32 = arith.mulf %18, %31 : vector<1x128xf32>
      %33 = arith.subf %14, %32 : vector<1x128xf32>
      %34 = vector.broadcast %31 : vector<1x128xf32> to vector<128x128xf32>
      %35 = arith.mulf %12, %34 : vector<128x128xf32>
      %36 = vector.broadcast %33 : vector<1x128xf32> to vector<128x128xf32>
      %37 = arith.addf %35, %36 : vector<128x128xf32>
      %cst_21 = arith.constant 0.000000e+00 : f32
      %38 = vector.broadcast %cst_21 : f32 to vector<128x128xf32>
      %39 = arith.cmpf ogt, %37, %38 : vector<128x128xf32>
      %cst_22 = arith.constant 2.000000e-01 : f32
      %40 = vector.broadcast %cst_22 : f32 to vector<128x128xf32>
      %41 = arith.mulf %40, %37 : vector<128x128xf32>
      %42 = arith.select %39, %37, %41 : vector<128x128xi1>, vector<128x128xf32>
      %43 = arith.truncf %42 : vector<128x128xf32> to vector<128x128xbf16>
      %c0_23 = arith.constant 0 : index
      %c0_24 = arith.constant 0 : index
      %44 = vector.load %arg6[%c0_23, %c0_24] : memref<128x128xbf16, #tpu.memory_space<vmem>>, vector<128x128xbf16>
      tpu.vector_store %arg6[%c0_23, %c0_24], %43 {strides = array<i32>} : memref<128x128xbf16, #tpu.memory_space<vmem>>, vector<128x128xbf16>,
    } else {
    }
    return
  }
  func.func @transform_0(%arg0: i32, %arg1: i32) -> (i32, i32) {
    %c0_i32 = arith.constant 0 : i32
    %c0_i32_0 = arith.constant 0 : i32
    return %c0_i32, %arg1 : i32, i32
  }
  func.func @transform_1(%arg0: i32, %arg1: i32) -> (i32, i32) {
    %c0_i32 = arith.constant 0 : i32
    return %arg1, %arg0 : i32, i32
  }
  func.func @transform_2(%arg0: i32, %arg1: i32) -> (i32, i32) {
    %c0_i32 = arith.constant 0 : i32
    %c0_i32_0 = arith.constant 0 : i32
    return %c0_i32, %arg0 : i32, i32
  }
  func.func @transform_3(%arg0: i32, %arg1: i32) -> (i32, i32) {
    %c0_i32 = arith.constant 0 : i32
    %c0_i32_0 = arith.constant 0 : i32
    return %c0_i32, %arg0 : i32, i32
  }
  func.func @transform_4(%arg0: i32, %arg1: i32) -> (i32, i32) {
    %c0_i32 = arith.constant 0 : i32
    %c0_i32_0 = arith.constant 0 : i32
    return %c0_i32, %arg0 : i32, i32
  }
}

module attributes {stable_mosaic.version = 11 : i64} {
  func.func @_matmul_bn_lrelu_head_kernel(%arg0: i32, %arg1: memref<32x2048xbf16, #tpu.memory_space<vmem>>, %arg2: memref<2048x512xbf16, #tpu.memory_space<vmem>>, %arg3: memref<1x512xf32, #tpu.memory_space<vmem>>, %arg4: memref<1x512xf32, #tpu.memory_space<vmem>>, %arg5: memref<16x512xf32, #tpu.memory_space<vmem>>, %arg6: memref<2x1xf32, #tpu.memory_space<vmem>>, %arg7: memref<32x512xf32, #tpu.memory_space<vmem>>) attributes {dimension_semantics = [#tpu.dimension_semantics<arbitrary>], iteration_bounds = array<i64: 2>, scalar_prefetch = 0 : i64, scratch_operands = 1 : i64, tpu.core_type = #tpu.core_type<tc>, window_params = [{transform_indices = @transform_0, window_bounds = array<i64: 32, 2048>}, {transform_indices = @transform_1, window_bounds = array<i64: 2048, 512>}, {pipeline_mode = #tpu.pipeline_mode<synchronous>, transform_indices = @transform_2, window_bounds = array<i64: 1, 512>}, {pipeline_mode = #tpu.pipeline_mode<synchronous>, transform_indices = @transform_3, window_bounds = array<i64: 1, 512>}, {pipeline_mode = #tpu.pipeline_mode<synchronous>, transform_indices = @transform_4, window_bounds = array<i64: 16, 512>}, {pipeline_mode = #tpu.pipeline_mode<synchronous>, transform_indices = @transform_5, window_bounds = array<i64: 2, 1>}]} {
    %c0_i32 = arith.constant 0 : i32
    %0 = arith.cmpi eq, %arg0, %c0_i32 : i32
    %1 = arith.extui %0 : i1 to i32
    %c0_i32_0 = arith.constant 0 : i32
    %2 = arith.cmpi ne, %1, %c0_i32_0 : i32
    scf.if %2 {
      %cst_9 = arith.constant 0.000000e+00 : f32
      %12 = vector.broadcast %cst_9 : f32 to vector<32x512xf32>
      %c0_10 = arith.constant 0 : index
      %c0_11 = arith.constant 0 : index
      %13 = vector.load %arg7[%c0_10, %c0_11] : memref<32x512xf32, #tpu.memory_space<vmem>>, vector<32x512xf32>
      tpu.vector_store %arg7[%c0_10, %c0_11], %12 {strides = array<i32>} : memref<32x512xf32, #tpu.memory_space<vmem>>, vector<32x512xf32>,
    } else {
    }
    %c0 = arith.constant 0 : index
    %c0_1 = arith.constant 0 : index
    %3 = vector.load %arg7[%c0, %c0_1] : memref<32x512xf32, #tpu.memory_space<vmem>>, vector<32x512xf32>
    %c0_2 = arith.constant 0 : index
    %c0_3 = arith.constant 0 : index
    %4 = vector.load %arg1[%c0_2, %c0_3] : memref<32x2048xbf16, #tpu.memory_space<vmem>>, vector<32x2048xbf16>
    %c0_4 = arith.constant 0 : index
    %c0_5 = arith.constant 0 : index
    %5 = vector.load %arg2[%c0_4, %c0_5] : memref<2048x512xbf16, #tpu.memory_space<vmem>>, vector<2048x512xbf16>
    %cst = arith.constant dense<0.000000e+00> : vector<32x512xf32>
    %6 = tpu.matmul %4, %5, %cst {dimension_numbers = #tpu.dot_dimension_numbers<[1], [0], [0], [1], [0, 0, 1, 1], [], []>} : vector<32x2048xbf16>, vector<2048x512xbf16>, vector<32x512xf32> -> vector<32x512xf32>
    %7 = arith.addf %3, %6 : vector<32x512xf32>
    %c0_6 = arith.constant 0 : index
    %c0_7 = arith.constant 0 : index
    %8 = vector.load %arg7[%c0_6, %c0_7] : memref<32x512xf32, #tpu.memory_space<vmem>>, vector<32x512xf32>
    tpu.vector_store %arg7[%c0_6, %c0_7], %7 {strides = array<i32>} : memref<32x512xf32, #tpu.memory_space<vmem>>, vector<32x512xf32>,
    %c1_i32 = arith.constant 1 : i32
    %9 = arith.cmpi eq, %arg0, %c1_i32 : i32
    %10 = arith.extui %9 : i1 to i32
    %c0_i32_8 = arith.constant 0 : i32
    %11 = arith.cmpi ne, %10, %c0_i32_8 : i32
    scf.if %11 {
      %c0_9 = arith.constant 0 : index
      %c0_10 = arith.constant 0 : index
      %12 = vector.load %arg7[%c0_9, %c0_10] : memref<32x512xf32, #tpu.memory_space<vmem>>, vector<32x512xf32>
      %c0_11 = arith.constant 0 : index
      %c0_12 = arith.constant 0 : index
      %13 = vector.load %arg3[%c0_11, %c0_12] : memref<1x512xf32, #tpu.memory_space<vmem>>, vector<1x512xf32>
      %c0_13 = arith.constant 0 : index
      %c0_14 = arith.constant 0 : index
      %14 = vector.load %arg4[%c0_13, %c0_14] : memref<1x512xf32, #tpu.memory_space<vmem>>, vector<1x512xf32>
      %cst_15 = arith.constant dense<0.000000e+00> : vector<512xf32>
      %15 = vector.multi_reduction <add>, %12, %cst_15 [0] : vector<32x512xf32> to vector<512xf32>
      %16 = vector.shape_cast %15 : vector<512xf32> to vector<1x512xf32>
      %cst_16 = arith.constant 3.125000e-02 : f32
      %17 = vector.broadcast %cst_16 : f32 to vector<1x512xf32>
      %18 = arith.mulf %16, %17 : vector<1x512xf32>
      %19 = arith.mulf %12, %12 : vector<32x512xf32>
      %cst_17 = arith.constant dense<0.000000e+00> : vector<512xf32>
      %20 = vector.multi_reduction <add>, %19, %cst_17 [0] : vector<32x512xf32> to vector<512xf32>
      %21 = vector.shape_cast %20 : vector<512xf32> to vector<1x512xf32>
      %cst_18 = arith.constant 3.125000e-02 : f32
      %22 = vector.broadcast %cst_18 : f32 to vector<1x512xf32>
      %23 = arith.mulf %21, %22 : vector<1x512xf32>
      %24 = arith.mulf %18, %18 : vector<1x512xf32>
      %25 = arith.subf %23, %24 : vector<1x512xf32>
      %cst_19 = arith.constant 0.000000e+00 : f32
      %26 = vector.broadcast %cst_19 : f32 to vector<1x512xf32>
      %27 = arith.maximumf %25, %26 : vector<1x512xf32>
      %cst_20 = arith.constant 9.99999974E-6 : f32
      %28 = vector.broadcast %cst_20 : f32 to vector<1x512xf32>
      %29 = arith.addf %27, %28 : vector<1x512xf32>
      %30 = math.rsqrt %29 : vector<1x512xf32>
      %31 = arith.mulf %13, %30 : vector<1x512xf32>
      %32 = arith.mulf %18, %31 : vector<1x512xf32>
      %33 = arith.subf %14, %32 : vector<1x512xf32>
      %34 = vector.broadcast %31 : vector<1x512xf32> to vector<32x512xf32>
      %35 = arith.mulf %12, %34 : vector<32x512xf32>
      %36 = vector.broadcast %33 : vector<1x512xf32> to vector<32x512xf32>
      %37 = arith.addf %35, %36 : vector<32x512xf32>
      %cst_21 = arith.constant 0.000000e+00 : f32
      %38 = vector.broadcast %cst_21 : f32 to vector<32x512xf32>
      %39 = arith.cmpf ogt, %37, %38 : vector<32x512xf32>
      %cst_22 = arith.constant 2.000000e-01 : f32
      %40 = vector.broadcast %cst_22 : f32 to vector<32x512xf32>
      %41 = arith.mulf %40, %37 : vector<32x512xf32>
      %42 = arith.select %39, %37, %41 : vector<32x512xi1>, vector<32x512xf32>
      %43 = vector.shape_cast %42 : vector<32x512xf32> to vector<2x16x512xf32>
      %c0_23 = arith.constant 0 : index
      %c0_24 = arith.constant 0 : index
      %44 = vector.load %arg5[%c0_23, %c0_24] : memref<16x512xf32, #tpu.memory_space<vmem>>, vector<16x512xf32>
      %45 = vector.shape_cast %44 : vector<16x512xf32> to vector<1x16x512xf32>
      %46 = vector.broadcast %45 : vector<1x16x512xf32> to vector<2x16x512xf32>
      %47 = arith.mulf %43, %46 : vector<2x16x512xf32>
      %cst_25 = arith.constant dense<0.000000e+00> : vector<2x512xf32>
      %48 = vector.multi_reduction <add>, %47, %cst_25 [1] : vector<2x16x512xf32> to vector<2x512xf32>
      %cst_26 = arith.constant dense<0.000000e+00> : vector<2xf32>
      %49 = vector.multi_reduction <add>, %48, %cst_26 [1] : vector<2x512xf32> to vector<2xf32>
      %50 = vector.shape_cast %49 : vector<2xf32> to vector<2x1xf32>
      %51 = arith.negf %50 : vector<2x1xf32>
      %52 = math.exp %51 : vector<2x1xf32>
      %cst_27 = arith.constant 1.000000e+00 : f32
      %53 = vector.broadcast %cst_27 : f32 to vector<2x1xf32>
      %54 = arith.addf %53, %52 : vector<2x1xf32>
      %55 = arith.divf %53, %54 : vector<2x1xf32>
      %c0_28 = arith.constant 0 : index
      %c0_29 = arith.constant 0 : index
      %56 = vector.load %arg6[%c0_28, %c0_29] : memref<2x1xf32, #tpu.memory_space<vmem>>, vector<2x1xf32>
      tpu.vector_store %arg6[%c0_28, %c0_29], %55 {strides = array<i32>} : memref<2x1xf32, #tpu.memory_space<vmem>>, vector<2x1xf32>,
    } else {
    }
    return
  }
  func.func @transform_0(%arg0: i32) -> (i32, i32) {
    %c0_i32 = arith.constant 0 : i32
    %c0_i32_0 = arith.constant 0 : i32
    return %c0_i32, %arg0 : i32, i32
  }
  func.func @transform_1(%arg0: i32) -> (i32, i32) {
    %c0_i32 = arith.constant 0 : i32
    %c0_i32_0 = arith.constant 0 : i32
    return %arg0, %c0_i32 : i32, i32
  }
  func.func @transform_2(%arg0: i32) -> (i32, i32) {
    %c0_i32 = arith.constant 0 : i32
    %c0_i32_0 = arith.constant 0 : i32
    %c0_i32_1 = arith.constant 0 : i32
    return %c0_i32, %c0_i32_0 : i32, i32
  }
  func.func @transform_3(%arg0: i32) -> (i32, i32) {
    %c0_i32 = arith.constant 0 : i32
    %c0_i32_0 = arith.constant 0 : i32
    %c0_i32_1 = arith.constant 0 : i32
    return %c0_i32, %c0_i32_0 : i32, i32
  }
  func.func @transform_4(%arg0: i32) -> (i32, i32) {
    %c0_i32 = arith.constant 0 : i32
    %c0_i32_0 = arith.constant 0 : i32
    %c0_i32_1 = arith.constant 0 : i32
    return %c0_i32, %c0_i32_0 : i32, i32
  }
  func.func @transform_5(%arg0: i32) -> (i32, i32) {
    %c0_i32 = arith.constant 0 : i32
    %c0_i32_0 = arith.constant 0 : i32
    %c0_i32_1 = arith.constant 0 : i32
    return %c0_i32, %c0_i32_0 : i32, i32
  }
}

</mosaic_0001>

<llo_original>
// kernel: cnn_discriminator_forward.3
$region0: #{cnn_discriminator_forward.3}
  #allocation0 [shape = 'u32[]', space=smem, size = 0x4, offset = 0x4, fixed_abs, tag = 'smem constant byte address 0x4 - core index']
  #allocation1 [shape = 'u32[144,128]{1,0:T(1,128)}', space=vmem, size = 0x12000, scoped, tag = 'internal scratch']
  %s0 = inlined_call_operand.vmem [shape: bf16[512,48], index: 0, kind: input, shape index: {}]
  %s1 = inlined_call_operand.vmem [shape: bf16[48,128], index: 1, kind: input, shape index: {}]
  %s2 = inlined_call_operand.vmem [shape: bf16[512,128], index: 2, kind: output, shape index: {}]
  %s3 = sld [smem:[#allocation0]]
  $region18: #{cnn_discriminator_forward.3} parent=0
    _
  %s5 = ssub.s32 1, %s3
  %s6 = scalar_select 0, %s5, %s3
  // Predicated region
  $region2: #{cnn_discriminator_forward.3} parent=0 // pred_check
    _
  $region3: #{cnn_discriminator_forward.3} parent=0 // pred_check_branch
    %8 = sbr.rel (0) target = $region5
  $region4: #{cnn_discriminator_forward.3} parent=0 // pred_region
    _
  $region5: #{cnn_discriminator_forward.3} parent=0 // pred_fallthru
    _
  // Predicated region
  $region6: #{cnn_discriminator_forward.3} parent=0 // pred_check
    _
  $region7: #{cnn_discriminator_forward.3} parent=0 // pred_check_branch
    %10 = sbr.rel (0) target = $region9
  $region8: #{cnn_discriminator_forward.3} parent=0 // pred_region
    _
  $region9: #{cnn_discriminator_forward.3} parent=0 // pred_fallthru
    _
  %v12 = vld [vmem:[%s0] sm:$0xf]
  %v13 = vld [vmem:[%s0 + $0x4] sm:$0xf]
  %v14 = vld [vmem:[%s0 + $0x8] sm:$0xf]
  %v15 = vld [vmem:[%s0 + $0xc] sm:$0xf]
  %v16 = vld [vmem:[%s0 + $0x10] sm:$0xf]
  %v17 = vld [vmem:[%s0 + $0x14] sm:$0xf]
  %v18 = vld [vmem:[%s0 + $0x18] sm:$0xf]
  %v19 = vld [vmem:[%s0 + $0x1c] sm:$0xf]
  %v20 = vld [vmem:[%s0 + $0x20] sm:$0xf]
  %v21 = vld [vmem:[%s0 + $0x24] sm:$0xf]
  %v22 = vld [vmem:[%s0 + $0x28] sm:$0xf]
  %v23 = vld [vmem:[%s0 + $0x2c] sm:$0xf]
  %v24 = vld [vmem:[%s0 + $0x30] sm:$0xf]
  %v25 = vld [vmem:[%s0 + $0x34] sm:$0xf]
  %v26 = vld [vmem:[%s0 + $0x38] sm:$0xf]
  %v27 = vld [vmem:[%s0 + $0x3c] sm:$0xf]
  %v28 = vld [vmem:[%s0 + $0x40] sm:$0xf]
  %v29 = vld [vmem:[%s0 + $0x44] sm:$0xf]
  %v30 = vld [vmem:[%s0 + $0x48] sm:$0xf]
  %v31 = vld [vmem:[%s0 + $0x4c] sm:$0xf]
  %v32 = vld [vmem:[%s0 + $0x50] sm:$0xf]
  %v33 = vld [vmem:[%s0 + $0x54] sm:$0xf]
  %v34 = vld [vmem:[%s0 + $0x58] sm:$0xf]
  %v35 = vld [vmem:[%s0 + $0x5c] sm:$0xf]
  %v36 = vld [vmem:[%s0 + $0x60] sm:$0xf]
  %v37 = vld [vmem:[%s0 + $0x64] sm:$0xf]
  %v38 = vld [vmem:[%s0 + $0x68] sm:$0xf]
  %v39 = vld [vmem:[%s0 + $0x6c] sm:$0xf]
  %v40 = vld [vmem:[%s0 + $0x70] sm:$0xf]
  %v41 = vld [vmem:[%s0 + $0x74] sm:$0xf]
  %v42 = vld [vmem:[%s0 + $0x78] sm:$0xf]
  %v43 = vld [vmem:[%s0 + $0x7c] sm:$0xf]
  %v44 = vld [vmem:[%s0 + $0x80] sm:$0xf]
  %v45 = vld [vmem:[%s0 + $0x84] sm:$0xf]
  %v46 = vld [vmem:[%s0 + $0x88] sm:$0xf]
  %v47 = vld [vmem:[%s0 + $0x8c] sm:$0xf]
  %v48 = vld [vmem:[%s0 + $0x90] sm:$0xf]
  %v49 = vld [vmem:[%s0 + $0x94] sm:$0xf]
  %v50 = vld [vmem:[%s0 + $0x98] sm:$0xf]
  %v51 = vld [vmem:[%s0 + $0x9c] sm:$0xf]
  %v52 = vld [vmem:[%s0 + $0xa0] sm:$0xf]
  %v53 = vld [vmem:[%s0 + $0xa4] sm:$0xf]
  %v54 = vld [vmem:[%s0 + $0xa8] sm:$0xf]
  %v55 = vld [vmem:[%s0 + $0xac] sm:$0xf]
  %v56 = vld [vmem:[%s0 + $0xb0] sm:$0xf]
  %v57 = vld [vmem:[%s0 + $0xb4] sm:$0xf]
  %v58 = vld [vmem:[%s0 + $0xb8] sm:$0xf]
  %v59 = vld [vmem:[%s0 + $0xbc] sm:$0xf]
  %v60 = vld [vmem:[%s0 + $0xc0] sm:$0xf]
  %v61 = vld [vmem:[%s0 + $0xc4] sm:$0xf]
  %v62 = vld [vmem:[%s0 + $0xc8] sm:$0xf]
  %v63 = vld [vmem:[%s0 + $0xcc] sm:$0xf]
  %v64 = vld [vmem:[%s0 + $0xd0] sm:$0xf]
  %v65 = vld [vmem:[%s0 + $0xd4] sm:$0xf]
  %v66 = vld [vmem:[%s0 + $0xd8] sm:$0xf]
  %v67 = vld [vmem:[%s0 + $0xdc] sm:$0xf]
  %v68 = vld [vmem:[%s0 + $0xe0] sm:$0xf]
  %v69 = vld [vmem:[%s0 + $0xe4] sm:$0xf]
  %v70 = vld [vmem:[%s0 + $0xe8] sm:$0xf]
  %v71 = vld [vmem:[%s0 + $0xec] sm:$0xf]
  %v72 = vld [vmem:[%s0 + $0xf0] sm:$0xf]
  %v73 = vld [vmem:[%s0 + $0xf4] sm:$0xf]
  %v74 = vld [vmem:[%s0 + $0xf8] sm:$0xf]
  %v75 = vld [vmem:[%s0 + $0xfc] sm:$0xf]
  %v76 = vld [vmem:[%s1] sm:$0xf]
  %v77 = vld [vmem:[%s1 + $0x4] sm:$0xf]
  %v78 = vld [vmem:[%s1 + $0x8] sm:$0xf]
  %v79 = vld [vmem:[%s1 + $0xc] sm:$0xf]
  %v80 = vld [vmem:[%s1 + $0x10] sm:$0xf]
  %v81 = vld [vmem:[%s1 + $0x14] sm:$0xf]
  %v146 = vunpack.c.l.b16 %v12
  %v147 = vunpack.c.l.b16 %v13
  %v148 = vunpack.c.l.b16 %v14
  %v149 = vunpack.c.l.b16 %v15
  %v150 = vunpack.c.l.b16 %v16
  %v151 = vunpack.c.l.b16 %v17
  %v152 = vunpack.c.l.b16 %v18
  %v153 = vunpack.c.l.b16 %v19
  %v154 = vunpack.c.l.b16 %v20
  %v155 = vunpack.c.l.b16 %v21
  %v156 = vunpack.c.l.b16 %v22
  %v157 = vunpack.c.l.b16 %v23
  %v158 = vunpack.c.l.b16 %v24
  %v159 = vunpack.c.l.b16 %v25
  %v160 = vunpack.c.l.b16 %v26
  %v161 = vunpack.c.l.b16 %v27
  %v162 = vunpack.c.l.b16 %v28
  %v163 = vunpack.c.l.b16 %v29
  %v164 = vunpack.c.l.b16 %v30
  %v165 = vunpack.c.l.b16 %v31
  %v166 = vunpack.c.l.b16 %v32
  %v167 = vunpack.c.l.b16 %v33
  %v168 = vunpack.c.l.b16 %v34
  %v169 = vunpack.c.l.b16 %v35
  %v170 = vunpack.c.l.b16 %v36
  %v171 = vunpack.c.l.b16 %v37
  %v172 = vunpack.c.l.b16 %v38
  %v173 = vunpack.c.l.b16 %v39
  %v174 = vunpack.c.l.b16 %v40
  %v175 = vunpack.c.l.b16 %v41
  %v176 = vunpack.c.l.b16 %v42
  %v177 = vunpack.c.l.b16 %v43
  %v178 = vunpack.c.l.b16 %v44
  %v179 = vunpack.c.l.b16 %v45
  %v180 = vunpack.c.l.b16 %v46
  %v181 = vunpack.c.l.b16 %v47
  %v182 = vunpack.c.l.b16 %v48
  %v183 = vunpack.c.l.b16 %v49
  %v184 = vunpack.c.l.b16 %v50
  %v185 = vunpack.c.l.b16 %v51
  %v186 = vunpack.c.l.b16 %v52
  %v187 = vunpack.c.l.b16 %v53
  %v188 = vunpack.c.l.b16 %v54
  %v189 = vunpack.c.l.b16 %v55
  %v190 = vunpack.c.l.b16 %v56
  %v191 = vunpack.c.l.b16 %v57
  %v192 = vunpack.c.l.b16 %v58
  %v193 = vunpack.c.l.b16 %v59
  %v194 = vunpack.c.l.b16 %v60
  %v195 = vunpack.c.l.b16 %v61
  %v196 = vunpack.c.l.b16 %v62
  %v197 = vunpack.c.l.b16 %v63
  %v198 = vunpack.c.l.b16 %v64
  %v199 = vunpack.c.l.b16 %v65
  %v200 = vunpack.c.l.b16 %v66
  %v201 = vunpack.c.l.b16 %v67
  %v202 = vunpack.c.l.b16 %v68
  %v203 = vunpack.c.l.b16 %v69
  %v204 = vunpack.c.l.b16 %v70
  %v205 = vunpack.c.l.b16 %v71
  %v206 = vunpack.c.l.b16 %v72
  %v207 = vunpack.c.l.b16 %v73
  %v208 = vunpack.c.l.b16 %v74
  %v209 = vunpack.c.l.b16 %v75
  %v210 = vpack.c.b16 %v147, %v146
  %v211 = vpack.c.b16 %v149, %v148
  %v212 = vpack.c.b16 %v151, %v150
  %v213 = vpack.c.b16 %v153, %v152
  %v214 = vpack.c.b16 %v155, %v154
  %v215 = vpack.c.b16 %v157, %v156
  %v216 = vpack.c.b16 %v159, %v158
  %v217 = vpack.c.b16 %v161, %v160
  %v218 = vpack.c.b16 %v163, %v162
  %v219 = vpack.c.b16 %v165, %v164
  %v220 = vpack.c.b16 %v167, %v166
  %v221 = vpack.c.b16 %v169, %v168
  %v222 = vpack.c.b16 %v171, %v170
  %v223 = vpack.c.b16 %v173, %v172
  %v224 = vpack.c.b16 %v175, %v174
  %v225 = vpack.c.b16 %v177, %v176
  %v226 = vpack.c.b16 %v179, %v178
  %v227 = vpack.c.b16 %v181, %v180
  %v228 = vpack.c.b16 %v183, %v182
  %v229 = vpack.c.b16 %v185, %v184
  %v230 = vpack.c.b16 %v187, %v186
  %v231 = vpack.c.b16 %v189, %v188
  %v232 = vpack.c.b16 %v191, %v190
  %v233 = vpack.c.b16 %v193, %v192
  %v234 = vpack.c.b16 %v195, %v194
  %v235 = vpack.c.b16 %v197, %v196
  %v236 = vpack.c.b16 %v199, %v198
  %v237 = vpack.c.b16 %v201, %v200
  %v238 = vpack.c.b16 %v203, %v202
  %v239 = vpack.c.b16 %v205, %v204
  %v240 = vpack.c.b16 %v207, %v206
  %v241 = vpack.c.b16 %v209, %v208
  %v248 = vunpack.c.l.b16 %v76
  %v249 = vunpack.c.l.b16 %v77
  %v250 = vunpack.c.l.b16 %v78
  %v251 = vunpack.c.l.b16 %v79
  %v252 = vunpack.c.l.b16 %v80
  %v253 = vunpack.c.l.b16 %v81
  %v254 = vpack.c.b16 %v249, %v248
  %v255 = vpack.c.b16 %v251, %v250
  %v256 = vpack.c.b16 %v253, %v252
  %vm260 = vcmask 392192
  %v262 = vsel %vm260, %v210, 0
  %v265 = vsel %vm260, %v211, 0
  %v268 = vsel %vm260, %v212, 0
  %v271 = vsel %vm260, %v213, 0
  %v274 = vsel %vm260, %v214, 0
  %v277 = vsel %vm260, %v215, 0
  %v280 = vsel %vm260, %v216, 0
  %v283 = vsel %vm260, %v217, 0
  %v286 = vsel %vm260, %v218, 0
  %v289 = vsel %vm260, %v219, 0
  %v292 = vsel %vm260, %v220, 0
  %v295 = vsel %vm260, %v221, 0
  %v298 = vsel %vm260, %v222, 0
  %v301 = vsel %vm260, %v223, 0
  %v304 = vsel %vm260, %v224, 0
  %v307 = vsel %vm260, %v225, 0
  %v310 = vsel %vm260, %v226, 0
  %v313 = vsel %vm260, %v227, 0
  %v316 = vsel %vm260, %v228, 0
  %v319 = vsel %vm260, %v229, 0
  %v322 = vsel %vm260, %v230, 0
  %v325 = vsel %vm260, %v231, 0
  %v328 = vsel %vm260, %v232, 0
  %v331 = vsel %vm260, %v233, 0
  %v334 = vsel %vm260, %v234, 0
  %v337 = vsel %vm260, %v235, 0
  %v340 = vsel %vm260, %v236, 0
  %v343 = vsel %vm260, %v237, 0
  %v346 = vsel %vm260, %v238, 0
  %v349 = vsel %vm260, %v239, 0
  %v352 = vsel %vm260, %v240, 0
  %v355 = vsel %vm260, %v241, 0
  %357 = vmatprep.subr.bf16.mxu0 0
  %358 = vmatpush1.bf16.msra.mxu0 %v254
  %359 = vmatprep.subr.bf16.mxu0 0
  %360 = vmatpush1.bf16.msra.mxu0 %v255
  %361 = vmatprep.subr.bf16.mxu0 0
  %362 = vmatpush1.bf16.msra.mxu0 %v256
  %363 = vmatprep.subr.bf16.mxu0 0
  %364 = vmatpush1.bf16.msra.mxu0 0
  %365 = vmatprep.subr.bf16.mxu0 0
  %366 = vmatpush1.bf16.msra.mxu0 0
  %367 = vmatprep.subr.bf16.mxu0 0
  %368 = vmatpush1.bf16.msra.mxu0 0
  %369 = vmatprep.subr.bf16.mxu0 0
  %370 = vmatpush1.bf16.msra.mxu0 0
  %371 = vmatprep.subr.bf16.mxu0 0
  %372 = vmatpush1.bf16.msra.mxu0 0
  %373 = vmatprep.subr.bf16.mxu0 0
  %374 = vmatpush1.bf16.msra.mxu0 0
  %375 = vmatprep.subr.bf16.mxu0 0
  %376 = vmatpush1.bf16.msra.mxu0 0
  %377 = vmatprep.subr.bf16.mxu0 0
  %378 = vmatpush1.bf16.msra.mxu0 0
  %379 = vmatprep.subr.bf16.mxu0 0
  %380 = vmatpush1.bf16.msra.mxu0 0
  %381 = vmatprep.subr.bf16.mxu0 0
  %382 = vmatpush1.bf16.msra.mxu0 0
  %383 = vmatprep.subr.bf16.mxu0 0
  %384 = vmatpush1.bf16.msra.mxu0 0
  %385 = vmatprep.subr.bf16.mxu0 0
  %386 = vmatpush1.bf16.msra.mxu0 0
  %387 = vmatprep.subr.bf16.mxu0 0
  %388 = vmatpush1.bf16.msra.mxu0 0
  %389 = vmatprep.mubr.bf16.mxu0 0
  %390 = vmatmul.mubr.bf16.gmra.mrb[0].mxu0 %v262
  %v391 = vpop.f32.mrb[0].mxu0
  %v392 = vadd.f32 0.0, %v391
  %v393 = vpop.f32.mrb[0].mxu0
  %v394 = vpop.f32.mrb[0].mxu0
  %v395 = vadd.f32 0.0, %v394
  %v396 = vpop.f32.mrb[0].mxu0
  %397 = vmatprep.mubr.bf16.mxu0 0
  %398 = vmatmul.mubr.bf16.gmra.mrb[0].mxu0 %v265
  %v399 = vpop.f32.mrb[0].mxu0
  %v400 = vadd.f32 0.0, %v399
  %v401 = vpop.f32.mrb[0].mxu0
  %v402 = vpop.f32.mrb[0].mxu0
  %v403 = vadd.f32 0.0, %v402
  %v404 = vpop.f32.mrb[0].mxu0
  %405 = vmatprep.mubr.bf16.mxu0 0
  %406 = vmatmul.mubr.bf16.gmra.mrb[0].mxu0 %v268
  %v407 = vpop.f32.mrb[0].mxu0
  %v408 = vadd.f32 0.0, %v407
  %v409 = vpop.f32.mrb[0].mxu0
  %v410 = vpop.f32.mrb[0].mxu0
  %v411 = vadd.f32 0.0, %v410
  %v412 = vpop.f32.mrb[0].mxu0
  %413 = vmatprep.mubr.bf16.mxu0 0
  %414 = vmatmul.mubr.bf16.gmra.mrb[0].mxu0 %v271
  %v415 = vpop.f32.mrb[0].mxu0
  %v416 = vadd.f32 0.0, %v415
  %v417 = vpop.f32.mrb[0].mxu0
  %v418 = vpop.f32.mrb[0].mxu0
  %v419 = vadd.f32 0.0, %v418
  %v420 = vpop.f32.mrb[0].mxu0
  %421 = vmatprep.mubr.bf16.mxu0 0
  %422 = vmatmul.mubr.bf16.gmra.mrb[0].mxu0 %v274
  %v423 = vpop.f32.mrb[0].mxu0
  %v424 = vadd.f32 0.0, %v423
  %v425 = vpop.f32.mrb[0].mxu0
  %v426 = vpop.f32.mrb[0].mxu0
  %v427 = vadd.f32 0.0, %v426
  %v428 = vpop.f32.mrb[0].mxu0
  %429 = vmatprep.mubr.bf16.mxu0 0
  %430 = vmatmul.mubr.bf16.gmra.mrb[0].mxu0 %v277
  %v431 = vpop.f32.mrb[0].mxu0
  %v432 = vadd.f32 0.0, %v431
  %v433 = vpop.f32.mrb[0].mxu0
  %v434 = vpop.f32.mrb[0].mxu0
  %v435 = vadd.f32 0.0, %v434
  %v436 = vpop.f32.mrb[0].mxu0
  %437 = vmatprep.mubr.bf16.mxu0 0
  %438 = vmatmul.mubr.bf16.gmra.mrb[0].mxu0 %v280
  %v439 = vpop.f32.mrb[0].mxu0
  %v440 = vadd.f32 0.0, %v439
  %v441 = vpop.f32.mrb[0].mxu0
  %v442 = vpop.f32.mrb[0].mxu0
  %v443 = vadd.f32 0.0, %v442
  %v444 = vpop.f32.mrb[0].mxu0
  %445 = vmatprep.mubr.bf16.mxu0 0
  %446 = vmatmul.mubr.bf16.gmra.mrb[0].mxu0 %v283
  %v447 = vpop.f32.mrb[0].mxu0
  %v448 = vadd.f32 0.0, %v447
  %v449 = vpop.f32.mrb[0].mxu0
  %v450 = vpop.f32.mrb[0].mxu0
  %v451 = vadd.f32 0.0, %v450
  %v452 = vpop.f32.mrb[0].mxu0
  %453 = vmatprep.mubr.bf16.mxu0 0
  %454 = vmatmul.mubr.bf16.gmra.mrb[0].mxu0 %v286
  %v455 = vpop.f32.mrb[0].mxu0
  %v456 = vadd.f32 0.0, %v455
  %v457 = vpop.f32.mrb[0].mxu0
  %v458 = vpop.f32.mrb[0].mxu0
  %v459 = vadd.f32 0.0, %v458
  %v460 = vpop.f32.mrb[0].mxu0
  %461 = vmatprep.mubr.bf16.mxu0 0
  %462 = vmatmul.mubr.bf16.gmra.mrb[0].mxu0 %v289
  %v463 = vpop.f32.mrb[0].mxu0
  %v464 = vadd.f32 0.0, %v463
  %v465 = vpop.f32.mrb[0].mxu0
  %v466 = vpop.f32.mrb[0].mxu0
  %v467 = vadd.f32 0.0, %v466
  %v468 = vpop.f32.mrb[0].mxu0
  %469 = vmatprep.mubr.bf16.mxu0 0
  %470 = vmatmul.mubr.bf16.gmra.mrb[0].mxu0 %v292
  %v471 = vpop.f32.mrb[0].mxu0
  %v472 = vadd.f32 0.0, %v471
  %v473 = vpop.f32.mrb[0].mxu0
  %v474 = vpop.f32.mrb[0].mxu0
  %v475 = vadd.f32 0.0, %v474
  %v476 = vpop.f32.mrb[0].mxu0
  %477 = vmatprep.mubr.bf16.mxu0 0
  %478 = vmatmul.mubr.bf16.gmra.mrb[0].mxu0 %v295
  %v479 = vpop.f32.mrb[0].mxu0
  %v480 = vadd.f32 0.0, %v479
  %v481 = vpop.f32.mrb[0].mxu0
  %v482 = vpop.f32.mrb[0].mxu0
  %v483 = vadd.f32 0.0, %v482
  %v484 = vpop.f32.mrb[0].mxu0
  %485 = vmatprep.mubr.bf16.mxu0 0
  %486 = vmatmul.mubr.bf16.gmra.mrb[0].mxu0 %v298
  %v487 = vpop.f32.mrb[0].mxu0
  %v488 = vadd.f32 0.0, %v487
  %v489 = vpop.f32.mrb[0].mxu0
  %v490 = vpop.f32.mrb[0].mxu0
  %v491 = vadd.f32 0.0, %v490
  %v492 = vpop.f32.mrb[0].mxu0
  %493 = vmatprep.mubr.bf16.mxu0 0
  %494 = vmatmul.mubr.bf16.gmra.mrb[0].mxu0 %v301
  %v495 = vpop.f32.mrb[0].mxu0
  %v496 = vadd.f32 0.0, %v495
  %v497 = vpop.f32.mrb[0].mxu0
  %v498 = vpop.f32.mrb[0].mxu0
  %v499 = vadd.f32 0.0, %v498
  %v500 = vpop.f32.mrb[0].mxu0
  %501 = vmatprep.mubr.bf16.mxu0 0
  %502 = vmatmul.mubr.bf16.gmra.mrb[0].mxu0 %v304
  %v503 = vpop.f32.mrb[0].mxu0
  %v504 = vadd.f32 0.0, %v503
  %v505 = vpop.f32.mrb[0].mxu0
  %v506 = vpop.f32.mrb[0].mxu0
  %v507 = vadd.f32 0.0, %v506
  %v508 = vpop.f32.mrb[0].mxu0
  %509 = vmatprep.mubr.bf16.mxu0 0
  %510 = vmatmul.mubr.bf16.gmra.mrb[0].mxu0 %v307
  %v511 = vpop.f32.mrb[0].mxu0
  %v512 = vadd.f32 0.0, %v511
  %v513 = vpop.f32.mrb[0].mxu0
  %v514 = vpop.f32.mrb[0].mxu0
  %v515 = vadd.f32 0.0, %v514
  %v516 = vpop.f32.mrb[0].mxu0
  %517 = vmatprep.mubr.bf16.mxu0 0
  %518 = vmatmul.mubr.bf16.gmra.mrb[0].mxu0 %v310
  %v519 = vpop.f32.mrb[0].mxu0
  %v520 = vadd.f32 0.0, %v519
  %v521 = vpop.f32.mrb[0].mxu0
  %v522 = vpop.f32.mrb[0].mxu0
  %v523 = vadd.f32 0.0, %v522
  %v524 = vpop.f32.mrb[0].mxu0
  %525 = vmatprep.mubr.bf16.mxu0 0
  %526 = vmatmul.mubr.bf16.gmra.mrb[0].mxu0 %v313
  %v527 = vpop.f32.mrb[0].mxu0
  %v528 = vadd.f32 0.0, %v527
  %v529 = vpop.f32.mrb[0].mxu0
  %v530 = vpop.f32.mrb[0].mxu0
  %v531 = vadd.f32 0.0, %v530
  %v532 = vpop.f32.mrb[0].mxu0
  %533 = vmatprep.mubr.bf16.mxu0 0
  %534 = vmatmul.mubr.bf16.gmra.mrb[0].mxu0 %v316
  %v535 = vpop.f32.mrb[0].mxu0
  %v536 = vadd.f32 0.0, %v535
  %v537 = vpop.f32.mrb[0].mxu0
  %v538 = vpop.f32.mrb[0].mxu0
  %v539 = vadd.f32 0.0, %v538
  %v540 = vpop.f32.mrb[0].mxu0
  %541 = vmatprep.mubr.bf16.mxu0 0
  %542 = vmatmul.mubr.bf16.gmra.mrb[0].mxu0 %v319
  %v543 = vpop.f32.mrb[0].mxu0
  %v544 = vadd.f32 0.0, %v543
  %v545 = vpop.f32.mrb[0].mxu0
  %v546 = vpop.f32.mrb[0].mxu0
  %v547 = vadd.f32 0.0, %v546
  %v548 = vpop.f32.mrb[0].mxu0
  %549 = vmatprep.mubr.bf16.mxu0 0
  %550 = vmatmul.mubr.bf16.gmra.mrb[0].mxu0 %v322
  %v551 = vpop.f32.mrb[0].mxu0
  %v552 = vadd.f32 0.0, %v551
  %v553 = vpop.f32.mrb[0].mxu0
  %v554 = vpop.f32.mrb[0].mxu0
  %v555 = vadd.f32 0.0, %v554
  %v556 = vpop.f32.mrb[0].mxu0
  %557 = vmatprep.mubr.bf16.mxu0 0
  %558 = vmatmul.mubr.bf16.gmra.mrb[0].mxu0 %v325
  %v559 = vpop.f32.mrb[0].mxu0
  %v560 = vadd.f32 0.0, %v559
  %v561 = vpop.f32.mrb[0].mxu0
  %v562 = vpop.f32.mrb[0].mxu0
  %v563 = vadd.f32 0.0, %v562
  %v564 = vpop.f32.mrb[0].mxu0
  %565 = vmatprep.mubr.bf16.mxu0 0
  %566 = vmatmul.mubr.bf16.gmra.mrb[0].mxu0 %v328
  %v567 = vpop.f32.mrb[0].mxu0
  %v568 = vadd.f32 0.0, %v567
  %v569 = vpop.f32.mrb[0].mxu0
  %v570 = vpop.f32.mrb[0].mxu0
  %v571 = vadd.f32 0.0, %v570
  %v572 = vpop.f32.mrb[0].mxu0
  %573 = vmatprep.mubr.bf16.mxu0 0
  %574 = vmatmul.mubr.bf16.gmra.mrb[0].mxu0 %v331
  %v575 = vpop.f32.mrb[0].mxu0
  %v576 = vadd.f32 0.0, %v575
  %v577 = vpop.f32.mrb[0].mxu0
  %v578 = vpop.f32.mrb[0].mxu0
  %v579 = vadd.f32 0.0, %v578
  %v580 = vpop.f32.mrb[0].mxu0
  %581 = vmatprep.mubr.bf16.mxu0 0
  %582 = vmatmul.mubr.bf16.gmra.mrb[0].mxu0 %v334
  %v583 = vpop.f32.mrb[0].mxu0
  %v584 = vadd.f32 0.0, %v583
  %v585 = vpop.f32.mrb[0].mxu0
  %v586 = vpop.f32.mrb[0].mxu0
  %v587 = vadd.f32 0.0, %v586
  %v588 = vpop.f32.mrb[0].mxu0
  %589 = vmatprep.mubr.bf16.mxu0 0
  %590 = vmatmul.mubr.bf16.gmra.mrb[0].mxu0 %v337
  %v591 = vpop.f32.mrb[0].mxu0
  %v592 = vadd.f32 0.0, %v591
  %v593 = vpop.f32.mrb[0].mxu0
  %v594 = vpop.f32.mrb[0].mxu0
  %v595 = vadd.f32 0.0, %v594
  %v596 = vpop.f32.mrb[0].mxu0
  %597 = vmatprep.mubr.bf16.mxu0 0
  %598 = vmatmul.mubr.bf16.gmra.mrb[0].mxu0 %v340
  %v599 = vpop.f32.mrb[0].mxu0
  %v600 = vadd.f32 0.0, %v599
  %v601 = vpop.f32.mrb[0].mxu0
  %v602 = vpop.f32.mrb[0].mxu0
  %v603 = vadd.f32 0.0, %v602
  %v604 = vpop.f32.mrb[0].mxu0
  %605 = vmatprep.mubr.bf16.mxu0 0
  %606 = vmatmul.mubr.bf16.gmra.mrb[0].mxu0 %v343
  %v607 = vpop.f32.mrb[0].mxu0
  %v608 = vadd.f32 0.0, %v607
  %v609 = vpop.f32.mrb[0].mxu0
  %v610 = vpop.f32.mrb[0].mxu0
  %v611 = vadd.f32 0.0, %v610
  %v612 = vpop.f32.mrb[0].mxu0
  %613 = vmatprep.mubr.bf16.mxu0 0
  %614 = vmatmul.mubr.bf16.gmra.mrb[0].mxu0 %v346
  %v615 = vpop.f32.mrb[0].mxu0
  %v616 = vadd.f32 0.0, %v615
  %v617 = vpop.f32.mrb[0].mxu0
  %v618 = vpop.f32.mrb[0].mxu0
  %v619 = vadd.f32 0.0, %v618
  %v620 = vpop.f32.mrb[0].mxu0
  %621 = vmatprep.mubr.bf16.mxu0 0
  %622 = vmatmul.mubr.bf16.gmra.mrb[0].mxu0 %v349
  %v623 = vpop.f32.mrb[0].mxu0
  %v624 = vadd.f32 0.0, %v623
  %v625 = vpop.f32.mrb[0].mxu0
  %v626 = vpop.f32.mrb[0].mxu0
  %v627 = vadd.f32 0.0, %v626
  %v628 = vpop.f32.mrb[0].mxu0
  %629 = vmatprep.mubr.bf16.mxu0 0
  %630 = vmatmul.mubr.bf16.gmra.mrb[0].mxu0 %v352
  %v631 = vpop.f32.mrb[0].mxu0
  %v632 = vadd.f32 0.0, %v631
  %v633 = vpop.f32.mrb[0].mxu0
  %v634 = vpop.f32.mrb[0].mxu0
  %v635 = vadd.f32 0.0, %v634
  %v636 = vpop.f32.mrb[0].mxu0
  %637 = vmatprep.mubr.bf16.mxu0 0
  %638 = vmatmul.mubr.bf16.gmra.mrb[0].mxu0 %v355
  %v639 = vpop.f32.mrb[0].mxu0
  %v640 = vadd.f32 0.0, %v639
  %v641 = vpop.f32.mrb[0].mxu0
  %v642 = vpop.f32.mrb[0].mxu0
  %v643 = vadd.f32 0.0, %v642
  %v644 = vpop.f32.mrb[0].mxu0
  %645 = vdwg.mxu0
  %vm646 = vcmp.gt.f32.partialorder %v392, 0.0
  %vm647 = vcmp.gt.f32.partialorder %v395, 0.0
  %vm648 = vcmp.gt.f32.partialorder %v400, 0.0
  %vm649 = vcmp.gt.f32.partialorder %v403, 0.0
  %vm650 = vcmp.gt.f32.partialorder %v408, 0.0
  %vm651 = vcmp.gt.f32.partialorder %v411, 0.0
  %vm652 = vcmp.gt.f32.partialorder %v416, 0.0
  %vm653 = vcmp.gt.f32.partialorder %v419, 0.0
  %vm654 = vcmp.gt.f32.partialorder %v424, 0.0
  %vm655 = vcmp.gt.f32.partialorder %v427, 0.0
  %vm656 = vcmp.gt.f32.partialorder %v432, 0.0
  %vm657 = vcmp.gt.f32.partialorder %v435, 0.0
  %vm658 = vcmp.gt.f32.partialorder %v440, 0.0
  %vm659 = vcmp.gt.f32.partialorder %v443, 0.0
  %vm660 = vcmp.gt.f32.partialorder %v448, 0.0
  %vm661 = vcmp.gt.f32.partialorder %v451, 0.0
  %vm662 = vcmp.gt.f32.partialorder %v456, 0.0
  %vm663 = vcmp.gt.f32.partialorder %v459, 0.0
  %vm664 = vcmp.gt.f32.partialorder %v464, 0.0
  %vm665 = vcmp.gt.f32.partialorder %v467, 0.0
  %vm666 = vcmp.gt.f32.partialorder %v472, 0.0
  %vm667 = vcmp.gt.f32.partialorder %v475, 0.0
  %vm668 = vcmp.gt.f32.partialorder %v480, 0.0
  %vm669 = vcmp.gt.f32.partialorder %v483, 0.0
  %vm670 = vcmp.gt.f32.partialorder %v488, 0.0
  %vm671 = vcmp.gt.f32.partialorder %v491, 0.0
  %vm672 = vcmp.gt.f32.partialorder %v496, 0.0
  %vm673 = vcmp.gt.f32.partialorder %v499, 0.0
  %vm674 = vcmp.gt.f32.partialorder %v504, 0.0
  %vm675 = vcmp.gt.f32.partialorder %v507, 0.0
  %vm676 = vcmp.gt.f32.partialorder %v512, 0.0
  %vm677 = vcmp.gt.f32.partialorder %v515, 0.0
  %vm678 = vcmp.gt.f32.partialorder %v520, 0.0
  %vm679 = vcmp.gt.f32.partialorder %v523, 0.0
  %vm680 = vcmp.gt.f32.partialorder %v528, 0.0
  %vm681 = vcmp.gt.f32.partialorder %v531, 0.0
  %vm682 = vcmp.gt.f32.partialorder %v536, 0.0
  %vm683 = vcmp.gt.f32.partialorder %v539, 0.0
  %vm684 = vcmp.gt.f32.partialorder %v544, 0.0
  %vm685 = vcmp.gt.f32.partialorder %v547, 0.0
  %vm686 = vcmp.gt.f32.partialorder %v552, 0.0
  %vm687 = vcmp.gt.f32.partialorder %v555, 0.0
  %vm688 = vcmp.gt.f32.partialorder %v560, 0.0
  %vm689 = vcmp.gt.f32.partialorder %v563, 0.0
  %vm690 = vcmp.gt.f32.partialorder %v568, 0.0
  %vm691 = vcmp.gt.f32.partialorder %v571, 0.0
  %vm692 = vcmp.gt.f32.partialorder %v576, 0.0
  %vm693 = vcmp.gt.f32.partialorder %v579, 0.0
  %vm694 = vcmp.gt.f32.partialorder %v584, 0.0
  %vm695 = vcmp.gt.f32.partialorder %v587, 0.0
  %vm696 = vcmp.gt.f32.partialorder %v592, 0.0
  %vm697 = vcmp.gt.f32.partialorder %v595, 0.0
  %vm698 = vcmp.gt.f32.partialorder %v600, 0.0
  %vm699 = vcmp.gt.f32.partialorder %v603, 0.0
  %vm700 = vcmp.gt.f32.partialorder %v608, 0.0
  %vm701 = vcmp.gt.f32.partialorder %v611, 0.0
  %vm702 = vcmp.gt.f32.partialorder %v616, 0.0
  %vm703 = vcmp.gt.f32.partialorder %v619, 0.0
  %vm704 = vcmp.gt.f32.partialorder %v624, 0.0
  %vm705 = vcmp.gt.f32.partialorder %v627, 0.0
  %vm706 = vcmp.gt.f32.partialorder %v632, 0.0
  %vm707 = vcmp.gt.f32.partialorder %v635, 0.0
  %vm708 = vcmp.gt.f32.partialorder %v640, 0.0
  %vm709 = vcmp.gt.f32.partialorder %v643, 0.0
  %v710 = vmul.f32 %v392, 0.2
  %v711 = vmul.f32 %v395, 0.2
  %v712 = vmul.f32 %v400, 0.2
  %v713 = vmul.f32 %v403, 0.2
  %v714 = vmul.f32 %v408, 0.2
  %v715 = vmul.f32 %v411, 0.2
  %v716 = vmul.f32 %v416, 0.2
  %v717 = vmul.f32 %v419, 0.2
  %v718 = vmul.f32 %v424, 0.2
  %v719 = vmul.f32 %v427, 0.2
  %v720 = vmul.f32 %v432, 0.2
  %v721 = vmul.f32 %v435, 0.2
  %v722 = vmul.f32 %v440, 0.2
  %v723 = vmul.f32 %v443, 0.2
  %v724 = vmul.f32 %v448, 0.2
  %v725 = vmul.f32 %v451, 0.2
  %v726 = vmul.f32 %v456, 0.2
  %v727 = vmul.f32 %v459, 0.2
  %v728 = vmul.f32 %v464, 0.2
  %v729 = vmul.f32 %v467, 0.2
  %v730 = vmul.f32 %v472, 0.2
  %v731 = vmul.f32 %v475, 0.2
  %v732 = vmul.f32 %v480, 0.2
  %v733 = vmul.f32 %v483, 0.2
  %v734 = vmul.f32 %v488, 0.2
  %v735 = vmul.f32 %v491, 0.2
  %v736 = vmul.f32 %v496, 0.2
  %v737 = vmul.f32 %v499, 0.2
  %v738 = vmul.f32 %v504, 0.2
  %v739 = vmul.f32 %v507, 0.2
  %v740 = vmul.f32 %v512, 0.2
  %v741 = vmul.f32 %v515, 0.2
  %v742 = vmul.f32 %v520, 0.2
  %v743 = vmul.f32 %v523, 0.2
  %v744 = vmul.f32 %v528, 0.2
  %v745 = vmul.f32 %v531, 0.2
  %v746 = vmul.f32 %v536, 0.2
  %v747 = vmul.f32 %v539, 0.2
  %v748 = vmul.f32 %v544, 0.2
  %v749 = vmul.f32 %v547, 0.2
  %v750 = vmul.f32 %v552, 0.2
  %v751 = vmul.f32 %v555, 0.2
  %v752 = vmul.f32 %v560, 0.2
  %v753 = vmul.f32 %v563, 0.2
  %v754 = vmul.f32 %v568, 0.2
  %v755 = vmul.f32 %v571, 0.2
  %v756 = vmul.f32 %v576, 0.2
  %v757 = vmul.f32 %v579, 0.2
  %v758 = vmul.f32 %v584, 0.2
  %v759 = vmul.f32 %v587, 0.2
  %v760 = vmul.f32 %v592, 0.2
  %v761 = vmul.f32 %v595, 0.2
  %v762 = vmul.f32 %v600, 0.2
  %v763 = vmul.f32 %v603, 0.2
  %v764 = vmul.f32 %v608, 0.2
  %v765 = vmul.f32 %v611, 0.2
  %v766 = vmul.f32 %v616, 0.2
  %v767 = vmul.f32 %v619, 0.2
  %v768 = vmul.f32 %v624, 0.2
  %v769 = vmul.f32 %v627, 0.2
  %v770 = vmul.f32 %v632, 0.2
  %v771 = vmul.f32 %v635, 0.2
  %v772 = vmul.f32 %v640, 0.2
  %v773 = vmul.f32 %v643, 0.2
  %v774 = vsel %vm646, %v392, %v710
  %v775 = vsel %vm647, %v395, %v711
  %v776 = vsel %vm648, %v400, %v712
  %v777 = vsel %vm649, %v403, %v713
  %v778 = vsel %vm650, %v408, %v714
  %v779 = vsel %vm651, %v411, %v715
  %v780 = vsel %vm652, %v416, %v716
  %v781 = vsel %vm653, %v419, %v717
  %v782 = vsel %vm654, %v424, %v718
  %v783 = vsel %vm655, %v427, %v719
  %v784 = vsel %vm656, %v432, %v720
  %v785 = vsel %vm657, %v435, %v721
  %v786 = vsel %vm658, %v440, %v722
  %v787 = vsel %vm659, %v443, %v723
  %v788 = vsel %vm660, %v448, %v724
  %v789 = vsel %vm661, %v451, %v725
  %v790 = vsel %vm662, %v456, %v726
  %v791 = vsel %vm663, %v459, %v727
  %v792 = vsel %vm664, %v464, %v728
  %v793 = vsel %vm665, %v467, %v729
  %v794 = vsel %vm666, %v472, %v730
  %v795 = vsel %vm667, %v475, %v731
  %v796 = vsel %vm668, %v480, %v732
  %v797 = vsel %vm669, %v483, %v733
  %v798 = vsel %vm670, %v488, %v734
  %v799 = vsel %vm671, %v491, %v735
  %v800 = vsel %vm672, %v496, %v736
  %v801 = vsel %vm673, %v499, %v737
  %v802 = vsel %vm674, %v504, %v738
  %v803 = vsel %vm675, %v507, %v739
  %v804 = vsel %vm676, %v512, %v740
  %v805 = vsel %vm677, %v515, %v741
  %v806 = vsel %vm678, %v520, %v742
  %v807 = vsel %vm679, %v523, %v743
  %v808 = vsel %vm680, %v528, %v744
  %v809 = vsel %vm681, %v531, %v745
  %v810 = vsel %vm682, %v536, %v746
  %v811 = vsel %vm683, %v539, %v747
  %v812 = vsel %vm684, %v544, %v748
  %v813 = vsel %vm685, %v547, %v749
  %v814 = vsel %vm686, %v552, %v750
  %v815 = vsel %vm687, %v555, %v751
  %v816 = vsel %vm688, %v560, %v752
  %v817 = vsel %vm689, %v563, %v753
  %v818 = vsel %vm690, %v568, %v754
  %v819 = vsel %vm691, %v571, %v755
  %v820 = vsel %vm692, %v576, %v756
  %v821 = vsel %vm693, %v579, %v757
  %v822 = vsel %vm694, %v584, %v758
  %v823 = vsel %vm695, %v587, %v759
  %v824 = vsel %vm696, %v592, %v760
  %v825 = vsel %vm697, %v595, %v761
  %v826 = vsel %vm698, %v600, %v762
  %v827 = vsel %vm699, %v603, %v763
  %v828 = vsel %vm700, %v608, %v764
  %v829 = vsel %vm701, %v611, %v765
  %v830 = vsel %vm702, %v616, %v766
  %v831 = vsel %vm703, %v619, %v767
  %v832 = vsel %vm704, %v624, %v768
  %v833 = vsel %vm705, %v627, %v769
  %v834 = vsel %vm706, %v632, %v770
  %v835 = vsel %vm707, %v635, %v771
  %v836 = vsel %vm708, %v640, %v772
  %v837 = vsel %vm709, %v643, %v773
  %v838 = vpack.c.bf16 %v775, %v774
  %v839 = vpack.c.bf16 %v777, %v776
  %v840 = vpack.c.bf16 %v779, %v778
  %v841 = vpack.c.bf16 %v781, %v780
  %v842 = vpack.c.bf16 %v783, %v782
  %v843 = vpack.c.bf16 %v785, %v784
  %v844 = vpack.c.bf16 %v787, %v786
  %v845 = vpack.c.bf16 %v789, %v788
  %v846 = vpack.c.bf16 %v791, %v790
  %v847 = vpack.c.bf16 %v793, %v792
  %v848 = vpack.c.bf16 %v795, %v794
  %v849 = vpack.c.bf16 %v797, %v796
  %v850 = vpack.c.bf16 %v799, %v798
  %v851 = vpack.c.bf16 %v801, %v800
  %v852 = vpack.c.bf16 %v803, %v802
  %v853 = vpack.c.bf16 %v805, %v804
  %v854 = vpack.c.bf16 %v807, %v806
  %v855 = vpack.c.bf16 %v809, %v808
  %v856 = vpack.c.bf16 %v811, %v810
  %v857 = vpack.c.bf16 %v813, %v812
  %v858 = vpack.c.bf16 %v815, %v814
  %v859 = vpack.c.bf16 %v817, %v816
  %v860 = vpack.c.bf16 %v819, %v818
  %v861 = vpack.c.bf16 %v821, %v820
  %v862 = vpack.c.bf16 %v823, %v822
  %v863 = vpack.c.bf16 %v825, %v824
  %v864 = vpack.c.bf16 %v827, %v826
  %v865 = vpack.c.bf16 %v829, %v828
  %v866 = vpack.c.bf16 %v831, %v830
  %v867 = vpack.c.bf16 %v833, %v832
  %v868 = vpack.c.bf16 %v835, %v834
  %v869 = vpack.c.bf16 %v837, %v836
  %v902 = vunpack.c.l.b16 %v838
  %v903 = vunpack.c.h.b16 %v838
  %v904 = vunpack.c.l.b16 %v839
  %v905 = vunpack.c.h.b16 %v839
  %v906 = vunpack.c.l.b16 %v840
  %v907 = vunpack.c.h.b16 %v840
  %v908 = vunpack.c.l.b16 %v841
  %v909 = vunpack.c.h.b16 %v841
  %v910 = vunpack.c.l.b16 %v842
  %v911 = vunpack.c.h.b16 %v842
  %v912 = vunpack.c.l.b16 %v843
  %v913 = vunpack.c.h.b16 %v843
  %v914 = vunpack.c.l.b16 %v844
  %v915 = vunpack.c.h.b16 %v844
  %v916 = vunpack.c.l.b16 %v845
  %v917 = vunpack.c.h.b16 %v845
  %v918 = vunpack.c.l.b16 %v846
  %v919 = vunpack.c.h.b16 %v846
  %v920 = vunpack.c.l.b16 %v847
  %v921 = vunpack.c.h.b16 %v847
  %v922 = vunpack.c.l.b16 %v848
  %v923 = vunpack.c.h.b16 %v848
  %v924 = vunpack.c.l.b16 %v849
  %v925 = vunpack.c.h.b16 %v849
  %v926 = vunpack.c.l.b16 %v850
  %v927 = vunpack.c.h.b16 %v850
  %v928 = vunpack.c.l.b16 %v851
  %v929 = vunpack.c.h.b16 %v851
  %v930 = vunpack.c.l.b16 %v852
  %v931 = vunpack.c.h.b16 %v852
  %v932 = vunpack.c.l.b16 %v853
  %v933 = vunpack.c.h.b16 %v853
  %v934 = vunpack.c.l.b16 %v854
  %v935 = vunpack.c.h.b16 %v854
  %v936 = vunpack.c.l.b16 %v855
  %v937 = vunpack.c.h.b16 %v855
  %v938 = vunpack.c.l.b16 %v856
  %v939 = vunpack.c.h.b16 %v856
  %v940 = vunpack.c.l.b16 %v857
  %v941 = vunpack.c.h.b16 %v857
  %v942 = vunpack.c.l.b16 %v858
  %v943 = vunpack.c.h.b16 %v858
  %v944 = vunpack.c.l.b16 %v859
  %v945 = vunpack.c.h.b16 %v859
  %v946 = vunpack.c.l.b16 %v860
  %v947 = vunpack.c.h.b16 %v860
  %v948 = vunpack.c.l.b16 %v861
  %v949 = vunpack.c.h.b16 %v861
  %v950 = vunpack.c.l.b16 %v862
  %v951 = vunpack.c.h.b16 %v862
  %v952 = vunpack.c.l.b16 %v863
  %v953 = vunpack.c.h.b16 %v863
  %v954 = vunpack.c.l.b16 %v864
  %v955 = vunpack.c.h.b16 %v864
  %v956 = vunpack.c.l.b16 %v865
  %v957 = vunpack.c.h.b16 %v865
  %v958 = vunpack.c.l.b16 %v866
  %v959 = vunpack.c.h.b16 %v866
  %v960 = vunpack.c.l.b16 %v867
  %v961 = vunpack.c.h.b16 %v867
  %v962 = vunpack.c.l.b16 %v868
  %v963 = vunpack.c.h.b16 %v868
  %v964 = vunpack.c.l.b16 %v869
  %v965 = vunpack.c.h.b16 %v869
  %v966 = vpack.c.b16 %v902, %v902
  %v967 = vpack.c.b16 %v903, %v903
  %v968 = vpack.c.b16 %v904, %v904
  %v969 = vpack.c.b16 %v905, %v905
  %v970 = vpack.c.b16 %v906, %v906
  %v971 = vpack.c.b16 %v907, %v907
  %v972 = vpack.c.b16 %v908, %v908
  %v973 = vpack.c.b16 %v909, %v909
  %v974 = vpack.c.b16 %v910, %v910
  %v975 = vpack.c.b16 %v911, %v911
  %v976 = vpack.c.b16 %v912, %v912
  %v977 = vpack.c.b16 %v913, %v913
  %v978 = vpack.c.b16 %v914, %v914
  %v979 = vpack.c.b16 %v915, %v915
  %v980 = vpack.c.b16 %v916, %v916
  %v981 = vpack.c.b16 %v917, %v917
  %v982 = vpack.c.b16 %v918, %v918
  %v983 = vpack.c.b16 %v919, %v919
  %v984 = vpack.c.b16 %v920, %v920
  %v985 = vpack.c.b16 %v921, %v921
  %v986 = vpack.c.b16 %v922, %v922
  %v987 = vpack.c.b16 %v923, %v923
  %v988 = vpack.c.b16 %v924, %v924
  %v989 = vpack.c.b16 %v925, %v925
  %v990 = vpack.c.b16 %v926, %v926
  %v991 = vpack.c.b16 %v927, %v927
  %v992 = vpack.c.b16 %v928, %v928
  %v993 = vpack.c.b16 %v929, %v929
  %v994 = vpack.c.b16 %v930, %v930
  %v995 = vpack.c.b16 %v931, %v931
  %v996 = vpack.c.b16 %v932, %v932
  %v997 = vpack.c.b16 %v933, %v933
  %v998 = vpack.c.b16 %v934, %v934
  %v999 = vpack.c.b16 %v935, %v935
  %v1000 = vpack.c.b16 %v936, %v936
  %v1001 = vpack.c.b16 %v937, %v937
  %v1002 = vpack.c.b16 %v938, %v938
  %v1003 = vpack.c.b16 %v939, %v939
  %v1004 = vpack.c.b16 %v940, %v940
  %v1005 = vpack.c.b16 %v941, %v941
  %v1006 = vpack.c.b16 %v942, %v942
  %v1007 = vpack.c.b16 %v943, %v943
  %v1008 = vpack.c.b16 %v944, %v944
  %v1009 = vpack.c.b16 %v945, %v945
  %v1010 = vpack.c.b16 %v946, %v946
  %v1011 = vpack.c.b16 %v947, %v947
  %v1012 = vpack.c.b16 %v948, %v948
  %v1013 = vpack.c.b16 %v949, %v949
  %v1014 = vpack.c.b16 %v950, %v950
  %v1015 = vpack.c.b16 %v951, %v951
  %v1016 = vpack.c.b16 %v952, %v952
  %v1017 = vpack.c.b16 %v953, %v953
  %v1018 = vpack.c.b16 %v954, %v954
  %v1019 = vpack.c.b16 %v955, %v955
  %v1020 = vpack.c.b16 %v956, %v956
  %v1021 = vpack.c.b16 %v957, %v957
  %v1022 = vpack.c.b16 %v958, %v958
  %v1023 = vpack.c.b16 %v959, %v959
  %v1024 = vpack.c.b16 %v960, %v960
  %v1025 = vpack.c.b16 %v961, %v961
  %v1026 = vpack.c.b16 %v962, %v962
  %v1027 = vpack.c.b16 %v963, %v963
  %v1028 = vpack.c.b16 %v964, %v964
  %v1029 = vpack.c.b16 %v965, %v965
  %1094 = vst [vmem:[%s2] sm:$0xf] %v966
  %1095 = vst [vmem:[%s2 + $0x4] sm:$0xf] %v967
  %1096 = vst [vmem:[%s2 + $0x8] sm:$0xf] %v968
  %1097 = vst [vmem:[%s2 + $0xc] sm:$0xf] %v969
  %1098 = vst [vmem:[%s2 + $0x10] sm:$0xf] %v970
  %1099 = vst [vmem:[%s2 + $0x14] sm:$0xf] %v971
  %1100 = vst [vmem:[%s2 + $0x18] sm:$0xf] %v972
  %1101 = vst [vmem:[%s2 + $0x1c] sm:$0xf] %v973
  %1102 = vst [vmem:[%s2 + $0x20] sm:$0xf] %v974
  %1103 = vst [vmem:[%s2 + $0x24] sm:$0xf] %v975
  %1104 = vst [vmem:[%s2 + $0x28] sm:$0xf] %v976
  %1105 = vst [vmem:[%s2 + $0x2c] sm:$0xf] %v977
  %1106 = vst [vmem:[%s2 + $0x30] sm:$0xf] %v978
  %1107 = vst [vmem:[%s2 + $0x34] sm:$0xf] %v979
  %1108 = vst [vmem:[%s2 + $0x38] sm:$0xf] %v980
  %1109 = vst [vmem:[%s2 + $0x3c] sm:$0xf] %v981
  %1110 = vst [vmem:[%s2 + $0x40] sm:$0xf] %v982
  %1111 = vst [vmem:[%s2 + $0x44] sm:$0xf] %v983
  %1112 = vst [vmem:[%s2 + $0x48] sm:$0xf] %v984
  %1113 = vst [vmem:[%s2 + $0x4c] sm:$0xf] %v985
  %1114 = vst [vmem:[%s2 + $0x50] sm:$0xf] %v986
  %1115 = vst [vmem:[%s2 + $0x54] sm:$0xf] %v987
  %1116 = vst [vmem:[%s2 + $0x58] sm:$0xf] %v988
  %1117 = vst [vmem:[%s2 + $0x5c] sm:$0xf] %v989
  %1118 = vst [vmem:[%s2 + $0x60] sm:$0xf] %v990
  %1119 = vst [vmem:[%s2 + $0x64] sm:$0xf] %v991
  %1120 = vst [vmem:[%s2 + $0x68] sm:$0xf] %v992
  %1121 = vst [vmem:[%s2 + $0x6c] sm:$0xf] %v993
  %1122 = vst [vmem:[%s2 + $0x70] sm:$0xf] %v994
  %1123 = vst [vmem:[%s2 + $0x74] sm:$0xf] %v995
  %1124 = vst [vmem:[%s2 + $0x78] sm:$0xf] %v996
  %1125 = vst [vmem:[%s2 + $0x7c] sm:$0xf] %v997
  %1126 = vst [vmem:[%s2 + $0x80] sm:$0xf] %v998
  %1127 = vst [vmem:[%s2 + $0x84] sm:$0xf] %v999
  %1128 = vst [vmem:[%s2 + $0x88] sm:$0xf] %v1000
  %1129 = vst [vmem:[%s2 + $0x8c] sm:$0xf] %v1001
  %1130 = vst [vmem:[%s2 + $0x90] sm:$0xf] %v1002
  %1131 = vst [vmem:[%s2 + $0x94] sm:$0xf] %v1003
  %1132 = vst [vmem:[%s2 + $0x98] sm:$0xf] %v1004
  %1133 = vst [vmem:[%s2 + $0x9c] sm:$0xf] %v1005
  %1134 = vst [vmem:[%s2 + $0xa0] sm:$0xf] %v1006
  %1135 = vst [vmem:[%s2 + $0xa4] sm:$0xf] %v1007
  %1136 = vst [vmem:[%s2 + $0xa8] sm:$0xf] %v1008
  %1137 = vst [vmem:[%s2 + $0xac] sm:$0xf] %v1009
  %1138 = vst [vmem:[%s2 + $0xb0] sm:$0xf] %v1010
  %1139 = vst [vmem:[%s2 + $0xb4] sm:$0xf] %v1011
  %1140 = vst [vmem:[%s2 + $0xb8] sm:$0xf] %v1012
  %1141 = vst [vmem:[%s2 + $0xbc] sm:$0xf] %v1013
  %1142 = vst [vmem:[%s2 + $0xc0] sm:$0xf] %v1014
  %1143 = vst [vmem:[%s2 + $0xc4] sm:$0xf] %v1015
  %1144 = vst [vmem:[%s2 + $0xc8] sm:$0xf] %v1016
  %1145 = vst [vmem:[%s2 + $0xcc] sm:$0xf] %v1017
  %1146 = vst [vmem:[%s2 + $0xd0] sm:$0xf] %v1018
  %1147 = vst [vmem:[%s2 + $0xd4] sm:$0xf] %v1019
  %1148 = vst [vmem:[%s2 + $0xd8] sm:$0xf] %v1020
  %1149 = vst [vmem:[%s2 + $0xdc] sm:$0xf] %v1021
  %1150 = vst [vmem:[%s2 + $0xe0] sm:$0xf] %v1022
  %1151 = vst [vmem:[%s2 + $0xe4] sm:$0xf] %v1023
  %1152 = vst [vmem:[%s2 + $0xe8] sm:$0xf] %v1024
  %1153 = vst [vmem:[%s2 + $0xec] sm:$0xf] %v1025
  %1154 = vst [vmem:[%s2 + $0xf0] sm:$0xf] %v1026
  %1155 = vst [vmem:[%s2 + $0xf4] sm:$0xf] %v1027
  %1156 = vst [vmem:[%s2 + $0xf8] sm:$0xf] %v1028
  %1157 = vst [vmem:[%s2 + $0xfc] sm:$0xf] %v1029
  // Predicated region
  $region10: #{cnn_discriminator_forward.3} parent=0 // pred_check
    _
  $region11: #{cnn_discriminator_forward.3} parent=0 // pred_check_branch
    %1159 = sbr.rel (0) target = $region13
  $region12: #{cnn_discriminator_forward.3} parent=0 // pred_region
    _
  $region13: #{cnn_discriminator_forward.3} parent=0 // pred_fallthru
    _
  // Predicated region
  $region14: #{cnn_discriminator_forward.3} parent=0 // pred_check
    _
  $region15: #{cnn_discriminator_forward.3} parent=0 // pred_check_branch
    %1161 = sbr.rel (0) target = $region17
  $region16: #{cnn_discriminator_forward.3} parent=0 // pred_region
    _
  $region17: #{cnn_discriminator_forward.3} parent=0 // pred_fallthru
    _

// kernel: cnn_discriminator_forward.4
$region0: #{cnn_discriminator_forward.4}
  #allocation0 [shape = 'u32[]', space=smem, size = 0x4, offset = 0x4, fixed_abs, tag = 'smem constant byte address 0x4 - core index']
  #allocation1 [shape = 'u32[144,128]{1,0:T(1,128)}', space=vmem, size = 0x12000, scoped, tag = 'internal scratch']
  #allocation2 [shape = 'f32[128,128]{1,0:T(8,128)}', space=vmem, size = 0x10000, scoped, tag = 'scratch operand']
  %s0 = inlined_call_operand.vmem [shape: bf16[128,2048], index: 0, kind: input, shape index: {}]
  %s1 = inlined_call_operand.vmem [shape: bf16[2048,256], index: 1, kind: input, shape index: {}]
  %s2 = inlined_call_operand.vmem [shape: f32[1,256], index: 2, kind: input, shape index: {}]
  %s3 = inlined_call_operand.vmem [shape: f32[1,256], index: 3, kind: input, shape index: {}]
  %s4 = inlined_call_operand.vmem [shape: bf16[128,256], index: 4, kind: output, shape index: {}]
  %s5 = sld [smem:[#allocation0]]
  $region158: #{cnn_discriminator_forward.4} parent=0
    _
  %s7 = ssub.s32 1, %s5
  %s8 = scalar_select 0, %s7, %s5
  $region1: #{cnn_discriminator_forward.4} parent=0
    #allocation3 [shape = 'u8[524288]{0}', space=vmem, size = 0x80000, scoped, tag = 'input window, operand 0']
    #allocation4 [shape = 'u8[524288]{0}', space=vmem, size = 0x80000, scoped, tag = 'input window, operand 1']
    #allocation5 [shape = 'u8[65536]{0}', space=vmem, size = 0x10000, scoped, tag = 'output window, operand 0']
    loop: start=0, step=1, limit=6
    $region2: #{cnn_discriminator_forward.4} parent=1 // loop_pre_header
      _
    $region3: #{cnn_discriminator_forward.4} parent=1 // loop_header
      %s10 = sphi 0, %s14
      %p11 = scmp.ge.s32.totalorder %s10, 6
      %s17 = sphi 0, %s29
      %s18 = sphi 0, %s25
      %s19 = sphi 0, %s17
      %s20 = sphi 0, %s18
      %s21 = sphi 0, %s19
      %s22 = sphi 0, %s20
      %s32 = sphi 0, %s34
      %s35 = sphi 0, %s32
      %s36 = sphi 0, %s35
      %s52 = sphi 0, %s36
      %s60 = sphi 0, %s62
      %s63 = sphi 0, %s60
      %s64 = sphi 0, %s63
      %s80 = sphi 0, %s64
      %s86 = sphi 0, %s88
      %s89 = sphi 0, %s86
      %s90 = sphi 0, %s89
      %s106 = sphi 0, %s90
      %s112 = sphi 0, %s114
      %s115 = sphi 0, %s112
      %s116 = sphi 0, %s115
      %s132 = sphi 0, %s116
      %s138 = sphi 0, %s140
      %s141 = sphi 0, %s138
      %s142 = sphi 0, %s141
      %s158 = sphi 0, %s142
    $region4: #{cnn_discriminator_forward.4} parent=1 // loop_header_branch
      %13 = sbr.rel (%p11) target = $region8
    $region5: #{cnn_discriminator_forward.4} parent=1 // loop_body
      %s15 = ssub.s32 %s10, 1
      %s16 = ssub.s32 %s10, 2
      %s23 = sadd.s32 1, %s18
      %p24 = scmp.ge.s32.totalorder %s23, 2
      %s25 = scalar_select %p24, 0, %s23
      %s26 = sadd.s32 1, %s17
      %s27 = scalar_select %p24, %s26, %s17
      %p28 = scmp.ge.s32.totalorder %s27, 2
      %s29 = scalar_select %p28, 0, %s27
      %s30 = ssub.s32 %s18, %s25
      %p31 = scmp.eq.s32.totalorder %s30, 0
      %s33 = sadd.s32 %s32, 1
      %s34 = scalar_select %p31, %s32, %s33
      %p37 = pneg %p31
      %p38 = scmp.eq.s32.totalorder %s10, 3
      %p39 = por %p37, %p38
      %p40 = scmp.ne.s32.totalorder %s32, %s35
      %p41 = scmp.eq.s32.totalorder %s10, 0
      %p42 = por %p40, %p41
      %p43 = scmp.ne.s32.totalorder %s32, %s35
      %p44 = scmp.eq.s32.totalorder %s15, 3
      %p45 = por %p43, %p44
      %p46 = scmp.ne.s32.totalorder %s35, %s36
      %p47 = scmp.eq.s32.totalorder %s15, 0
      %p48 = por %p46, %p47
      %p49 = scmp.ne.s32.totalorder %s35, %s36
      %p50 = scmp.eq.s32.totalorder %s16, 3
      %p51 = por %p49, %p50
      %p53 = scmp.ne.s32.totalorder %s36, %s52
      %p54 = scmp.eq.s32.totalorder %s16, 0
      %p55 = por %p53, %p54
      %s56 = ssub.s32 %s18, %s25
      %s57 = ssub.s32 %s17, %s29
      %s58 = sor.u32 %s56, %s57
      %p59 = scmp.eq.s32.totalorder %s58, 0
      %s61 = sadd.s32 %s60, 1
      %s62 = scalar_select %p59, %s60, %s61
      %p65 = pneg %p59
      %p66 = scmp.eq.s32.totalorder %s10, 3
      %p67 = por %p65, %p66
      %p68 = scmp.ne.s32.totalorder %s60, %s63
      %p69 = scmp.eq.s32.totalorder %s10, 0
      %p70 = por %p68, %p69
      %p71 = scmp.ne.s32.totalorder %s60, %s63
      %p72 = scmp.eq.s32.totalorder %s15, 3
      %p73 = por %p71, %p72
      %p74 = scmp.ne.s32.totalorder %s63, %s64
      %p75 = scmp.eq.s32.totalorder %s15, 0
      %p76 = por %p74, %p75
      %p77 = scmp.ne.s32.totalorder %s63, %s64
      %p78 = scmp.eq.s32.totalorder %s16, 3
      %p79 = por %p77, %p78
      %p81 = scmp.ne.s32.totalorder %s64, %s80
      %p82 = scmp.eq.s32.totalorder %s16, 0
      %p83 = por %p81, %p82
      %s84 = ssub.s32 %s17, %s29
      %p85 = scmp.eq.s32.totalorder %s84, 0
      %s87 = sadd.s32 %s86, 1
      %s88 = scalar_select %p85, %s86, %s87
      %p91 = pneg %p85
      %p92 = scmp.eq.s32.totalorder %s10, 3
      %p93 = por %p91, %p92
      %p94 = scmp.ne.s32.totalorder %s86, %s89
      %p95 = scmp.eq.s32.totalorder %s10, 0
      %p96 = por %p94, %p95
      %p97 = scmp.ne.s32.totalorder %s86, %s89
      %p98 = scmp.eq.s32.totalorder %s15, 3
      %p99 = por %p97, %p98
      %p100 = scmp.ne.s32.totalorder %s89, %s90
      %p101 = scmp.eq.s32.totalorder %s15, 0
      %p102 = por %p100, %p101
      %p103 = scmp.ne.s32.totalorder %s89, %s90
      %p104 = scmp.eq.s32.totalorder %s16, 3
      %p105 = por %p103, %p104
      %p107 = scmp.ne.s32.totalorder %s90, %s106
      %p108 = scmp.eq.s32.totalorder %s16, 0
      %p109 = por %p107, %p108
      %s110 = ssub.s32 %s17, %s29
      %p111 = scmp.eq.s32.totalorder %s110, 0
      %s113 = sadd.s32 %s112, 1
      %s114 = scalar_select %p111, %s112, %s113
      %p117 = pneg %p111
      %p118 = scmp.eq.s32.totalorder %s10, 3
      %p119 = por %p117, %p118
      %p120 = scmp.ne.s32.totalorder %s112, %s115
      %p121 = scmp.eq.s32.totalorder %s10, 0
      %p122 = por %p120, %p121
      %p123 = scmp.ne.s32.totalorder %s112, %s115
      %p124 = scmp.eq.s32.totalorder %s15, 3
      %p125 = por %p123, %p124
      %p126 = scmp.ne.s32.totalorder %s115, %s116
      %p127 = scmp.eq.s32.totalorder %s15, 0
      %p128 = por %p126, %p127
      %p129 = scmp.ne.s32.totalorder %s115, %s116
      %p130 = scmp.eq.s32.totalorder %s16, 3
      %p131 = por %p129, %p130
      %p133 = scmp.ne.s32.totalorder %s116, %s132
      %p134 = scmp.eq.s32.totalorder %s16, 0
      %p135 = por %p133, %p134
      %s136 = ssub.s32 %s17, %s29
      %p137 = scmp.eq.s32.totalorder %s136, 0
      %s139 = sadd.s32 %s138, 1
      %s140 = scalar_select %p137, %s138, %s139
      %p143 = pneg %p137
      %p144 = scmp.eq.s32.totalorder %s10, 3
      %p145 = por %p143, %p144
      %p146 = scmp.ne.s32.totalorder %s138, %s141
      %p147 = scmp.eq.s32.totalorder %s10, 0
      %p148 = por %p146, %p147
      %p149 = scmp.ne.s32.totalorder %s138, %s141
      %p150 = scmp.eq.s32.totalorder %s15, 3
      %p151 = por %p149, %p150
      %p152 = scmp.ne.s32.totalorder %s141, %s142
      %p153 = scmp.eq.s32.totalorder %s15, 0
      %p154 = por %p152, %p153
      %p155 = scmp.ne.s32.totalorder %s141, %s142
      %p156 = scmp.eq.s32.totalorder %s16, 3
      %p157 = por %p155, %p156
      %p159 = scmp.ne.s32.totalorder %s142, %s158
      %p160 = scmp.eq.s32.totalorder %s16, 0
      %p161 = por %p159, %p160
      %p162 = scmp.le.s32.totalorder 1, %s10
      %p163 = scmp.lt.s32.totalorder %s10, 5
      %p164 = pnand %p162, %p163
      %p165 = pneg %p164
      // Predicated region
      $region9: #{cnn_discriminator_forward.4} parent=5 // pred_check
        _
      $region10: #{cnn_discriminator_forward.4} parent=5 // pred_check_branch
        %167 = sbr.rel (%p164) target = $region12
      $region11: #{cnn_discriminator_forward.4} parent=5 // pred_region
        %s168 = ssub.s32 %s10, 1
      $region12: #{cnn_discriminator_forward.4} parent=5 // pred_fallthru
        _
      %p169 = scmp.lt.s32.totalorder %s10, 4
      // Predicated region
      $region13: #{cnn_discriminator_forward.4} parent=5 // pred_check
        %p170 = pneg %p169
      $region14: #{cnn_discriminator_forward.4} parent=5 // pred_check_branch
        %172 = sbr.rel (%p170) target = $region16
      $region15: #{cnn_discriminator_forward.4} parent=5 // pred_region
        // Predicated region
        $region17: #{cnn_discriminator_forward.4} parent=15 // pred_check
          %p173 = pneg %p42
        $region18: #{cnn_discriminator_forward.4} parent=15 // pred_check_branch
          %175 = sbr.rel (%p173) target = $region20
        $region19: #{cnn_discriminator_forward.4} parent=15 // pred_region
          %s176 = sand.u32 %s32, 1
          %s177 = sand.u32 %s32, 1
          %s178 = smul.addr %s177, 512
          %s179 = scalar_lea.vmem [#allocation3], %s178
          %s180 = smul.u32 8, %s18
          %s181 = smul.addr %s180, 4
          %s182 = scalar_lea.vmem %s0, %s181
          // Predicated region
          $region21: #{cnn_discriminator_forward.4} parent=19 // pred_check
            _
          $region22: #{cnn_discriminator_forward.4} parent=19 // pred_check_branch
            %184 = sbr.rel (0) target = $region24
          $region23: #{cnn_discriminator_forward.4} parent=19 // pred_region
            // Predicated region
            $region25: #{cnn_discriminator_forward.4} parent=23 // pred_check
              _
            $region26: #{cnn_discriminator_forward.4} parent=23 // pred_check_branch
              %186 = sbr.rel (0) target = $region28
            $region27: #{cnn_discriminator_forward.4} parent=23 // pred_region
              loop: start=0, step=1, limit=1
              $region29: #{cnn_discriminator_forward.4} parent=27 // loop_pre_header
                _
              $region30: #{cnn_discriminator_forward.4} parent=27 // loop_header
                %s188 = sphi 0, %s192
                %p189 = scmp.ge.s32.totalorder %s188, 1
                %s193 = sphi %s182, %s182
                %s194 = sphi %s179, %s179
              $region31: #{cnn_discriminator_forward.4} parent=27 // loop_header_branch
                %191 = sbr.rel (%p189) target = $region35
              $region32: #{cnn_discriminator_forward.4} parent=27 // loop_body
                %v195 = vld [vmem:[%s193] sm:$0xff]
                %196 = vst [vmem:[%s194] sm:$0xff] %v195
                %v197 = vld [vmem:[%s193 + $0x8] sm:$0xff]
                %198 = vst [vmem:[%s194 + $0x8] sm:$0xff] %v197
                %v199 = vld [vmem:[%s193 + $0x10] sm:$0xff]
                %200 = vst [vmem:[%s194 + $0x10] sm:$0xff] %v199
                %v201 = vld [vmem:[%s193 + $0x18] sm:$0xff]
                %202 = vst [vmem:[%s194 + $0x18] sm:$0xff] %v201
                %v203 = vld [vmem:[%s193 + $0x40] sm:$0xff]
                %204 = vst [vmem:[%s194 + $0x20] sm:$0xff] %v203
                %v205 = vld [vmem:[%s193 + $0x48] sm:$0xff]
                %206 = vst [vmem:[%s194 + $0x28] sm:$0xff] %v205
                %v207 = vld [vmem:[%s193 + $0x50] sm:$0xff]
                %208 = vst [vmem:[%s194 + $0x30] sm:$0xff] %v207
                %v209 = vld [vmem:[%s193 + $0x58] sm:$0xff]
                %210 = vst [vmem:[%s194 + $0x38] sm:$0xff] %v209
                %v211 = vld [vmem:[%s193 + $0x80] sm:$0xff]
                %212 = vst [vmem:[%s194 + $0x40] sm:$0xff] %v211
                %v213 = vld [vmem:[%s193 + $0x88] sm:$0xff]
                %214 = vst [vmem:[%s194 + $0x48] sm:$0xff] %v213
                %v215 = vld [vmem:[%s193 + $0x90] sm:$0xff]
                %216 = vst [vmem:[%s194 + $0x50] sm:$0xff] %v215
                %v217 = vld [vmem:[%s193 + $0x98] sm:$0xff]
                %218 = vst [vmem:[%s194 + $0x58] sm:$0xff] %v217
                %v219 = vld [vmem:[%s193 + $0xc0] sm:$0xff]
                %220 = vst [vmem:[%s194 + $0x60] sm:$0xff] %v219
                %v221 = vld [vmem:[%s193 + $0xc8] sm:$0xff]
                %222 = vst [vmem:[%s194 + $0x68] sm:$0xff] %v221
                %v223 = vld [vmem:[%s193 + $0xd0] sm:$0xff]
                %224 = vst [vmem:[%s194 + $0x70] sm:$0xff] %v223
                %v225 = vld [vmem:[%s193 + $0xd8] sm:$0xff]
                %226 = vst [vmem:[%s194 + $0x78] sm:$0xff] %v225
                %v227 = vld [vmem:[%s193 + $0x100] sm:$0xff]
                %228 = vst [vmem:[%s194 + $0x80] sm:$0xff] %v227
                %v229 = vld [vmem:[%s193 + $0x108] sm:$0xff]
                %230 = vst [vmem:[%s194 + $0x88] sm:$0xff] %v229
                %v231 = vld [vmem:[%s193 + $0x110] sm:$0xff]
                %232 = vst [vmem:[%s194 + $0x90] sm:$0xff] %v231
                %v233 = vld [vmem:[%s193 + $0x118] sm:$0xff]
                %234 = vst [vmem:[%s194 + $0x98] sm:$0xff] %v233
                %v235 = vld [vmem:[%s193 + $0x140] sm:$0xff]
                %236 = vst [vmem:[%s194 + $0xa0] sm:$0xff] %v235
                %v237 = vld [vmem:[%s193 + $0x148] sm:$0xff]
                %238 = vst [vmem:[%s194 + $0xa8] sm:$0xff] %v237
                %v239 = vld [vmem:[%s193 + $0x150] sm:$0xff]
                %240 = vst [vmem:[%s194 + $0xb0] sm:$0xff] %v239
                %v241 = vld [vmem:[%s193 + $0x158] sm:$0xff]
                %242 = vst [vmem:[%s194 + $0xb8] sm:$0xff] %v241
                %v243 = vld [vmem:[%s193 + $0x180] sm:$0xff]
                %244 = vst [vmem:[%s194 + $0xc0] sm:$0xff] %v243
                %v245 = vld [vmem:[%s193 + $0x188] sm:$0xff]
                %246 = vst [vmem:[%s194 + $0xc8] sm:$0xff] %v245
                %v247 = vld [vmem:[%s193 + $0x190] sm:$0xff]
                %248 = vst [vmem:[%s194 + $0xd0] sm:$0xff] %v247
                %v249 = vld [vmem:[%s193 + $0x198] sm:$0xff]
                %250 = vst [vmem:[%s194 + $0xd8] sm:$0xff] %v249
                %v251 = vld [vmem:[%s193 + $0x1c0] sm:$0xff]
                %252 = vst [vmem:[%s194 + $0xe0] sm:$0xff] %v251
                %v253 = vld [vmem:[%s193 + $0x1c8] sm:$0xff]
                %254 = vst [vmem:[%s194 + $0xe8] sm:$0xff] %v253
                %v255 = vld [vmem:[%s193 + $0x1d0] sm:$0xff]
                %256 = vst [vmem:[%s194 + $0xf0] sm:$0xff] %v255
                %v257 = vld [vmem:[%s193 + $0x1d8] sm:$0xff]
                %258 = vst [vmem:[%s194 + $0xf8] sm:$0xff] %v257
                %v259 = vld [vmem:[%s193 + $0x200] sm:$0xff]
                %260 = vst [vmem:[%s194 + $0x100] sm:$0xff] %v259
                %v261 = vld [vmem:[%s193 + $0x208] sm:$0xff]
                %262 = vst [vmem:[%s194 + $0x108] sm:$0xff] %v261
                %v263 = vld [vmem:[%s193 + $0x210] sm:$0xff]
                %264 = vst [vmem:[%s194 + $0x110] sm:$0xff] %v263
                %v265 = vld [vmem:[%s193 + $0x218] sm:$0xff]
                %266 = vst [vmem:[%s194 + $0x118] sm:$0xff] %v265
                %v267 = vld [vmem:[%s193 + $0x240] sm:$0xff]
                %268 = vst [vmem:[%s194 + $0x120] sm:$0xff] %v267
                %v269 = vld [vmem:[%s193 + $0x248] sm:$0xff]
                %270 = vst [vmem:[%s194 + $0x128] sm:$0xff] %v269
                %v271 = vld [vmem:[%s193 + $0x250] sm:$0xff]
                %272 = vst [vmem:[%s194 + $0x130] sm:$0xff] %v271
                %v273 = vld [vmem:[%s193 + $0x258] sm:$0xff]
                %274 = vst [vmem:[%s194 + $0x138] sm:$0xff] %v273
                %v275 = vld [vmem:[%s193 + $0x280] sm:$0xff]
                %276 = vst [vmem:[%s194 + $0x140] sm:$0xff] %v275
                %v277 = vld [vmem:[%s193 + $0x288] sm:$0xff]
                %278 = vst [vmem:[%s194 + $0x148] sm:$0xff] %v277
                %v279 = vld [vmem:[%s193 + $0x290] sm:$0xff]
                %280 = vst [vmem:[%s194 + $0x150] sm:$0xff] %v279
                %v281 = vld [vmem:[%s193 + $0x298] sm:$0xff]
                %282 = vst [vmem:[%s194 + $0x158] sm:$0xff] %v281
                %v283 = vld [vmem:[%s193 + $0x2c0] sm:$0xff]
                %284 = vst [vmem:[%s194 + $0x160] sm:$0xff] %v283
                %v285 = vld [vmem:[%s193 + $0x2c8] sm:$0xff]
                %286 = vst [vmem:[%s194 + $0x168] sm:$0xff] %v285
                %v287 = vld [vmem:[%s193 + $0x2d0] sm:$0xff]
                %288 = vst [vmem:[%s194 + $0x170] sm:$0xff] %v287
                %v289 = vld [vmem:[%s193 + $0x2d8] sm:$0xff]
                %290 = vst [vmem:[%s194 + $0x178] sm:$0xff] %v289
                %v291 = vld [vmem:[%s193 + $0x300] sm:$0xff]
                %292 = vst [vmem:[%s194 + $0x180] sm:$0xff] %v291
                %v293 = vld [vmem:[%s193 + $0x308] sm:$0xff]
                %294 = vst [vmem:[%s194 + $0x188] sm:$0xff] %v293
                %v295 = vld [vmem:[%s193 + $0x310] sm:$0xff]
                %296 = vst [vmem:[%s194 + $0x190] sm:$0xff] %v295
                %v297 = vld [vmem:[%s193 + $0x318] sm:$0xff]
                %298 = vst [vmem:[%s194 + $0x198] sm:$0xff] %v297
                %v299 = vld [vmem:[%s193 + $0x340] sm:$0xff]
                %300 = vst [vmem:[%s194 + $0x1a0] sm:$0xff] %v299
                %v301 = vld [vmem:[%s193 + $0x348] sm:$0xff]
                %302 = vst [vmem:[%s194 + $0x1a8] sm:$0xff] %v301
                %v303 = vld [vmem:[%s193 + $0x350] sm:$0xff]
                %304 = vst [vmem:[%s194 + $0x1b0] sm:$0xff] %v303
                %v305 = vld [vmem:[%s193 + $0x358] sm:$0xff]
                %306 = vst [vmem:[%s194 + $0x1b8] sm:$0xff] %v305
                %v307 = vld [vmem:[%s193 + $0x380] sm:$0xff]
                %308 = vst [vmem:[%s194 + $0x1c0] sm:$0xff] %v307
                %v309 = vld [vmem:[%s193 + $0x388] sm:$0xff]
                %310 = vst [vmem:[%s194 + $0x1c8] sm:$0xff] %v309
                %v311 = vld [vmem:[%s193 + $0x390] sm:$0xff]
                %312 = vst [vmem:[%s194 + $0x1d0] sm:$0xff] %v311
                %v313 = vld [vmem:[%s193 + $0x398] sm:$0xff]
                %314 = vst [vmem:[%s194 + $0x1d8] sm:$0xff] %v313
                %v315 = vld [vmem:[%s193 + $0x3c0] sm:$0xff]
                %316 = vst [vmem:[%s194 + $0x1e0] sm:$0xff] %v315
                %v317 = vld [vmem:[%s193 + $0x3c8] sm:$0xff]
                %318 = vst [vmem:[%s194 + $0x1e8] sm:$0xff] %v317
                %v319 = vld [vmem:[%s193 + $0x3d0] sm:$0xff]
                %320 = vst [vmem:[%s194 + $0x1f0] sm:$0xff] %v319
                %v321 = vld [vmem:[%s193 + $0x3d8] sm:$0xff]
                %322 = vst [vmem:[%s194 + $0x1f8] sm:$0xff] %v321
              $region33: #{cnn_discriminator_forward.4} parent=27 // loop_footer
                %s192 = sadd.s32 1, %s188
              $region34: #{cnn_discriminator_forward.4} parent=27 // loop_footer_branch
                %187 = sbr.rel target = $region30
              $region35: #{cnn_discriminator_forward.4} parent=27 // loop_exit
                _
            $region28: #{cnn_discriminator_forward.4} parent=23 // pred_fallthru
              _
            // Predicated region
            $region36: #{cnn_discriminator_forward.4} parent=23 // pred_check
              _
            $region37: #{cnn_discriminator_forward.4} parent=23 // pred_check_branch
              %324 = sbr.rel target = $region39
            $region38: #{cnn_discriminator_forward.4} parent=23 // pred_region
              _
            $region39: #{cnn_discriminator_forward.4} parent=23 // pred_fallthru
              _
          $region24: #{cnn_discriminator_forward.4} parent=19 // pred_fallthru
            _
          %325 = vnop
        $region20: #{cnn_discriminator_forward.4} parent=15 // pred_fallthru
          _
        // Predicated region
        $region40: #{cnn_discriminator_forward.4} parent=15 // pred_check
          %p326 = pneg %p70
        $region41: #{cnn_discriminator_forward.4} parent=15 // pred_check_branch
          %328 = sbr.rel (%p326) target = $region43
        $region42: #{cnn_discriminator_forward.4} parent=15 // pred_region
          %s329 = sand.u32 %s60, 1
          %s330 = sand.u32 %s60, 1
          %s331 = smul.addr %s330, 512
          %s332 = scalar_lea.vmem [#allocation4], %s331
          %s333 = smul.u32 128, %s18
          %s334 = smul.addr %s333, 2
          %s335 = sadd.s32 %s17, %s334
          %s336 = smul.addr %s335, 4
          %s337 = scalar_lea.vmem %s1, %s336
          // Predicated region
          $region44: #{cnn_discriminator_forward.4} parent=42 // pred_check
            _
          $region45: #{cnn_discriminator_forward.4} parent=42 // pred_check_branch
            %339 = sbr.rel (0) target = $region47
          $region46: #{cnn_discriminator_forward.4} parent=42 // pred_region
            // Predicated region
            $region48: #{cnn_discriminator_forward.4} parent=46 // pred_check
              _
            $region49: #{cnn_discriminator_forward.4} parent=46 // pred_check_branch
              %341 = sbr.rel target = $region51
            $region50: #{cnn_discriminator_forward.4} parent=46 // pred_region
              // Predicated region
              $region63: #{cnn_discriminator_forward.4} parent=50 // pred_check
                _
              $region64: #{cnn_discriminator_forward.4} parent=50 // pred_check_branch
                %610 = sbr.rel (0) target = $region66
              $region65: #{cnn_discriminator_forward.4} parent=50 // pred_region
                loop: start=0, step=1, limit=1
                $region67: #{cnn_discriminator_forward.4} parent=65 // loop_pre_header
                  _
                $region68: #{cnn_discriminator_forward.4} parent=65 // loop_header
                  %s612 = sphi 0, %s616
                  %p613 = scmp.ge.s32.totalorder %s612, 1
                  %s617 = sphi %s337, %s337
                  %s618 = sphi %s332, %s332
                $region69: #{cnn_discriminator_forward.4} parent=65 // loop_header_branch
                  %615 = sbr.rel (%p613) target = $region73
                $region70: #{cnn_discriminator_forward.4} parent=65 // loop_body
                  _
                $region71: #{cnn_discriminator_forward.4} parent=65 // loop_footer
                  %s616 = sadd.s32 1, %s612
                $region72: #{cnn_discriminator_forward.4} parent=65 // loop_footer_branch
                  %611 = sbr.rel target = $region68
                $region73: #{cnn_discriminator_forward.4} parent=65 // loop_exit
                  _
                loop: start=0, step=1, limit=1
                $region74: #{cnn_discriminator_forward.4} parent=65 // loop_pre_header
                  _
                $region75: #{cnn_discriminator_forward.4} parent=65 // loop_header
                  %s621 = sphi 0, %s625
                  %p622 = scmp.ge.s32.totalorder %s621, 1
                  %s626 = sphi %s337, %s337
                  %s627 = sphi %s332, %s332
                $region76: #{cnn_discriminator_forward.4} parent=65 // loop_header_branch
                  %624 = sbr.rel (%p622) target = $region80
                $region77: #{cnn_discriminator_forward.4} parent=65 // loop_body
                  %v628 = vld [vmem:[%s626] sm:$0xf]
                  %629 = vst [vmem:[%s627] sm:$0xf] %v628
                  %v630 = vld [vmem:[%s626 + $0x8] sm:$0xf]
                  %631 = vst [vmem:[%s627 + $0x4] sm:$0xf] %v630
                  %v632 = vld [vmem:[%s626 + $0x10] sm:$0xf]
                  %633 = vst [vmem:[%s627 + $0x8] sm:$0xf] %v632
                  %v634 = vld [vmem:[%s626 + $0x18] sm:$0xf]
                  %635 = vst [vmem:[%s627 + $0xc] sm:$0xf] %v634
                  %v636 = vld [vmem:[%s626 + $0x20] sm:$0xf]
                  %637 = vst [vmem:[%s627 + $0x10] sm:$0xf] %v636
                  %v638 = vld [vmem:[%s626 + $0x28] sm:$0xf]
                  %639 = vst [vmem:[%s627 + $0x14] sm:$0xf] %v638
                  %v640 = vld [vmem:[%s626 + $0x30] sm:$0xf]
                  %641 = vst [vmem:[%s627 + $0x18] sm:$0xf] %v640
                  %v642 = vld [vmem:[%s626 + $0x38] sm:$0xf]
                  %643 = vst [vmem:[%s627 + $0x1c] sm:$0xf] %v642
                  %v644 = vld [vmem:[%s626 + $0x40] sm:$0xf]
                  %645 = vst [vmem:[%s627 + $0x20] sm:$0xf] %v644
                  %v646 = vld [vmem:[%s626 + $0x48] sm:$0xf]
                  %647 = vst [vmem:[%s627 + $0x24] sm:$0xf] %v646
                  %v648 = vld [vmem:[%s626 + $0x50] sm:$0xf]
                  %649 = vst [vmem:[%s627 + $0x28] sm:$0xf] %v648
                  %v650 = vld [vmem:[%s626 + $0x58] sm:$0xf]
                  %651 = vst [vmem:[%s627 + $0x2c] sm:$0xf] %v650
                  %v652 = vld [vmem:[%s626 + $0x60] sm:$0xf]
                  %653 = vst [vmem:[%s627 + $0x30] sm:$0xf] %v652
                  %v654 = vld [vmem:[%s626 + $0x68] sm:$0xf]
                  %655 = vst [vmem:[%s627 + $0x34] sm:$0xf] %v654
                  %v656 = vld [vmem:[%s626 + $0x70] sm:$0xf]
                  %657 = vst [vmem:[%s627 + $0x38] sm:$0xf] %v656
                  %v658 = vld [vmem:[%s626 + $0x78] sm:$0xf]
                  %659 = vst [vmem:[%s627 + $0x3c] sm:$0xf] %v658
                  %v660 = vld [vmem:[%s626 + $0x80] sm:$0xf]
                  %661 = vst [vmem:[%s627 + $0x40] sm:$0xf] %v660
                  %v662 = vld [vmem:[%s626 + $0x88] sm:$0xf]
                  %663 = vst [vmem:[%s627 + $0x44] sm:$0xf] %v662
                  %v664 = vld [vmem:[%s626 + $0x90] sm:$0xf]
                  %665 = vst [vmem:[%s627 + $0x48] sm:$0xf] %v664
                  %v666 = vld [vmem:[%s626 + $0x98] sm:$0xf]
                  %667 = vst [vmem:[%s627 + $0x4c] sm:$0xf] %v666
                  %v668 = vld [vmem:[%s626 + $0xa0] sm:$0xf]
                  %669 = vst [vmem:[%s627 + $0x50] sm:$0xf] %v668
                  %v670 = vld [vmem:[%s626 + $0xa8] sm:$0xf]
                  %671 = vst [vmem:[%s627 + $0x54] sm:$0xf] %v670
                  %v672 = vld [vmem:[%s626 + $0xb0] sm:$0xf]
                  %673 = vst [vmem:[%s627 + $0x58] sm:$0xf] %v672
                  %v674 = vld [vmem:[%s626 + $0xb8] sm:$0xf]
                  %675 = vst [vmem:[%s627 + $0x5c] sm:$0xf] %v674
                  %v676 = vld [vmem:[%s626 + $0xc0] sm:$0xf]
                  %677 = vst [vmem:[%s627 + $0x60] sm:$0xf] %v676
                  %v678 = vld [vmem:[%s626 + $0xc8] sm:$0xf]
                  %679 = vst [vmem:[%s627 + $0x64] sm:$0xf] %v678
                  %v680 = vld [vmem:[%s626 + $0xd0] sm:$0xf]
                  %681 = vst [vmem:[%s627 + $0x68] sm:$0xf] %v680
                  %v682 = vld [vmem:[%s626 + $0xd8] sm:$0xf]
                  %683 = vst [vmem:[%s627 + $0x6c] sm:$0xf] %v682
                  %v684 = vld [vmem:[%s626 + $0xe0] sm:$0xf]
                  %685 = vst [vmem:[%s627 + $0x70] sm:$0xf] %v684
                  %v686 = vld [vmem:[%s626 + $0xe8] sm:$0xf]
                  %687 = vst [vmem:[%s627 + $0x74] sm:$0xf] %v686
                  %v688 = vld [vmem:[%s626 + $0xf0] sm:$0xf]
                  %689 = vst [vmem:[%s627 + $0x78] sm:$0xf] %v688
                  %v690 = vld [vmem:[%s626 + $0xf8] sm:$0xf]
                  %691 = vst [vmem:[%s627 + $0x7c] sm:$0xf] %v690
                  %v692 = vld [vmem:[%s626 + $0x100] sm:$0xf]
                  %693 = vst [vmem:[%s627 + $0x80] sm:$0xf] %v692
                  %v694 = vld [vmem:[%s626 + $0x108] sm:$0xf]
                  %695 = vst [vmem:[%s627 + $0x84] sm:$0xf] %v694
                  %v696 = vld [vmem:[%s626 + $0x110] sm:$0xf]
                  %697 = vst [vmem:[%s627 + $0x88] sm:$0xf] %v696
                  %v698 = vld [vmem:[%s626 + $0x118] sm:$0xf]
                  %699 = vst [vmem:[%s627 + $0x8c] sm:$0xf] %v698
                  %v700 = vld [vmem:[%s626 + $0x120] sm:$0xf]
                  %701 = vst [vmem:[%s627 + $0x90] sm:$0xf] %v700
                  %v702 = vld [vmem:[%s626 + $0x128] sm:$0xf]
                  %703 = vst [vmem:[%s627 + $0x94] sm:$0xf] %v702
                  %v704 = vld [vmem:[%s626 + $0x130] sm:$0xf]
                  %705 = vst [vmem:[%s627 + $0x98] sm:$0xf] %v704
                  %v706 = vld [vmem:[%s626 + $0x138] sm:$0xf]
                  %707 = vst [vmem:[%s627 + $0x9c] sm:$0xf] %v706
                  %v708 = vld [vmem:[%s626 + $0x140] sm:$0xf]
                  %709 = vst [vmem:[%s627 + $0xa0] sm:$0xf] %v708
                  %v710 = vld [vmem:[%s626 + $0x148] sm:$0xf]
                  %711 = vst [vmem:[%s627 + $0xa4] sm:$0xf] %v710
                  %v712 = vld [vmem:[%s626 + $0x150] sm:$0xf]
                  %713 = vst [vmem:[%s627 + $0xa8] sm:$0xf] %v712
                  %v714 = vld [vmem:[%s626 + $0x158] sm:$0xf]
                  %715 = vst [vmem:[%s627 + $0xac] sm:$0xf] %v714
                  %v716 = vld [vmem:[%s626 + $0x160] sm:$0xf]
                  %717 = vst [vmem:[%s627 + $0xb0] sm:$0xf] %v716
                  %v718 = vld [vmem:[%s626 + $0x168] sm:$0xf]
                  %719 = vst [vmem:[%s627 + $0xb4] sm:$0xf] %v718
                  %v720 = vld [vmem:[%s626 + $0x170] sm:$0xf]
                  %721 = vst [vmem:[%s627 + $0xb8] sm:$0xf] %v720
                  %v722 = vld [vmem:[%s626 + $0x178] sm:$0xf]
                  %723 = vst [vmem:[%s627 + $0xbc] sm:$0xf] %v722
                  %v724 = vld [vmem:[%s626 + $0x180] sm:$0xf]
                  %725 = vst [vmem:[%s627 + $0xc0] sm:$0xf] %v724
                  %v726 = vld [vmem:[%s626 + $0x188] sm:$0xf]
                  %727 = vst [vmem:[%s627 + $0xc4] sm:$0xf] %v726
                  %v728 = vld [vmem:[%s626 + $0x190] sm:$0xf]
                  %729 = vst [vmem:[%s627 + $0xc8] sm:$0xf] %v728
                  %v730 = vld [vmem:[%s626 + $0x198] sm:$0xf]
                  %731 = vst [vmem:[%s627 + $0xcc] sm:$0xf] %v730
                  %v732 = vld [vmem:[%s626 + $0x1a0] sm:$0xf]
                  %733 = vst [vmem:[%s627 + $0xd0] sm:$0xf] %v732
                  %v734 = vld [vmem:[%s626 + $0x1a8] sm:$0xf]
                  %735 = vst [vmem:[%s627 + $0xd4] sm:$0xf] %v734
                  %v736 = vld [vmem:[%s626 + $0x1b0] sm:$0xf]
                  %737 = vst [vmem:[%s627 + $0xd8] sm:$0xf] %v736
                  %v738 = vld [vmem:[%s626 + $0x1b8] sm:$0xf]
                  %739 = vst [vmem:[%s627 + $0xdc] sm:$0xf] %v738
                  %v740 = vld [vmem:[%s626 + $0x1c0] sm:$0xf]
                  %741 = vst [vmem:[%s627 + $0xe0] sm:$0xf] %v740
                  %v742 = vld [vmem:[%s626 + $0x1c8] sm:$0xf]
                  %743 = vst [vmem:[%s627 + $0xe4] sm:$0xf] %v742
                  %v744 = vld [vmem:[%s626 + $0x1d0] sm:$0xf]
                  %745 = vst [vmem:[%s627 + $0xe8] sm:$0xf] %v744
                  %v746 = vld [vmem:[%s626 + $0x1d8] sm:$0xf]
                  %747 = vst [vmem:[%s627 + $0xec] sm:$0xf] %v746
                  %v748 = vld [vmem:[%s626 + $0x1e0] sm:$0xf]
                  %749 = vst [vmem:[%s627 + $0xf0] sm:$0xf] %v748
                  %v750 = vld [vmem:[%s626 + $0x1e8] sm:$0xf]
                  %751 = vst [vmem:[%s627 + $0xf4] sm:$0xf] %v750
                  %v752 = vld [vmem:[%s626 + $0x1f0] sm:$0xf]
                  %753 = vst [vmem:[%s627 + $0xf8] sm:$0xf] %v752
                  %v754 = vld [vmem:[%s626 + $0x1f8] sm:$0xf]
                  %755 = vst [vmem:[%s627 + $0xfc] sm:$0xf] %v754
                  %v756 = vld [vmem:[%s626 + $0x200] sm:$0xf]
                  %757 = vst [vmem:[%s627 + $0x100] sm:$0xf] %v756
                  %v758 = vld [vmem:[%s626 + $0x208] sm:$0xf]
                  %759 = vst [vmem:[%s627 + $0x104] sm:$0xf] %v758
                  %v760 = vld [vmem:[%s626 + $0x210] sm:$0xf]
                  %761 = vst [vmem:[%s627 + $0x108] sm:$0xf] %v760
                  %v762 = vld [vmem:[%s626 + $0x218] sm:$0xf]
                  %763 = vst [vmem:[%s627 + $0x10c] sm:$0xf] %v762
                  %v764 = vld [vmem:[%s626 + $0x220] sm:$0xf]
                  %765 = vst [vmem:[%s627 + $0x110] sm:$0xf] %v764
                  %v766 = vld [vmem:[%s626 + $0x228] sm:$0xf]
                  %767 = vst [vmem:[%s627 + $0x114] sm:$0xf] %v766
                  %v768 = vld [vmem:[%s626 + $0x230] sm:$0xf]
                  %769 = vst [vmem:[%s627 + $0x118] sm:$0xf] %v768
                  %v770 = vld [vmem:[%s626 + $0x238] sm:$0xf]
                  %771 = vst [vmem:[%s627 + $0x11c] sm:$0xf] %v770
                  %v772 = vld [vmem:[%s626 + $0x240] sm:$0xf]
                  %773 = vst [vmem:[%s627 + $0x120] sm:$0xf] %v772
                  %v774 = vld [vmem:[%s626 + $0x248] sm:$0xf]
                  %775 = vst [vmem:[%s627 + $0x124] sm:$0xf] %v774
                  %v776 = vld [vmem:[%s626 + $0x250] sm:$0xf]
                  %777 = vst [vmem:[%s627 + $0x128] sm:$0xf] %v776
                  %v778 = vld [vmem:[%s626 + $0x258] sm:$0xf]
                  %779 = vst [vmem:[%s627 + $0x12c] sm:$0xf] %v778
                  %v780 = vld [vmem:[%s626 + $0x260] sm:$0xf]
                  %781 = vst [vmem:[%s627 + $0x130] sm:$0xf] %v780
                  %v782 = vld [vmem:[%s626 + $0x268] sm:$0xf]
                  %783 = vst [vmem:[%s627 + $0x134] sm:$0xf] %v782
                  %v784 = vld [vmem:[%s626 + $0x270] sm:$0xf]
                  %785 = vst [vmem:[%s627 + $0x138] sm:$0xf] %v784
                  %v786 = vld [vmem:[%s626 + $0x278] sm:$0xf]
                  %787 = vst [vmem:[%s627 + $0x13c] sm:$0xf] %v786
                  %v788 = vld [vmem:[%s626 + $0x280] sm:$0xf]
                  %789 = vst [vmem:[%s627 + $0x140] sm:$0xf] %v788
                  %v790 = vld [vmem:[%s626 + $0x288] sm:$0xf]
                  %791 = vst [vmem:[%s627 + $0x144] sm:$0xf] %v790
                  %v792 = vld [vmem:[%s626 + $0x290] sm:$0xf]
                  %793 = vst [vmem:[%s627 + $0x148] sm:$0xf] %v792
                  %v794 = vld [vmem:[%s626 + $0x298] sm:$0xf]
                  %795 = vst [vmem:[%s627 + $0x14c] sm:$0xf] %v794
                  %v796 = vld [vmem:[%s626 + $0x2a0] sm:$0xf]
                  %797 = vst [vmem:[%s627 + $0x150] sm:$0xf] %v796
                  %v798 = vld [vmem:[%s626 + $0x2a8] sm:$0xf]
                  %799 = vst [vmem:[%s627 + $0x154] sm:$0xf] %v798
                  %v800 = vld [vmem:[%s626 + $0x2b0] sm:$0xf]
                  %801 = vst [vmem:[%s627 + $0x158] sm:$0xf] %v800
                  %v802 = vld [vmem:[%s626 + $0x2b8] sm:$0xf]
                  %803 = vst [vmem:[%s627 + $0x15c] sm:$0xf] %v802
                  %v804 = vld [vmem:[%s626 + $0x2c0] sm:$0xf]
                  %805 = vst [vmem:[%s627 + $0x160] sm:$0xf] %v804
                  %v806 = vld [vmem:[%s626 + $0x2c8] sm:$0xf]
                  %807 = vst [vmem:[%s627 + $0x164] sm:$0xf] %v806
                  %v808 = vld [vmem:[%s626 + $0x2d0] sm:$0xf]
                  %809 = vst [vmem:[%s627 + $0x168] sm:$0xf] %v808
                  %v810 = vld [vmem:[%s626 + $0x2d8] sm:$0xf]
                  %811 = vst [vmem:[%s627 + $0x16c] sm:$0xf] %v810
                  %v812 = vld [vmem:[%s626 + $0x2e0] sm:$0xf]
                  %813 = vst [vmem:[%s627 + $0x170] sm:$0xf] %v812
                  %v814 = vld [vmem:[%s626 + $0x2e8] sm:$0xf]
                  %815 = vst [vmem:[%s627 + $0x174] sm:$0xf] %v814
                  %v816 = vld [vmem:[%s626 + $0x2f0] sm:$0xf]
                  %817 = vst [vmem:[%s627 + $0x178] sm:$0xf] %v816
                  %v818 = vld [vmem:[%s626 + $0x2f8] sm:$0xf]
                  %819 = vst [vmem:[%s627 + $0x17c] sm:$0xf] %v818
                  %v820 = vld [vmem:[%s626 + $0x300] sm:$0xf]
                  %821 = vst [vmem:[%s627 + $0x180] sm:$0xf] %v820
                  %v822 = vld [vmem:[%s626 + $0x308] sm:$0xf]
                  %823 = vst [vmem:[%s627 + $0x184] sm:$0xf] %v822
                  %v824 = vld [vmem:[%s626 + $0x310] sm:$0xf]
                  %825 = vst [vmem:[%s627 + $0x188] sm:$0xf] %v824
                  %v826 = vld [vmem:[%s626 + $0x318] sm:$0xf]
                  %827 = vst [vmem:[%s627 + $0x18c] sm:$0xf] %v826
                  %v828 = vld [vmem:[%s626 + $0x320] sm:$0xf]
                  %829 = vst [vmem:[%s627 + $0x190] sm:$0xf] %v828
                  %v830 = vld [vmem:[%s626 + $0x328] sm:$0xf]
                  %831 = vst [vmem:[%s627 + $0x194] sm:$0xf] %v830
                  %v832 = vld [vmem:[%s626 + $0x330] sm:$0xf]
                  %833 = vst [vmem:[%s627 + $0x198] sm:$0xf] %v832
                  %v834 = vld [vmem:[%s626 + $0x338] sm:$0xf]
                  %835 = vst [vmem:[%s627 + $0x19c] sm:$0xf] %v834
                  %v836 = vld [vmem:[%s626 + $0x340] sm:$0xf]
                  %837 = vst [vmem:[%s627 + $0x1a0] sm:$0xf] %v836
                  %v838 = vld [vmem:[%s626 + $0x348] sm:$0xf]
                  %839 = vst [vmem:[%s627 + $0x1a4] sm:$0xf] %v838
                  %v840 = vld [vmem:[%s626 + $0x350] sm:$0xf]
                  %841 = vst [vmem:[%s627 + $0x1a8] sm:$0xf] %v840
                  %v842 = vld [vmem:[%s626 + $0x358] sm:$0xf]
                  %843 = vst [vmem:[%s627 + $0x1ac] sm:$0xf] %v842
                  %v844 = vld [vmem:[%s626 + $0x360] sm:$0xf]
                  %845 = vst [vmem:[%s627 + $0x1b0] sm:$0xf] %v844
                  %v846 = vld [vmem:[%s626 + $0x368] sm:$0xf]
                  %847 = vst [vmem:[%s627 + $0x1b4] sm:$0xf] %v846
                  %v848 = vld [vmem:[%s626 + $0x370] sm:$0xf]
                  %849 = vst [vmem:[%s627 + $0x1b8] sm:$0xf] %v848
                  %v850 = vld [vmem:[%s626 + $0x378] sm:$0xf]
                  %851 = vst [vmem:[%s627 + $0x1bc] sm:$0xf] %v850
                  %v852 = vld [vmem:[%s626 + $0x380] sm:$0xf]
                  %853 = vst [vmem:[%s627 + $0x1c0] sm:$0xf] %v852
                  %v854 = vld [vmem:[%s626 + $0x388] sm:$0xf]
                  %855 = vst [vmem:[%s627 + $0x1c4] sm:$0xf] %v854
                  %v856 = vld [vmem:[%s626 + $0x390] sm:$0xf]
                  %857 = vst [vmem:[%s627 + $0x1c8] sm:$0xf] %v856
                  %v858 = vld [vmem:[%s626 + $0x398] sm:$0xf]
                  %859 = vst [vmem:[%s627 + $0x1cc] sm:$0xf] %v858
                  %v860 = vld [vmem:[%s626 + $0x3a0] sm:$0xf]
                  %861 = vst [vmem:[%s627 + $0x1d0] sm:$0xf] %v860
                  %v862 = vld [vmem:[%s626 + $0x3a8] sm:$0xf]
                  %863 = vst [vmem:[%s627 + $0x1d4] sm:$0xf] %v862
                  %v864 = vld [vmem:[%s626 + $0x3b0] sm:$0xf]
                  %865 = vst [vmem:[%s627 + $0x1d8] sm:$0xf] %v864
                  %v866 = vld [vmem:[%s626 + $0x3b8] sm:$0xf]
                  %867 = vst [vmem:[%s627 + $0x1dc] sm:$0xf] %v866
                  %v868 = vld [vmem:[%s626 + $0x3c0] sm:$0xf]
                  %869 = vst [vmem:[%s627 + $0x1e0] sm:$0xf] %v868
                  %v870 = vld [vmem:[%s626 + $0x3c8] sm:$0xf]
                  %871 = vst [vmem:[%s627 + $0x1e4] sm:$0xf] %v870
                  %v872 = vld [vmem:[%s626 + $0x3d0] sm:$0xf]
                  %873 = vst [vmem:[%s627 + $0x1e8] sm:$0xf] %v872
                  %v874 = vld [vmem:[%s626 + $0x3d8] sm:$0xf]
                  %875 = vst [vmem:[%s627 + $0x1ec] sm:$0xf] %v874
                  %v876 = vld [vmem:[%s626 + $0x3e0] sm:$0xf]
                  %877 = vst [vmem:[%s627 + $0x1f0] sm:$0xf] %v876
                  %v878 = vld [vmem:[%s626 + $0x3e8] sm:$0xf]
                  %879 = vst [vmem:[%s627 + $0x1f4] sm:$0xf] %v878
                  %v880 = vld [vmem:[%s626 + $0x3f0] sm:$0xf]
                  %881 = vst [vmem:[%s627 + $0x1f8] sm:$0xf] %v880
                  %v882 = vld [vmem:[%s626 + $0x3f8] sm:$0xf]
                  %883 = vst [vmem:[%s627 + $0x1fc] sm:$0xf] %v882
                $region78: #{cnn_discriminator_forward.4} parent=65 // loop_footer
                  %s625 = sadd.s32 1, %s621
                $region79: #{cnn_discriminator_forward.4} parent=65 // loop_footer_branch
                  %620 = sbr.rel target = $region75
                $region80: #{cnn_discriminator_forward.4} parent=65 // loop_exit
                  _
              $region66: #{cnn_discriminator_forward.4} parent=50 // pred_fallthru
                _
            $region51: #{cnn_discriminator_forward.4} parent=46 // pred_fallthru
              _
            // Predicated region
            $region52: #{cnn_discriminator_forward.4} parent=46 // pred_check
              _
            $region53: #{cnn_discriminator_forward.4} parent=46 // pred_check_branch
              %343 = sbr.rel (0) target = $region55
            $region54: #{cnn_discriminator_forward.4} parent=46 // pred_region
              loop: start=0, step=1, limit=1
              $region56: #{cnn_discriminator_forward.4} parent=54 // loop_pre_header
                _
              $region57: #{cnn_discriminator_forward.4} parent=54 // loop_header
                %s346 = sphi 0, %s350
                %p347 = scmp.ge.s32.totalorder %s346, 1
                %s351 = sphi %s337, %s337
                %s352 = sphi %s332, %s332
              $region58: #{cnn_discriminator_forward.4} parent=54 // loop_header_branch
                %349 = sbr.rel (%p347) target = $region62
              $region59: #{cnn_discriminator_forward.4} parent=54 // loop_body
                %v353 = vld [vmem:[%s351] sm:$0xf]
                %354 = vst [vmem:[%s352] sm:$0xf] %v353
                %v355 = vld [vmem:[%s351 + $0x8] sm:$0xf]
                %356 = vst [vmem:[%s352 + $0x4] sm:$0xf] %v355
                %v357 = vld [vmem:[%s351 + $0x10] sm:$0xf]
                %358 = vst [vmem:[%s352 + $0x8] sm:$0xf] %v357
                %v359 = vld [vmem:[%s351 + $0x18] sm:$0xf]
                %360 = vst [vmem:[%s352 + $0xc] sm:$0xf] %v359
                %v361 = vld [vmem:[%s351 + $0x20] sm:$0xf]
                %362 = vst [vmem:[%s352 + $0x10] sm:$0xf] %v361
                %v363 = vld [vmem:[%s351 + $0x28] sm:$0xf]
                %364 = vst [vmem:[%s352 + $0x14] sm:$0xf] %v363
                %v365 = vld [vmem:[%s351 + $0x30] sm:$0xf]
                %366 = vst [vmem:[%s352 + $0x18] sm:$0xf] %v365
                %v367 = vld [vmem:[%s351 + $0x38] sm:$0xf]
                %368 = vst [vmem:[%s352 + $0x1c] sm:$0xf] %v367
                %v369 = vld [vmem:[%s351 + $0x40] sm:$0xf]
                %370 = vst [vmem:[%s352 + $0x20] sm:$0xf] %v369
                %v371 = vld [vmem:[%s351 + $0x48] sm:$0xf]
                %372 = vst [vmem:[%s352 + $0x24] sm:$0xf] %v371
                %v373 = vld [vmem:[%s351 + $0x50] sm:$0xf]
                %374 = vst [vmem:[%s352 + $0x28] sm:$0xf] %v373
                %v375 = vld [vmem:[%s351 + $0x58] sm:$0xf]
                %376 = vst [vmem:[%s352 + $0x2c] sm:$0xf] %v375
                %v377 = vld [vmem:[%s351 + $0x60] sm:$0xf]
                %378 = vst [vmem:[%s352 + $0x30] sm:$0xf] %v377
                %v379 = vld [vmem:[%s351 + $0x68] sm:$0xf]
                %380 = vst [vmem:[%s352 + $0x34] sm:$0xf] %v379
                %v381 = vld [vmem:[%s351 + $0x70] sm:$0xf]
                %382 = vst [vmem:[%s352 + $0x38] sm:$0xf] %v381
                %v383 = vld [vmem:[%s351 + $0x78] sm:$0xf]
                %384 = vst [vmem:[%s352 + $0x3c] sm:$0xf] %v383
                %v385 = vld [vmem:[%s351 + $0x80] sm:$0xf]
                %386 = vst [vmem:[%s352 + $0x40] sm:$0xf] %v385
                %v387 = vld [vmem:[%s351 + $0x88] sm:$0xf]
                %388 = vst [vmem:[%s352 + $0x44] sm:$0xf] %v387
                %v389 = vld [vmem:[%s351 + $0x90] sm:$0xf]
                %390 = vst [vmem:[%s352 + $0x48] sm:$0xf] %v389
                %v391 = vld [vmem:[%s351 + $0x98] sm:$0xf]
                %392 = vst [vmem:[%s352 + $0x4c] sm:$0xf] %v391
                %v393 = vld [vmem:[%s351 + $0xa0] sm:$0xf]
                %394 = vst [vmem:[%s352 + $0x50] sm:$0xf] %v393
                %v395 = vld [vmem:[%s351 + $0xa8] sm:$0xf]
                %396 = vst [vmem:[%s352 + $0x54] sm:$0xf] %v395
                %v397 = vld [vmem:[%s351 + $0xb0] sm:$0xf]
                %398 = vst [vmem:[%s352 + $0x58] sm:$0xf] %v397
                %v399 = vld [vmem:[%s351 + $0xb8] sm:$0xf]
                %400 = vst [vmem:[%s352 + $0x5c] sm:$0xf] %v399
                %v401 = vld [vmem:[%s351 + $0xc0] sm:$0xf]
                %402 = vst [vmem:[%s352 + $0x60] sm:$0xf] %v401
                %v403 = vld [vmem:[%s351 + $0xc8] sm:$0xf]
                %404 = vst [vmem:[%s352 + $0x64] sm:$0xf] %v403
                %v405 = vld [vmem:[%s351 + $0xd0] sm:$0xf]
                %406 = vst [vmem:[%s352 + $0x68] sm:$0xf] %v405
                %v407 = vld [vmem:[%s351 + $0xd8] sm:$0xf]
                %408 = vst [vmem:[%s352 + $0x6c] sm:$0xf] %v407
                %v409 = vld [vmem:[%s351 + $0xe0] sm:$0xf]
                %410 = vst [vmem:[%s352 + $0x70] sm:$0xf] %v409
                %v411 = vld [vmem:[%s351 + $0xe8] sm:$0xf]
                %412 = vst [vmem:[%s352 + $0x74] sm:$0xf] %v411
                %v413 = vld [vmem:[%s351 + $0xf0] sm:$0xf]
                %414 = vst [vmem:[%s352 + $0x78] sm:$0xf] %v413
                %v415 = vld [vmem:[%s351 + $0xf8] sm:$0xf]
                %416 = vst [vmem:[%s352 + $0x7c] sm:$0xf] %v415
                %v417 = vld [vmem:[%s351 + $0x100] sm:$0xf]
                %418 = vst [vmem:[%s352 + $0x80] sm:$0xf] %v417
                %v419 = vld [vmem:[%s351 + $0x108] sm:$0xf]
                %420 = vst [vmem:[%s352 + $0x84] sm:$0xf] %v419
                %v421 = vld [vmem:[%s351 + $0x110] sm:$0xf]
                %422 = vst [vmem:[%s352 + $0x88] sm:$0xf] %v421
                %v423 = vld [vmem:[%s351 + $0x118] sm:$0xf]
                %424 = vst [vmem:[%s352 + $0x8c] sm:$0xf] %v423
                %v425 = vld [vmem:[%s351 + $0x120] sm:$0xf]
                %426 = vst [vmem:[%s352 + $0x90] sm:$0xf] %v425
                %v427 = vld [vmem:[%s351 + $0x128] sm:$0xf]
                %428 = vst [vmem:[%s352 + $0x94] sm:$0xf] %v427
                %v429 = vld [vmem:[%s351 + $0x130] sm:$0xf]
                %430 = vst [vmem:[%s352 + $0x98] sm:$0xf] %v429
                %v431 = vld [vmem:[%s351 + $0x138] sm:$0xf]
                %432 = vst [vmem:[%s352 + $0x9c] sm:$0xf] %v431
                %v433 = vld [vmem:[%s351 + $0x140] sm:$0xf]
                %434 = vst [vmem:[%s352 + $0xa0] sm:$0xf] %v433
                %v435 = vld [vmem:[%s351 + $0x148] sm:$0xf]
                %436 = vst [vmem:[%s352 + $0xa4] sm:$0xf] %v435
                %v437 = vld [vmem:[%s351 + $0x150] sm:$0xf]
                %438 = vst [vmem:[%s352 + $0xa8] sm:$0xf] %v437
                %v439 = vld [vmem:[%s351 + $0x158] sm:$0xf]
                %440 = vst [vmem:[%s352 + $0xac] sm:$0xf] %v439
                %v441 = vld [vmem:[%s351 + $0x160] sm:$0xf]
                %442 = vst [vmem:[%s352 + $0xb0] sm:$0xf] %v441
                %v443 = vld [vmem:[%s351 + $0x168] sm:$0xf]
                %444 = vst [vmem:[%s352 + $0xb4] sm:$0xf] %v443
                %v445 = vld [vmem:[%s351 + $0x170] sm:$0xf]
                %446 = vst [vmem:[%s352 + $0xb8] sm:$0xf] %v445
                %v447 = vld [vmem:[%s351 + $0x178] sm:$0xf]
                %448 = vst [vmem:[%s352 + $0xbc] sm:$0xf] %v447
                %v449 = vld [vmem:[%s351 + $0x180] sm:$0xf]
                %450 = vst [vmem:[%s352 + $0xc0] sm:$0xf] %v449
                %v451 = vld [vmem:[%s351 + $0x188] sm:$0xf]
                %452 = vst [vmem:[%s352 + $0xc4] sm:$0xf] %v451
                %v453 = vld [vmem:[%s351 + $0x190] sm:$0xf]
                %454 = vst [vmem:[%s352 + $0xc8] sm:$0xf] %v453
                %v455 = vld [vmem:[%s351 + $0x198] sm:$0xf]
                %456 = vst [vmem:[%s352 + $0xcc] sm:$0xf] %v455
                %v457 = vld [vmem:[%s351 + $0x1a0] sm:$0xf]
                %458 = vst [vmem:[%s352 + $0xd0] sm:$0xf] %v457
                %v459 = vld [vmem:[%s351 + $0x1a8] sm:$0xf]
                %460 = vst [vmem:[%s352 + $0xd4] sm:$0xf] %v459
                %v461 = vld [vmem:[%s351 + $0x1b0] sm:$0xf]
                %462 = vst [vmem:[%s352 + $0xd8] sm:$0xf] %v461
                %v463 = vld [vmem:[%s351 + $0x1b8] sm:$0xf]
                %464 = vst [vmem:[%s352 + $0xdc] sm:$0xf] %v463
                %v465 = vld [vmem:[%s351 + $0x1c0] sm:$0xf]
                %466 = vst [vmem:[%s352 + $0xe0] sm:$0xf] %v465
                %v467 = vld [vmem:[%s351 + $0x1c8] sm:$0xf]
                %468 = vst [vmem:[%s352 + $0xe4] sm:$0xf] %v467
                %v469 = vld [vmem:[%s351 + $0x1d0] sm:$0xf]
                %470 = vst [vmem:[%s352 + $0xe8] sm:$0xf] %v469
                %v471 = vld [vmem:[%s351 + $0x1d8] sm:$0xf]
                %472 = vst [vmem:[%s352 + $0xec] sm:$0xf] %v471
                %v473 = vld [vmem:[%s351 + $0x1e0] sm:$0xf]
                %474 = vst [vmem:[%s352 + $0xf0] sm:$0xf] %v473
                %v475 = vld [vmem:[%s351 + $0x1e8] sm:$0xf]
                %476 = vst [vmem:[%s352 + $0xf4] sm:$0xf] %v475
                %v477 = vld [vmem:[%s351 + $0x1f0] sm:$0xf]
                %478 = vst [vmem:[%s352 + $0xf8] sm:$0xf] %v477
                %v479 = vld [vmem:[%s351 + $0x1f8] sm:$0xf]
                %480 = vst [vmem:[%s352 + $0xfc] sm:$0xf] %v479
                %v481 = vld [vmem:[%s351 + $0x200] sm:$0xf]
                %482 = vst [vmem:[%s352 + $0x100] sm:$0xf] %v481
                %v483 = vld [vmem:[%s351 + $0x208] sm:$0xf]
                %484 = vst [vmem:[%s352 + $0x104] sm:$0xf] %v483
                %v485 = vld [vmem:[%s351 + $0x210] sm:$0xf]
                %486 = vst [vmem:[%s352 + $0x108] sm:$0xf] %v485
                %v487 = vld [vmem:[%s351 + $0x218] sm:$0xf]
                %488 = vst [vmem:[%s352 + $0x10c] sm:$0xf] %v487
                %v489 = vld [vmem:[%s351 + $0x220] sm:$0xf]
                %490 = vst [vmem:[%s352 + $0x110] sm:$0xf] %v489
                %v491 = vld [vmem:[%s351 + $0x228] sm:$0xf]
                %492 = vst [vmem:[%s352 + $0x114] sm:$0xf] %v491
                %v493 = vld [vmem:[%s351 + $0x230] sm:$0xf]
                %494 = vst [vmem:[%s352 + $0x118] sm:$0xf] %v493
                %v495 = vld [vmem:[%s351 + $0x238] sm:$0xf]
                %496 = vst [vmem:[%s352 + $0x11c] sm:$0xf] %v495
                %v497 = vld [vmem:[%s351 + $0x240] sm:$0xf]
                %498 = vst [vmem:[%s352 + $0x120] sm:$0xf] %v497
                %v499 = vld [vmem:[%s351 + $0x248] sm:$0xf]
                %500 = vst [vmem:[%s352 + $0x124] sm:$0xf] %v499
                %v501 = vld [vmem:[%s351 + $0x250] sm:$0xf]
                %502 = vst [vmem:[%s352 + $0x128] sm:$0xf] %v501
                %v503 = vld [vmem:[%s351 + $0x258] sm:$0xf]
                %504 = vst [vmem:[%s352 + $0x12c] sm:$0xf] %v503
                %v505 = vld [vmem:[%s351 + $0x260] sm:$0xf]
                %506 = vst [vmem:[%s352 + $0x130] sm:$0xf] %v505
                %v507 = vld [vmem:[%s351 + $0x268] sm:$0xf]
                %508 = vst [vmem:[%s352 + $0x134] sm:$0xf] %v507
                %v509 = vld [vmem:[%s351 + $0x270] sm:$0xf]
                %510 = vst [vmem:[%s352 + $0x138] sm:$0xf] %v509
                %v511 = vld [vmem:[%s351 + $0x278] sm:$0xf]
                %512 = vst [vmem:[%s352 + $0x13c] sm:$0xf] %v511
                %v513 = vld [vmem:[%s351 + $0x280] sm:$0xf]
                %514 = vst [vmem:[%s352 + $0x140] sm:$0xf] %v513
                %v515 = vld [vmem:[%s351 + $0x288] sm:$0xf]
                %516 = vst [vmem:[%s352 + $0x144] sm:$0xf] %v515
                %v517 = vld [vmem:[%s351 + $0x290] sm:$0xf]
                %518 = vst [vmem:[%s352 + $0x148] sm:$0xf] %v517
                %v519 = vld [vmem:[%s351 + $0x298] sm:$0xf]
                %520 = vst [vmem:[%s352 + $0x14c] sm:$0xf] %v519
                %v521 = vld [vmem:[%s351 + $0x2a0] sm:$0xf]
                %522 = vst [vmem:[%s352 + $0x150] sm:$0xf] %v521
                %v523 = vld [vmem:[%s351 + $0x2a8] sm:$0xf]
                %524 = vst [vmem:[%s352 + $0x154] sm:$0xf] %v523
                %v525 = vld [vmem:[%s351 + $0x2b0] sm:$0xf]
                %526 = vst [vmem:[%s352 + $0x158] sm:$0xf] %v525
                %v527 = vld [vmem:[%s351 + $0x2b8] sm:$0xf]
                %528 = vst [vmem:[%s352 + $0x15c] sm:$0xf] %v527
                %v529 = vld [vmem:[%s351 + $0x2c0] sm:$0xf]
                %530 = vst [vmem:[%s352 + $0x160] sm:$0xf] %v529
                %v531 = vld [vmem:[%s351 + $0x2c8] sm:$0xf]
                %532 = vst [vmem:[%s352 + $0x164] sm:$0xf] %v531
                %v533 = vld [vmem:[%s351 + $0x2d0] sm:$0xf]
                %534 = vst [vmem:[%s352 + $0x168] sm:$0xf] %v533
                %v535 = vld [vmem:[%s351 + $0x2d8] sm:$0xf]
                %536 = vst [vmem:[%s352 + $0x16c] sm:$0xf] %v535
                %v537 = vld [vmem:[%s351 + $0x2e0] sm:$0xf]
                %538 = vst [vmem:[%s352 + $0x170] sm:$0xf] %v537
                %v539 = vld [vmem:[%s351 + $0x2e8] sm:$0xf]
                %540 = vst [vmem:[%s352 + $0x174] sm:$0xf] %v539
                %v541 = vld [vmem:[%s351 + $0x2f0] sm:$0xf]
                %542 = vst [vmem:[%s352 + $0x178] sm:$0xf] %v541
                %v543 = vld [vmem:[%s351 + $0x2f8] sm:$0xf]
                %544 = vst [vmem:[%s352 + $0x17c] sm:$0xf] %v543
                %v545 = vld [vmem:[%s351 + $0x300] sm:$0xf]
                %546 = vst [vmem:[%s352 + $0x180] sm:$0xf] %v545
                %v547 = vld [vmem:[%s351 + $0x308] sm:$0xf]
                %548 = vst [vmem:[%s352 + $0x184] sm:$0xf] %v547
                %v549 = vld [vmem:[%s351 + $0x310] sm:$0xf]
                %550 = vst [vmem:[%s352 + $0x188] sm:$0xf] %v549
                %v551 = vld [vmem:[%s351 + $0x318] sm:$0xf]
                %552 = vst [vmem:[%s352 + $0x18c] sm:$0xf] %v551
                %v553 = vld [vmem:[%s351 + $0x320] sm:$0xf]
                %554 = vst [vmem:[%s352 + $0x190] sm:$0xf] %v553
                %v555 = vld [vmem:[%s351 + $0x328] sm:$0xf]
                %556 = vst [vmem:[%s352 + $0x194] sm:$0xf] %v555
                %v557 = vld [vmem:[%s351 + $0x330] sm:$0xf]
                %558 = vst [vmem:[%s352 + $0x198] sm:$0xf] %v557
                %v559 = vld [vmem:[%s351 + $0x338] sm:$0xf]
                %560 = vst [vmem:[%s352 + $0x19c] sm:$0xf] %v559
                %v561 = vld [vmem:[%s351 + $0x340] sm:$0xf]
                %562 = vst [vmem:[%s352 + $0x1a0] sm:$0xf] %v561
                %v563 = vld [vmem:[%s351 + $0x348] sm:$0xf]
                %564 = vst [vmem:[%s352 + $0x1a4] sm:$0xf] %v563
                %v565 = vld [vmem:[%s351 + $0x350] sm:$0xf]
                %566 = vst [vmem:[%s352 + $0x1a8] sm:$0xf] %v565
                %v567 = vld [vmem:[%s351 + $0x358] sm:$0xf]
                %568 = vst [vmem:[%s352 + $0x1ac] sm:$0xf] %v567
                %v569 = vld [vmem:[%s351 + $0x360] sm:$0xf]
                %570 = vst [vmem:[%s352 + $0x1b0] sm:$0xf] %v569
                %v571 = vld [vmem:[%s351 + $0x368] sm:$0xf]
                %572 = vst [vmem:[%s352 + $0x1b4] sm:$0xf] %v571
                %v573 = vld [vmem:[%s351 + $0x370] sm:$0xf]
                %574 = vst [vmem:[%s352 + $0x1b8] sm:$0xf] %v573
                %v575 = vld [vmem:[%s351 + $0x378] sm:$0xf]
                %576 = vst [vmem:[%s352 + $0x1bc] sm:$0xf] %v575
                %v577 = vld [vmem:[%s351 + $0x380] sm:$0xf]
                %578 = vst [vmem:[%s352 + $0x1c0] sm:$0xf] %v577
                %v579 = vld [vmem:[%s351 + $0x388] sm:$0xf]
                %580 = vst [vmem:[%s352 + $0x1c4] sm:$0xf] %v579
                %v581 = vld [vmem:[%s351 + $0x390] sm:$0xf]
                %582 = vst [vmem:[%s352 + $0x1c8] sm:$0xf] %v581
                %v583 = vld [vmem:[%s351 + $0x398] sm:$0xf]
                %584 = vst [vmem:[%s352 + $0x1cc] sm:$0xf] %v583
                %v585 = vld [vmem:[%s351 + $0x3a0] sm:$0xf]
                %586 = vst [vmem:[%s352 + $0x1d0] sm:$0xf] %v585
                %v587 = vld [vmem:[%s351 + $0x3a8] sm:$0xf]
                %588 = vst [vmem:[%s352 + $0x1d4] sm:$0xf] %v587
                %v589 = vld [vmem:[%s351 + $0x3b0] sm:$0xf]
                %590 = vst [vmem:[%s352 + $0x1d8] sm:$0xf] %v589
                %v591 = vld [vmem:[%s351 + $0x3b8] sm:$0xf]
                %592 = vst [vmem:[%s352 + $0x1dc] sm:$0xf] %v591
                %v593 = vld [vmem:[%s351 + $0x3c0] sm:$0xf]
                %594 = vst [vmem:[%s352 + $0x1e0] sm:$0xf] %v593
                %v595 = vld [vmem:[%s351 + $0x3c8] sm:$0xf]
                %596 = vst [vmem:[%s352 + $0x1e4] sm:$0xf] %v595
                %v597 = vld [vmem:[%s351 + $0x3d0] sm:$0xf]
                %598 = vst [vmem:[%s352 + $0x1e8] sm:$0xf] %v597
                %v599 = vld [vmem:[%s351 + $0x3d8] sm:$0xf]
                %600 = vst [vmem:[%s352 + $0x1ec] sm:$0xf] %v599
                %v601 = vld [vmem:[%s351 + $0x3e0] sm:$0xf]
                %602 = vst [vmem:[%s352 + $0x1f0] sm:$0xf] %v601
                %v603 = vld [vmem:[%s351 + $0x3e8] sm:$0xf]
                %604 = vst [vmem:[%s352 + $0x1f4] sm:$0xf] %v603
                %v605 = vld [vmem:[%s351 + $0x3f0] sm:$0xf]
                %606 = vst [vmem:[%s352 + $0x1f8] sm:$0xf] %v605
                %v607 = vld [vmem:[%s351 + $0x3f8] sm:$0xf]
                %608 = vst [vmem:[%s352 + $0x1fc] sm:$0xf] %v607
              $region60: #{cnn_discriminator_forward.4} parent=54 // loop_footer
                %s350 = sadd.s32 1, %s346
              $region61: #{cnn_discriminator_forward.4} parent=54 // loop_footer_branch
                %345 = sbr.rel target = $region57
              $region62: #{cnn_discriminator_forward.4} parent=54 // loop_exit
                _
            $region55: #{cnn_discriminator_forward.4} parent=46 // pred_fallthru
              _
          $region47: #{cnn_discriminator_forward.4} parent=42 // pred_fallthru
            _
          %884 = vnop
        $region43: #{cnn_discriminator_forward.4} parent=15 // pred_fallthru
          _
        // Predicated region
        $region81: #{cnn_discriminator_forward.4} parent=15 // pred_check
          %p885 = pneg %p96
        $region82: #{cnn_discriminator_forward.4} parent=15 // pred_check_branch
          %887 = sbr.rel (%p885) target = $region84
        $region83: #{cnn_discriminator_forward.4} parent=15 // pred_region
          %p888 = scmp.lt.s32.totalorder %s17, 1
          %s889 = scalar_select %p888, %s17, 1
          %s890 = scalar_lea.vmem %s2, %s889
        $region84: #{cnn_discriminator_forward.4} parent=15 // pred_fallthru
          _
        // Predicated region
        $region85: #{cnn_discriminator_forward.4} parent=15 // pred_check
          %p891 = pneg %p122
        $region86: #{cnn_discriminator_forward.4} parent=15 // pred_check_branch
          %893 = sbr.rel (%p891) target = $region88
        $region87: #{cnn_discriminator_forward.4} parent=15 // pred_region
          %p894 = scmp.lt.s32.totalorder %s17, 1
          %s895 = scalar_select %p894, %s17, 1
          %s896 = scalar_lea.vmem %s3, %s895
        $region88: #{cnn_discriminator_forward.4} parent=15 // pred_fallthru
          _
      $region16: #{cnn_discriminator_forward.4} parent=5 // pred_fallthru
        _
      %p897 = scmp.le.s32.totalorder 1, %s10
      %p898 = scmp.lt.s32.totalorder %s10, 5
      %p899 = pnand %p897, %p898
      %p900 = pneg %p899
      // Predicated region
      $region89: #{cnn_discriminator_forward.4} parent=5 // pred_check
        _
      $region90: #{cnn_discriminator_forward.4} parent=5 // pred_check_branch
        %902 = sbr.rel (%p899) target = $region92
      $region91: #{cnn_discriminator_forward.4} parent=5 // pred_region
        %s903 = ssub.s32 %s10, 1
        %s904 = sand.u32 %s35, 1
        %s905 = sand.u32 %s35, 1
        %s906 = smul.addr %s905, 512
        %s907 = scalar_lea.vmem [#allocation3], %s906
        // Predicated region
        $region93: #{cnn_discriminator_forward.4} parent=91 // pred_check
          %p908 = pneg %p48
        $region94: #{cnn_discriminator_forward.4} parent=91 // pred_check_branch
          %910 = sbr.rel (%p908) target = $region96
        $region95: #{cnn_discriminator_forward.4} parent=91 // pred_region
          _
        $region96: #{cnn_discriminator_forward.4} parent=91 // pred_fallthru
          _
        %s911 = sand.u32 %s63, 1
        %s912 = sand.u32 %s63, 1
        %s913 = smul.addr %s912, 512
        %s914 = scalar_lea.vmem [#allocation4], %s913
        // Predicated region
        $region97: #{cnn_discriminator_forward.4} parent=91 // pred_check
          %p915 = pneg %p76
        $region98: #{cnn_discriminator_forward.4} parent=91 // pred_check_branch
          %917 = sbr.rel (%p915) target = $region100
        $region99: #{cnn_discriminator_forward.4} parent=91 // pred_region
          _
        $region100: #{cnn_discriminator_forward.4} parent=91 // pred_fallthru
          _
        %s918 = sand.u32 %s35, 1
        %s919 = sand.u32 %s35, 1
        %s920 = smul.addr %s919, 512
        %s921 = scalar_lea.vmem [#allocation3], %s920
        %p922 = pneg %p48
        %p923 = pneg %p45
        %s924 = sand.u32 %s63, 1
        %s925 = sand.u32 %s63, 1
        %s926 = smul.addr %s925, 512
        %s927 = scalar_lea.vmem [#allocation4], %s926
        %p928 = pneg %p76
        %p929 = pneg %p73
        %p930 = scmp.lt.s32.totalorder %s19, 1
        %s931 = scalar_select %p930, %s19, 1
        %s932 = scalar_lea.vmem %s2, %s931
        %p933 = pneg %p102
        %p934 = pneg %p99
        %p935 = scmp.lt.s32.totalorder %s19, 1
        %s936 = scalar_select %p935, %s19, 1
        %s937 = scalar_lea.vmem %s3, %s936
        %p938 = pneg %p128
        %p939 = pneg %p125
        %p940 = pneg %p154
        %p941 = pneg %p151
        %s942 = sand.u32 %s141, 1
        %s943 = sand.u32 %s141, 1
        %s944 = smul.addr %s943, 64
        %s945 = scalar_lea.vmem [#allocation5], %s944
        %s946 = smul.u32 8, %s20
        %s947 = smul.u32 128, %s20
        %p948 = scmp.lt.s32.totalorder %s19, 1
        %s949 = scalar_select %p948, %s19, 1
        %s950 = scalar_lea.vmem %s2, %s949
        %p951 = scmp.lt.s32.totalorder %s19, 1
        %s952 = scalar_select %p951, %s19, 1
        %s953 = scalar_lea.vmem %s3, %s952
        %p955 = scmp.eq.s32.totalorder %s20, 0
        // Predicated region
        $region101: #{cnn_discriminator_forward.4} parent=91 // pred_check
          %p956 = pneg %p955
        $region102: #{cnn_discriminator_forward.4} parent=91 // pred_check_branch
          %958 = sbr.rel (%p956) target = $region104
        $region103: #{cnn_discriminator_forward.4} parent=91 // pred_region
          %959 = vst [vmem:[#allocation2] sm:$0xff] 0.0
          %960 = vst [vmem:[#allocation2 + $0x8] sm:$0xff] 0.0
          %961 = vst [vmem:[#allocation2 + $0x10] sm:$0xff] 0.0
          %962 = vst [vmem:[#allocation2 + $0x18] sm:$0xff] 0.0
          %963 = vst [vmem:[#allocation2 + $0x20] sm:$0xff] 0.0
          %964 = vst [vmem:[#allocation2 + $0x28] sm:$0xff] 0.0
          %965 = vst [vmem:[#allocation2 + $0x30] sm:$0xff] 0.0
          %966 = vst [vmem:[#allocation2 + $0x38] sm:$0xff] 0.0
          %967 = vst [vmem:[#allocation2 + $0x40] sm:$0xff] 0.0
          %968 = vst [vmem:[#allocation2 + $0x48] sm:$0xff] 0.0
          %969 = vst [vmem:[#allocation2 + $0x50] sm:$0xff] 0.0
          %970 = vst [vmem:[#allocation2 + $0x58] sm:$0xff] 0.0
          %971 = vst [vmem:[#allocation2 + $0x60] sm:$0xff] 0.0
          %972 = vst [vmem:[#allocation2 + $0x68] sm:$0xff] 0.0
          %973 = vst [vmem:[#allocation2 + $0x70] sm:$0xff] 0.0
          %974 = vst [vmem:[#allocation2 + $0x78] sm:$0xff] 0.0
        $region104: #{cnn_discriminator_forward.4} parent=91 // pred_fallthru
          _
        %v975 = vld [vmem:[#allocation2] sm:$0xff]
        %v976 = vld [vmem:[#allocation2 + $0x8] sm:$0xff]
        %v977 = vld [vmem:[#allocation2 + $0x10] sm:$0xff]
        %v978 = vld [vmem:[#allocation2 + $0x18] sm:$0xff]
        %v979 = vld [vmem:[#allocation2 + $0x20] sm:$0xff]
        %v980 = vld [vmem:[#allocation2 + $0x28] sm:$0xff]
        %v981 = vld [vmem:[#allocation2 + $0x30] sm:$0xff]
        %v982 = vld [vmem:[#allocation2 + $0x38] sm:$0xff]
        %v983 = vld [vmem:[#allocation2 + $0x40] sm:$0xff]
        %v984 = vld [vmem:[#allocation2 + $0x48] sm:$0xff]
        %v985 = vld [vmem:[#allocation2 + $0x50] sm:$0xff]
        %v986 = vld [vmem:[#allocation2 + $0x58] sm:$0xff]
        %v987 = vld [vmem:[#allocation2 + $0x60] sm:$0xff]
        %v988 = vld [vmem:[#allocation2 + $0x68] sm:$0xff]
        %v989 = vld [vmem:[#allocation2 + $0x70] sm:$0xff]
        %v990 = vld [vmem:[#allocation2 + $0x78] sm:$0xff]
        %v991 = vld [vmem:[%s907] sm:$0xff]
        %v992 = vld [vmem:[%s907 + $0x8] sm:$0xff]
        %v993 = vld [vmem:[%s907 + $0x10] sm:$0xff]
        %v994 = vld [vmem:[%s907 + $0x18] sm:$0xff]
        %v995 = vld [vmem:[%s907 + $0x20] sm:$0xff]
        %v996 = vld [vmem:[%s907 + $0x28] sm:$0xff]
        %v997 = vld [vmem:[%s907 + $0x30] sm:$0xff]
        %v998 = vld [vmem:[%s907 + $0x38] sm:$0xff]
        %v999 = vld [vmem:[%s907 + $0x40] sm:$0xff]
        %v1000 = vld [vmem:[%s907 + $0x48] sm:$0xff]
        %v1001 = vld [vmem:[%s907 + $0x50] sm:$0xff]
        %v1002 = vld [vmem:[%s907 + $0x58] sm:$0xff]
        %v1003 = vld [vmem:[%s907 + $0x60] sm:$0xff]
        %v1004 = vld [vmem:[%s907 + $0x68] sm:$0xff]
        %v1005 = vld [vmem:[%s907 + $0x70] sm:$0xff]
        %v1006 = vld [vmem:[%s907 + $0x78] sm:$0xff]
        %v1007 = vld [vmem:[%s907 + $0x80] sm:$0xff]
        %v1008 = vld [vmem:[%s907 + $0x88] sm:$0xff]
        %v1009 = vld [vmem:[%s907 + $0x90] sm:$0xff]
        %v1010 = vld [vmem:[%s907 + $0x98] sm:$0xff]
        %v1011 = vld [vmem:[%s907 + $0xa0] sm:$0xff]
        %v1012 = vld [vmem:[%s907 + $0xa8] sm:$0xff]
        %v1013 = vld [vmem:[%s907 + $0xb0] sm:$0xff]
        %v1014 = vld [vmem:[%s907 + $0xb8] sm:$0xff]
        %v1015 = vld [vmem:[%s907 + $0xc0] sm:$0xff]
        %v1016 = vld [vmem:[%s907 + $0xc8] sm:$0xff]
        %v1017 = vld [vmem:[%s907 + $0xd0] sm:$0xff]
        %v1018 = vld [vmem:[%s907 + $0xd8] sm:$0xff]
        %v1019 = vld [vmem:[%s907 + $0xe0] sm:$0xff]
        %v1020 = vld [vmem:[%s907 + $0xe8] sm:$0xff]
        %v1021 = vld [vmem:[%s907 + $0xf0] sm:$0xff]
        %v1022 = vld [vmem:[%s907 + $0xf8] sm:$0xff]
        %v1023 = vld [vmem:[%s907 + $0x100] sm:$0xff]
        %v1024 = vld [vmem:[%s907 + $0x108] sm:$0xff]
        %v1025 = vld [vmem:[%s907 + $0x110] sm:$0xff]
        %v1026 = vld [vmem:[%s907 + $0x118] sm:$0xff]
        %v1027 = vld [vmem:[%s907 + $0x120] sm:$0xff]
        %v1028 = vld [vmem:[%s907 + $0x128] sm:$0xff]
        %v1029 = vld [vmem:[%s907 + $0x130] sm:$0xff]
        %v1030 = vld [vmem:[%s907 + $0x138] sm:$0xff]
        %v1031 = vld [vmem:[%s907 + $0x140] sm:$0xff]
        %v1032 = vld [vmem:[%s907 + $0x148] sm:$0xff]
        %v1033 = vld [vmem:[%s907 + $0x150] sm:$0xff]
        %v1034 = vld [vmem:[%s907 + $0x158] sm:$0xff]
        %v1035 = vld [vmem:[%s907 + $0x160] sm:$0xff]
        %v1036 = vld [vmem:[%s907 + $0x168] sm:$0xff]
        %v1037 = vld [vmem:[%s907 + $0x170] sm:$0xff]
        %v1038 = vld [vmem:[%s907 + $0x178] sm:$0xff]
        %v1039 = vld [vmem:[%s907 + $0x180] sm:$0xff]
        %v1040 = vld [vmem:[%s907 + $0x188] sm:$0xff]
        %v1041 = vld [vmem:[%s907 + $0x190] sm:$0xff]
        %v1042 = vld [vmem:[%s907 + $0x198] sm:$0xff]
        %v1043 = vld [vmem:[%s907 + $0x1a0] sm:$0xff]
        %v1044 = vld [vmem:[%s907 + $0x1a8] sm:$0xff]
        %v1045 = vld [vmem:[%s907 + $0x1b0] sm:$0xff]
        %v1046 = vld [vmem:[%s907 + $0x1b8] sm:$0xff]
        %v1047 = vld [vmem:[%s907 + $0x1c0] sm:$0xff]
        %v1048 = vld [vmem:[%s907 + $0x1c8] sm:$0xff]
        %v1049 = vld [vmem:[%s907 + $0x1d0] sm:$0xff]
        %v1050 = vld [vmem:[%s907 + $0x1d8] sm:$0xff]
        %v1051 = vld [vmem:[%s907 + $0x1e0] sm:$0xff]
        %v1052 = vld [vmem:[%s907 + $0x1e8] sm:$0xff]
        %v1053 = vld [vmem:[%s907 + $0x1f0] sm:$0xff]
        %v1054 = vld [vmem:[%s907 + $0x1f8] sm:$0xff]
        %v1055 = vld [vmem:[%s914] sm:$0xf]
        %v1056 = vld [vmem:[%s914 + $0x4] sm:$0xf]
        %v1057 = vld [vmem:[%s914 + $0x8] sm:$0xf]
        %v1058 = vld [vmem:[%s914 + $0xc] sm:$0xf]
        %v1059 = vld [vmem:[%s914 + $0x10] sm:$0xf]
        %v1060 = vld [vmem:[%s914 + $0x14] sm:$0xf]
        %v1061 = vld [vmem:[%s914 + $0x18] sm:$0xf]
        %v1062 = vld [vmem:[%s914 + $0x1c] sm:$0xf]
        %v1063 = vld [vmem:[%s914 + $0x20] sm:$0xf]
        %v1064 = vld [vmem:[%s914 + $0x24] sm:$0xf]
        %v1065 = vld [vmem:[%s914 + $0x28] sm:$0xf]
        %v1066 = vld [vmem:[%s914 + $0x2c] sm:$0xf]
        %v1067 = vld [vmem:[%s914 + $0x30] sm:$0xf]
        %v1068 = vld [vmem:[%s914 + $0x34] sm:$0xf]
        %v1069 = vld [vmem:[%s914 + $0x38] sm:$0xf]
        %v1070 = vld [vmem:[%s914 + $0x3c] sm:$0xf]
        %v1071 = vld [vmem:[%s914 + $0x40] sm:$0xf]
        %v1072 = vld [vmem:[%s914 + $0x44] sm:$0xf]
        %v1073 = vld [vmem:[%s914 + $0x48] sm:$0xf]
        %v1074 = vld [vmem:[%s914 + $0x4c] sm:$0xf]
        %v1075 = vld [vmem:[%s914 + $0x50] sm:$0xf]
        %v1076 = vld [vmem:[%s914 + $0x54] sm:$0xf]
        %v1077 = vld [vmem:[%s914 + $0x58] sm:$0xf]
        %v1078 = vld [vmem:[%s914 + $0x5c] sm:$0xf]
        %v1079 = vld [vmem:[%s914 + $0x60] sm:$0xf]
        %v1080 = vld [vmem:[%s914 + $0x64] sm:$0xf]
        %v1081 = vld [vmem:[%s914 + $0x68] sm:$0xf]
        %v1082 = vld [vmem:[%s914 + $0x6c] sm:$0xf]
        %v1083 = vld [vmem:[%s914 + $0x70] sm:$0xf]
        %v1084 = vld [vmem:[%s914 + $0x74] sm:$0xf]
        %v1085 = vld [vmem:[%s914 + $0x78] sm:$0xf]
        %v1086 = vld [vmem:[%s914 + $0x7c] sm:$0xf]
        %v1087 = vld [vmem:[%s914 + $0x80] sm:$0xf]
        %v1088 = vld [vmem:[%s914 + $0x84] sm:$0xf]
        %v1089 = vld [vmem:[%s914 + $0x88] sm:$0xf]
        %v1090 = vld [vmem:[%s914 + $0x8c] sm:$0xf]
        %v1091 = vld [vmem:[%s914 + $0x90] sm:$0xf]
        %v1092 = vld [vmem:[%s914 + $0x94] sm:$0xf]
        %v1093 = vld [vmem:[%s914 + $0x98] sm:$0xf]
        %v1094 = vld [vmem:[%s914 + $0x9c] sm:$0xf]
        %v1095 = vld [vmem:[%s914 + $0xa0] sm:$0xf]
        %v1096 = vld [vmem:[%s914 + $0xa4] sm:$0xf]
        %v1097 = vld [vmem:[%s914 + $0xa8] sm:$0xf]
        %v1098 = vld [vmem:[%s914 + $0xac] sm:$0xf]
        %v1099 = vld [vmem:[%s914 + $0xb0] sm:$0xf]
        %v1100 = vld [vmem:[%s914 + $0xb4] sm:$0xf]
        %v1101 = vld [vmem:[%s914 + $0xb8] sm:$0xf]
        %v1102 = vld [vmem:[%s914 + $0xbc] sm:$0xf]
        %v1103 = vld [vmem:[%s914 + $0xc0] sm:$0xf]
        %v1104 = vld [vmem:[%s914 + $0xc4] sm:$0xf]
        %v1105 = vld [vmem:[%s914 + $0xc8] sm:$0xf]
        %v1106 = vld [vmem:[%s914 + $0xcc] sm:$0xf]
        %v1107 = vld [vmem:[%s914 + $0xd0] sm:$0xf]
        %v1108 = vld [vmem:[%s914 + $0xd4] sm:$0xf]
        %v1109 = vld [vmem:[%s914 + $0xd8] sm:$0xf]
        %v1110 = vld [vmem:[%s914 + $0xdc] sm:$0xf]
        %v1111 = vld [vmem:[%s914 + $0xe0] sm:$0xf]
        %v1112 = vld [vmem:[%s914 + $0xe4] sm:$0xf]
        %v1113 = vld [vmem:[%s914 + $0xe8] sm:$0xf]
        %v1114 = vld [vmem:[%s914 + $0xec] sm:$0xf]
        %v1115 = vld [vmem:[%s914 + $0xf0] sm:$0xf]
        %v1116 = vld [vmem:[%s914 + $0xf4] sm:$0xf]
        %v1117 = vld [vmem:[%s914 + $0xf8] sm:$0xf]
        %v1118 = vld [vmem:[%s914 + $0xfc] sm:$0xf]
        %v1119 = vld [vmem:[%s914 + $0x100] sm:$0xf]
        %v1120 = vld [vmem:[%s914 + $0x104] sm:$0xf]
        %v1121 = vld [vmem:[%s914 + $0x108] sm:$0xf]
        %v1122 = vld [vmem:[%s914 + $0x10c] sm:$0xf]
        %v1123 = vld [vmem:[%s914 + $0x110] sm:$0xf]
        %v1124 = vld [vmem:[%s914 + $0x114] sm:$0xf]
        %v1125 = vld [vmem:[%s914 + $0x118] sm:$0xf]
        %v1126 = vld [vmem:[%s914 + $0x11c] sm:$0xf]
        %v1127 = vld [vmem:[%s914 + $0x120] sm:$0xf]
        %v1128 = vld [vmem:[%s914 + $0x124] sm:$0xf]
        %v1129 = vld [vmem:[%s914 + $0x128] sm:$0xf]
        %v1130 = vld [vmem:[%s914 + $0x12c] sm:$0xf]
        %v1131 = vld [vmem:[%s914 + $0x130] sm:$0xf]
        %v1132 = vld [vmem:[%s914 + $0x134] sm:$0xf]
        %v1133 = vld [vmem:[%s914 + $0x138] sm:$0xf]
        %v1134 = vld [vmem:[%s914 + $0x13c] sm:$0xf]
        %v1135 = vld [vmem:[%s914 + $0x140] sm:$0xf]
        %v1136 = vld [vmem:[%s914 + $0x144] sm:$0xf]
        %v1137 = vld [vmem:[%s914 + $0x148] sm:$0xf]
        %v1138 = vld [vmem:[%s914 + $0x14c] sm:$0xf]
        %v1139 = vld [vmem:[%s914 + $0x150] sm:$0xf]
        %v1140 = vld [vmem:[%s914 + $0x154] sm:$0xf]
        %v1141 = vld [vmem:[%s914 + $0x158] sm:$0xf]
        %v1142 = vld [vmem:[%s914 + $0x15c] sm:$0xf]
        %v1143 = vld [vmem:[%s914 + $0x160] sm:$0xf]
        %v1144 = vld [vmem:[%s914 + $0x164] sm:$0xf]
        %v1145 = vld [vmem:[%s914 + $0x168] sm:$0xf]
        %v1146 = vld [vmem:[%s914 + $0x16c] sm:$0xf]
        %v1147 = vld [vmem:[%s914 + $0x170] sm:$0xf]
        %v1148 = vld [vmem:[%s914 + $0x174] sm:$0xf]
        %v1149 = vld [vmem:[%s914 + $0x178] sm:$0xf]
        %v1150 = vld [vmem:[%s914 + $0x17c] sm:$0xf]
        %v1151 = vld [vmem:[%s914 + $0x180] sm:$0xf]
        %v1152 = vld [vmem:[%s914 + $0x184] sm:$0xf]
        %v1153 = vld [vmem:[%s914 + $0x188] sm:$0xf]
        %v1154 = vld [vmem:[%s914 + $0x18c] sm:$0xf]
        %v1155 = vld [vmem:[%s914 + $0x190] sm:$0xf]
        %v1156 = vld [vmem:[%s914 + $0x194] sm:$0xf]
        %v1157 = vld [vmem:[%s914 + $0x198] sm:$0xf]
        %v1158 = vld [vmem:[%s914 + $0x19c] sm:$0xf]
        %v1159 = vld [vmem:[%s914 + $0x1a0] sm:$0xf]
        %v1160 = vld [vmem:[%s914 + $0x1a4] sm:$0xf]
        %v1161 = vld [vmem:[%s914 + $0x1a8] sm:$0xf]
        %v1162 = vld [vmem:[%s914 + $0x1ac] sm:$0xf]
        %v1163 = vld [vmem:[%s914 + $0x1b0] sm:$0xf]
        %v1164 = vld [vmem:[%s914 + $0x1b4] sm:$0xf]
        %v1165 = vld [vmem:[%s914 + $0x1b8] sm:$0xf]
        %v1166 = vld [vmem:[%s914 + $0x1bc] sm:$0xf]
        %v1167 = vld [vmem:[%s914 + $0x1c0] sm:$0xf]
        %v1168 = vld [vmem:[%s914 + $0x1c4] sm:$0xf]
        %v1169 = vld [vmem:[%s914 + $0x1c8] sm:$0xf]
        %v1170 = vld [vmem:[%s914 + $0x1cc] sm:$0xf]
        %v1171 = vld [vmem:[%s914 + $0x1d0] sm:$0xf]
        %v1172 = vld [vmem:[%s914 + $0x1d4] sm:$0xf]
        %v1173 = vld [vmem:[%s914 + $0x1d8] sm:$0xf]
        %v1174 = vld [vmem:[%s914 + $0x1dc] sm:$0xf]
        %v1175 = vld [vmem:[%s914 + $0x1e0] sm:$0xf]
        %v1176 = vld [vmem:[%s914 + $0x1e4] sm:$0xf]
        %v1177 = vld [vmem:[%s914 + $0x1e8] sm:$0xf]
        %v1178 = vld [vmem:[%s914 + $0x1ec] sm:$0xf]
        %v1179 = vld [vmem:[%s914 + $0x1f0] sm:$0xf]
        %v1180 = vld [vmem:[%s914 + $0x1f4] sm:$0xf]
        %v1181 = vld [vmem:[%s914 + $0x1f8] sm:$0xf]
        %v1182 = vld [vmem:[%s914 + $0x1fc] sm:$0xf]
        %v1247 = vunpack.c.l.b16 %v991
        %v1248 = vunpack.c.h.b16 %v991
        %v1249 = vunpack.c.l.b16 %v992
        %v1250 = vunpack.c.h.b16 %v992
        %v1251 = vunpack.c.l.b16 %v993
        %v1252 = vunpack.c.h.b16 %v993
        %v1253 = vunpack.c.l.b16 %v994
        %v1254 = vunpack.c.h.b16 %v994
        %v1255 = vunpack.c.l.b16 %v995
        %v1256 = vunpack.c.h.b16 %v995
        %v1257 = vunpack.c.l.b16 %v996
        %v1258 = vunpack.c.h.b16 %v996
        %v1259 = vunpack.c.l.b16 %v997
        %v1260 = vunpack.c.h.b16 %v997
        %v1261 = vunpack.c.l.b16 %v998
        %v1262 = vunpack.c.h.b16 %v998
        %v1263 = vunpack.c.l.b16 %v999
        %v1264 = vunpack.c.h.b16 %v999
        %v1265 = vunpack.c.l.b16 %v1000
        %v1266 = vunpack.c.h.b16 %v1000
        %v1267 = vunpack.c.l.b16 %v1001
        %v1268 = vunpack.c.h.b16 %v1001
        %v1269 = vunpack.c.l.b16 %v1002
        %v1270 = vunpack.c.h.b16 %v1002
        %v1271 = vunpack.c.l.b16 %v1003
        %v1272 = vunpack.c.h.b16 %v1003
        %v1273 = vunpack.c.l.b16 %v1004
        %v1274 = vunpack.c.h.b16 %v1004
        %v1275 = vunpack.c.l.b16 %v1005
        %v1276 = vunpack.c.h.b16 %v1005
        %v1277 = vunpack.c.l.b16 %v1006
        %v1278 = vunpack.c.h.b16 %v1006
        %v1279 = vunpack.c.l.b16 %v1007
        %v1280 = vunpack.c.h.b16 %v1007
        %v1281 = vunpack.c.l.b16 %v1008
        %v1282 = vunpack.c.h.b16 %v1008
        %v1283 = vunpack.c.l.b16 %v1009
        %v1284 = vunpack.c.h.b16 %v1009
        %v1285 = vunpack.c.l.b16 %v1010
        %v1286 = vunpack.c.h.b16 %v1010
        %v1287 = vunpack.c.l.b16 %v1011
        %v1288 = vunpack.c.h.b16 %v1011
        %v1289 = vunpack.c.l.b16 %v1012
        %v1290 = vunpack.c.h.b16 %v1012
        %v1291 = vunpack.c.l.b16 %v1013
        %v1292 = vunpack.c.h.b16 %v1013
        %v1293 = vunpack.c.l.b16 %v1014
        %v1294 = vunpack.c.h.b16 %v1014
        %v1295 = vunpack.c.l.b16 %v1015
        %v1296 = vunpack.c.h.b16 %v1015
        %v1297 = vunpack.c.l.b16 %v1016
        %v1298 = vunpack.c.h.b16 %v1016
        %v1299 = vunpack.c.l.b16 %v1017
        %v1300 = vunpack.c.h.b16 %v1017
        %v1301 = vunpack.c.l.b16 %v1018
        %v1302 = vunpack.c.h.b16 %v1018
        %v1303 = vunpack.c.l.b16 %v1019
        %v1304 = vunpack.c.h.b16 %v1019
        %v1305 = vunpack.c.l.b16 %v1020
        %v1306 = vunpack.c.h.b16 %v1020
        %v1307 = vunpack.c.l.b16 %v1021
        %v1308 = vunpack.c.h.b16 %v1021
        %v1309 = vunpack.c.l.b16 %v1022
        %v1310 = vunpack.c.h.b16 %v1022
        %v1311 = vunpack.c.l.b16 %v1023
        %v1312 = vunpack.c.h.b16 %v1023
        %v1313 = vunpack.c.l.b16 %v1024
        %v1314 = vunpack.c.h.b16 %v1024
        %v1315 = vunpack.c.l.b16 %v1025
        %v1316 = vunpack.c.h.b16 %v1025
        %v1317 = vunpack.c.l.b16 %v1026
        %v1318 = vunpack.c.h.b16 %v1026
        %v1319 = vunpack.c.l.b16 %v1027
        %v1320 = vunpack.c.h.b16 %v1027
        %v1321 = vunpack.c.l.b16 %v1028
        %v1322 = vunpack.c.h.b16 %v1028
        %v1323 = vunpack.c.l.b16 %v1029
        %v1324 = vunpack.c.h.b16 %v1029
        %v1325 = vunpack.c.l.b16 %v1030
        %v1326 = vunpack.c.h.b16 %v1030
        %v1327 = vunpack.c.l.b16 %v1031
        %v1328 = vunpack.c.h.b16 %v1031
        %v1329 = vunpack.c.l.b16 %v1032
        %v1330 = vunpack.c.h.b16 %v1032
        %v1331 = vunpack.c.l.b16 %v1033
        %v1332 = vunpack.c.h.b16 %v1033
        %v1333 = vunpack.c.l.b16 %v1034
        %v1334 = vunpack.c.h.b16 %v1034
        %v1335 = vunpack.c.l.b16 %v1035
        %v1336 = vunpack.c.h.b16 %v1035
        %v1337 = vunpack.c.l.b16 %v1036
        %v1338 = vunpack.c.h.b16 %v1036
        %v1339 = vunpack.c.l.b16 %v1037
        %v1340 = vunpack.c.h.b16 %v1037
        %v1341 = vunpack.c.l.b16 %v1038
        %v1342 = vunpack.c.h.b16 %v1038
        %v1343 = vunpack.c.l.b16 %v1039
        %v1344 = vunpack.c.h.b16 %v1039
        %v1345 = vunpack.c.l.b16 %v1040
        %v1346 = vunpack.c.h.b16 %v1040
        %v1347 = vunpack.c.l.b16 %v1041
        %v1348 = vunpack.c.h.b16 %v1041
        %v1349 = vunpack.c.l.b16 %v1042
        %v1350 = vunpack.c.h.b16 %v1042
        %v1351 = vunpack.c.l.b16 %v1043
        %v1352 = vunpack.c.h.b16 %v1043
        %v1353 = vunpack.c.l.b16 %v1044
        %v1354 = vunpack.c.h.b16 %v1044
        %v1355 = vunpack.c.l.b16 %v1045
        %v1356 = vunpack.c.h.b16 %v1045
        %v1357 = vunpack.c.l.b16 %v1046
        %v1358 = vunpack.c.h.b16 %v1046
        %v1359 = vunpack.c.l.b16 %v1047
        %v1360 = vunpack.c.h.b16 %v1047
        %v1361 = vunpack.c.l.b16 %v1048
        %v1362 = vunpack.c.h.b16 %v1048
        %v1363 = vunpack.c.l.b16 %v1049
        %v1364 = vunpack.c.h.b16 %v1049
        %v1365 = vunpack.c.l.b16 %v1050
        %v1366 = vunpack.c.h.b16 %v1050
        %v1367 = vunpack.c.l.b16 %v1051
        %v1368 = vunpack.c.h.b16 %v1051
        %v1369 = vunpack.c.l.b16 %v1052
        %v1370 = vunpack.c.h.b16 %v1052
        %v1371 = vunpack.c.l.b16 %v1053
        %v1372 = vunpack.c.h.b16 %v1053
        %v1373 = vunpack.c.l.b16 %v1054
        %v1374 = vunpack.c.h.b16 %v1054
        %v1375 = vpack.c.b16 %v1255, %v1247
        %v1376 = vpack.c.b16 %v1256, %v1248
        %v1377 = vpack.c.b16 %v1257, %v1249
        %v1378 = vpack.c.b16 %v1258, %v1250
        %v1379 = vpack.c.b16 %v1259, %v1251
        %v1380 = vpack.c.b16 %v1260, %v1252
        %v1381 = vpack.c.b16 %v1261, %v1253
        %v1382 = vpack.c.b16 %v1262, %v1254
        %v1383 = vpack.c.b16 %v1271, %v1263
        %v1384 = vpack.c.b16 %v1272, %v1264
        %v1385 = vpack.c.b16 %v1273, %v1265
        %v1386 = vpack.c.b16 %v1274, %v1266
        %v1387 = vpack.c.b16 %v1275, %v1267
        %v1388 = vpack.c.b16 %v1276, %v1268
        %v1389 = vpack.c.b16 %v1277, %v1269
        %v1390 = vpack.c.b16 %v1278, %v1270
        %v1391 = vpack.c.b16 %v1287, %v1279
        %v1392 = vpack.c.b16 %v1288, %v1280
        %v1393 = vpack.c.b16 %v1289, %v1281
        %v1394 = vpack.c.b16 %v1290, %v1282
        %v1395 = vpack.c.b16 %v1291, %v1283
        %v1396 = vpack.c.b16 %v1292, %v1284
        %v1397 = vpack.c.b16 %v1293, %v1285
        %v1398 = vpack.c.b16 %v1294, %v1286
        %v1399 = vpack.c.b16 %v1303, %v1295
        %v1400 = vpack.c.b16 %v1304, %v1296
        %v1401 = vpack.c.b16 %v1305, %v1297
        %v1402 = vpack.c.b16 %v1306, %v1298
        %v1403 = vpack.c.b16 %v1307, %v1299
        %v1404 = vpack.c.b16 %v1308, %v1300
        %v1405 = vpack.c.b16 %v1309, %v1301
        %v1406 = vpack.c.b16 %v1310, %v1302
        %v1407 = vpack.c.b16 %v1319, %v1311
        %v1408 = vpack.c.b16 %v1320, %v1312
        %v1409 = vpack.c.b16 %v1321, %v1313
        %v1410 = vpack.c.b16 %v1322, %v1314
        %v1411 = vpack.c.b16 %v1323, %v1315
        %v1412 = vpack.c.b16 %v1324, %v1316
        %v1413 = vpack.c.b16 %v1325, %v1317
        %v1414 = vpack.c.b16 %v1326, %v1318
        %v1415 = vpack.c.b16 %v1335, %v1327
        %v1416 = vpack.c.b16 %v1336, %v1328
        %v1417 = vpack.c.b16 %v1337, %v1329
        %v1418 = vpack.c.b16 %v1338, %v1330
        %v1419 = vpack.c.b16 %v1339, %v1331
        %v1420 = vpack.c.b16 %v1340, %v1332
        %v1421 = vpack.c.b16 %v1341, %v1333
        %v1422 = vpack.c.b16 %v1342, %v1334
        %v1423 = vpack.c.b16 %v1351, %v1343
        %v1424 = vpack.c.b16 %v1352, %v1344
        %v1425 = vpack.c.b16 %v1353, %v1345
        %v1426 = vpack.c.b16 %v1354, %v1346
        %v1427 = vpack.c.b16 %v1355, %v1347
        %v1428 = vpack.c.b16 %v1356, %v1348
        %v1429 = vpack.c.b16 %v1357, %v1349
        %v1430 = vpack.c.b16 %v1358, %v1350
        %v1431 = vpack.c.b16 %v1367, %v1359
        %v1432 = vpack.c.b16 %v1368, %v1360
        %v1433 = vpack.c.b16 %v1369, %v1361
        %v1434 = vpack.c.b16 %v1370, %v1362
        %v1435 = vpack.c.b16 %v1371, %v1363
        %v1436 = vpack.c.b16 %v1372, %v1364
        %v1437 = vpack.c.b16 %v1373, %v1365
        %v1438 = vpack.c.b16 %v1374, %v1366
        %v1631 = vunpack.c.l.b16 %v1055
        %v1632 = vunpack.c.l.b16 %v1056
        %v1633 = vunpack.c.l.b16 %v1057
        %v1634 = vunpack.c.l.b16 %v1058
        %v1635 = vunpack.c.l.b16 %v1059
        %v1636 = vunpack.c.l.b16 %v1060
        %v1637 = vunpack.c.l.b16 %v1061
        %v1638 = vunpack.c.l.b16 %v1062
        %v1639 = vunpack.c.l.b16 %v1063
        %v1640 = vunpack.c.l.b16 %v1064
        %v1641 = vunpack.c.l.b16 %v1065
        %v1642 = vunpack.c.l.b16 %v1066
        %v1643 = vunpack.c.l.b16 %v1067
        %v1644 = vunpack.c.l.b16 %v1068
        %v1645 = vunpack.c.l.b16 %v1069
        %v1646 = vunpack.c.l.b16 %v1070
        %v1647 = vunpack.c.l.b16 %v1071
        %v1648 = vunpack.c.l.b16 %v1072
        %v1649 = vunpack.c.l.b16 %v1073
        %v1650 = vunpack.c.l.b16 %v1074
        %v1651 = vunpack.c.l.b16 %v1075
        %v1652 = vunpack.c.l.b16 %v1076
        %v1653 = vunpack.c.l.b16 %v1077
        %v1654 = vunpack.c.l.b16 %v1078
        %v1655 = vunpack.c.l.b16 %v1079
        %v1656 = vunpack.c.l.b16 %v1080
        %v1657 = vunpack.c.l.b16 %v1081
        %v1658 = vunpack.c.l.b16 %v1082
        %v1659 = vunpack.c.l.b16 %v1083
        %v1660 = vunpack.c.l.b16 %v1084
        %v1661 = vunpack.c.l.b16 %v1085
        %v1662 = vunpack.c.l.b16 %v1086
        %v1663 = vunpack.c.l.b16 %v1087
        %v1664 = vunpack.c.l.b16 %v1088
        %v1665 = vunpack.c.l.b16 %v1089
        %v1666 = vunpack.c.l.b16 %v1090
        %v1667 = vunpack.c.l.b16 %v1091
        %v1668 = vunpack.c.l.b16 %v1092
        %v1669 = vunpack.c.l.b16 %v1093
        %v1670 = vunpack.c.l.b16 %v1094
        %v1671 = vunpack.c.l.b16 %v1095
        %v1672 = vunpack.c.l.b16 %v1096
        %v1673 = vunpack.c.l.b16 %v1097
        %v1674 = vunpack.c.l.b16 %v1098
        %v1675 = vunpack.c.l.b16 %v1099
        %v1676 = vunpack.c.l.b16 %v1100
        %v1677 = vunpack.c.l.b16 %v1101
        %v1678 = vunpack.c.l.b16 %v1102
        %v1679 = vunpack.c.l.b16 %v1103
        %v1680 = vunpack.c.l.b16 %v1104
        %v1681 = vunpack.c.l.b16 %v1105
        %v1682 = vunpack.c.l.b16 %v1106
        %v1683 = vunpack.c.l.b16 %v1107
        %v1684 = vunpack.c.l.b16 %v1108
        %v1685 = vunpack.c.l.b16 %v1109
        %v1686 = vunpack.c.l.b16 %v1110
        %v1687 = vunpack.c.l.b16 %v1111
        %v1688 = vunpack.c.l.b16 %v1112
        %v1689 = vunpack.c.l.b16 %v1113
        %v1690 = vunpack.c.l.b16 %v1114
        %v1691 = vunpack.c.l.b16 %v1115
        %v1692 = vunpack.c.l.b16 %v1116
        %v1693 = vunpack.c.l.b16 %v1117
        %v1694 = vunpack.c.l.b16 %v1118
        %v1695 = vunpack.c.l.b16 %v1119
        %v1696 = vunpack.c.l.b16 %v1120
        %v1697 = vunpack.c.l.b16 %v1121
        %v1698 = vunpack.c.l.b16 %v1122
        %v1699 = vunpack.c.l.b16 %v1123
        %v1700 = vunpack.c.l.b16 %v1124
        %v1701 = vunpack.c.l.b16 %v1125
        %v1702 = vunpack.c.l.b16 %v1126
        %v1703 = vunpack.c.l.b16 %v1127
        %v1704 = vunpack.c.l.b16 %v1128
        %v1705 = vunpack.c.l.b16 %v1129
        %v1706 = vunpack.c.l.b16 %v1130
        %v1707 = vunpack.c.l.b16 %v1131
        %v1708 = vunpack.c.l.b16 %v1132
        %v1709 = vunpack.c.l.b16 %v1133
        %v1710 = vunpack.c.l.b16 %v1134
        %v1711 = vunpack.c.l.b16 %v1135
        %v1712 = vunpack.c.l.b16 %v1136
        %v1713 = vunpack.c.l.b16 %v1137
        %v1714 = vunpack.c.l.b16 %v1138
        %v1715 = vunpack.c.l.b16 %v1139
        %v1716 = vunpack.c.l.b16 %v1140
        %v1717 = vunpack.c.l.b16 %v1141
        %v1718 = vunpack.c.l.b16 %v1142
        %v1719 = vunpack.c.l.b16 %v1143
        %v1720 = vunpack.c.l.b16 %v1144
        %v1721 = vunpack.c.l.b16 %v1145
        %v1722 = vunpack.c.l.b16 %v1146
        %v1723 = vunpack.c.l.b16 %v1147
        %v1724 = vunpack.c.l.b16 %v1148
        %v1725 = vunpack.c.l.b16 %v1149
        %v1726 = vunpack.c.l.b16 %v1150
        %v1727 = vunpack.c.l.b16 %v1151
        %v1728 = vunpack.c.l.b16 %v1152
        %v1729 = vunpack.c.l.b16 %v1153
        %v1730 = vunpack.c.l.b16 %v1154
        %v1731 = vunpack.c.l.b16 %v1155
        %v1732 = vunpack.c.l.b16 %v1156
        %v1733 = vunpack.c.l.b16 %v1157
        %v1734 = vunpack.c.l.b16 %v1158
        %v1735 = vunpack.c.l.b16 %v1159
        %v1736 = vunpack.c.l.b16 %v1160
        %v1737 = vunpack.c.l.b16 %v1161
        %v1738 = vunpack.c.l.b16 %v1162
        %v1739 = vunpack.c.l.b16 %v1163
        %v1740 = vunpack.c.l.b16 %v1164
        %v1741 = vunpack.c.l.b16 %v1165
        %v1742 = vunpack.c.l.b16 %v1166
        %v1743 = vunpack.c.l.b16 %v1167
        %v1744 = vunpack.c.l.b16 %v1168
        %v1745 = vunpack.c.l.b16 %v1169
        %v1746 = vunpack.c.l.b16 %v1170
        %v1747 = vunpack.c.l.b16 %v1171
        %v1748 = vunpack.c.l.b16 %v1172
        %v1749 = vunpack.c.l.b16 %v1173
        %v1750 = vunpack.c.l.b16 %v1174
        %v1751 = vunpack.c.l.b16 %v1175
        %v1752 = vunpack.c.l.b16 %v1176
        %v1753 = vunpack.c.l.b16 %v1177
        %v1754 = vunpack.c.l.b16 %v1178
        %v1755 = vunpack.c.l.b16 %v1179
        %v1756 = vunpack.c.l.b16 %v1180
        %v1757 = vunpack.c.l.b16 %v1181
        %v1758 = vunpack.c.l.b16 %v1182
        %v1759 = vpack.c.b16 %v1632, %v1631
        %v1760 = vpack.c.b16 %v1634, %v1633
        %v1761 = vpack.c.b16 %v1636, %v1635
        %v1762 = vpack.c.b16 %v1638, %v1637
        %v1763 = vpack.c.b16 %v1640, %v1639
        %v1764 = vpack.c.b16 %v1642, %v1641
        %v1765 = vpack.c.b16 %v1644, %v1643
        %v1766 = vpack.c.b16 %v1646, %v1645
        %v1767 = vpack.c.b16 %v1648, %v1647
        %v1768 = vpack.c.b16 %v1650, %v1649
        %v1769 = vpack.c.b16 %v1652, %v1651
        %v1770 = vpack.c.b16 %v1654, %v1653
        %v1771 = vpack.c.b16 %v1656, %v1655
        %v1772 = vpack.c.b16 %v1658, %v1657
        %v1773 = vpack.c.b16 %v1660, %v1659
        %v1774 = vpack.c.b16 %v1662, %v1661
        %v1775 = vpack.c.b16 %v1664, %v1663
        %v1776 = vpack.c.b16 %v1666, %v1665
        %v1777 = vpack.c.b16 %v1668, %v1667
        %v1778 = vpack.c.b16 %v1670, %v1669
        %v1779 = vpack.c.b16 %v1672, %v1671
        %v1780 = vpack.c.b16 %v1674, %v1673
        %v1781 = vpack.c.b16 %v1676, %v1675
        %v1782 = vpack.c.b16 %v1678, %v1677
        %v1783 = vpack.c.b16 %v1680, %v1679
        %v1784 = vpack.c.b16 %v1682, %v1681
        %v1785 = vpack.c.b16 %v1684, %v1683
        %v1786 = vpack.c.b16 %v1686, %v1685
        %v1787 = vpack.c.b16 %v1688, %v1687
        %v1788 = vpack.c.b16 %v1690, %v1689
        %v1789 = vpack.c.b16 %v1692, %v1691
        %v1790 = vpack.c.b16 %v1694, %v1693
        %v1791 = vpack.c.b16 %v1696, %v1695
        %v1792 = vpack.c.b16 %v1698, %v1697
        %v1793 = vpack.c.b16 %v1700, %v1699
        %v1794 = vpack.c.b16 %v1702, %v1701
        %v1795 = vpack.c.b16 %v1704, %v1703
        %v1796 = vpack.c.b16 %v1706, %v1705
        %v1797 = vpack.c.b16 %v1708, %v1707
        %v1798 = vpack.c.b16 %v1710, %v1709
        %v1799 = vpack.c.b16 %v1712, %v1711
        %v1800 = vpack.c.b16 %v1714, %v1713
        %v1801 = vpack.c.b16 %v1716, %v1715
        %v1802 = vpack.c.b16 %v1718, %v1717
        %v1803 = vpack.c.b16 %v1720, %v1719
        %v1804 = vpack.c.b16 %v1722, %v1721
        %v1805 = vpack.c.b16 %v1724, %v1723
        %v1806 = vpack.c.b16 %v1726, %v1725
        %v1807 = vpack.c.b16 %v1728, %v1727
        %v1808 = vpack.c.b16 %v1730, %v1729
        %v1809 = vpack.c.b16 %v1732, %v1731
        %v1810 = vpack.c.b16 %v1734, %v1733
        %v1811 = vpack.c.b16 %v1736, %v1735
        %v1812 = vpack.c.b16 %v1738, %v1737
        %v1813 = vpack.c.b16 %v1740, %v1739
        %v1814 = vpack.c.b16 %v1742, %v1741
        %v1815 = vpack.c.b16 %v1744, %v1743
        %v1816 = vpack.c.b16 %v1746, %v1745
        %v1817 = vpack.c.b16 %v1748, %v1747
        %v1818 = vpack.c.b16 %v1750, %v1749
        %v1819 = vpack.c.b16 %v1752, %v1751
        %v1820 = vpack.c.b16 %v1754, %v1753
        %v1821 = vpack.c.b16 %v1756, %v1755
        %v1822 = vpack.c.b16 %v1758, %v1757
        %1887 = vmatprep.subr.bf16.mxu0 0
        %1888 = vmatpush1.bf16.msra.mxu0 %v1759
        %1889 = vmatprep.subr.bf16.mxu0 0
        %1890 = vmatpush1.bf16.msra.mxu0 %v1760
        %1891 = vmatprep.subr.bf16.mxu0 0
        %1892 = vmatpush1.bf16.msra.mxu0 %v1761
        %1893 = vmatprep.subr.bf16.mxu0 0
        %1894 = vmatpush1.bf16.msra.mxu0 %v1762
        %1895 = vmatprep.subr.bf16.mxu0 0
        %1896 = vmatpush1.bf16.msra.mxu0 %v1763
        %1897 = vmatprep.subr.bf16.mxu0 0
        %1898 = vmatpush1.bf16.msra.mxu0 %v1764
        %1899 = vmatprep.subr.bf16.mxu0 0
        %1900 = vmatpush1.bf16.msra.mxu0 %v1765
        %1901 = vmatprep.subr.bf16.mxu0 0
        %1902 = vmatpush1.bf16.msra.mxu0 %v1766
        %1903 = vmatprep.subr.bf16.mxu0 0
        %1904 = vmatpush1.bf16.msra.mxu0 %v1767
        %1905 = vmatprep.subr.bf16.mxu0 0
        %1906 = vmatpush1.bf16.msra.mxu0 %v1768
        %1907 = vmatprep.subr.bf16.mxu0 0
        %1908 = vmatpush1.bf16.msra.mxu0 %v1769
        %1909 = vmatprep.subr.bf16.mxu0 0
        %1910 = vmatpush1.bf16.msra.mxu0 %v1770
        %1911 = vmatprep.subr.bf16.mxu0 0
        %1912 = vmatpush1.bf16.msra.mxu0 %v1771
        %1913 = vmatprep.subr.bf16.mxu0 0
        %1914 = vmatpush1.bf16.msra.mxu0 %v1772
        %1915 = vmatprep.subr.bf16.mxu0 0
        %1916 = vmatpush1.bf16.msra.mxu0 %v1773
        %1917 = vmatprep.subr.bf16.mxu0 0
        %1918 = vmatpush1.bf16.msra.mxu0 %v1774
        %1919 = vmatprep.mubr.bf16.mxu0 %v1376
        %1920 = vmatmul.mubr.bf16.gmra.mrb[0].mxu0 %v1375
        %v1921 = vpop.f32.mrb[0].mxu0
        %v1922 = vadd.f32 0.0, %v1921
        %v1923 = vpop.f32.mrb[0].mxu0
        %v1924 = vpop.f32.mrb[0].mxu0
        %v1925 = vadd.f32 0.0, %v1924
        %v1926 = vpop.f32.mrb[0].mxu0
        %1927 = vmatprep.mubr.bf16.mxu0 %v1384
        %1928 = vmatmul.mubr.bf16.gmra.mrb[0].mxu0 %v1383
        %v1929 = vpop.f32.mrb[0].mxu0
        %v1930 = vadd.f32 0.0, %v1929
        %v1931 = vpop.f32.mrb[0].mxu0
        %v1932 = vpop.f32.mrb[0].mxu0
        %v1933 = vadd.f32 0.0, %v1932
        %v1934 = vpop.f32.mrb[0].mxu0
        %1935 = vmatprep.mubr.bf16.mxu0 %v1392
        %1936 = vmatmul.mubr.bf16.gmra.mrb[0].mxu0 %v1391
        %v1937 = vpop.f32.mrb[0].mxu0
        %v1938 = vadd.f32 0.0, %v1937
        %v1939 = vpop.f32.mrb[0].mxu0
        %v1940 = vpop.f32.mrb[0].mxu0
        %v1941 = vadd.f32 0.0, %v1940
        %v1942 = vpop.f32.mrb[0].mxu0
        %1943 = vmatprep.mubr.bf16.mxu0 %v1400
        %1944 = vmatmul.mubr.bf16.gmra.mrb[0].mxu0 %v1399
        %v1945 = vpop.f32.mrb[0].mxu0
        %v1946 = vadd.f32 0.0, %v1945
        %v1947 = vpop.f32.mrb[0].mxu0
        %v1948 = vpop.f32.mrb[0].mxu0
        %v1949 = vadd.f32 0.0, %v1948
        %v1950 = vpop.f32.mrb[0].mxu0
        %1951 = vmatprep.mubr.bf16.mxu0 %v1408
        %1952 = vmatmul.mubr.bf16.gmra.mrb[0].mxu0 %v1407
        %v1953 = vpop.f32.mrb[0].mxu0
        %v1954 = vadd.f32 0.0, %v1953
        %v1955 = vpop.f32.mrb[0].mxu0
        %v1956 = vpop.f32.mrb[0].mxu0
        %v1957 = vadd.f32 0.0, %v1956
        %v1958 = vpop.f32.mrb[0].mxu0
        %1959 = vmatprep.mubr.bf16.mxu0 %v1416
        %1960 = vmatmul.mubr.bf16.gmra.mrb[0].mxu0 %v1415
        %v1961 = vpop.f32.mrb[0].mxu0
        %v1962 = vadd.f32 0.0, %v1961
        %v1963 = vpop.f32.mrb[0].mxu0
        %v1964 = vpop.f32.mrb[0].mxu0
        %v1965 = vadd.f32 0.0, %v1964
        %v1966 = vpop.f32.mrb[0].mxu0
        %1967 = vmatprep.mubr.bf16.mxu0 %v1424
        %1968 = vmatmul.mubr.bf16.gmra.mrb[0].mxu0 %v1423
        %v1969 = vpop.f32.mrb[0].mxu0
        %v1970 = vadd.f32 0.0, %v1969
        %v1971 = vpop.f32.mrb[0].mxu0
        %v1972 = vpop.f32.mrb[0].mxu0
        %v1973 = vadd.f32 0.0, %v1972
        %v1974 = vpop.f32.mrb[0].mxu0
        %1975 = vmatprep.mubr.bf16.mxu0 %v1432
        %1976 = vmatmul.mubr.bf16.gmra.mrb[0].mxu0 %v1431
        %v1977 = vpop.f32.mrb[0].mxu0
        %v1978 = vadd.f32 0.0, %v1977
        %v1979 = vpop.f32.mrb[0].mxu0
        %v1980 = vpop.f32.mrb[0].mxu0
        %v1981 = vadd.f32 0.0, %v1980
        %v1982 = vpop.f32.mrb[0].mxu0
        %1983 = vdwg.mxu0
        %1984 = vmatprep.subr.bf16.mxu0 0
        %1985 = vmatpush1.bf16.msra.mxu0 %v1775
        %1986 = vmatprep.subr.bf16.mxu0 0
        %1987 = vmatpush1.bf16.msra.mxu0 %v1776
        %1988 = vmatprep.subr.bf16.mxu0 0
        %1989 = vmatpush1.bf16.msra.mxu0 %v1777
        %1990 = vmatprep.subr.bf16.mxu0 0
        %1991 = vmatpush1.bf16.msra.mxu0 %v1778
        %1992 = vmatprep.subr.bf16.mxu0 0
        %1993 = vmatpush1.bf16.msra.mxu0 %v1779
        %1994 = vmatprep.subr.bf16.mxu0 0
        %1995 = vmatpush1.bf16.msra.mxu0 %v1780
        %1996 = vmatprep.subr.bf16.mxu0 0
        %1997 = vmatpush1.bf16.msra.mxu0 %v1781
        %1998 = vmatprep.subr.bf16.mxu0 0
        %1999 = vmatpush1.bf16.msra.mxu0 %v1782
        %2000 = vmatprep.subr.bf16.mxu0 0
        %2001 = vmatpush1.bf16.msra.mxu0 %v1783
        %2002 = vmatprep.subr.bf16.mxu0 0
        %2003 = vmatpush1.bf16.msra.mxu0 %v1784
        %2004 = vmatprep.subr.bf16.mxu0 0
        %2005 = vmatpush1.bf16.msra.mxu0 %v1785
        %2006 = vmatprep.subr.bf16.mxu0 0
        %2007 = vmatpush1.bf16.msra.mxu0 %v1786
        %2008 = vmatprep.subr.bf16.mxu0 0
        %2009 = vmatpush1.bf16.msra.mxu0 %v1787
        %2010 = vmatprep.subr.bf16.mxu0 0
        %2011 = vmatpush1.bf16.msra.mxu0 %v1788
        %2012 = vmatprep.subr.bf16.mxu0 0
        %2013 = vmatpush1.bf16.msra.mxu0 %v1789
        %2014 = vmatprep.subr.bf16.mxu0 0
        %2015 = vmatpush1.bf16.msra.mxu0 %v1790
        %2016 = vmatprep.mubr.bf16.mxu0 %v1378
        %2017 = vmatmul.mubr.bf16.gmra.mrb[0].mxu0 %v1377
        %v2018 = vpop.f32.mrb[0].mxu0
        %v2019 = vadd.f32 %v1922, %v2018
        %v2020 = vpop.f32.mrb[0].mxu0
        %v2021 = vpop.f32.mrb[0].mxu0
        %v2022 = vadd.f32 %v1925, %v2021
        %v2023 = vpop.f32.mrb[0].mxu0
        %2024 = vmatprep.mubr.bf16.mxu0 %v1386
        %2025 = vmatmul.mubr.bf16.gmra.mrb[0].mxu0 %v1385
        %v2026 = vpop.f32.mrb[0].mxu0
        %v2027 = vadd.f32 %v1930, %v2026
        %v2028 = vpop.f32.mrb[0].mxu0
        %v2029 = vpop.f32.mrb[0].mxu0
        %v2030 = vadd.f32 %v1933, %v2029
        %v2031 = vpop.f32.mrb[0].mxu0
        %2032 = vmatprep.mubr.bf16.mxu0 %v1394
        %2033 = vmatmul.mubr.bf16.gmra.mrb[0].mxu0 %v1393
        %v2034 = vpop.f32.mrb[0].mxu0
        %v2035 = vadd.f32 %v1938, %v2034
        %v2036 = vpop.f32.mrb[0].mxu0
        %v2037 = vpop.f32.mrb[0].mxu0
        %v2038 = vadd.f32 %v1941, %v2037
        %v2039 = vpop.f32.mrb[0].mxu0
        %2040 = vmatprep.mubr.bf16.mxu0 %v1402
        %2041 = vmatmul.mubr.bf16.gmra.mrb[0].mxu0 %v1401
        %v2042 = vpop.f32.mrb[0].mxu0
        %v2043 = vadd.f32 %v1946, %v2042
        %v2044 = vpop.f32.mrb[0].mxu0
        %v2045 = vpop.f32.mrb[0].mxu0
        %v2046 = vadd.f32 %v1949, %v2045
        %v2047 = vpop.f32.mrb[0].mxu0
        %2048 = vmatprep.mubr.bf16.mxu0 %v1410
        %2049 = vmatmul.mubr.bf16.gmra.mrb[0].mxu0 %v1409
        %v2050 = vpop.f32.mrb[0].mxu0
        %v2051 = vadd.f32 %v1954, %v2050
        %v2052 = vpop.f32.mrb[0].mxu0
        %v2053 = vpop.f32.mrb[0].mxu0
        %v2054 = vadd.f32 %v1957, %v2053
        %v2055 = vpop.f32.mrb[0].mxu0
        %2056 = vmatprep.mubr.bf16.mxu0 %v1418
        %2057 = vmatmul.mubr.bf16.gmra.mrb[0].mxu0 %v1417
        %v2058 = vpop.f32.mrb[0].mxu0
        %v2059 = vadd.f32 %v1962, %v2058
        %v2060 = vpop.f32.mrb[0].mxu0
        %v2061 = vpop.f32.mrb[0].mxu0
        %v2062 = vadd.f32 %v1965, %v2061
        %v2063 = vpop.f32.mrb[0].mxu0
        %2064 = vmatprep.mubr.bf16.mxu0 %v1426
        %2065 = vmatmul.mubr.bf16.gmra.mrb[0].mxu0 %v1425
        %v2066 = vpop.f32.mrb[0].mxu0
        %v2067 = vadd.f32 %v1970, %v2066
        %v2068 = vpop.f32.mrb[0].mxu0
        %v2069 = vpop.f32.mrb[0].mxu0
        %v2070 = vadd.f32 %v1973, %v2069
        %v2071 = vpop.f32.mrb[0].mxu0
        %2072 = vmatprep.mubr.bf16.mxu0 %v1434
        %2073 = vmatmul.mubr.bf16.gmra.mrb[0].mxu0 %v1433
        %v2074 = vpop.f32.mrb[0].mxu0
        %v2075 = vadd.f32 %v1978, %v2074
        %v2076 = vpop.f32.mrb[0].mxu0
        %v2077 = vpop.f32.mrb[0].mxu0
        %v2078 = vadd.f32 %v1981, %v2077
        %v2079 = vpop.f32.mrb[0].mxu0
        %2080 = vdwg.mxu0
        %2081 = vmatprep.subr.bf16.mxu0 0
        %2082 = vmatpush1.bf16.msra.mxu0 %v1791
        %2083 = vmatprep.subr.bf16.mxu0 0
        %2084 = vmatpush1.bf16.msra.mxu0 %v1792
        %2085 = vmatprep.subr.bf16.mxu0 0
        %2086 = vmatpush1.bf16.msra.mxu0 %v1793
        %2087 = vmatprep.subr.bf16.mxu0 0
        %2088 = vmatpush1.bf16.msra.mxu0 %v1794
        %2089 = vmatprep.subr.bf16.mxu0 0
        %2090 = vmatpush1.bf16.msra.mxu0 %v1795
        %2091 = vmatprep.subr.bf16.mxu0 0
        %2092 = vmatpush1.bf16.msra.mxu0 %v1796
        %2093 = vmatprep.subr.bf16.mxu0 0
        %2094 = vmatpush1.bf16.msra.mxu0 %v1797
        %2095 = vmatprep.subr.bf16.mxu0 0
        %2096 = vmatpush1.bf16.msra.mxu0 %v1798
        %2097 = vmatprep.subr.bf16.mxu0 0
        %2098 = vmatpush1.bf16.msra.mxu0 %v1799
        %2099 = vmatprep.subr.bf16.mxu0 0
        %2100 = vmatpush1.bf16.msra.mxu0 %v1800
        %2101 = vmatprep.subr.bf16.mxu0 0
        %2102 = vmatpush1.bf16.msra.mxu0 %v1801
        %2103 = vmatprep.subr.bf16.mxu0 0
        %2104 = vmatpush1.bf16.msra.mxu0 %v1802
        %2105 = vmatprep.subr.bf16.mxu0 0
        %2106 = vmatpush1.bf16.msra.mxu0 %v1803
        %2107 = vmatprep.subr.bf16.mxu0 0
        %2108 = vmatpush1.bf16.msra.mxu0 %v1804
        %2109 = vmatprep.subr.bf16.mxu0 0
        %2110 = vmatpush1.bf16.msra.mxu0 %v1805
        %2111 = vmatprep.subr.bf16.mxu0 0
        %2112 = vmatpush1.bf16.msra.mxu0 %v1806
        %2113 = vmatprep.mubr.bf16.mxu0 %v1380
        %2114 = vmatmul.mubr.bf16.gmra.mrb[0].mxu0 %v1379
        %v2115 = vpop.f32.mrb[0].mxu0
        %v2116 = vadd.f32 %v2019, %v2115
        %v2117 = vpop.f32.mrb[0].mxu0
        %v2118 = vpop.f32.mrb[0].mxu0
        %v2119 = vadd.f32 %v2022, %v2118
        %v2120 = vpop.f32.mrb[0].mxu0
        %2121 = vmatprep.mubr.bf16.mxu0 %v1388
        %2122 = vmatmul.mubr.bf16.gmra.mrb[0].mxu0 %v1387
        %v2123 = vpop.f32.mrb[0].mxu0
        %v2124 = vadd.f32 %v2027, %v2123
        %v2125 = vpop.f32.mrb[0].mxu0
        %v2126 = vpop.f32.mrb[0].mxu0
        %v2127 = vadd.f32 %v2030, %v2126
        %v2128 = vpop.f32.mrb[0].mxu0
        %2129 = vmatprep.mubr.bf16.mxu0 %v1396
        %2130 = vmatmul.mubr.bf16.gmra.mrb[0].mxu0 %v1395
        %v2131 = vpop.f32.mrb[0].mxu0
        %v2132 = vadd.f32 %v2035, %v2131
        %v2133 = vpop.f32.mrb[0].mxu0
        %v2134 = vpop.f32.mrb[0].mxu0
        %v2135 = vadd.f32 %v2038, %v2134
        %v2136 = vpop.f32.mrb[0].mxu0
        %2137 = vmatprep.mubr.bf16.mxu0 %v1404
        %2138 = vmatmul.mubr.bf16.gmra.mrb[0].mxu0 %v1403
        %v2139 = vpop.f32.mrb[0].mxu0
        %v2140 = vadd.f32 %v2043, %v2139
        %v2141 = vpop.f32.mrb[0].mxu0
        %v2142 = vpop.f32.mrb[0].mxu0
        %v2143 = vadd.f32 %v2046, %v2142
        %v2144 = vpop.f32.mrb[0].mxu0
        %2145 = vmatprep.mubr.bf16.mxu0 %v1412
        %2146 = vmatmul.mubr.bf16.gmra.mrb[0].mxu0 %v1411
        %v2147 = vpop.f32.mrb[0].mxu0
        %v2148 = vadd.f32 %v2051, %v2147
        %v2149 = vpop.f32.mrb[0].mxu0
        %v2150 = vpop.f32.mrb[0].mxu0
        %v2151 = vadd.f32 %v2054, %v2150
        %v2152 = vpop.f32.mrb[0].mxu0
        %2153 = vmatprep.mubr.bf16.mxu0 %v1420
        %2154 = vmatmul.mubr.bf16.gmra.mrb[0].mxu0 %v1419
        %v2155 = vpop.f32.mrb[0].mxu0
        %v2156 = vadd.f32 %v2059, %v2155
        %v2157 = vpop.f32.mrb[0].mxu0
        %v2158 = vpop.f32.mrb[0].mxu0
        %v2159 = vadd.f32 %v2062, %v2158
        %v2160 = vpop.f32.mrb[0].mxu0
        %2161 = vmatprep.mubr.bf16.mxu0 %v1428
        %2162 = vmatmul.mubr.bf16.gmra.mrb[0].mxu0 %v1427
        %v2163 = vpop.f32.mrb[0].mxu0
        %v2164 = vadd.f32 %v2067, %v2163
        %v2165 = vpop.f32.mrb[0].mxu0
        %v2166 = vpop.f32.mrb[0].mxu0
        %v2167 = vadd.f32 %v2070, %v2166
        %v2168 = vpop.f32.mrb[0].mxu0
        %2169 = vmatprep.mubr.bf16.mxu0 %v1436
        %2170 = vmatmul.mubr.bf16.gmra.mrb[0].mxu0 %v1435
        %v2171 = vpop.f32.mrb[0].mxu0
        %v2172 = vadd.f32 %v2075, %v2171
        %v2173 = vpop.f32.mrb[0].mxu0
        %v2174 = vpop.f32.mrb[0].mxu0
        %v2175 = vadd.f32 %v2078, %v2174
        %v2176 = vpop.f32.mrb[0].mxu0
        %2177 = vdwg.mxu0
        %2178 = vmatprep.subr.bf16.mxu0 0
        %2179 = vmatpush1.bf16.msra.mxu0 %v1807
        %2180 = vmatprep.subr.bf16.mxu0 0
        %2181 = vmatpush1.bf16.msra.mxu0 %v1808
        %2182 = vmatprep.subr.bf16.mxu0 0
        %2183 = vmatpush1.bf16.msra.mxu0 %v1809
        %2184 = vmatprep.subr.bf16.mxu0 0
        %2185 = vmatpush1.bf16.msra.mxu0 %v1810
        %2186 = vmatprep.subr.bf16.mxu0 0
        %2187 = vmatpush1.bf16.msra.mxu0 %v1811
        %2188 = vmatprep.subr.bf16.mxu0 0
        %2189 = vmatpush1.bf16.msra.mxu0 %v1812
        %2190 = vmatprep.subr.bf16.mxu0 0
        %2191 = vmatpush1.bf16.msra.mxu0 %v1813
        %2192 = vmatprep.subr.bf16.mxu0 0
        %2193 = vmatpush1.bf16.msra.mxu0 %v1814
        %2194 = vmatprep.subr.bf16.mxu0 0
        %2195 = vmatpush1.bf16.msra.mxu0 %v1815
        %2196 = vmatprep.subr.bf16.mxu0 0
        %2197 = vmatpush1.bf16.msra.mxu0 %v1816
        %2198 = vmatprep.subr.bf16.mxu0 0
        %2199 = vmatpush1.bf16.msra.mxu0 %v1817
        %2200 = vmatprep.subr.bf16.mxu0 0
        %2201 = vmatpush1.bf16.msra.mxu0 %v1818
        %2202 = vmatprep.subr.bf16.mxu0 0
        %2203 = vmatpush1.bf16.msra.mxu0 %v1819
        %2204 = vmatprep.subr.bf16.mxu0 0
        %2205 = vmatpush1.bf16.msra.mxu0 %v1820
        %2206 = vmatprep.subr.bf16.mxu0 0
        %2207 = vmatpush1.bf16.msra.mxu0 %v1821
        %2208 = vmatprep.subr.bf16.mxu0 0
        %2209 = vmatpush1.bf16.msra.mxu0 %v1822
        %2210 = vmatprep.mubr.bf16.mxu0 %v1382
        %2211 = vmatmul.mubr.bf16.gmra.mrb[0].mxu0 %v1381
        %v2212 = vpop.f32.mrb[0].mxu0
        %v2213 = vadd.f32 %v2116, %v2212
        %v2214 = vpop.f32.mrb[0].mxu0
        %v2215 = vpop.f32.mrb[0].mxu0
        %v2216 = vadd.f32 %v2119, %v2215
        %v2217 = vpop.f32.mrb[0].mxu0
        %2218 = vmatprep.mubr.bf16.mxu0 %v1390
        %2219 = vmatmul.mubr.bf16.gmra.mrb[0].mxu0 %v1389
        %v2220 = vpop.f32.mrb[0].mxu0
        %v2221 = vadd.f32 %v2124, %v2220
        %v2222 = vpop.f32.mrb[0].mxu0
        %v2223 = vpop.f32.mrb[0].mxu0
        %v2224 = vadd.f32 %v2127, %v2223
        %v2225 = vpop.f32.mrb[0].mxu0
        %2226 = vmatprep.mubr.bf16.mxu0 %v1398
        %2227 = vmatmul.mubr.bf16.gmra.mrb[0].mxu0 %v1397
        %v2228 = vpop.f32.mrb[0].mxu0
        %v2229 = vadd.f32 %v2132, %v2228
        %v2230 = vpop.f32.mrb[0].mxu0
        %v2231 = vpop.f32.mrb[0].mxu0
        %v2232 = vadd.f32 %v2135, %v2231
        %v2233 = vpop.f32.mrb[0].mxu0
        %2234 = vmatprep.mubr.bf16.mxu0 %v1406
        %2235 = vmatmul.mubr.bf16.gmra.mrb[0].mxu0 %v1405
        %v2236 = vpop.f32.mrb[0].mxu0
        %v2237 = vadd.f32 %v2140, %v2236
        %v2238 = vpop.f32.mrb[0].mxu0
        %v2239 = vpop.f32.mrb[0].mxu0
        %v2240 = vadd.f32 %v2143, %v2239
        %v2241 = vpop.f32.mrb[0].mxu0
        %2242 = vmatprep.mubr.bf16.mxu0 %v1414
        %2243 = vmatmul.mubr.bf16.gmra.mrb[0].mxu0 %v1413
        %v2244 = vpop.f32.mrb[0].mxu0
        %v2245 = vadd.f32 %v2148, %v2244
        %v2246 = vpop.f32.mrb[0].mxu0
        %v2247 = vpop.f32.mrb[0].mxu0
        %v2248 = vadd.f32 %v2151, %v2247
        %v2249 = vpop.f32.mrb[0].mxu0
        %2250 = vmatprep.mubr.bf16.mxu0 %v1422
        %2251 = vmatmul.mubr.bf16.gmra.mrb[0].mxu0 %v1421
        %v2252 = vpop.f32.mrb[0].mxu0
        %v2253 = vadd.f32 %v2156, %v2252
        %v2254 = vpop.f32.mrb[0].mxu0
        %v2255 = vpop.f32.mrb[0].mxu0
        %v2256 = vadd.f32 %v2159, %v2255
        %v2257 = vpop.f32.mrb[0].mxu0
        %2258 = vmatprep.mubr.bf16.mxu0 %v1430
        %2259 = vmatmul.mubr.bf16.gmra.mrb[0].mxu0 %v1429
        %v2260 = vpop.f32.mrb[0].mxu0
        %v2261 = vadd.f32 %v2164, %v2260
        %v2262 = vpop.f32.mrb[0].mxu0
        %v2263 = vpop.f32.mrb[0].mxu0
        %v2264 = vadd.f32 %v2167, %v2263
        %v2265 = vpop.f32.mrb[0].mxu0
        %2266 = vmatprep.mubr.bf16.mxu0 %v1438
        %2267 = vmatmul.mubr.bf16.gmra.mrb[0].mxu0 %v1437
        %v2268 = vpop.f32.mrb[0].mxu0
        %v2269 = vadd.f32 %v2172, %v2268
        %v2270 = vpop.f32.mrb[0].mxu0
        %v2271 = vpop.f32.mrb[0].mxu0
        %v2272 = vadd.f32 %v2175, %v2271
        %v2273 = vpop.f32.mrb[0].mxu0
        %2274 = vdwg.mxu0
        %v2275 = vadd.f32 %v975, %v2213
        %v2276 = vadd.f32 %v976, %v2216
        %v2277 = vadd.f32 %v977, %v2221
        %v2278 = vadd.f32 %v978, %v2224
        %v2279 = vadd.f32 %v979, %v2229
        %v2280 = vadd.f32 %v980, %v2232
        %v2281 = vadd.f32 %v981, %v2237
        %v2282 = vadd.f32 %v982, %v2240
        %v2283 = vadd.f32 %v983, %v2245
        %v2284 = vadd.f32 %v984, %v2248
        %v2285 = vadd.f32 %v985, %v2253
        %v2286 = vadd.f32 %v986, %v2256
        %v2287 = vadd.f32 %v987, %v2261
        %v2288 = vadd.f32 %v988, %v2264
        %v2289 = vadd.f32 %v989, %v2269
        %v2290 = vadd.f32 %v990, %v2272
        %2291 = vst [vmem:[#allocation2] sm:$0xff] %v2275
        %2292 = vst [vmem:[#allocation2 + $0x8] sm:$0xff] %v2276
        %2293 = vst [vmem:[#allocation2 + $0x10] sm:$0xff] %v2277
        %2294 = vst [vmem:[#allocation2 + $0x18] sm:$0xff] %v2278
        %2295 = vst [vmem:[#allocation2 + $0x20] sm:$0xff] %v2279
        %2296 = vst [vmem:[#allocation2 + $0x28] sm:$0xff] %v2280
        %2297 = vst [vmem:[#allocation2 + $0x30] sm:$0xff] %v2281
        %2298 = vst [vmem:[#allocation2 + $0x38] sm:$0xff] %v2282
        %2299 = vst [vmem:[#allocation2 + $0x40] sm:$0xff] %v2283
        %2300 = vst [vmem:[#allocation2 + $0x48] sm:$0xff] %v2284
        %2301 = vst [vmem:[#allocation2 + $0x50] sm:$0xff] %v2285
        %2302 = vst [vmem:[#allocation2 + $0x58] sm:$0xff] %v2286
        %2303 = vst [vmem:[#allocation2 + $0x60] sm:$0xff] %v2287
        %2304 = vst [vmem:[#allocation2 + $0x68] sm:$0xff] %v2288
        %2305 = vst [vmem:[#allocation2 + $0x70] sm:$0xff] %v2289
        %2306 = vst [vmem:[#allocation2 + $0x78] sm:$0xff] %v2290
        %p2307 = scmp.eq.s32.totalorder %s20, 1
        // Predicated region
        $region105: #{cnn_discriminator_forward.4} parent=91 // pred_check
          %p2308 = pneg %p2307
        $region106: #{cnn_discriminator_forward.4} parent=91 // pred_check_branch
          %2310 = sbr.rel (%p2308) target = $region108
        $region107: #{cnn_discriminator_forward.4} parent=91 // pred_region
          %v2311 = vld [vmem:[#allocation2] sm:$0xff]
          %v2312 = vld [vmem:[#allocation2 + $0x8] sm:$0xff]
          %v2313 = vld [vmem:[#allocation2 + $0x10] sm:$0xff]
          %v2314 = vld [vmem:[#allocation2 + $0x18] sm:$0xff]
          %v2315 = vld [vmem:[#allocation2 + $0x20] sm:$0xff]
          %v2316 = vld [vmem:[#allocation2 + $0x28] sm:$0xff]
          %v2317 = vld [vmem:[#allocation2 + $0x30] sm:$0xff]
          %v2318 = vld [vmem:[#allocation2 + $0x38] sm:$0xff]
          %v2319 = vld [vmem:[#allocation2 + $0x40] sm:$0xff]
          %v2320 = vld [vmem:[#allocation2 + $0x48] sm:$0xff]
          %v2321 = vld [vmem:[#allocation2 + $0x50] sm:$0xff]
          %v2322 = vld [vmem:[#allocation2 + $0x58] sm:$0xff]
          %v2323 = vld [vmem:[#allocation2 + $0x60] sm:$0xff]
          %v2324 = vld [vmem:[#allocation2 + $0x68] sm:$0xff]
          %v2325 = vld [vmem:[#allocation2 + $0x70] sm:$0xff]
          %v2326 = vld [vmem:[#allocation2 + $0x78] sm:$0xff]
          %v2327 = vld [vmem:[%s950] sm:$0x1]
          %v2328 = vld [vmem:[%s953] sm:$0x1]
          %v2329 = vadd.f32 %v2311, %v2312
          %v2330 = vadd.f32 %v2329, %v2313
          %v2331 = vadd.f32 %v2330, %v2314
          %v2332 = vadd.f32 %v2331, %v2315
          %v2333 = vadd.f32 %v2332, %v2316
          %v2334 = vadd.f32 %v2333, %v2317
          %v2335 = vadd.f32 %v2334, %v2318
          %v2336 = vadd.f32 %v2335, %v2319
          %v2337 = vadd.f32 %v2336, %v2320
          %v2338 = vadd.f32 %v2337, %v2321
          %v2339 = vadd.f32 %v2338, %v2322
          %v2340 = vadd.f32 %v2339, %v2323
          %v2341 = vadd.f32 %v2340, %v2324
          %v2342 = vadd.f32 %v2341, %v2325
          %v2343 = vadd.f32 %v2342, %v2326
          %v2344 = vrot.slane %v2343, 4
          %v2345 = vadd.f32 %v2343, %v2344
          %v2346 = vrot.slane %v2345, 2
          %v2347 = vadd.f32 %v2345, %v2346
          %v2348 = vrot.slane %v2347, 1
          %v2349 = vadd.f32 %v2347, %v2348
          %v2350 = vmul.f32 %v2349, 0.0078125
          %v2351 = vmul.f32 %v2311, %v2311
          %v2352 = vmul.f32 %v2312, %v2312
          %v2353 = vmul.f32 %v2313, %v2313
          %v2354 = vmul.f32 %v2314, %v2314
          %v2355 = vmul.f32 %v2315, %v2315
          %v2356 = vmul.f32 %v2316, %v2316
          %v2357 = vmul.f32 %v2317, %v2317
          %v2358 = vmul.f32 %v2318, %v2318
          %v2359 = vmul.f32 %v2319, %v2319
          %v2360 = vmul.f32 %v2320, %v2320
          %v2361 = vmul.f32 %v2321, %v2321
          %v2362 = vmul.f32 %v2322, %v2322
          %v2363 = vmul.f32 %v2323, %v2323
          %v2364 = vmul.f32 %v2324, %v2324
          %v2365 = vmul.f32 %v2325, %v2325
          %v2366 = vmul.f32 %v2326, %v2326
          %v2367 = vadd.f32 %v2351, %v2352
          %v2368 = vadd.f32 %v2367, %v2353
          %v2369 = vadd.f32 %v2368, %v2354
          %v2370 = vadd.f32 %v2369, %v2355
          %v2371 = vadd.f32 %v2370, %v2356
          %v2372 = vadd.f32 %v2371, %v2357
          %v2373 = vadd.f32 %v2372, %v2358
          %v2374 = vadd.f32 %v2373, %v2359
          %v2375 = vadd.f32 %v2374, %v2360
          %v2376 = vadd.f32 %v2375, %v2361
          %v2377 = vadd.f32 %v2376, %v2362
          %v2378 = vadd.f32 %v2377, %v2363
          %v2379 = vadd.f32 %v2378, %v2364
          %v2380 = vadd.f32 %v2379, %v2365
          %v2381 = vadd.f32 %v2380, %v2366
          %v2382 = vrot.slane %v2381, 4
          %v2383 = vadd.f32 %v2381, %v2382
          %v2384 = vrot.slane %v2383, 2
          %v2385 = vadd.f32 %v2383, %v2384
          %v2386 = vrot.slane %v2385, 1
          %v2387 = vadd.f32 %v2385, %v2386
          %v2388 = vmul.f32 %v2387, 0.0078125
          %v2389 = vmul.f32 %v2350, %v2350
          %v2390 = vsub.f32 %v2388, %v2389
          %v2391 = vmax.f32 %v2390, 0.0
          %v2392 = vadd.f32 %v2391, 1e-05
          %v2393 = vrsqrt.pop %v2392
          %v2394 = vmul.f32 %v2327, %v2393
          %v2395 = vmul.f32 %v2350, %v2394
          %v2396 = vsub.f32 %v2328, %v2395
          %v2398 = vlaneseq
          %v2399 = vshrl.u32 %v2398, 7
          %v2400 = vsub.s32 0, %v2399
          %v2401 = vrot.slane %v2394, %v2400
          %v2403 = vmul.f32 %v2311, %v2401
          %v2404 = vmul.f32 %v2312, %v2401
          %v2405 = vmul.f32 %v2313, %v2401
          %v2406 = vmul.f32 %v2314, %v2401
          %v2407 = vmul.f32 %v2315, %v2401
          %v2408 = vmul.f32 %v2316, %v2401
          %v2409 = vmul.f32 %v2317, %v2401
          %v2410 = vmul.f32 %v2318, %v2401
          %v2411 = vmul.f32 %v2319, %v2401
          %v2412 = vmul.f32 %v2320, %v2401
          %v2413 = vmul.f32 %v2321, %v2401
          %v2414 = vmul.f32 %v2322, %v2401
          %v2415 = vmul.f32 %v2323, %v2401
          %v2416 = vmul.f32 %v2324, %v2401
          %v2417 = vmul.f32 %v2325, %v2401
          %v2418 = vmul.f32 %v2326, %v2401
          %v2420 = vlaneseq
          %v2421 = vshrl.u32 %v2420, 7
          %v2422 = vsub.s32 0, %v2421
          %v2423 = vrot.slane %v2396, %v2422
          %v2425 = vadd.f32 %v2403, %v2423
          %v2426 = vadd.f32 %v2404, %v2423
          %v2427 = vadd.f32 %v2405, %v2423
          %v2428 = vadd.f32 %v2406, %v2423
          %v2429 = vadd.f32 %v2407, %v2423
          %v2430 = vadd.f32 %v2408, %v2423
          %v2431 = vadd.f32 %v2409, %v2423
          %v2432 = vadd.f32 %v2410, %v2423
          %v2433 = vadd.f32 %v2411, %v2423
          %v2434 = vadd.f32 %v2412, %v2423
          %v2435 = vadd.f32 %v2413, %v2423
          %v2436 = vadd.f32 %v2414, %v2423
          %v2437 = vadd.f32 %v2415, %v2423
          %v2438 = vadd.f32 %v2416, %v2423
          %v2439 = vadd.f32 %v2417, %v2423
          %v2440 = vadd.f32 %v2418, %v2423
          %vm2441 = vcmp.gt.f32.partialorder %v2425, 0.0
          %vm2442 = vcmp.gt.f32.partialorder %v2426, 0.0
          %vm2443 = vcmp.gt.f32.partialorder %v2427, 0.0
          %vm2444 = vcmp.gt.f32.partialorder %v2428, 0.0
          %vm2445 = vcmp.gt.f32.partialorder %v2429, 0.0
          %vm2446 = vcmp.gt.f32.partialorder %v2430, 0.0
          %vm2447 = vcmp.gt.f32.partialorder %v2431, 0.0
          %vm2448 = vcmp.gt.f32.partialorder %v2432, 0.0
          %vm2449 = vcmp.gt.f32.partialorder %v2433, 0.0
          %vm2450 = vcmp.gt.f32.partialorder %v2434, 0.0
          %vm2451 = vcmp.gt.f32.partialorder %v2435, 0.0
          %vm2452 = vcmp.gt.f32.partialorder %v2436, 0.0
          %vm2453 = vcmp.gt.f32.partialorder %v2437, 0.0
          %vm2454 = vcmp.gt.f32.partialorder %v2438, 0.0
          %vm2455 = vcmp.gt.f32.partialorder %v2439, 0.0
          %vm2456 = vcmp.gt.f32.partialorder %v2440, 0.0
          %v2457 = vmul.f32 %v2425, 0.2
          %v2458 = vmul.f32 %v2426, 0.2
          %v2459 = vmul.f32 %v2427, 0.2
          %v2460 = vmul.f32 %v2428, 0.2
          %v2461 = vmul.f32 %v2429, 0.2
          %v2462 = vmul.f32 %v2430, 0.2
          %v2463 = vmul.f32 %v2431, 0.2
          %v2464 = vmul.f32 %v2432, 0.2
          %v2465 = vmul.f32 %v2433, 0.2
          %v2466 = vmul.f32 %v2434, 0.2
          %v2467 = vmul.f32 %v2435, 0.2
          %v2468 = vmul.f32 %v2436, 0.2
          %v2469 = vmul.f32 %v2437, 0.2
          %v2470 = vmul.f32 %v2438, 0.2
          %v2471 = vmul.f32 %v2439, 0.2
          %v2472 = vmul.f32 %v2440, 0.2
          %v2473 = vsel %vm2441, %v2425, %v2457
          %v2474 = vsel %vm2442, %v2426, %v2458
          %v2475 = vsel %vm2443, %v2427, %v2459
          %v2476 = vsel %vm2444, %v2428, %v2460
          %v2477 = vsel %vm2445, %v2429, %v2461
          %v2478 = vsel %vm2446, %v2430, %v2462
          %v2479 = vsel %vm2447, %v2431, %v2463
          %v2480 = vsel %vm2448, %v2432, %v2464
          %v2481 = vsel %vm2449, %v2433, %v2465
          %v2482 = vsel %vm2450, %v2434, %v2466
          %v2483 = vsel %vm2451, %v2435, %v2467
          %v2484 = vsel %vm2452, %v2436, %v2468
          %v2485 = vsel %vm2453, %v2437, %v2469
          %v2486 = vsel %vm2454, %v2438, %v2470
          %v2487 = vsel %vm2455, %v2439, %v2471
          %v2488 = vsel %vm2456, %v2440, %v2472
          %v2489 = vpack.c.bf16 %v2474, %v2473
          %v2490 = vpack.c.bf16 %v2476, %v2475
          %v2491 = vpack.c.bf16 %v2478, %v2477
          %v2492 = vpack.c.bf16 %v2480, %v2479
          %v2493 = vpack.c.bf16 %v2482, %v2481
          %v2494 = vpack.c.bf16 %v2484, %v2483
          %v2495 = vpack.c.bf16 %v2486, %v2485
          %v2496 = vpack.c.bf16 %v2488, %v2487
          %v2505 = vunpack.c.l.b16 %v2489
          %v2506 = vunpack.c.h.b16 %v2489
          %v2507 = vunpack.c.l.b16 %v2490
          %v2508 = vunpack.c.h.b16 %v2490
          %v2509 = vunpack.c.l.b16 %v2491
          %v2510 = vunpack.c.h.b16 %v2491
          %v2511 = vunpack.c.l.b16 %v2492
          %v2512 = vunpack.c.h.b16 %v2492
          %v2513 = vunpack.c.l.b16 %v2493
          %v2514 = vunpack.c.h.b16 %v2493
          %v2515 = vunpack.c.l.b16 %v2494
          %v2516 = vunpack.c.h.b16 %v2494
          %v2517 = vunpack.c.l.b16 %v2495
          %v2518 = vunpack.c.h.b16 %v2495
          %v2519 = vunpack.c.l.b16 %v2496
          %v2520 = vunpack.c.h.b16 %v2496
          %v2521 = vpack.c.b16 %v2505, %v2505
          %v2522 = vpack.c.b16 %v2506, %v2506
          %v2523 = vpack.c.b16 %v2507, %v2507
          %v2524 = vpack.c.b16 %v2508, %v2508
          %v2525 = vpack.c.b16 %v2509, %v2509
          %v2526 = vpack.c.b16 %v2510, %v2510
          %v2527 = vpack.c.b16 %v2511, %v2511
          %v2528 = vpack.c.b16 %v2512, %v2512
          %v2529 = vpack.c.b16 %v2513, %v2513
          %v2530 = vpack.c.b16 %v2514, %v2514
          %v2531 = vpack.c.b16 %v2515, %v2515
          %v2532 = vpack.c.b16 %v2516, %v2516
          %v2533 = vpack.c.b16 %v2517, %v2517
          %v2534 = vpack.c.b16 %v2518, %v2518
          %v2535 = vpack.c.b16 %v2519, %v2519
          %v2536 = vpack.c.b16 %v2520, %v2520
          %2553 = vst [vmem:[%s945] sm:$0xf] %v2521
          %2554 = vst [vmem:[%s945 + $0x4] sm:$0xf] %v2522
          %2555 = vst [vmem:[%s945 + $0x8] sm:$0xf] %v2523
          %2556 = vst [vmem:[%s945 + $0xc] sm:$0xf] %v2524
          %2557 = vst [vmem:[%s945 + $0x10] sm:$0xf] %v2525
          %2558 = vst [vmem:[%s945 + $0x14] sm:$0xf] %v2526
          %2559 = vst [vmem:[%s945 + $0x18] sm:$0xf] %v2527
          %2560 = vst [vmem:[%s945 + $0x1c] sm:$0xf] %v2528
          %2561 = vst [vmem:[%s945 + $0x20] sm:$0xf] %v2529
          %2562 = vst [vmem:[%s945 + $0x24] sm:$0xf] %v2530
          %2563 = vst [vmem:[%s945 + $0x28] sm:$0xf] %v2531
          %2564 = vst [vmem:[%s945 + $0x2c] sm:$0xf] %v2532
          %2565 = vst [vmem:[%s945 + $0x30] sm:$0xf] %v2533
          %2566 = vst [vmem:[%s945 + $0x34] sm:$0xf] %v2534
          %2567 = vst [vmem:[%s945 + $0x38] sm:$0xf] %v2535
          %2568 = vst [vmem:[%s945 + $0x3c] sm:$0xf] %v2536
        $region108: #{cnn_discriminator_forward.4} parent=91 // pred_fallthru
          _
        %s2569 = sand.u32 %s141, 1
        %s2570 = sand.u32 %s141, 1
        %s2571 = smul.addr %s2570, 64
        %s2572 = scalar_lea.vmem [#allocation5], %s2571
        // Predicated region
        $region109: #{cnn_discriminator_forward.4} parent=91 // pred_check
          %p2573 = pneg %p151
        $region110: #{cnn_discriminator_forward.4} parent=91 // pred_check_branch
          %2575 = sbr.rel (%p2573) target = $region112
        $region111: #{cnn_discriminator_forward.4} parent=91 // pred_region
          %s2576 = smul.addr %s19, 4
          %s2577 = scalar_lea.vmem %s4, %s2576
          // Predicated region
          $region113: #{cnn_discriminator_forward.4} parent=111 // pred_check
            _
          $region114: #{cnn_discriminator_forward.4} parent=111 // pred_check_branch
            %2579 = sbr.rel (0) target = $region116
          $region115: #{cnn_discriminator_forward.4} parent=111 // pred_region
            // Predicated region
            $region117: #{cnn_discriminator_forward.4} parent=115 // pred_check
              _
            $region118: #{cnn_discriminator_forward.4} parent=115 // pred_check_branch
              %2581 = sbr.rel target = $region120
            $region119: #{cnn_discriminator_forward.4} parent=115 // pred_region
              // Predicated region
              $region132: #{cnn_discriminator_forward.4} parent=119 // pred_check
                _
              $region133: #{cnn_discriminator_forward.4} parent=119 // pred_check_branch
                %2626 = sbr.rel (0) target = $region135
              $region134: #{cnn_discriminator_forward.4} parent=119 // pred_region
                loop: start=0, step=1, limit=1
                $region136: #{cnn_discriminator_forward.4} parent=134 // loop_pre_header
                  _
                $region137: #{cnn_discriminator_forward.4} parent=134 // loop_header
                  %s2628 = sphi 0, %s2632
                  %p2629 = scmp.ge.s32.totalorder %s2628, 1
                  %s2633 = sphi %s2572, %s2572
                  %s2634 = sphi %s2577, %s2577
                $region138: #{cnn_discriminator_forward.4} parent=134 // loop_header_branch
                  %2631 = sbr.rel (%p2629) target = $region142
                $region139: #{cnn_discriminator_forward.4} parent=134 // loop_body
                  _
                $region140: #{cnn_discriminator_forward.4} parent=134 // loop_footer
                  %s2632 = sadd.s32 1, %s2628
                $region141: #{cnn_discriminator_forward.4} parent=134 // loop_footer_branch
                  %2627 = sbr.rel target = $region137
                $region142: #{cnn_discriminator_forward.4} parent=134 // loop_exit
                  _
                loop: start=0, step=1, limit=1
                $region143: #{cnn_discriminator_forward.4} parent=134 // loop_pre_header
                  _
                $region144: #{cnn_discriminator_forward.4} parent=134 // loop_header
                  %s2637 = sphi 0, %s2641
                  %p2638 = scmp.ge.s32.totalorder %s2637, 1
                  %s2642 = sphi %s2572, %s2572
                  %s2643 = sphi %s2577, %s2577
                $region145: #{cnn_discriminator_forward.4} parent=134 // loop_header_branch
                  %2640 = sbr.rel (%p2638) target = $region149
                $region146: #{cnn_discriminator_forward.4} parent=134 // loop_body
                  %v2644 = vld [vmem:[%s2642] sm:$0xf]
                  %2645 = vst [vmem:[%s2643] sm:$0xf] %v2644
                  %v2646 = vld [vmem:[%s2642 + $0x4] sm:$0xf]
                  %2647 = vst [vmem:[%s2643 + $0x8] sm:$0xf] %v2646
                  %v2648 = vld [vmem:[%s2642 + $0x8] sm:$0xf]
                  %2649 = vst [vmem:[%s2643 + $0x10] sm:$0xf] %v2648
                  %v2650 = vld [vmem:[%s2642 + $0xc] sm:$0xf]
                  %2651 = vst [vmem:[%s2643 + $0x18] sm:$0xf] %v2650
                  %v2652 = vld [vmem:[%s2642 + $0x10] sm:$0xf]
                  %2653 = vst [vmem:[%s2643 + $0x20] sm:$0xf] %v2652
                  %v2654 = vld [vmem:[%s2642 + $0x14] sm:$0xf]
                  %2655 = vst [vmem:[%s2643 + $0x28] sm:$0xf] %v2654
                  %v2656 = vld [vmem:[%s2642 + $0x18] sm:$0xf]
                  %2657 = vst [vmem:[%s2643 + $0x30] sm:$0xf] %v2656
                  %v2658 = vld [vmem:[%s2642 + $0x1c] sm:$0xf]
                  %2659 = vst [vmem:[%s2643 + $0x38] sm:$0xf] %v2658
                  %v2660 = vld [vmem:[%s2642 + $0x20] sm:$0xf]
                  %2661 = vst [vmem:[%s2643 + $0x40] sm:$0xf] %v2660
                  %v2662 = vld [vmem:[%s2642 + $0x24] sm:$0xf]
                  %2663 = vst [vmem:[%s2643 + $0x48] sm:$0xf] %v2662
                  %v2664 = vld [vmem:[%s2642 + $0x28] sm:$0xf]
                  %2665 = vst [vmem:[%s2643 + $0x50] sm:$0xf] %v2664
                  %v2666 = vld [vmem:[%s2642 + $0x2c] sm:$0xf]
                  %2667 = vst [vmem:[%s2643 + $0x58] sm:$0xf] %v2666
                  %v2668 = vld [vmem:[%s2642 + $0x30] sm:$0xf]
                  %2669 = vst [vmem:[%s2643 + $0x60] sm:$0xf] %v2668
                  %v2670 = vld [vmem:[%s2642 + $0x34] sm:$0xf]
                  %2671 = vst [vmem:[%s2643 + $0x68] sm:$0xf] %v2670
                  %v2672 = vld [vmem:[%s2642 + $0x38] sm:$0xf]
                  %2673 = vst [vmem:[%s2643 + $0x70] sm:$0xf] %v2672
                  %v2674 = vld [vmem:[%s2642 + $0x3c] sm:$0xf]
                  %2675 = vst [vmem:[%s2643 + $0x78] sm:$0xf] %v2674
                $region147: #{cnn_discriminator_forward.4} parent=134 // loop_footer
                  %s2641 = sadd.s32 1, %s2637
                $region148: #{cnn_discriminator_forward.4} parent=134 // loop_footer_branch
                  %2636 = sbr.rel target = $region144
                $region149: #{cnn_discriminator_forward.4} parent=134 // loop_exit
                  _
              $region135: #{cnn_discriminator_forward.4} parent=119 // pred_fallthru
                _
            $region120: #{cnn_discriminator_forward.4} parent=115 // pred_fallthru
              _
            // Predicated region
            $region121: #{cnn_discriminator_forward.4} parent=115 // pred_check
              _
            $region122: #{cnn_discriminator_forward.4} parent=115 // pred_check_branch
              %2583 = sbr.rel (0) target = $region124
            $region123: #{cnn_discriminator_forward.4} parent=115 // pred_region
              loop: start=0, step=1, limit=1
              $region125: #{cnn_discriminator_forward.4} parent=123 // loop_pre_header
                _
              $region126: #{cnn_discriminator_forward.4} parent=123 // loop_header
                %s2586 = sphi 0, %s2590
                %p2587 = scmp.ge.s32.totalorder %s2586, 1
                %s2591 = sphi %s2572, %s2572
                %s2592 = sphi %s2577, %s2577
              $region127: #{cnn_discriminator_forward.4} parent=123 // loop_header_branch
                %2589 = sbr.rel (%p2587) target = $region131
              $region128: #{cnn_discriminator_forward.4} parent=123 // loop_body
                %v2593 = vld [vmem:[%s2591] sm:$0xf]
                %2594 = vst [vmem:[%s2592] sm:$0xf] %v2593
                %v2595 = vld [vmem:[%s2591 + $0x4] sm:$0xf]
                %2596 = vst [vmem:[%s2592 + $0x8] sm:$0xf] %v2595
                %v2597 = vld [vmem:[%s2591 + $0x8] sm:$0xf]
                %2598 = vst [vmem:[%s2592 + $0x10] sm:$0xf] %v2597
                %v2599 = vld [vmem:[%s2591 + $0xc] sm:$0xf]
                %2600 = vst [vmem:[%s2592 + $0x18] sm:$0xf] %v2599
                %v2601 = vld [vmem:[%s2591 + $0x10] sm:$0xf]
                %2602 = vst [vmem:[%s2592 + $0x20] sm:$0xf] %v2601
                %v2603 = vld [vmem:[%s2591 + $0x14] sm:$0xf]
                %2604 = vst [vmem:[%s2592 + $0x28] sm:$0xf] %v2603
                %v2605 = vld [vmem:[%s2591 + $0x18] sm:$0xf]
                %2606 = vst [vmem:[%s2592 + $0x30] sm:$0xf] %v2605
                %v2607 = vld [vmem:[%s2591 + $0x1c] sm:$0xf]
                %2608 = vst [vmem:[%s2592 + $0x38] sm:$0xf] %v2607
                %v2609 = vld [vmem:[%s2591 + $0x20] sm:$0xf]
                %2610 = vst [vmem:[%s2592 + $0x40] sm:$0xf] %v2609
                %v2611 = vld [vmem:[%s2591 + $0x24] sm:$0xf]
                %2612 = vst [vmem:[%s2592 + $0x48] sm:$0xf] %v2611
                %v2613 = vld [vmem:[%s2591 + $0x28] sm:$0xf]
                %2614 = vst [vmem:[%s2592 + $0x50] sm:$0xf] %v2613
                %v2615 = vld [vmem:[%s2591 + $0x2c] sm:$0xf]
                %2616 = vst [vmem:[%s2592 + $0x58] sm:$0xf] %v2615
                %v2617 = vld [vmem:[%s2591 + $0x30] sm:$0xf]
                %2618 = vst [vmem:[%s2592 + $0x60] sm:$0xf] %v2617
                %v2619 = vld [vmem:[%s2591 + $0x34] sm:$0xf]
                %2620 = vst [vmem:[%s2592 + $0x68] sm:$0xf] %v2619
                %v2621 = vld [vmem:[%s2591 + $0x38] sm:$0xf]
                %2622 = vst [vmem:[%s2592 + $0x70] sm:$0xf] %v2621
                %v2623 = vld [vmem:[%s2591 + $0x3c] sm:$0xf]
                %2624 = vst [vmem:[%s2592 + $0x78] sm:$0xf] %v2623
              $region129: #{cnn_discriminator_forward.4} parent=123 // loop_footer
                %s2590 = sadd.s32 1, %s2586
              $region130: #{cnn_discriminator_forward.4} parent=123 // loop_footer_branch
                %2585 = sbr.rel target = $region126
              $region131: #{cnn_discriminator_forward.4} parent=123 // loop_exit
                _
            $region124: #{cnn_discriminator_forward.4} parent=115 // pred_fallthru
              _
          $region116: #{cnn_discriminator_forward.4} parent=111 // pred_fallthru
            _
          %2676 = vnop
        $region112: #{cnn_discriminator_forward.4} parent=91 // pred_fallthru
          _
      $region92: #{cnn_discriminator_forward.4} parent=5 // pred_fallthru
        _
      %p2677 = scmp.le.s32.totalorder 2, %s10
      // Predicated region
      $region150: #{cnn_discriminator_forward.4} parent=5 // pred_check
        %p2678 = pneg %p2677
      $region151: #{cnn_discriminator_forward.4} parent=5 // pred_check_branch
        %2680 = sbr.rel (%p2678) target = $region153
      $region152: #{cnn_discriminator_forward.4} parent=5 // pred_region
        %s2681 = ssub.s32 %s10, 2
        // Predicated region
        $region154: #{cnn_discriminator_forward.4} parent=152 // pred_check
          %p2682 = pneg %p157
        $region155: #{cnn_discriminator_forward.4} parent=152 // pred_check_branch
          %2684 = sbr.rel (%p2682) target = $region157
        $region156: #{cnn_discriminator_forward.4} parent=152 // pred_region
          %s2685 = sand.u32 %s142, 1
          %s2686 = sand.u32 %s142, 1
          %s2687 = smul.addr %s2686, 64
          %s2688 = scalar_lea.vmem [#allocation5], %s2687
        $region157: #{cnn_discriminator_forward.4} parent=152 // pred_fallthru
          _
      $region153: #{cnn_discriminator_forward.4} parent=5 // pred_fallthru
        _
    $region6: #{cnn_discriminator_forward.4} parent=1 // loop_footer
      %s14 = sadd.s32 1, %s10
    $region7: #{cnn_discriminator_forward.4} parent=1 // loop_footer_branch
      %9 = sbr.rel target = $region3
    $region8: #{cnn_discriminator_forward.4} parent=1 // loop_exit
      _

// kernel: cnn_discriminator_forward.5
$region0: #{cnn_discriminator_forward.5}
  #allocation0 [shape = 'u32[]', space=smem, size = 0x4, offset = 0x4, fixed_abs, tag = 'smem constant byte address 0x4 - core index']
  #allocation1 [shape = 'u32[144,128]{1,0:T(1,128)}', space=vmem, size = 0x12000, scoped, tag = 'internal scratch']
  #allocation2 [shape = 'f32[32,512]{1,0:T(8,128)}', space=vmem, size = 0x10000, scoped, tag = 'scratch operand']
  %s0 = inlined_call_operand.vmem [shape: bf16[32,4096], index: 0, kind: input, shape index: {}]
  %s1 = inlined_call_operand.vmem [shape: bf16[4096,512], index: 1, kind: input, shape index: {}]
  %s2 = inlined_call_operand.vmem [shape: f32[1,512], index: 2, kind: input, shape index: {}]
  %s3 = inlined_call_operand.vmem [shape: f32[1,512], index: 3, kind: input, shape index: {}]
  %s4 = inlined_call_operand.vmem [shape: f32[16,512], index: 4, kind: input, shape index: {}]
  %s5 = inlined_call_operand.vmem [shape: f32[2,1], index: 5, kind: output, shape index: {}]
  %s6 = sld [smem:[#allocation0]]
  $region84: #{cnn_discriminator_forward.5} parent=0
    _
  %s8 = ssub.s32 1, %s6
  %s9 = scalar_select 0, %s8, %s6
  $region1: #{cnn_discriminator_forward.5} parent=0
    #allocation3 [shape = 'u8[262144]{0}', space=vmem, size = 0x40000, scoped, tag = 'input window, operand 0']
    loop: start=0, step=1, limit=4
    $region2: #{cnn_discriminator_forward.5} parent=1 // loop_pre_header
      _
    $region3: #{cnn_discriminator_forward.5} parent=1 // loop_header
      %s11 = sphi 0, %s15
      %p12 = scmp.ge.s32.totalorder %s11, 4
      %s21 = sphi 0, %s23
      %s24 = sphi 0, %s21
      %s25 = sphi 0, %s24
      %s41 = sphi 0, %s25
      %s47 = sphi 0, %s49
      %s50 = sphi 0, %s47
      %s51 = sphi 0, %s50
      %s67 = sphi 0, %s51
      %s71 = sphi 0, %s71
      %s73 = sphi 0, %s71
      %s74 = sphi 0, %s73
      %s88 = sphi 0, %s74
      %s92 = sphi 0, %s92
      %s94 = sphi 0, %s92
      %s95 = sphi 0, %s94
      %s109 = sphi 0, %s95
      %s113 = sphi 0, %s113
      %s115 = sphi 0, %s113
      %s116 = sphi 0, %s115
      %s130 = sphi 0, %s116
      %s134 = sphi 0, %s134
      %s136 = sphi 0, %s134
      %s137 = sphi 0, %s136
      %s151 = sphi 0, %s137
    $region4: #{cnn_discriminator_forward.5} parent=1 // loop_header_branch
      %14 = sbr.rel (%p12) target = $region8
    $region5: #{cnn_discriminator_forward.5} parent=1 // loop_body
      %s16 = ssub.s32 %s11, 1
      %s17 = ssub.s32 %s11, 2
      %s18 = sadd.s32 %s11, 1
      %s19 = ssub.s32 %s11, %s18
      %p20 = scmp.eq.s32.totalorder %s19, 0
      %s22 = sadd.s32 %s21, 1
      %s23 = scalar_select %p20, %s21, %s22
      %p26 = pneg %p20
      %p27 = scmp.eq.s32.totalorder %s11, 1
      %p28 = por %p26, %p27
      %p29 = scmp.ne.s32.totalorder %s21, %s24
      %p30 = scmp.eq.s32.totalorder %s11, 0
      %p31 = por %p29, %p30
      %p32 = scmp.ne.s32.totalorder %s21, %s24
      %p33 = scmp.eq.s32.totalorder %s16, 1
      %p34 = por %p32, %p33
      %p35 = scmp.ne.s32.totalorder %s24, %s25
      %p36 = scmp.eq.s32.totalorder %s16, 0
      %p37 = por %p35, %p36
      %p38 = scmp.ne.s32.totalorder %s24, %s25
      %p39 = scmp.eq.s32.totalorder %s17, 1
      %p40 = por %p38, %p39
      %p42 = scmp.ne.s32.totalorder %s25, %s41
      %p43 = scmp.eq.s32.totalorder %s17, 0
      %p44 = por %p42, %p43
      %s45 = ssub.s32 %s11, %s18
      %p46 = scmp.eq.s32.totalorder %s45, 0
      %s48 = sadd.s32 %s47, 1
      %s49 = scalar_select %p46, %s47, %s48
      %p52 = pneg %p46
      %p53 = scmp.eq.s32.totalorder %s11, 1
      %p54 = por %p52, %p53
      %p55 = scmp.ne.s32.totalorder %s47, %s50
      %p56 = scmp.eq.s32.totalorder %s11, 0
      %p57 = por %p55, %p56
      %p58 = scmp.ne.s32.totalorder %s47, %s50
      %p59 = scmp.eq.s32.totalorder %s16, 1
      %p60 = por %p58, %p59
      %p61 = scmp.ne.s32.totalorder %s50, %s51
      %p62 = scmp.eq.s32.totalorder %s16, 0
      %p63 = por %p61, %p62
      %p64 = scmp.ne.s32.totalorder %s50, %s51
      %p65 = scmp.eq.s32.totalorder %s17, 1
      %p66 = por %p64, %p65
      %p68 = scmp.ne.s32.totalorder %s51, %s67
      %p69 = scmp.eq.s32.totalorder %s17, 0
      %p70 = por %p68, %p69
      %s72 = sadd.s32 %s71, 1
      %p75 = scmp.eq.s32.totalorder %s11, 1
      %p76 = scmp.ne.s32.totalorder %s71, %s73
      %p77 = scmp.eq.s32.totalorder %s11, 0
      %p78 = por %p76, %p77
      %p79 = scmp.ne.s32.totalorder %s71, %s73
      %p80 = scmp.eq.s32.totalorder %s16, 1
      %p81 = por %p79, %p80
      %p82 = scmp.ne.s32.totalorder %s73, %s74
      %p83 = scmp.eq.s32.totalorder %s16, 0
      %p84 = por %p82, %p83
      %p85 = scmp.ne.s32.totalorder %s73, %s74
      %p86 = scmp.eq.s32.totalorder %s17, 1
      %p87 = por %p85, %p86
      %p89 = scmp.ne.s32.totalorder %s74, %s88
      %p90 = scmp.eq.s32.totalorder %s17, 0
      %p91 = por %p89, %p90
      %s93 = sadd.s32 %s92, 1
      %p96 = scmp.eq.s32.totalorder %s11, 1
      %p97 = scmp.ne.s32.totalorder %s92, %s94
      %p98 = scmp.eq.s32.totalorder %s11, 0
      %p99 = por %p97, %p98
      %p100 = scmp.ne.s32.totalorder %s92, %s94
      %p101 = scmp.eq.s32.totalorder %s16, 1
      %p102 = por %p100, %p101
      %p103 = scmp.ne.s32.totalorder %s94, %s95
      %p104 = scmp.eq.s32.totalorder %s16, 0
      %p105 = por %p103, %p104
      %p106 = scmp.ne.s32.totalorder %s94, %s95
      %p107 = scmp.eq.s32.totalorder %s17, 1
      %p108 = por %p106, %p107
      %p110 = scmp.ne.s32.totalorder %s95, %s109
      %p111 = scmp.eq.s32.totalorder %s17, 0
      %p112 = por %p110, %p111
      %s114 = sadd.s32 %s113, 1
      %p117 = scmp.eq.s32.totalorder %s11, 1
      %p118 = scmp.ne.s32.totalorder %s113, %s115
      %p119 = scmp.eq.s32.totalorder %s11, 0
      %p120 = por %p118, %p119
      %p121 = scmp.ne.s32.totalorder %s113, %s115
      %p122 = scmp.eq.s32.totalorder %s16, 1
      %p123 = por %p121, %p122
      %p124 = scmp.ne.s32.totalorder %s115, %s116
      %p125 = scmp.eq.s32.totalorder %s16, 0
      %p126 = por %p124, %p125
      %p127 = scmp.ne.s32.totalorder %s115, %s116
      %p128 = scmp.eq.s32.totalorder %s17, 1
      %p129 = por %p127, %p128
      %p131 = scmp.ne.s32.totalorder %s116, %s130
      %p132 = scmp.eq.s32.totalorder %s17, 0
      %p133 = por %p131, %p132
      %s135 = sadd.s32 %s134, 1
      %p138 = scmp.eq.s32.totalorder %s11, 1
      %p139 = scmp.ne.s32.totalorder %s134, %s136
      %p140 = scmp.eq.s32.totalorder %s11, 0
      %p141 = por %p139, %p140
      %p142 = scmp.ne.s32.totalorder %s134, %s136
      %p143 = scmp.eq.s32.totalorder %s16, 1
      %p144 = por %p142, %p143
      %p145 = scmp.ne.s32.totalorder %s136, %s137
      %p146 = scmp.eq.s32.totalorder %s16, 0
      %p147 = por %p145, %p146
      %p148 = scmp.ne.s32.totalorder %s136, %s137
      %p149 = scmp.eq.s32.totalorder %s17, 1
      %p150 = por %p148, %p149
      %p152 = scmp.ne.s32.totalorder %s137, %s151
      %p153 = scmp.eq.s32.totalorder %s17, 0
      %p154 = por %p152, %p153
      %p155 = scmp.le.s32.totalorder 1, %s11
      %p156 = scmp.lt.s32.totalorder %s11, 3
      %p157 = pnand %p155, %p156
      %p158 = pneg %p157
      // Predicated region
      $region9: #{cnn_discriminator_forward.5} parent=5 // pred_check
        _
      $region10: #{cnn_discriminator_forward.5} parent=5 // pred_check_branch
        %160 = sbr.rel (%p157) target = $region12
      $region11: #{cnn_discriminator_forward.5} parent=5 // pred_region
        %s161 = ssub.s32 %s11, 1
        // Predicated region
        $region13: #{cnn_discriminator_forward.5} parent=11 // pred_check
          %p162 = pneg %p84
        $region14: #{cnn_discriminator_forward.5} parent=11 // pred_check_branch
          %164 = sbr.rel (%p162) target = $region16
        $region15: #{cnn_discriminator_forward.5} parent=11 // pred_region
          _
        $region16: #{cnn_discriminator_forward.5} parent=11 // pred_fallthru
          _
        // Predicated region
        $region17: #{cnn_discriminator_forward.5} parent=11 // pred_check
          %p165 = pneg %p105
        $region18: #{cnn_discriminator_forward.5} parent=11 // pred_check_branch
          %167 = sbr.rel (%p165) target = $region20
        $region19: #{cnn_discriminator_forward.5} parent=11 // pred_region
          _
        $region20: #{cnn_discriminator_forward.5} parent=11 // pred_fallthru
          _
        // Predicated region
        $region21: #{cnn_discriminator_forward.5} parent=11 // pred_check
          %p168 = pneg %p126
        $region22: #{cnn_discriminator_forward.5} parent=11 // pred_check_branch
          %170 = sbr.rel (%p168) target = $region24
        $region23: #{cnn_discriminator_forward.5} parent=11 // pred_region
          _
        $region24: #{cnn_discriminator_forward.5} parent=11 // pred_fallthru
          _
      $region12: #{cnn_discriminator_forward.5} parent=5 // pred_fallthru
        _
      %p171 = scmp.lt.s32.totalorder %s11, 2
      // Predicated region
      $region25: #{cnn_discriminator_forward.5} parent=5 // pred_check
        %p172 = pneg %p171
      $region26: #{cnn_discriminator_forward.5} parent=5 // pred_check_branch
        %174 = sbr.rel (%p172) target = $region28
      $region27: #{cnn_discriminator_forward.5} parent=5 // pred_region
        // Predicated region
        $region29: #{cnn_discriminator_forward.5} parent=27 // pred_check
          %p175 = pneg %p31
        $region30: #{cnn_discriminator_forward.5} parent=27 // pred_check_branch
          %177 = sbr.rel (%p175) target = $region32
        $region31: #{cnn_discriminator_forward.5} parent=27 // pred_region
          %s178 = sand.u32 %s21, 1
          %s179 = sand.u32 %s21, 1
          %s180 = smul.addr %s179, 256
          %s181 = scalar_lea.vmem [#allocation3], %s180
          %s182 = smul.u32 16, %s11
          %s183 = smul.addr %s182, 4
          %s184 = scalar_lea.vmem %s0, %s183
          // Predicated region
          $region33: #{cnn_discriminator_forward.5} parent=31 // pred_check
            _
          $region34: #{cnn_discriminator_forward.5} parent=31 // pred_check_branch
            %186 = sbr.rel (0) target = $region36
          $region35: #{cnn_discriminator_forward.5} parent=31 // pred_region
            // Predicated region
            $region37: #{cnn_discriminator_forward.5} parent=35 // pred_check
              _
            $region38: #{cnn_discriminator_forward.5} parent=35 // pred_check_branch
              %188 = sbr.rel (0) target = $region40
            $region39: #{cnn_discriminator_forward.5} parent=35 // pred_region
              loop: start=0, step=1, limit=1
              $region41: #{cnn_discriminator_forward.5} parent=39 // loop_pre_header
                _
              $region42: #{cnn_discriminator_forward.5} parent=39 // loop_header
                %s190 = sphi 0, %s194
                %p191 = scmp.ge.s32.totalorder %s190, 1
                %s195 = sphi %s184, %s184
                %s196 = sphi %s181, %s181
              $region43: #{cnn_discriminator_forward.5} parent=39 // loop_header_branch
                %193 = sbr.rel (%p191) target = $region47
              $region44: #{cnn_discriminator_forward.5} parent=39 // loop_body
                %v197 = vld [vmem:[%s195] sm:$0xff]
                %198 = vst [vmem:[%s196] sm:$0xff] %v197
                %v199 = vld [vmem:[%s195 + $0x8] sm:$0xff]
                %200 = vst [vmem:[%s196 + $0x8] sm:$0xff] %v199
                %v201 = vld [vmem:[%s195 + $0x10] sm:$0xff]
                %202 = vst [vmem:[%s196 + $0x10] sm:$0xff] %v201
                %v203 = vld [vmem:[%s195 + $0x18] sm:$0xff]
                %204 = vst [vmem:[%s196 + $0x18] sm:$0xff] %v203
                %v205 = vld [vmem:[%s195 + $0x20] sm:$0xff]
                %206 = vst [vmem:[%s196 + $0x20] sm:$0xff] %v205
                %v207 = vld [vmem:[%s195 + $0x28] sm:$0xff]
                %208 = vst [vmem:[%s196 + $0x28] sm:$0xff] %v207
                %v209 = vld [vmem:[%s195 + $0x30] sm:$0xff]
                %210 = vst [vmem:[%s196 + $0x30] sm:$0xff] %v209
                %v211 = vld [vmem:[%s195 + $0x38] sm:$0xff]
                %212 = vst [vmem:[%s196 + $0x38] sm:$0xff] %v211
                %v213 = vld [vmem:[%s195 + $0x80] sm:$0xff]
                %214 = vst [vmem:[%s196 + $0x40] sm:$0xff] %v213
                %v215 = vld [vmem:[%s195 + $0x88] sm:$0xff]
                %216 = vst [vmem:[%s196 + $0x48] sm:$0xff] %v215
                %v217 = vld [vmem:[%s195 + $0x90] sm:$0xff]
                %218 = vst [vmem:[%s196 + $0x50] sm:$0xff] %v217
                %v219 = vld [vmem:[%s195 + $0x98] sm:$0xff]
                %220 = vst [vmem:[%s196 + $0x58] sm:$0xff] %v219
                %v221 = vld [vmem:[%s195 + $0xa0] sm:$0xff]
                %222 = vst [vmem:[%s196 + $0x60] sm:$0xff] %v221
                %v223 = vld [vmem:[%s195 + $0xa8] sm:$0xff]
                %224 = vst [vmem:[%s196 + $0x68] sm:$0xff] %v223
                %v225 = vld [vmem:[%s195 + $0xb0] sm:$0xff]
                %226 = vst [vmem:[%s196 + $0x70] sm:$0xff] %v225
                %v227 = vld [vmem:[%s195 + $0xb8] sm:$0xff]
                %228 = vst [vmem:[%s196 + $0x78] sm:$0xff] %v227
                %v229 = vld [vmem:[%s195 + $0x100] sm:$0xff]
                %230 = vst [vmem:[%s196 + $0x80] sm:$0xff] %v229
                %v231 = vld [vmem:[%s195 + $0x108] sm:$0xff]
                %232 = vst [vmem:[%s196 + $0x88] sm:$0xff] %v231
                %v233 = vld [vmem:[%s195 + $0x110] sm:$0xff]
                %234 = vst [vmem:[%s196 + $0x90] sm:$0xff] %v233
                %v235 = vld [vmem:[%s195 + $0x118] sm:$0xff]
                %236 = vst [vmem:[%s196 + $0x98] sm:$0xff] %v235
                %v237 = vld [vmem:[%s195 + $0x120] sm:$0xff]
                %238 = vst [vmem:[%s196 + $0xa0] sm:$0xff] %v237
                %v239 = vld [vmem:[%s195 + $0x128] sm:$0xff]
                %240 = vst [vmem:[%s196 + $0xa8] sm:$0xff] %v239
                %v241 = vld [vmem:[%s195 + $0x130] sm:$0xff]
                %242 = vst [vmem:[%s196 + $0xb0] sm:$0xff] %v241
                %v243 = vld [vmem:[%s195 + $0x138] sm:$0xff]
                %244 = vst [vmem:[%s196 + $0xb8] sm:$0xff] %v243
                %v245 = vld [vmem:[%s195 + $0x180] sm:$0xff]
                %246 = vst [vmem:[%s196 + $0xc0] sm:$0xff] %v245
                %v247 = vld [vmem:[%s195 + $0x188] sm:$0xff]
                %248 = vst [vmem:[%s196 + $0xc8] sm:$0xff] %v247
                %v249 = vld [vmem:[%s195 + $0x190] sm:$0xff]
                %250 = vst [vmem:[%s196 + $0xd0] sm:$0xff] %v249
                %v251 = vld [vmem:[%s195 + $0x198] sm:$0xff]
                %252 = vst [vmem:[%s196 + $0xd8] sm:$0xff] %v251
                %v253 = vld [vmem:[%s195 + $0x1a0] sm:$0xff]
                %254 = vst [vmem:[%s196 + $0xe0] sm:$0xff] %v253
                %v255 = vld [vmem:[%s195 + $0x1a8] sm:$0xff]
                %256 = vst [vmem:[%s196 + $0xe8] sm:$0xff] %v255
                %v257 = vld [vmem:[%s195 + $0x1b0] sm:$0xff]
                %258 = vst [vmem:[%s196 + $0xf0] sm:$0xff] %v257
                %v259 = vld [vmem:[%s195 + $0x1b8] sm:$0xff]
                %260 = vst [vmem:[%s196 + $0xf8] sm:$0xff] %v259
              $region45: #{cnn_discriminator_forward.5} parent=39 // loop_footer
                %s194 = sadd.s32 1, %s190
              $region46: #{cnn_discriminator_forward.5} parent=39 // loop_footer_branch
                %189 = sbr.rel target = $region42
              $region47: #{cnn_discriminator_forward.5} parent=39 // loop_exit
                _
            $region40: #{cnn_discriminator_forward.5} parent=35 // pred_fallthru
              _
            // Predicated region
            $region48: #{cnn_discriminator_forward.5} parent=35 // pred_check
              _
            $region49: #{cnn_discriminator_forward.5} parent=35 // pred_check_branch
              %262 = sbr.rel target = $region51
            $region50: #{cnn_discriminator_forward.5} parent=35 // pred_region
              _
            $region51: #{cnn_discriminator_forward.5} parent=35 // pred_fallthru
              _
          $region36: #{cnn_discriminator_forward.5} parent=31 // pred_fallthru
            _
          %263 = vnop
        $region32: #{cnn_discriminator_forward.5} parent=27 // pred_fallthru
          _
        // Predicated region
        $region52: #{cnn_discriminator_forward.5} parent=27 // pred_check
          %p264 = pneg %p57
        $region53: #{cnn_discriminator_forward.5} parent=27 // pred_check_branch
          %266 = sbr.rel (%p264) target = $region55
        $region54: #{cnn_discriminator_forward.5} parent=27 // pred_region
          %s267 = smul.u32 256, %s11
          %p268 = scmp.lt.s32.totalorder %s267, 511
          %s269 = scalar_select %p268, %s267, 511
          %s270 = smul.addr %s269, 4
          %s271 = smul.addr %s270, 4
          %s272 = scalar_lea.vmem %s1, %s271
          %s273 = smul.u32 256, %s11
        $region55: #{cnn_discriminator_forward.5} parent=27 // pred_fallthru
          _
      $region28: #{cnn_discriminator_forward.5} parent=5 // pred_fallthru
        _
      %p274 = scmp.le.s32.totalorder 1, %s11
      %p275 = scmp.lt.s32.totalorder %s11, 3
      %p276 = pnand %p274, %p275
      %p277 = pneg %p276
      // Predicated region
      $region56: #{cnn_discriminator_forward.5} parent=5 // pred_check
        _
      $region57: #{cnn_discriminator_forward.5} parent=5 // pred_check_branch
        %279 = sbr.rel (%p276) target = $region59
      $region58: #{cnn_discriminator_forward.5} parent=5 // pred_region
        %s280 = ssub.s32 %s11, 1
        %s281 = sand.u32 %s24, 1
        %s282 = sand.u32 %s24, 1
        %s283 = smul.addr %s282, 256
        %s284 = scalar_lea.vmem [#allocation3], %s283
        // Predicated region
        $region60: #{cnn_discriminator_forward.5} parent=58 // pred_check
          %p285 = pneg %p37
        $region61: #{cnn_discriminator_forward.5} parent=58 // pred_check_branch
          %287 = sbr.rel (%p285) target = $region63
        $region62: #{cnn_discriminator_forward.5} parent=58 // pred_region
          _
        $region63: #{cnn_discriminator_forward.5} parent=58 // pred_fallthru
          _
        %s288 = sand.u32 %s24, 1
        %s289 = sand.u32 %s24, 1
        %s290 = smul.addr %s289, 256
        %s291 = scalar_lea.vmem [#allocation3], %s290
        %p292 = pneg %p37
        %p293 = pneg %p34
        %s294 = smul.u32 256, %s16
        %p295 = scmp.lt.s32.totalorder %s294, 511
        %s296 = scalar_select %p295, %s294, 511
        %s297 = smul.addr %s296, 4
        %s298 = smul.addr %s297, 4
        %s299 = scalar_lea.vmem %s1, %s298
        %p300 = pneg %p63
        %p301 = pneg %p60
        %p302 = pneg %p84
        %p303 = pneg %p81
        %p304 = pneg %p105
        %p305 = pneg %p102
        %p306 = pneg %p126
        %p307 = pneg %p123
        %p308 = pneg %p147
        %p309 = pneg %p144
        %s310 = smul.u32 16, %s16
        %s311 = smul.u32 256, %s16
        %p312 = scmp.lt.s32.totalorder %s311, 511
        %s313 = scalar_select %p312, %s311, 511
        %s314 = smul.addr %s313, 4
        %s315 = smul.addr %s314, 4
        %s316 = scalar_lea.vmem %s1, %s315
        %s317 = smul.u32 256, %s16
        %p318 = scmp.eq.s32.totalorder %s16, 0
        // Predicated region
        $region64: #{cnn_discriminator_forward.5} parent=58 // pred_check
          %p319 = pneg %p318
        $region65: #{cnn_discriminator_forward.5} parent=58 // pred_check_branch
          %321 = sbr.rel (%p319) target = $region67
        $region66: #{cnn_discriminator_forward.5} parent=58 // pred_region
          %322 = vst [vmem:[#allocation2] sm:$0xff] 0.0
          %323 = vst [vmem:[#allocation2 + $0x8] sm:$0xff] 0.0
          %324 = vst [vmem:[#allocation2 + $0x10] sm:$0xff] 0.0
          %325 = vst [vmem:[#allocation2 + $0x18] sm:$0xff] 0.0
          %326 = vst [vmem:[#allocation2 + $0x20] sm:$0xff] 0.0
          %327 = vst [vmem:[#allocation2 + $0x28] sm:$0xff] 0.0
          %328 = vst [vmem:[#allocation2 + $0x30] sm:$0xff] 0.0
          %329 = vst [vmem:[#allocation2 + $0x38] sm:$0xff] 0.0
          %330 = vst [vmem:[#allocation2 + $0x40] sm:$0xff] 0.0
          %331 = vst [vmem:[#allocation2 + $0x48] sm:$0xff] 0.0
          %332 = vst [vmem:[#allocation2 + $0x50] sm:$0xff] 0.0
          %333 = vst [vmem:[#allocation2 + $0x58] sm:$0xff] 0.0
          %334 = vst [vmem:[#allocation2 + $0x60] sm:$0xff] 0.0
          %335 = vst [vmem:[#allocation2 + $0x68] sm:$0xff] 0.0
          %336 = vst [vmem:[#allocation2 + $0x70] sm:$0xff] 0.0
          %337 = vst [vmem:[#allocation2 + $0x78] sm:$0xff] 0.0
        $region67: #{cnn_discriminator_forward.5} parent=58 // pred_fallthru
          _
        %v338 = vld [vmem:[#allocation2] sm:$0xff]
        %v339 = vld [vmem:[#allocation2 + $0x8] sm:$0xff]
        %v340 = vld [vmem:[#allocation2 + $0x10] sm:$0xff]
        %v341 = vld [vmem:[#allocation2 + $0x18] sm:$0xff]
        %v342 = vld [vmem:[#allocation2 + $0x20] sm:$0xff]
        %v343 = vld [vmem:[#allocation2 + $0x28] sm:$0xff]
        %v344 = vld [vmem:[#allocation2 + $0x30] sm:$0xff]
        %v345 = vld [vmem:[#allocation2 + $0x38] sm:$0xff]
        %v346 = vld [vmem:[#allocation2 + $0x40] sm:$0xff]
        %v347 = vld [vmem:[#allocation2 + $0x48] sm:$0xff]
        %v348 = vld [vmem:[#allocation2 + $0x50] sm:$0xff]
        %v349 = vld [vmem:[#allocation2 + $0x58] sm:$0xff]
        %v350 = vld [vmem:[#allocation2 + $0x60] sm:$0xff]
        %v351 = vld [vmem:[#allocation2 + $0x68] sm:$0xff]
        %v352 = vld [vmem:[#allocation2 + $0x70] sm:$0xff]
        %v353 = vld [vmem:[#allocation2 + $0x78] sm:$0xff]
        %v354 = vld [vmem:[%s284] sm:$0xff]
        %v355 = vld [vmem:[%s284 + $0x8] sm:$0xff]
        %v356 = vld [vmem:[%s284 + $0x10] sm:$0xff]
        %v357 = vld [vmem:[%s284 + $0x18] sm:$0xff]
        %v358 = vld [vmem:[%s284 + $0x20] sm:$0xff]
        %v359 = vld [vmem:[%s284 + $0x28] sm:$0xff]
        %v360 = vld [vmem:[%s284 + $0x30] sm:$0xff]
        %v361 = vld [vmem:[%s284 + $0x38] sm:$0xff]
        %v362 = vld [vmem:[%s284 + $0x40] sm:$0xff]
        %v363 = vld [vmem:[%s284 + $0x48] sm:$0xff]
        %v364 = vld [vmem:[%s284 + $0x50] sm:$0xff]
        %v365 = vld [vmem:[%s284 + $0x58] sm:$0xff]
        %v366 = vld [vmem:[%s284 + $0x60] sm:$0xff]
        %v367 = vld [vmem:[%s284 + $0x68] sm:$0xff]
        %v368 = vld [vmem:[%s284 + $0x70] sm:$0xff]
        %v369 = vld [vmem:[%s284 + $0x78] sm:$0xff]
        %v370 = vld [vmem:[%s284 + $0x80] sm:$0xff]
        %v371 = vld [vmem:[%s284 + $0x88] sm:$0xff]
        %v372 = vld [vmem:[%s284 + $0x90] sm:$0xff]
        %v373 = vld [vmem:[%s284 + $0x98] sm:$0xff]
        %v374 = vld [vmem:[%s284 + $0xa0] sm:$0xff]
        %v375 = vld [vmem:[%s284 + $0xa8] sm:$0xff]
        %v376 = vld [vmem:[%s284 + $0xb0] sm:$0xff]
        %v377 = vld [vmem:[%s284 + $0xb8] sm:$0xff]
        %v378 = vld [vmem:[%s284 + $0xc0] sm:$0xff]
        %v379 = vld [vmem:[%s284 + $0xc8] sm:$0xff]
        %v380 = vld [vmem:[%s284 + $0xd0] sm:$0xff]
        %v381 = vld [vmem:[%s284 + $0xd8] sm:$0xff]
        %v382 = vld [vmem:[%s284 + $0xe0] sm:$0xff]
        %v383 = vld [vmem:[%s284 + $0xe8] sm:$0xff]
        %v384 = vld [vmem:[%s284 + $0xf0] sm:$0xff]
        %v385 = vld [vmem:[%s284 + $0xf8] sm:$0xff]
        %v386 = vld [vmem:[%s316] sm:$0xff]
        %v387 = vld [vmem:[%s316 + $0x8] sm:$0xff]
        %v388 = vld [vmem:[%s316 + $0x10] sm:$0xff]
        %v389 = vld [vmem:[%s316 + $0x18] sm:$0xff]
        %v390 = vld [vmem:[%s316 + $0x20] sm:$0xff]
        %v391 = vld [vmem:[%s316 + $0x28] sm:$0xff]
        %v392 = vld [vmem:[%s316 + $0x30] sm:$0xff]
        %v393 = vld [vmem:[%s316 + $0x38] sm:$0xff]
        %v394 = vld [vmem:[%s316 + $0x40] sm:$0xff]
        %v395 = vld [vmem:[%s316 + $0x48] sm:$0xff]
        %v396 = vld [vmem:[%s316 + $0x50] sm:$0xff]
        %v397 = vld [vmem:[%s316 + $0x58] sm:$0xff]
        %v398 = vld [vmem:[%s316 + $0x60] sm:$0xff]
        %v399 = vld [vmem:[%s316 + $0x68] sm:$0xff]
        %v400 = vld [vmem:[%s316 + $0x70] sm:$0xff]
        %v401 = vld [vmem:[%s316 + $0x78] sm:$0xff]
        %v402 = vld [vmem:[%s316 + $0x80] sm:$0xff]
        %v403 = vld [vmem:[%s316 + $0x88] sm:$0xff]
        %v404 = vld [vmem:[%s316 + $0x90] sm:$0xff]
        %v405 = vld [vmem:[%s316 + $0x98] sm:$0xff]
        %v406 = vld [vmem:[%s316 + $0xa0] sm:$0xff]
        %v407 = vld [vmem:[%s316 + $0xa8] sm:$0xff]
        %v408 = vld [vmem:[%s316 + $0xb0] sm:$0xff]
        %v409 = vld [vmem:[%s316 + $0xb8] sm:$0xff]
        %v410 = vld [vmem:[%s316 + $0xc0] sm:$0xff]
        %v411 = vld [vmem:[%s316 + $0xc8] sm:$0xff]
        %v412 = vld [vmem:[%s316 + $0xd0] sm:$0xff]
        %v413 = vld [vmem:[%s316 + $0xd8] sm:$0xff]
        %v414 = vld [vmem:[%s316 + $0xe0] sm:$0xff]
        %v415 = vld [vmem:[%s316 + $0xe8] sm:$0xff]
        %v416 = vld [vmem:[%s316 + $0xf0] sm:$0xff]
        %v417 = vld [vmem:[%s316 + $0xf8] sm:$0xff]
        %v418 = vld [vmem:[%s316 + $0x100] sm:$0xff]
        %v419 = vld [vmem:[%s316 + $0x108] sm:$0xff]
        %v420 = vld [vmem:[%s316 + $0x110] sm:$0xff]
        %v421 = vld [vmem:[%s316 + $0x118] sm:$0xff]
        %v422 = vld [vmem:[%s316 + $0x120] sm:$0xff]
        %v423 = vld [vmem:[%s316 + $0x128] sm:$0xff]
        %v424 = vld [vmem:[%s316 + $0x130] sm:$0xff]
        %v425 = vld [vmem:[%s316 + $0x138] sm:$0xff]
        %v426 = vld [vmem:[%s316 + $0x140] sm:$0xff]
        %v427 = vld [vmem:[%s316 + $0x148] sm:$0xff]
        %v428 = vld [vmem:[%s316 + $0x150] sm:$0xff]
        %v429 = vld [vmem:[%s316 + $0x158] sm:$0xff]
        %v430 = vld [vmem:[%s316 + $0x160] sm:$0xff]
        %v431 = vld [vmem:[%s316 + $0x168] sm:$0xff]
        %v432 = vld [vmem:[%s316 + $0x170] sm:$0xff]
        %v433 = vld [vmem:[%s316 + $0x178] sm:$0xff]
        %v434 = vld [vmem:[%s316 + $0x180] sm:$0xff]
        %v435 = vld [vmem:[%s316 + $0x188] sm:$0xff]
        %v436 = vld [vmem:[%s316 + $0x190] sm:$0xff]
        %v437 = vld [vmem:[%s316 + $0x198] sm:$0xff]
        %v438 = vld [vmem:[%s316 + $0x1a0] sm:$0xff]
        %v439 = vld [vmem:[%s316 + $0x1a8] sm:$0xff]
        %v440 = vld [vmem:[%s316 + $0x1b0] sm:$0xff]
        %v441 = vld [vmem:[%s316 + $0x1b8] sm:$0xff]
        %v442 = vld [vmem:[%s316 + $0x1c0] sm:$0xff]
        %v443 = vld [vmem:[%s316 + $0x1c8] sm:$0xff]
        %v444 = vld [vmem:[%s316 + $0x1d0] sm:$0xff]
        %v445 = vld [vmem:[%s316 + $0x1d8] sm:$0xff]
        %v446 = vld [vmem:[%s316 + $0x1e0] sm:$0xff]
        %v447 = vld [vmem:[%s316 + $0x1e8] sm:$0xff]
        %v448 = vld [vmem:[%s316 + $0x1f0] sm:$0xff]
        %v449 = vld [vmem:[%s316 + $0x1f8] sm:$0xff]
        %v450 = vld [vmem:[%s316 + $0x200] sm:$0xff]
        %v451 = vld [vmem:[%s316 + $0x208] sm:$0xff]
        %v452 = vld [vmem:[%s316 + $0x210] sm:$0xff]
        %v453 = vld [vmem:[%s316 + $0x218] sm:$0xff]
        %v454 = vld [vmem:[%s316 + $0x220] sm:$0xff]
        %v455 = vld [vmem:[%s316 + $0x228] sm:$0xff]
        %v456 = vld [vmem:[%s316 + $0x230] sm:$0xff]
        %v457 = vld [vmem:[%s316 + $0x238] sm:$0xff]
        %v458 = vld [vmem:[%s316 + $0x240] sm:$0xff]
        %v459 = vld [vmem:[%s316 + $0x248] sm:$0xff]
        %v460 = vld [vmem:[%s316 + $0x250] sm:$0xff]
        %v461 = vld [vmem:[%s316 + $0x258] sm:$0xff]
        %v462 = vld [vmem:[%s316 + $0x260] sm:$0xff]
        %v463 = vld [vmem:[%s316 + $0x268] sm:$0xff]
        %v464 = vld [vmem:[%s316 + $0x270] sm:$0xff]
        %v465 = vld [vmem:[%s316 + $0x278] sm:$0xff]
        %v466 = vld [vmem:[%s316 + $0x280] sm:$0xff]
        %v467 = vld [vmem:[%s316 + $0x288] sm:$0xff]
        %v468 = vld [vmem:[%s316 + $0x290] sm:$0xff]
        %v469 = vld [vmem:[%s316 + $0x298] sm:$0xff]
        %v470 = vld [vmem:[%s316 + $0x2a0] sm:$0xff]
        %v471 = vld [vmem:[%s316 + $0x2a8] sm:$0xff]
        %v472 = vld [vmem:[%s316 + $0x2b0] sm:$0xff]
        %v473 = vld [vmem:[%s316 + $0x2b8] sm:$0xff]
        %v474 = vld [vmem:[%s316 + $0x2c0] sm:$0xff]
        %v475 = vld [vmem:[%s316 + $0x2c8] sm:$0xff]
        %v476 = vld [vmem:[%s316 + $0x2d0] sm:$0xff]
        %v477 = vld [vmem:[%s316 + $0x2d8] sm:$0xff]
        %v478 = vld [vmem:[%s316 + $0x2e0] sm:$0xff]
        %v479 = vld [vmem:[%s316 + $0x2e8] sm:$0xff]
        %v480 = vld [vmem:[%s316 + $0x2f0] sm:$0xff]
        %v481 = vld [vmem:[%s316 + $0x2f8] sm:$0xff]
        %v482 = vld [vmem:[%s316 + $0x300] sm:$0xff]
        %v483 = vld [vmem:[%s316 + $0x308] sm:$0xff]
        %v484 = vld [vmem:[%s316 + $0x310] sm:$0xff]
        %v485 = vld [vmem:[%s316 + $0x318] sm:$0xff]
        %v486 = vld [vmem:[%s316 + $0x320] sm:$0xff]
        %v487 = vld [vmem:[%s316 + $0x328] sm:$0xff]
        %v488 = vld [vmem:[%s316 + $0x330] sm:$0xff]
        %v489 = vld [vmem:[%s316 + $0x338] sm:$0xff]
        %v490 = vld [vmem:[%s316 + $0x340] sm:$0xff]
        %v491 = vld [vmem:[%s316 + $0x348] sm:$0xff]
        %v492 = vld [vmem:[%s316 + $0x350] sm:$0xff]
        %v493 = vld [vmem:[%s316 + $0x358] sm:$0xff]
        %v494 = vld [vmem:[%s316 + $0x360] sm:$0xff]
        %v495 = vld [vmem:[%s316 + $0x368] sm:$0xff]
        %v496 = vld [vmem:[%s316 + $0x370] sm:$0xff]
        %v497 = vld [vmem:[%s316 + $0x378] sm:$0xff]
        %v498 = vld [vmem:[%s316 + $0x380] sm:$0xff]
        %v499 = vld [vmem:[%s316 + $0x388] sm:$0xff]
        %v500 = vld [vmem:[%s316 + $0x390] sm:$0xff]
        %v501 = vld [vmem:[%s316 + $0x398] sm:$0xff]
        %v502 = vld [vmem:[%s316 + $0x3a0] sm:$0xff]
        %v503 = vld [vmem:[%s316 + $0x3a8] sm:$0xff]
        %v504 = vld [vmem:[%s316 + $0x3b0] sm:$0xff]
        %v505 = vld [vmem:[%s316 + $0x3b8] sm:$0xff]
        %v506 = vld [vmem:[%s316 + $0x3c0] sm:$0xff]
        %v507 = vld [vmem:[%s316 + $0x3c8] sm:$0xff]
        %v508 = vld [vmem:[%s316 + $0x3d0] sm:$0xff]
        %v509 = vld [vmem:[%s316 + $0x3d8] sm:$0xff]
        %v510 = vld [vmem:[%s316 + $0x3e0] sm:$0xff]
        %v511 = vld [vmem:[%s316 + $0x3e8] sm:$0xff]
        %v512 = vld [vmem:[%s316 + $0x3f0] sm:$0xff]
        %v513 = vld [vmem:[%s316 + $0x3f8] sm:$0xff]
        %v514 = vld [vmem:[%s316 + $0x400] sm:$0xff]
        %v515 = vld [vmem:[%s316 + $0x408] sm:$0xff]
        %v516 = vld [vmem:[%s316 + $0x410] sm:$0xff]
        %v517 = vld [vmem:[%s316 + $0x418] sm:$0xff]
        %v518 = vld [vmem:[%s316 + $0x420] sm:$0xff]
        %v519 = vld [vmem:[%s316 + $0x428] sm:$0xff]
        %v520 = vld [vmem:[%s316 + $0x430] sm:$0xff]
        %v521 = vld [vmem:[%s316 + $0x438] sm:$0xff]
        %v522 = vld [vmem:[%s316 + $0x440] sm:$0xff]
        %v523 = vld [vmem:[%s316 + $0x448] sm:$0xff]
        %v524 = vld [vmem:[%s316 + $0x450] sm:$0xff]
        %v525 = vld [vmem:[%s316 + $0x458] sm:$0xff]
        %v526 = vld [vmem:[%s316 + $0x460] sm:$0xff]
        %v527 = vld [vmem:[%s316 + $0x468] sm:$0xff]
        %v528 = vld [vmem:[%s316 + $0x470] sm:$0xff]
        %v529 = vld [vmem:[%s316 + $0x478] sm:$0xff]
        %v530 = vld [vmem:[%s316 + $0x480] sm:$0xff]
        %v531 = vld [vmem:[%s316 + $0x488] sm:$0xff]
        %v532 = vld [vmem:[%s316 + $0x490] sm:$0xff]
        %v533 = vld [vmem:[%s316 + $0x498] sm:$0xff]
        %v534 = vld [vmem:[%s316 + $0x4a0] sm:$0xff]
        %v535 = vld [vmem:[%s316 + $0x4a8] sm:$0xff]
        %v536 = vld [vmem:[%s316 + $0x4b0] sm:$0xff]
        %v537 = vld [vmem:[%s316 + $0x4b8] sm:$0xff]
        %v538 = vld [vmem:[%s316 + $0x4c0] sm:$0xff]
        %v539 = vld [vmem:[%s316 + $0x4c8] sm:$0xff]
        %v540 = vld [vmem:[%s316 + $0x4d0] sm:$0xff]
        %v541 = vld [vmem:[%s316 + $0x4d8] sm:$0xff]
        %v542 = vld [vmem:[%s316 + $0x4e0] sm:$0xff]
        %v543 = vld [vmem:[%s316 + $0x4e8] sm:$0xff]
        %v544 = vld [vmem:[%s316 + $0x4f0] sm:$0xff]
        %v545 = vld [vmem:[%s316 + $0x4f8] sm:$0xff]
        %v546 = vld [vmem:[%s316 + $0x500] sm:$0xff]
        %v547 = vld [vmem:[%s316 + $0x508] sm:$0xff]
        %v548 = vld [vmem:[%s316 + $0x510] sm:$0xff]
        %v549 = vld [vmem:[%s316 + $0x518] sm:$0xff]
        %v550 = vld [vmem:[%s316 + $0x520] sm:$0xff]
        %v551 = vld [vmem:[%s316 + $0x528] sm:$0xff]
        %v552 = vld [vmem:[%s316 + $0x530] sm:$0xff]
        %v553 = vld [vmem:[%s316 + $0x538] sm:$0xff]
        %v554 = vld [vmem:[%s316 + $0x540] sm:$0xff]
        %v555 = vld [vmem:[%s316 + $0x548] sm:$0xff]
        %v556 = vld [vmem:[%s316 + $0x550] sm:$0xff]
        %v557 = vld [vmem:[%s316 + $0x558] sm:$0xff]
        %v558 = vld [vmem:[%s316 + $0x560] sm:$0xff]
        %v559 = vld [vmem:[%s316 + $0x568] sm:$0xff]
        %v560 = vld [vmem:[%s316 + $0x570] sm:$0xff]
        %v561 = vld [vmem:[%s316 + $0x578] sm:$0xff]
        %v562 = vld [vmem:[%s316 + $0x580] sm:$0xff]
        %v563 = vld [vmem:[%s316 + $0x588] sm:$0xff]
        %v564 = vld [vmem:[%s316 + $0x590] sm:$0xff]
        %v565 = vld [vmem:[%s316 + $0x598] sm:$0xff]
        %v566 = vld [vmem:[%s316 + $0x5a0] sm:$0xff]
        %v567 = vld [vmem:[%s316 + $0x5a8] sm:$0xff]
        %v568 = vld [vmem:[%s316 + $0x5b0] sm:$0xff]
        %v569 = vld [vmem:[%s316 + $0x5b8] sm:$0xff]
        %v570 = vld [vmem:[%s316 + $0x5c0] sm:$0xff]
        %v571 = vld [vmem:[%s316 + $0x5c8] sm:$0xff]
        %v572 = vld [vmem:[%s316 + $0x5d0] sm:$0xff]
        %v573 = vld [vmem:[%s316 + $0x5d8] sm:$0xff]
        %v574 = vld [vmem:[%s316 + $0x5e0] sm:$0xff]
        %v575 = vld [vmem:[%s316 + $0x5e8] sm:$0xff]
        %v576 = vld [vmem:[%s316 + $0x5f0] sm:$0xff]
        %v577 = vld [vmem:[%s316 + $0x5f8] sm:$0xff]
        %v578 = vld [vmem:[%s316 + $0x600] sm:$0xff]
        %v579 = vld [vmem:[%s316 + $0x608] sm:$0xff]
        %v580 = vld [vmem:[%s316 + $0x610] sm:$0xff]
        %v581 = vld [vmem:[%s316 + $0x618] sm:$0xff]
        %v582 = vld [vmem:[%s316 + $0x620] sm:$0xff]
        %v583 = vld [vmem:[%s316 + $0x628] sm:$0xff]
        %v584 = vld [vmem:[%s316 + $0x630] sm:$0xff]
        %v585 = vld [vmem:[%s316 + $0x638] sm:$0xff]
        %v586 = vld [vmem:[%s316 + $0x640] sm:$0xff]
        %v587 = vld [vmem:[%s316 + $0x648] sm:$0xff]
        %v588 = vld [vmem:[%s316 + $0x650] sm:$0xff]
        %v589 = vld [vmem:[%s316 + $0x658] sm:$0xff]
        %v590 = vld [vmem:[%s316 + $0x660] sm:$0xff]
        %v591 = vld [vmem:[%s316 + $0x668] sm:$0xff]
        %v592 = vld [vmem:[%s316 + $0x670] sm:$0xff]
        %v593 = vld [vmem:[%s316 + $0x678] sm:$0xff]
        %v594 = vld [vmem:[%s316 + $0x680] sm:$0xff]
        %v595 = vld [vmem:[%s316 + $0x688] sm:$0xff]
        %v596 = vld [vmem:[%s316 + $0x690] sm:$0xff]
        %v597 = vld [vmem:[%s316 + $0x698] sm:$0xff]
        %v598 = vld [vmem:[%s316 + $0x6a0] sm:$0xff]
        %v599 = vld [vmem:[%s316 + $0x6a8] sm:$0xff]
        %v600 = vld [vmem:[%s316 + $0x6b0] sm:$0xff]
        %v601 = vld [vmem:[%s316 + $0x6b8] sm:$0xff]
        %v602 = vld [vmem:[%s316 + $0x6c0] sm:$0xff]
        %v603 = vld [vmem:[%s316 + $0x6c8] sm:$0xff]
        %v604 = vld [vmem:[%s316 + $0x6d0] sm:$0xff]
        %v605 = vld [vmem:[%s316 + $0x6d8] sm:$0xff]
        %v606 = vld [vmem:[%s316 + $0x6e0] sm:$0xff]
        %v607 = vld [vmem:[%s316 + $0x6e8] sm:$0xff]
        %v608 = vld [vmem:[%s316 + $0x6f0] sm:$0xff]
        %v609 = vld [vmem:[%s316 + $0x6f8] sm:$0xff]
        %v610 = vld [vmem:[%s316 + $0x700] sm:$0xff]
        %v611 = vld [vmem:[%s316 + $0x708] sm:$0xff]
        %v612 = vld [vmem:[%s316 + $0x710] sm:$0xff]
        %v613 = vld [vmem:[%s316 + $0x718] sm:$0xff]
        %v614 = vld [vmem:[%s316 + $0x720] sm:$0xff]
        %v615 = vld [vmem:[%s316 + $0x728] sm:$0xff]
        %v616 = vld [vmem:[%s316 + $0x730] sm:$0xff]
        %v617 = vld [vmem:[%s316 + $0x738] sm:$0xff]
        %v618 = vld [vmem:[%s316 + $0x740] sm:$0xff]
        %v619 = vld [vmem:[%s316 + $0x748] sm:$0xff]
        %v620 = vld [vmem:[%s316 + $0x750] sm:$0xff]
        %v621 = vld [vmem:[%s316 + $0x758] sm:$0xff]
        %v622 = vld [vmem:[%s316 + $0x760] sm:$0xff]
        %v623 = vld [vmem:[%s316 + $0x768] sm:$0xff]
        %v624 = vld [vmem:[%s316 + $0x770] sm:$0xff]
        %v625 = vld [vmem:[%s316 + $0x778] sm:$0xff]
        %v626 = vld [vmem:[%s316 + $0x780] sm:$0xff]
        %v627 = vld [vmem:[%s316 + $0x788] sm:$0xff]
        %v628 = vld [vmem:[%s316 + $0x790] sm:$0xff]
        %v629 = vld [vmem:[%s316 + $0x798] sm:$0xff]
        %v630 = vld [vmem:[%s316 + $0x7a0] sm:$0xff]
        %v631 = vld [vmem:[%s316 + $0x7a8] sm:$0xff]
        %v632 = vld [vmem:[%s316 + $0x7b0] sm:$0xff]
        %v633 = vld [vmem:[%s316 + $0x7b8] sm:$0xff]
        %v634 = vld [vmem:[%s316 + $0x7c0] sm:$0xff]
        %v635 = vld [vmem:[%s316 + $0x7c8] sm:$0xff]
        %v636 = vld [vmem:[%s316 + $0x7d0] sm:$0xff]
        %v637 = vld [vmem:[%s316 + $0x7d8] sm:$0xff]
        %v638 = vld [vmem:[%s316 + $0x7e0] sm:$0xff]
        %v639 = vld [vmem:[%s316 + $0x7e8] sm:$0xff]
        %v640 = vld [vmem:[%s316 + $0x7f0] sm:$0xff]
        %v641 = vld [vmem:[%s316 + $0x7f8] sm:$0xff]
        %v642 = vld [vmem:[%s316 + $0x800] sm:$0xff]
        %v643 = vld [vmem:[%s316 + $0x808] sm:$0xff]
        %v644 = vld [vmem:[%s316 + $0x810] sm:$0xff]
        %v645 = vld [vmem:[%s316 + $0x818] sm:$0xff]
        %v646 = vld [vmem:[%s316 + $0x820] sm:$0xff]
        %v647 = vld [vmem:[%s316 + $0x828] sm:$0xff]
        %v648 = vld [vmem:[%s316 + $0x830] sm:$0xff]
        %v649 = vld [vmem:[%s316 + $0x838] sm:$0xff]
        %v650 = vld [vmem:[%s316 + $0x840] sm:$0xff]
        %v651 = vld [vmem:[%s316 + $0x848] sm:$0xff]
        %v652 = vld [vmem:[%s316 + $0x850] sm:$0xff]
        %v653 = vld [vmem:[%s316 + $0x858] sm:$0xff]
        %v654 = vld [vmem:[%s316 + $0x860] sm:$0xff]
        %v655 = vld [vmem:[%s316 + $0x868] sm:$0xff]
        %v656 = vld [vmem:[%s316 + $0x870] sm:$0xff]
        %v657 = vld [vmem:[%s316 + $0x878] sm:$0xff]
        %v658 = vld [vmem:[%s316 + $0x880] sm:$0xff]
        %v659 = vld [vmem:[%s316 + $0x888] sm:$0xff]
        %v660 = vld [vmem:[%s316 + $0x890] sm:$0xff]
        %v661 = vld [vmem:[%s316 + $0x898] sm:$0xff]
        %v662 = vld [vmem:[%s316 + $0x8a0] sm:$0xff]
        %v663 = vld [vmem:[%s316 + $0x8a8] sm:$0xff]
        %v664 = vld [vmem:[%s316 + $0x8b0] sm:$0xff]
        %v665 = vld [vmem:[%s316 + $0x8b8] sm:$0xff]
        %v666 = vld [vmem:[%s316 + $0x8c0] sm:$0xff]
        %v667 = vld [vmem:[%s316 + $0x8c8] sm:$0xff]
        %v668 = vld [vmem:[%s316 + $0x8d0] sm:$0xff]
        %v669 = vld [vmem:[%s316 + $0x8d8] sm:$0xff]
        %v670 = vld [vmem:[%s316 + $0x8e0] sm:$0xff]
        %v671 = vld [vmem:[%s316 + $0x8e8] sm:$0xff]
        %v672 = vld [vmem:[%s316 + $0x8f0] sm:$0xff]
        %v673 = vld [vmem:[%s316 + $0x8f8] sm:$0xff]
        %v674 = vld [vmem:[%s316 + $0x900] sm:$0xff]
        %v675 = vld [vmem:[%s316 + $0x908] sm:$0xff]
        %v676 = vld [vmem:[%s316 + $0x910] sm:$0xff]
        %v677 = vld [vmem:[%s316 + $0x918] sm:$0xff]
        %v678 = vld [vmem:[%s316 + $0x920] sm:$0xff]
        %v679 = vld [vmem:[%s316 + $0x928] sm:$0xff]
        %v680 = vld [vmem:[%s316 + $0x930] sm:$0xff]
        %v681 = vld [vmem:[%s316 + $0x938] sm:$0xff]
        %v682 = vld [vmem:[%s316 + $0x940] sm:$0xff]
        %v683 = vld [vmem:[%s316 + $0x948] sm:$0xff]
        %v684 = vld [vmem:[%s316 + $0x950] sm:$0xff]
        %v685 = vld [vmem:[%s316 + $0x958] sm:$0xff]
        %v686 = vld [vmem:[%s316 + $0x960] sm:$0xff]
        %v687 = vld [vmem:[%s316 + $0x968] sm:$0xff]
        %v688 = vld [vmem:[%s316 + $0x970] sm:$0xff]
        %v689 = vld [vmem:[%s316 + $0x978] sm:$0xff]
        %v690 = vld [vmem:[%s316 + $0x980] sm:$0xff]
        %v691 = vld [vmem:[%s316 + $0x988] sm:$0xff]
        %v692 = vld [vmem:[%s316 + $0x990] sm:$0xff]
        %v693 = vld [vmem:[%s316 + $0x998] sm:$0xff]
        %v694 = vld [vmem:[%s316 + $0x9a0] sm:$0xff]
        %v695 = vld [vmem:[%s316 + $0x9a8] sm:$0xff]
        %v696 = vld [vmem:[%s316 + $0x9b0] sm:$0xff]
        %v697 = vld [vmem:[%s316 + $0x9b8] sm:$0xff]
        %v698 = vld [vmem:[%s316 + $0x9c0] sm:$0xff]
        %v699 = vld [vmem:[%s316 + $0x9c8] sm:$0xff]
        %v700 = vld [vmem:[%s316 + $0x9d0] sm:$0xff]
        %v701 = vld [vmem:[%s316 + $0x9d8] sm:$0xff]
        %v702 = vld [vmem:[%s316 + $0x9e0] sm:$0xff]
        %v703 = vld [vmem:[%s316 + $0x9e8] sm:$0xff]
        %v704 = vld [vmem:[%s316 + $0x9f0] sm:$0xff]
        %v705 = vld [vmem:[%s316 + $0x9f8] sm:$0xff]
        %v706 = vld [vmem:[%s316 + $0xa00] sm:$0xff]
        %v707 = vld [vmem:[%s316 + $0xa08] sm:$0xff]
        %v708 = vld [vmem:[%s316 + $0xa10] sm:$0xff]
        %v709 = vld [vmem:[%s316 + $0xa18] sm:$0xff]
        %v710 = vld [vmem:[%s316 + $0xa20] sm:$0xff]
        %v711 = vld [vmem:[%s316 + $0xa28] sm:$0xff]
        %v712 = vld [vmem:[%s316 + $0xa30] sm:$0xff]
        %v713 = vld [vmem:[%s316 + $0xa38] sm:$0xff]
        %v714 = vld [vmem:[%s316 + $0xa40] sm:$0xff]
        %v715 = vld [vmem:[%s316 + $0xa48] sm:$0xff]
        %v716 = vld [vmem:[%s316 + $0xa50] sm:$0xff]
        %v717 = vld [vmem:[%s316 + $0xa58] sm:$0xff]
        %v718 = vld [vmem:[%s316 + $0xa60] sm:$0xff]
        %v719 = vld [vmem:[%s316 + $0xa68] sm:$0xff]
        %v720 = vld [vmem:[%s316 + $0xa70] sm:$0xff]
        %v721 = vld [vmem:[%s316 + $0xa78] sm:$0xff]
        %v722 = vld [vmem:[%s316 + $0xa80] sm:$0xff]
        %v723 = vld [vmem:[%s316 + $0xa88] sm:$0xff]
        %v724 = vld [vmem:[%s316 + $0xa90] sm:$0xff]
        %v725 = vld [vmem:[%s316 + $0xa98] sm:$0xff]
        %v726 = vld [vmem:[%s316 + $0xaa0] sm:$0xff]
        %v727 = vld [vmem:[%s316 + $0xaa8] sm:$0xff]
        %v728 = vld [vmem:[%s316 + $0xab0] sm:$0xff]
        %v729 = vld [vmem:[%s316 + $0xab8] sm:$0xff]
        %v730 = vld [vmem:[%s316 + $0xac0] sm:$0xff]
        %v731 = vld [vmem:[%s316 + $0xac8] sm:$0xff]
        %v732 = vld [vmem:[%s316 + $0xad0] sm:$0xff]
        %v733 = vld [vmem:[%s316 + $0xad8] sm:$0xff]
        %v734 = vld [vmem:[%s316 + $0xae0] sm:$0xff]
        %v735 = vld [vmem:[%s316 + $0xae8] sm:$0xff]
        %v736 = vld [vmem:[%s316 + $0xaf0] sm:$0xff]
        %v737 = vld [vmem:[%s316 + $0xaf8] sm:$0xff]
        %v738 = vld [vmem:[%s316 + $0xb00] sm:$0xff]
        %v739 = vld [vmem:[%s316 + $0xb08] sm:$0xff]
        %v740 = vld [vmem:[%s316 + $0xb10] sm:$0xff]
        %v741 = vld [vmem:[%s316 + $0xb18] sm:$0xff]
        %v742 = vld [vmem:[%s316 + $0xb20] sm:$0xff]
        %v743 = vld [vmem:[%s316 + $0xb28] sm:$0xff]
        %v744 = vld [vmem:[%s316 + $0xb30] sm:$0xff]
        %v745 = vld [vmem:[%s316 + $0xb38] sm:$0xff]
        %v746 = vld [vmem:[%s316 + $0xb40] sm:$0xff]
        %v747 = vld [vmem:[%s316 + $0xb48] sm:$0xff]
        %v748 = vld [vmem:[%s316 + $0xb50] sm:$0xff]
        %v749 = vld [vmem:[%s316 + $0xb58] sm:$0xff]
        %v750 = vld [vmem:[%s316 + $0xb60] sm:$0xff]
        %v751 = vld [vmem:[%s316 + $0xb68] sm:$0xff]
        %v752 = vld [vmem:[%s316 + $0xb70] sm:$0xff]
        %v753 = vld [vmem:[%s316 + $0xb78] sm:$0xff]
        %v754 = vld [vmem:[%s316 + $0xb80] sm:$0xff]
        %v755 = vld [vmem:[%s316 + $0xb88] sm:$0xff]
        %v756 = vld [vmem:[%s316 + $0xb90] sm:$0xff]
        %v757 = vld [vmem:[%s316 + $0xb98] sm:$0xff]
        %v758 = vld [vmem:[%s316 + $0xba0] sm:$0xff]
        %v759 = vld [vmem:[%s316 + $0xba8] sm:$0xff]
        %v760 = vld [vmem:[%s316 + $0xbb0] sm:$0xff]
        %v761 = vld [vmem:[%s316 + $0xbb8] sm:$0xff]
        %v762 = vld [vmem:[%s316 + $0xbc0] sm:$0xff]
        %v763 = vld [vmem:[%s316 + $0xbc8] sm:$0xff]
        %v764 = vld [vmem:[%s316 + $0xbd0] sm:$0xff]
        %v765 = vld [vmem:[%s316 + $0xbd8] sm:$0xff]
        %v766 = vld [vmem:[%s316 + $0xbe0] sm:$0xff]
        %v767 = vld [vmem:[%s316 + $0xbe8] sm:$0xff]
        %v768 = vld [vmem:[%s316 + $0xbf0] sm:$0xff]
        %v769 = vld [vmem:[%s316 + $0xbf8] sm:$0xff]
        %v770 = vld [vmem:[%s316 + $0xc00] sm:$0xff]
        %v771 = vld [vmem:[%s316 + $0xc08] sm:$0xff]
        %v772 = vld [vmem:[%s316 + $0xc10] sm:$0xff]
        %v773 = vld [vmem:[%s316 + $0xc18] sm:$0xff]
        %v774 = vld [vmem:[%s316 + $0xc20] sm:$0xff]
        %v775 = vld [vmem:[%s316 + $0xc28] sm:$0xff]
        %v776 = vld [vmem:[%s316 + $0xc30] sm:$0xff]
        %v777 = vld [vmem:[%s316 + $0xc38] sm:$0xff]
        %v778 = vld [vmem:[%s316 + $0xc40] sm:$0xff]
        %v779 = vld [vmem:[%s316 + $0xc48] sm:$0xff]
        %v780 = vld [vmem:[%s316 + $0xc50] sm:$0xff]
        %v781 = vld [vmem:[%s316 + $0xc58] sm:$0xff]
        %v782 = vld [vmem:[%s316 + $0xc60] sm:$0xff]
        %v783 = vld [vmem:[%s316 + $0xc68] sm:$0xff]
        %v784 = vld [vmem:[%s316 + $0xc70] sm:$0xff]
        %v785 = vld [vmem:[%s316 + $0xc78] sm:$0xff]
        %v786 = vld [vmem:[%s316 + $0xc80] sm:$0xff]
        %v787 = vld [vmem:[%s316 + $0xc88] sm:$0xff]
        %v788 = vld [vmem:[%s316 + $0xc90] sm:$0xff]
        %v789 = vld [vmem:[%s316 + $0xc98] sm:$0xff]
        %v790 = vld [vmem:[%s316 + $0xca0] sm:$0xff]
        %v791 = vld [vmem:[%s316 + $0xca8] sm:$0xff]
        %v792 = vld [vmem:[%s316 + $0xcb0] sm:$0xff]
        %v793 = vld [vmem:[%s316 + $0xcb8] sm:$0xff]
        %v794 = vld [vmem:[%s316 + $0xcc0] sm:$0xff]
        %v795 = vld [vmem:[%s316 + $0xcc8] sm:$0xff]
        %v796 = vld [vmem:[%s316 + $0xcd0] sm:$0xff]
        %v797 = vld [vmem:[%s316 + $0xcd8] sm:$0xff]
        %v798 = vld [vmem:[%s316 + $0xce0] sm:$0xff]
        %v799 = vld [vmem:[%s316 + $0xce8] sm:$0xff]
        %v800 = vld [vmem:[%s316 + $0xcf0] sm:$0xff]
        %v801 = vld [vmem:[%s316 + $0xcf8] sm:$0xff]
        %v802 = vld [vmem:[%s316 + $0xd00] sm:$0xff]
        %v803 = vld [vmem:[%s316 + $0xd08] sm:$0xff]
        %v804 = vld [vmem:[%s316 + $0xd10] sm:$0xff]
        %v805 = vld [vmem:[%s316 + $0xd18] sm:$0xff]
        %v806 = vld [vmem:[%s316 + $0xd20] sm:$0xff]
        %v807 = vld [vmem:[%s316 + $0xd28] sm:$0xff]
        %v808 = vld [vmem:[%s316 + $0xd30] sm:$0xff]
        %v809 = vld [vmem:[%s316 + $0xd38] sm:$0xff]
        %v810 = vld [vmem:[%s316 + $0xd40] sm:$0xff]
        %v811 = vld [vmem:[%s316 + $0xd48] sm:$0xff]
        %v812 = vld [vmem:[%s316 + $0xd50] sm:$0xff]
        %v813 = vld [vmem:[%s316 + $0xd58] sm:$0xff]
        %v814 = vld [vmem:[%s316 + $0xd60] sm:$0xff]
        %v815 = vld [vmem:[%s316 + $0xd68] sm:$0xff]
        %v816 = vld [vmem:[%s316 + $0xd70] sm:$0xff]
        %v817 = vld [vmem:[%s316 + $0xd78] sm:$0xff]
        %v818 = vld [vmem:[%s316 + $0xd80] sm:$0xff]
        %v819 = vld [vmem:[%s316 + $0xd88] sm:$0xff]
        %v820 = vld [vmem:[%s316 + $0xd90] sm:$0xff]
        %v821 = vld [vmem:[%s316 + $0xd98] sm:$0xff]
        %v822 = vld [vmem:[%s316 + $0xda0] sm:$0xff]
        %v823 = vld [vmem:[%s316 + $0xda8] sm:$0xff]
        %v824 = vld [vmem:[%s316 + $0xdb0] sm:$0xff]
        %v825 = vld [vmem:[%s316 + $0xdb8] sm:$0xff]
        %v826 = vld [vmem:[%s316 + $0xdc0] sm:$0xff]
        %v827 = vld [vmem:[%s316 + $0xdc8] sm:$0xff]
        %v828 = vld [vmem:[%s316 + $0xdd0] sm:$0xff]
        %v829 = vld [vmem:[%s316 + $0xdd8] sm:$0xff]
        %v830 = vld [vmem:[%s316 + $0xde0] sm:$0xff]
        %v831 = vld [vmem:[%s316 + $0xde8] sm:$0xff]
        %v832 = vld [vmem:[%s316 + $0xdf0] sm:$0xff]
        %v833 = vld [vmem:[%s316 + $0xdf8] sm:$0xff]
        %v834 = vld [vmem:[%s316 + $0xe00] sm:$0xff]
        %v835 = vld [vmem:[%s316 + $0xe08] sm:$0xff]
        %v836 = vld [vmem:[%s316 + $0xe10] sm:$0xff]
        %v837 = vld [vmem:[%s316 + $0xe18] sm:$0xff]
        %v838 = vld [vmem:[%s316 + $0xe20] sm:$0xff]
        %v839 = vld [vmem:[%s316 + $0xe28] sm:$0xff]
        %v840 = vld [vmem:[%s316 + $0xe30] sm:$0xff]
        %v841 = vld [vmem:[%s316 + $0xe38] sm:$0xff]
        %v842 = vld [vmem:[%s316 + $0xe40] sm:$0xff]
        %v843 = vld [vmem:[%s316 + $0xe48] sm:$0xff]
        %v844 = vld [vmem:[%s316 + $0xe50] sm:$0xff]
        %v845 = vld [vmem:[%s316 + $0xe58] sm:$0xff]
        %v846 = vld [vmem:[%s316 + $0xe60] sm:$0xff]
        %v847 = vld [vmem:[%s316 + $0xe68] sm:$0xff]
        %v848 = vld [vmem:[%s316 + $0xe70] sm:$0xff]
        %v849 = vld [vmem:[%s316 + $0xe78] sm:$0xff]
        %v850 = vld [vmem:[%s316 + $0xe80] sm:$0xff]
        %v851 = vld [vmem:[%s316 + $0xe88] sm:$0xff]
        %v852 = vld [vmem:[%s316 + $0xe90] sm:$0xff]
        %v853 = vld [vmem:[%s316 + $0xe98] sm:$0xff]
        %v854 = vld [vmem:[%s316 + $0xea0] sm:$0xff]
        %v855 = vld [vmem:[%s316 + $0xea8] sm:$0xff]
        %v856 = vld [vmem:[%s316 + $0xeb0] sm:$0xff]
        %v857 = vld [vmem:[%s316 + $0xeb8] sm:$0xff]
        %v858 = vld [vmem:[%s316 + $0xec0] sm:$0xff]
        %v859 = vld [vmem:[%s316 + $0xec8] sm:$0xff]
        %v860 = vld [vmem:[%s316 + $0xed0] sm:$0xff]
        %v861 = vld [vmem:[%s316 + $0xed8] sm:$0xff]
        %v862 = vld [vmem:[%s316 + $0xee0] sm:$0xff]
        %v863 = vld [vmem:[%s316 + $0xee8] sm:$0xff]
        %v864 = vld [vmem:[%s316 + $0xef0] sm:$0xff]
        %v865 = vld [vmem:[%s316 + $0xef8] sm:$0xff]
        %v866 = vld [vmem:[%s316 + $0xf00] sm:$0xff]
        %v867 = vld [vmem:[%s316 + $0xf08] sm:$0xff]
        %v868 = vld [vmem:[%s316 + $0xf10] sm:$0xff]
        %v869 = vld [vmem:[%s316 + $0xf18] sm:$0xff]
        %v870 = vld [vmem:[%s316 + $0xf20] sm:$0xff]
        %v871 = vld [vmem:[%s316 + $0xf28] sm:$0xff]
        %v872 = vld [vmem:[%s316 + $0xf30] sm:$0xff]
        %v873 = vld [vmem:[%s316 + $0xf38] sm:$0xff]
        %v874 = vld [vmem:[%s316 + $0xf40] sm:$0xff]
        %v875 = vld [vmem:[%s316 + $0xf48] sm:$0xff]
        %v876 = vld [vmem:[%s316 + $0xf50] sm:$0xff]
        %v877 = vld [vmem:[%s316 + $0xf58] sm:$0xff]
        %v878 = vld [vmem:[%s316 + $0xf60] sm:$0xff]
        %v879 = vld [vmem:[%s316 + $0xf68] sm:$0xff]
        %v880 = vld [vmem:[%s316 + $0xf70] sm:$0xff]
        %v881 = vld [vmem:[%s316 + $0xf78] sm:$0xff]
        %v882 = vld [vmem:[%s316 + $0xf80] sm:$0xff]
        %v883 = vld [vmem:[%s316 + $0xf88] sm:$0xff]
        %v884 = vld [vmem:[%s316 + $0xf90] sm:$0xff]
        %v885 = vld [vmem:[%s316 + $0xf98] sm:$0xff]
        %v886 = vld [vmem:[%s316 + $0xfa0] sm:$0xff]
        %v887 = vld [vmem:[%s316 + $0xfa8] sm:$0xff]
        %v888 = vld [vmem:[%s316 + $0xfb0] sm:$0xff]
        %v889 = vld [vmem:[%s316 + $0xfb8] sm:$0xff]
        %v890 = vld [vmem:[%s316 + $0xfc0] sm:$0xff]
        %v891 = vld [vmem:[%s316 + $0xfc8] sm:$0xff]
        %v892 = vld [vmem:[%s316 + $0xfd0] sm:$0xff]
        %v893 = vld [vmem:[%s316 + $0xfd8] sm:$0xff]
        %v894 = vld [vmem:[%s316 + $0xfe0] sm:$0xff]
        %v895 = vld [vmem:[%s316 + $0xfe8] sm:$0xff]
        %v896 = vld [vmem:[%s316 + $0xff0] sm:$0xff]
        %v897 = vld [vmem:[%s316 + $0xff8] sm:$0xff]
        %v930 = vunpack.c.l.b16 %v354
        %v931 = vunpack.c.h.b16 %v354
        %v932 = vunpack.c.l.b16 %v355
        %v933 = vunpack.c.h.b16 %v355
        %v934 = vunpack.c.l.b16 %v356
        %v935 = vunpack.c.h.b16 %v356
        %v936 = vunpack.c.l.b16 %v357
        %v937 = vunpack.c.h.b16 %v357
        %v938 = vunpack.c.l.b16 %v358
        %v939 = vunpack.c.h.b16 %v358
        %v940 = vunpack.c.l.b16 %v359
        %v941 = vunpack.c.h.b16 %v359
        %v942 = vunpack.c.l.b16 %v360
        %v943 = vunpack.c.h.b16 %v360
        %v944 = vunpack.c.l.b16 %v361
        %v945 = vunpack.c.h.b16 %v361
        %v946 = vunpack.c.l.b16 %v362
        %v947 = vunpack.c.h.b16 %v362
        %v948 = vunpack.c.l.b16 %v363
        %v949 = vunpack.c.h.b16 %v363
        %v950 = vunpack.c.l.b16 %v364
        %v951 = vunpack.c.h.b16 %v364
        %v952 = vunpack.c.l.b16 %v365
        %v953 = vunpack.c.h.b16 %v365
        %v954 = vunpack.c.l.b16 %v366
        %v955 = vunpack.c.h.b16 %v366
        %v956 = vunpack.c.l.b16 %v367
        %v957 = vunpack.c.h.b16 %v367
        %v958 = vunpack.c.l.b16 %v368
        %v959 = vunpack.c.h.b16 %v368
        %v960 = vunpack.c.l.b16 %v369
        %v961 = vunpack.c.h.b16 %v369
        %v962 = vunpack.c.l.b16 %v370
        %v963 = vunpack.c.h.b16 %v370
        %v964 = vunpack.c.l.b16 %v371
        %v965 = vunpack.c.h.b16 %v371
        %v966 = vunpack.c.l.b16 %v372
        %v967 = vunpack.c.h.b16 %v372
        %v968 = vunpack.c.l.b16 %v373
        %v969 = vunpack.c.h.b16 %v373
        %v970 = vunpack.c.l.b16 %v374
        %v971 = vunpack.c.h.b16 %v374
        %v972 = vunpack.c.l.b16 %v375
        %v973 = vunpack.c.h.b16 %v375
        %v974 = vunpack.c.l.b16 %v376
        %v975 = vunpack.c.h.b16 %v376
        %v976 = vunpack.c.l.b16 %v377
        %v977 = vunpack.c.h.b16 %v377
        %v978 = vunpack.c.l.b16 %v378
        %v979 = vunpack.c.h.b16 %v378
        %v980 = vunpack.c.l.b16 %v379
        %v981 = vunpack.c.h.b16 %v379
        %v982 = vunpack.c.l.b16 %v380
        %v983 = vunpack.c.h.b16 %v380
        %v984 = vunpack.c.l.b16 %v381
        %v985 = vunpack.c.h.b16 %v381
        %v986 = vunpack.c.l.b16 %v382
        %v987 = vunpack.c.h.b16 %v382
        %v988 = vunpack.c.l.b16 %v383
        %v989 = vunpack.c.h.b16 %v383
        %v990 = vunpack.c.l.b16 %v384
        %v991 = vunpack.c.h.b16 %v384
        %v992 = vunpack.c.l.b16 %v385
        %v993 = vunpack.c.h.b16 %v385
        %v994 = vpack.c.b16 %v946, %v930
        %v995 = vpack.c.b16 %v947, %v931
        %v996 = vpack.c.b16 %v948, %v932
        %v997 = vpack.c.b16 %v949, %v933
        %v998 = vpack.c.b16 %v950, %v934
        %v999 = vpack.c.b16 %v951, %v935
        %v1000 = vpack.c.b16 %v952, %v936
        %v1001 = vpack.c.b16 %v953, %v937
        %v1002 = vpack.c.b16 %v954, %v938
        %v1003 = vpack.c.b16 %v955, %v939
        %v1004 = vpack.c.b16 %v956, %v940
        %v1005 = vpack.c.b16 %v957, %v941
        %v1006 = vpack.c.b16 %v958, %v942
        %v1007 = vpack.c.b16 %v959, %v943
        %v1008 = vpack.c.b16 %v960, %v944
        %v1009 = vpack.c.b16 %v961, %v945
        %v1010 = vpack.c.b16 %v978, %v962
        %v1011 = vpack.c.b16 %v979, %v963
        %v1012 = vpack.c.b16 %v980, %v964
        %v1013 = vpack.c.b16 %v981, %v965
        %v1014 = vpack.c.b16 %v982, %v966
        %v1015 = vpack.c.b16 %v983, %v967
        %v1016 = vpack.c.b16 %v984, %v968
        %v1017 = vpack.c.b16 %v985, %v969
        %v1018 = vpack.c.b16 %v986, %v970
        %v1019 = vpack.c.b16 %v987, %v971
        %v1020 = vpack.c.b16 %v988, %v972
        %v1021 = vpack.c.b16 %v989, %v973
        %v1022 = vpack.c.b16 %v990, %v974
        %v1023 = vpack.c.b16 %v991, %v975
        %v1024 = vpack.c.b16 %v992, %v976
        %v1025 = vpack.c.b16 %v993, %v977
        %v1570 = vunpack.c.l.b16 %v386
        %v1571 = vunpack.c.h.b16 %v386
        %v1572 = vunpack.c.l.b16 %v387
        %v1573 = vunpack.c.h.b16 %v387
        %v1574 = vunpack.c.l.b16 %v388
        %v1575 = vunpack.c.h.b16 %v388
        %v1576 = vunpack.c.l.b16 %v389
        %v1577 = vunpack.c.h.b16 %v389
        %v1578 = vunpack.c.l.b16 %v390
        %v1579 = vunpack.c.h.b16 %v390
        %v1580 = vunpack.c.l.b16 %v391
        %v1581 = vunpack.c.h.b16 %v391
        %v1582 = vunpack.c.l.b16 %v392
        %v1583 = vunpack.c.h.b16 %v392
        %v1584 = vunpack.c.l.b16 %v393
        %v1585 = vunpack.c.h.b16 %v393
        %v1586 = vunpack.c.l.b16 %v394
        %v1587 = vunpack.c.h.b16 %v394
        %v1588 = vunpack.c.l.b16 %v395
        %v1589 = vunpack.c.h.b16 %v395
        %v1590 = vunpack.c.l.b16 %v396
        %v1591 = vunpack.c.h.b16 %v396
        %v1592 = vunpack.c.l.b16 %v397
        %v1593 = vunpack.c.h.b16 %v397
        %v1594 = vunpack.c.l.b16 %v398
        %v1595 = vunpack.c.h.b16 %v398
        %v1596 = vunpack.c.l.b16 %v399
        %v1597 = vunpack.c.h.b16 %v399
        %v1598 = vunpack.c.l.b16 %v400
        %v1599 = vunpack.c.h.b16 %v400
        %v1600 = vunpack.c.l.b16 %v401
        %v1601 = vunpack.c.h.b16 %v401
        %v1602 = vunpack.c.l.b16 %v402
        %v1603 = vunpack.c.h.b16 %v402
        %v1604 = vunpack.c.l.b16 %v403
        %v1605 = vunpack.c.h.b16 %v403
        %v1606 = vunpack.c.l.b16 %v404
        %v1607 = vunpack.c.h.b16 %v404
        %v1608 = vunpack.c.l.b16 %v405
        %v1609 = vunpack.c.h.b16 %v405
        %v1610 = vunpack.c.l.b16 %v406
        %v1611 = vunpack.c.h.b16 %v406
        %v1612 = vunpack.c.l.b16 %v407
        %v1613 = vunpack.c.h.b16 %v407
        %v1614 = vunpack.c.l.b16 %v408
        %v1615 = vunpack.c.h.b16 %v408
        %v1616 = vunpack.c.l.b16 %v409
        %v1617 = vunpack.c.h.b16 %v409
        %v1618 = vunpack.c.l.b16 %v410
        %v1619 = vunpack.c.h.b16 %v410
        %v1620 = vunpack.c.l.b16 %v411
        %v1621 = vunpack.c.h.b16 %v411
        %v1622 = vunpack.c.l.b16 %v412
        %v1623 = vunpack.c.h.b16 %v412
        %v1624 = vunpack.c.l.b16 %v413
        %v1625 = vunpack.c.h.b16 %v413
        %v1626 = vunpack.c.l.b16 %v414
        %v1627 = vunpack.c.h.b16 %v414
        %v1628 = vunpack.c.l.b16 %v415
        %v1629 = vunpack.c.h.b16 %v415
        %v1630 = vunpack.c.l.b16 %v416
        %v1631 = vunpack.c.h.b16 %v416
        %v1632 = vunpack.c.l.b16 %v417
        %v1633 = vunpack.c.h.b16 %v417
        %v1634 = vunpack.c.l.b16 %v418
        %v1635 = vunpack.c.h.b16 %v418
        %v1636 = vunpack.c.l.b16 %v419
        %v1637 = vunpack.c.h.b16 %v419
        %v1638 = vunpack.c.l.b16 %v420
        %v1639 = vunpack.c.h.b16 %v420
        %v1640 = vunpack.c.l.b16 %v421
        %v1641 = vunpack.c.h.b16 %v421
        %v1642 = vunpack.c.l.b16 %v422
        %v1643 = vunpack.c.h.b16 %v422
        %v1644 = vunpack.c.l.b16 %v423
        %v1645 = vunpack.c.h.b16 %v423
        %v1646 = vunpack.c.l.b16 %v424
        %v1647 = vunpack.c.h.b16 %v424
        %v1648 = vunpack.c.l.b16 %v425
        %v1649 = vunpack.c.h.b16 %v425
        %v1650 = vunpack.c.l.b16 %v426
        %v1651 = vunpack.c.h.b16 %v426
        %v1652 = vunpack.c.l.b16 %v427
        %v1653 = vunpack.c.h.b16 %v427
        %v1654 = vunpack.c.l.b16 %v428
        %v1655 = vunpack.c.h.b16 %v428
        %v1656 = vunpack.c.l.b16 %v429
        %v1657 = vunpack.c.h.b16 %v429
        %v1658 = vunpack.c.l.b16 %v430
        %v1659 = vunpack.c.h.b16 %v430
        %v1660 = vunpack.c.l.b16 %v431
        %v1661 = vunpack.c.h.b16 %v431
        %v1662 = vunpack.c.l.b16 %v432
        %v1663 = vunpack.c.h.b16 %v432
        %v1664 = vunpack.c.l.b16 %v433
        %v1665 = vunpack.c.h.b16 %v433
        %v1666 = vunpack.c.l.b16 %v434
        %v1667 = vunpack.c.h.b16 %v434
        %v1668 = vunpack.c.l.b16 %v435
        %v1669 = vunpack.c.h.b16 %v435
        %v1670 = vunpack.c.l.b16 %v436
        %v1671 = vunpack.c.h.b16 %v436
        %v1672 = vunpack.c.l.b16 %v437
        %v1673 = vunpack.c.h.b16 %v437
        %v1674 = vunpack.c.l.b16 %v438
        %v1675 = vunpack.c.h.b16 %v438
        %v1676 = vunpack.c.l.b16 %v439
        %v1677 = vunpack.c.h.b16 %v439
        %v1678 = vunpack.c.l.b16 %v440
        %v1679 = vunpack.c.h.b16 %v440
        %v1680 = vunpack.c.l.b16 %v441
        %v1681 = vunpack.c.h.b16 %v441
        %v1682 = vunpack.c.l.b16 %v442
        %v1683 = vunpack.c.h.b16 %v442
        %v1684 = vunpack.c.l.b16 %v443
        %v1685 = vunpack.c.h.b16 %v443
        %v1686 = vunpack.c.l.b16 %v444
        %v1687 = vunpack.c.h.b16 %v444
        %v1688 = vunpack.c.l.b16 %v445
        %v1689 = vunpack.c.h.b16 %v445
        %v1690 = vunpack.c.l.b16 %v446
        %v1691 = vunpack.c.h.b16 %v446
        %v1692 = vunpack.c.l.b16 %v447
        %v1693 = vunpack.c.h.b16 %v447
        %v1694 = vunpack.c.l.b16 %v448
        %v1695 = vunpack.c.h.b16 %v448
        %v1696 = vunpack.c.l.b16 %v449
        %v1697 = vunpack.c.h.b16 %v449
        %v1698 = vunpack.c.l.b16 %v450
        %v1699 = vunpack.c.h.b16 %v450
        %v1700 = vunpack.c.l.b16 %v451
        %v1701 = vunpack.c.h.b16 %v451
        %v1702 = vunpack.c.l.b16 %v452
        %v1703 = vunpack.c.h.b16 %v452
        %v1704 = vunpack.c.l.b16 %v453
        %v1705 = vunpack.c.h.b16 %v453
        %v1706 = vunpack.c.l.b16 %v454
        %v1707 = vunpack.c.h.b16 %v454
        %v1708 = vunpack.c.l.b16 %v455
        %v1709 = vunpack.c.h.b16 %v455
        %v1710 = vunpack.c.l.b16 %v456
        %v1711 = vunpack.c.h.b16 %v456
        %v1712 = vunpack.c.l.b16 %v457
        %v1713 = vunpack.c.h.b16 %v457
        %v1714 = vunpack.c.l.b16 %v458
        %v1715 = vunpack.c.h.b16 %v458
        %v1716 = vunpack.c.l.b16 %v459
        %v1717 = vunpack.c.h.b16 %v459
        %v1718 = vunpack.c.l.b16 %v460
        %v1719 = vunpack.c.h.b16 %v460
        %v1720 = vunpack.c.l.b16 %v461
        %v1721 = vunpack.c.h.b16 %v461
        %v1722 = vunpack.c.l.b16 %v462
        %v1723 = vunpack.c.h.b16 %v462
        %v1724 = vunpack.c.l.b16 %v463
        %v1725 = vunpack.c.h.b16 %v463
        %v1726 = vunpack.c.l.b16 %v464
        %v1727 = vunpack.c.h.b16 %v464
        %v1728 = vunpack.c.l.b16 %v465
        %v1729 = vunpack.c.h.b16 %v465
        %v1730 = vunpack.c.l.b16 %v466
        %v1731 = vunpack.c.h.b16 %v466
        %v1732 = vunpack.c.l.b16 %v467
        %v1733 = vunpack.c.h.b16 %v467
        %v1734 = vunpack.c.l.b16 %v468
        %v1735 = vunpack.c.h.b16 %v468
        %v1736 = vunpack.c.l.b16 %v469
        %v1737 = vunpack.c.h.b16 %v469
        %v1738 = vunpack.c.l.b16 %v470
        %v1739 = vunpack.c.h.b16 %v470
        %v1740 = vunpack.c.l.b16 %v471
        %v1741 = vunpack.c.h.b16 %v471
        %v1742 = vunpack.c.l.b16 %v472
        %v1743 = vunpack.c.h.b16 %v472
        %v1744 = vunpack.c.l.b16 %v473
        %v1745 = vunpack.c.h.b16 %v473
        %v1746 = vunpack.c.l.b16 %v474
        %v1747 = vunpack.c.h.b16 %v474
        %v1748 = vunpack.c.l.b16 %v475
        %v1749 = vunpack.c.h.b16 %v475
        %v1750 = vunpack.c.l.b16 %v476
        %v1751 = vunpack.c.h.b16 %v476
        %v1752 = vunpack.c.l.b16 %v477
        %v1753 = vunpack.c.h.b16 %v477
        %v1754 = vunpack.c.l.b16 %v478
        %v1755 = vunpack.c.h.b16 %v478
        %v1756 = vunpack.c.l.b16 %v479
        %v1757 = vunpack.c.h.b16 %v479
        %v1758 = vunpack.c.l.b16 %v480
        %v1759 = vunpack.c.h.b16 %v480
        %v1760 = vunpack.c.l.b16 %v481
        %v1761 = vunpack.c.h.b16 %v481
        %v1762 = vunpack.c.l.b16 %v482
        %v1763 = vunpack.c.h.b16 %v482
        %v1764 = vunpack.c.l.b16 %v483
        %v1765 = vunpack.c.h.b16 %v483
        %v1766 = vunpack.c.l.b16 %v484
        %v1767 = vunpack.c.h.b16 %v484
        %v1768 = vunpack.c.l.b16 %v485
        %v1769 = vunpack.c.h.b16 %v485
        %v1770 = vunpack.c.l.b16 %v486
        %v1771 = vunpack.c.h.b16 %v486
        %v1772 = vunpack.c.l.b16 %v487
        %v1773 = vunpack.c.h.b16 %v487
        %v1774 = vunpack.c.l.b16 %v488
        %v1775 = vunpack.c.h.b16 %v488
        %v1776 = vunpack.c.l.b16 %v489
        %v1777 = vunpack.c.h.b16 %v489
        %v1778 = vunpack.c.l.b16 %v490
        %v1779 = vunpack.c.h.b16 %v490
        %v1780 = vunpack.c.l.b16 %v491
        %v1781 = vunpack.c.h.b16 %v491
        %v1782 = vunpack.c.l.b16 %v492
        %v1783 = vunpack.c.h.b16 %v492
        %v1784 = vunpack.c.l.b16 %v493
        %v1785 = vunpack.c.h.b16 %v493
        %v1786 = vunpack.c.l.b16 %v494
        %v1787 = vunpack.c.h.b16 %v494
        %v1788 = vunpack.c.l.b16 %v495
        %v1789 = vunpack.c.h.b16 %v495
        %v1790 = vunpack.c.l.b16 %v496
        %v1791 = vunpack.c.h.b16 %v496
        %v1792 = vunpack.c.l.b16 %v497
        %v1793 = vunpack.c.h.b16 %v497
        %v1794 = vunpack.c.l.b16 %v498
        %v1795 = vunpack.c.h.b16 %v498
        %v1796 = vunpack.c.l.b16 %v499
        %v1797 = vunpack.c.h.b16 %v499
        %v1798 = vunpack.c.l.b16 %v500
        %v1799 = vunpack.c.h.b16 %v500
        %v1800 = vunpack.c.l.b16 %v501
        %v1801 = vunpack.c.h.b16 %v501
        %v1802 = vunpack.c.l.b16 %v502
        %v1803 = vunpack.c.h.b16 %v502
        %v1804 = vunpack.c.l.b16 %v503
        %v1805 = vunpack.c.h.b16 %v503
        %v1806 = vunpack.c.l.b16 %v504
        %v1807 = vunpack.c.h.b16 %v504
        %v1808 = vunpack.c.l.b16 %v505
        %v1809 = vunpack.c.h.b16 %v505
        %v1810 = vunpack.c.l.b16 %v506
        %v1811 = vunpack.c.h.b16 %v506
        %v1812 = vunpack.c.l.b16 %v507
        %v1813 = vunpack.c.h.b16 %v507
        %v1814 = vunpack.c.l.b16 %v508
        %v1815 = vunpack.c.h.b16 %v508
        %v1816 = vunpack.c.l.b16 %v509
        %v1817 = vunpack.c.h.b16 %v509
        %v1818 = vunpack.c.l.b16 %v510
        %v1819 = vunpack.c.h.b16 %v510
        %v1820 = vunpack.c.l.b16 %v511
        %v1821 = vunpack.c.h.b16 %v511
        %v1822 = vunpack.c.l.b16 %v512
        %v1823 = vunpack.c.h.b16 %v512
        %v1824 = vunpack.c.l.b16 %v513
        %v1825 = vunpack.c.h.b16 %v513
        %v1826 = vunpack.c.l.b16 %v514
        %v1827 = vunpack.c.h.b16 %v514
        %v1828 = vunpack.c.l.b16 %v515
        %v1829 = vunpack.c.h.b16 %v515
        %v1830 = vunpack.c.l.b16 %v516
        %v1831 = vunpack.c.h.b16 %v516
        %v1832 = vunpack.c.l.b16 %v517
        %v1833 = vunpack.c.h.b16 %v517
        %v1834 = vunpack.c.l.b16 %v518
        %v1835 = vunpack.c.h.b16 %v518
        %v1836 = vunpack.c.l.b16 %v519
        %v1837 = vunpack.c.h.b16 %v519
        %v1838 = vunpack.c.l.b16 %v520
        %v1839 = vunpack.c.h.b16 %v520
        %v1840 = vunpack.c.l.b16 %v521
        %v1841 = vunpack.c.h.b16 %v521
        %v1842 = vunpack.c.l.b16 %v522
        %v1843 = vunpack.c.h.b16 %v522
        %v1844 = vunpack.c.l.b16 %v523
        %v1845 = vunpack.c.h.b16 %v523
        %v1846 = vunpack.c.l.b16 %v524
        %v1847 = vunpack.c.h.b16 %v524
        %v1848 = vunpack.c.l.b16 %v525
        %v1849 = vunpack.c.h.b16 %v525
        %v1850 = vunpack.c.l.b16 %v526
        %v1851 = vunpack.c.h.b16 %v526
        %v1852 = vunpack.c.l.b16 %v527
        %v1853 = vunpack.c.h.b16 %v527
        %v1854 = vunpack.c.l.b16 %v528
        %v1855 = vunpack.c.h.b16 %v528
        %v1856 = vunpack.c.l.b16 %v529
        %v1857 = vunpack.c.h.b16 %v529
        %v1858 = vunpack.c.l.b16 %v530
        %v1859 = vunpack.c.h.b16 %v530
        %v1860 = vunpack.c.l.b16 %v531
        %v1861 = vunpack.c.h.b16 %v531
        %v1862 = vunpack.c.l.b16 %v532
        %v1863 = vunpack.c.h.b16 %v532
        %v1864 = vunpack.c.l.b16 %v533
        %v1865 = vunpack.c.h.b16 %v533
        %v1866 = vunpack.c.l.b16 %v534
        %v1867 = vunpack.c.h.b16 %v534
        %v1868 = vunpack.c.l.b16 %v535
        %v1869 = vunpack.c.h.b16 %v535
        %v1870 = vunpack.c.l.b16 %v536
        %v1871 = vunpack.c.h.b16 %v536
        %v1872 = vunpack.c.l.b16 %v537
        %v1873 = vunpack.c.h.b16 %v537
        %v1874 = vunpack.c.l.b16 %v538
        %v1875 = vunpack.c.h.b16 %v538
        %v1876 = vunpack.c.l.b16 %v539
        %v1877 = vunpack.c.h.b16 %v539
        %v1878 = vunpack.c.l.b16 %v540
        %v1879 = vunpack.c.h.b16 %v540
        %v1880 = vunpack.c.l.b16 %v541
        %v1881 = vunpack.c.h.b16 %v541
        %v1882 = vunpack.c.l.b16 %v542
        %v1883 = vunpack.c.h.b16 %v542
        %v1884 = vunpack.c.l.b16 %v543
        %v1885 = vunpack.c.h.b16 %v543
        %v1886 = vunpack.c.l.b16 %v544
        %v1887 = vunpack.c.h.b16 %v544
        %v1888 = vunpack.c.l.b16 %v545
        %v1889 = vunpack.c.h.b16 %v545
        %v1890 = vunpack.c.l.b16 %v546
        %v1891 = vunpack.c.h.b16 %v546
        %v1892 = vunpack.c.l.b16 %v547
        %v1893 = vunpack.c.h.b16 %v547
        %v1894 = vunpack.c.l.b16 %v548
        %v1895 = vunpack.c.h.b16 %v548
        %v1896 = vunpack.c.l.b16 %v549
        %v1897 = vunpack.c.h.b16 %v549
        %v1898 = vunpack.c.l.b16 %v550
        %v1899 = vunpack.c.h.b16 %v550
        %v1900 = vunpack.c.l.b16 %v551
        %v1901 = vunpack.c.h.b16 %v551
        %v1902 = vunpack.c.l.b16 %v552
        %v1903 = vunpack.c.h.b16 %v552
        %v1904 = vunpack.c.l.b16 %v553
        %v1905 = vunpack.c.h.b16 %v553
        %v1906 = vunpack.c.l.b16 %v554
        %v1907 = vunpack.c.h.b16 %v554
        %v1908 = vunpack.c.l.b16 %v555
        %v1909 = vunpack.c.h.b16 %v555
        %v1910 = vunpack.c.l.b16 %v556
        %v1911 = vunpack.c.h.b16 %v556
        %v1912 = vunpack.c.l.b16 %v557
        %v1913 = vunpack.c.h.b16 %v557
        %v1914 = vunpack.c.l.b16 %v558
        %v1915 = vunpack.c.h.b16 %v558
        %v1916 = vunpack.c.l.b16 %v559
        %v1917 = vunpack.c.h.b16 %v559
        %v1918 = vunpack.c.l.b16 %v560
        %v1919 = vunpack.c.h.b16 %v560
        %v1920 = vunpack.c.l.b16 %v561
        %v1921 = vunpack.c.h.b16 %v561
        %v1922 = vunpack.c.l.b16 %v562
        %v1923 = vunpack.c.h.b16 %v562
        %v1924 = vunpack.c.l.b16 %v563
        %v1925 = vunpack.c.h.b16 %v563
        %v1926 = vunpack.c.l.b16 %v564
        %v1927 = vunpack.c.h.b16 %v564
        %v1928 = vunpack.c.l.b16 %v565
        %v1929 = vunpack.c.h.b16 %v565
        %v1930 = vunpack.c.l.b16 %v566
        %v1931 = vunpack.c.h.b16 %v566
        %v1932 = vunpack.c.l.b16 %v567
        %v1933 = vunpack.c.h.b16 %v567
        %v1934 = vunpack.c.l.b16 %v568
        %v1935 = vunpack.c.h.b16 %v568
        %v1936 = vunpack.c.l.b16 %v569
        %v1937 = vunpack.c.h.b16 %v569
        %v1938 = vunpack.c.l.b16 %v570
        %v1939 = vunpack.c.h.b16 %v570
        %v1940 = vunpack.c.l.b16 %v571
        %v1941 = vunpack.c.h.b16 %v571
        %v1942 = vunpack.c.l.b16 %v572
        %v1943 = vunpack.c.h.b16 %v572
        %v1944 = vunpack.c.l.b16 %v573
        %v1945 = vunpack.c.h.b16 %v573
        %v1946 = vunpack.c.l.b16 %v574
        %v1947 = vunpack.c.h.b16 %v574
        %v1948 = vunpack.c.l.b16 %v575
        %v1949 = vunpack.c.h.b16 %v575
        %v1950 = vunpack.c.l.b16 %v576
        %v1951 = vunpack.c.h.b16 %v576
        %v1952 = vunpack.c.l.b16 %v577
        %v1953 = vunpack.c.h.b16 %v577
        %v1954 = vunpack.c.l.b16 %v578
        %v1955 = vunpack.c.h.b16 %v578
        %v1956 = vunpack.c.l.b16 %v579
        %v1957 = vunpack.c.h.b16 %v579
        %v1958 = vunpack.c.l.b16 %v580
        %v1959 = vunpack.c.h.b16 %v580
        %v1960 = vunpack.c.l.b16 %v581
        %v1961 = vunpack.c.h.b16 %v581
        %v1962 = vunpack.c.l.b16 %v582
        %v1963 = vunpack.c.h.b16 %v582
        %v1964 = vunpack.c.l.b16 %v583
        %v1965 = vunpack.c.h.b16 %v583
        %v1966 = vunpack.c.l.b16 %v584
        %v1967 = vunpack.c.h.b16 %v584
        %v1968 = vunpack.c.l.b16 %v585
        %v1969 = vunpack.c.h.b16 %v585
        %v1970 = vunpack.c.l.b16 %v586
        %v1971 = vunpack.c.h.b16 %v586
        %v1972 = vunpack.c.l.b16 %v587
        %v1973 = vunpack.c.h.b16 %v587
        %v1974 = vunpack.c.l.b16 %v588
        %v1975 = vunpack.c.h.b16 %v588
        %v1976 = vunpack.c.l.b16 %v589
        %v1977 = vunpack.c.h.b16 %v589
        %v1978 = vunpack.c.l.b16 %v590
        %v1979 = vunpack.c.h.b16 %v590
        %v1980 = vunpack.c.l.b16 %v591
        %v1981 = vunpack.c.h.b16 %v591
        %v1982 = vunpack.c.l.b16 %v592
        %v1983 = vunpack.c.h.b16 %v592
        %v1984 = vunpack.c.l.b16 %v593
        %v1985 = vunpack.c.h.b16 %v593
        %v1986 = vunpack.c.l.b16 %v594
        %v1987 = vunpack.c.h.b16 %v594
        %v1988 = vunpack.c.l.b16 %v595
        %v1989 = vunpack.c.h.b16 %v595
        %v1990 = vunpack.c.l.b16 %v596
        %v1991 = vunpack.c.h.b16 %v596
        %v1992 = vunpack.c.l.b16 %v597
        %v1993 = vunpack.c.h.b16 %v597
        %v1994 = vunpack.c.l.b16 %v598
        %v1995 = vunpack.c.h.b16 %v598
        %v1996 = vunpack.c.l.b16 %v599
        %v1997 = vunpack.c.h.b16 %v599
        %v1998 = vunpack.c.l.b16 %v600
        %v1999 = vunpack.c.h.b16 %v600
        %v2000 = vunpack.c.l.b16 %v601
        %v2001 = vunpack.c.h.b16 %v601
        %v2002 = vunpack.c.l.b16 %v602
        %v2003 = vunpack.c.h.b16 %v602
        %v2004 = vunpack.c.l.b16 %v603
        %v2005 = vunpack.c.h.b16 %v603
        %v2006 = vunpack.c.l.b16 %v604
        %v2007 = vunpack.c.h.b16 %v604
        %v2008 = vunpack.c.l.b16 %v605
        %v2009 = vunpack.c.h.b16 %v605
        %v2010 = vunpack.c.l.b16 %v606
        %v2011 = vunpack.c.h.b16 %v606
        %v2012 = vunpack.c.l.b16 %v607
        %v2013 = vunpack.c.h.b16 %v607
        %v2014 = vunpack.c.l.b16 %v608
        %v2015 = vunpack.c.h.b16 %v608
        %v2016 = vunpack.c.l.b16 %v609
        %v2017 = vunpack.c.h.b16 %v609
        %v2018 = vunpack.c.l.b16 %v610
        %v2019 = vunpack.c.h.b16 %v610
        %v2020 = vunpack.c.l.b16 %v611
        %v2021 = vunpack.c.h.b16 %v611
        %v2022 = vunpack.c.l.b16 %v612
        %v2023 = vunpack.c.h.b16 %v612
        %v2024 = vunpack.c.l.b16 %v613
        %v2025 = vunpack.c.h.b16 %v613
        %v2026 = vunpack.c.l.b16 %v614
        %v2027 = vunpack.c.h.b16 %v614
        %v2028 = vunpack.c.l.b16 %v615
        %v2029 = vunpack.c.h.b16 %v615
        %v2030 = vunpack.c.l.b16 %v616
        %v2031 = vunpack.c.h.b16 %v616
        %v2032 = vunpack.c.l.b16 %v617
        %v2033 = vunpack.c.h.b16 %v617
        %v2034 = vunpack.c.l.b16 %v618
        %v2035 = vunpack.c.h.b16 %v618
        %v2036 = vunpack.c.l.b16 %v619
        %v2037 = vunpack.c.h.b16 %v619
        %v2038 = vunpack.c.l.b16 %v620
        %v2039 = vunpack.c.h.b16 %v620
        %v2040 = vunpack.c.l.b16 %v621
        %v2041 = vunpack.c.h.b16 %v621
        %v2042 = vunpack.c.l.b16 %v622
        %v2043 = vunpack.c.h.b16 %v622
        %v2044 = vunpack.c.l.b16 %v623
        %v2045 = vunpack.c.h.b16 %v623
        %v2046 = vunpack.c.l.b16 %v624
        %v2047 = vunpack.c.h.b16 %v624
        %v2048 = vunpack.c.l.b16 %v625
        %v2049 = vunpack.c.h.b16 %v625
        %v2050 = vunpack.c.l.b16 %v626
        %v2051 = vunpack.c.h.b16 %v626
        %v2052 = vunpack.c.l.b16 %v627
        %v2053 = vunpack.c.h.b16 %v627
        %v2054 = vunpack.c.l.b16 %v628
        %v2055 = vunpack.c.h.b16 %v628
        %v2056 = vunpack.c.l.b16 %v629
        %v2057 = vunpack.c.h.b16 %v629
        %v2058 = vunpack.c.l.b16 %v630
        %v2059 = vunpack.c.h.b16 %v630
        %v2060 = vunpack.c.l.b16 %v631
        %v2061 = vunpack.c.h.b16 %v631
        %v2062 = vunpack.c.l.b16 %v632
        %v2063 = vunpack.c.h.b16 %v632
        %v2064 = vunpack.c.l.b16 %v633
        %v2065 = vunpack.c.h.b16 %v633
        %v2066 = vunpack.c.l.b16 %v634
        %v2067 = vunpack.c.h.b16 %v634
        %v2068 = vunpack.c.l.b16 %v635
        %v2069 = vunpack.c.h.b16 %v635
        %v2070 = vunpack.c.l.b16 %v636
        %v2071 = vunpack.c.h.b16 %v636
        %v2072 = vunpack.c.l.b16 %v637
        %v2073 = vunpack.c.h.b16 %v637
        %v2074 = vunpack.c.l.b16 %v638
        %v2075 = vunpack.c.h.b16 %v638
        %v2076 = vunpack.c.l.b16 %v639
        %v2077 = vunpack.c.h.b16 %v639
        %v2078 = vunpack.c.l.b16 %v640
        %v2079 = vunpack.c.h.b16 %v640
        %v2080 = vunpack.c.l.b16 %v641
        %v2081 = vunpack.c.h.b16 %v641
        %v2082 = vunpack.c.l.b16 %v642
        %v2083 = vunpack.c.h.b16 %v642
        %v2084 = vunpack.c.l.b16 %v643
        %v2085 = vunpack.c.h.b16 %v643
        %v2086 = vunpack.c.l.b16 %v644
        %v2087 = vunpack.c.h.b16 %v644
        %v2088 = vunpack.c.l.b16 %v645
        %v2089 = vunpack.c.h.b16 %v645
        %v2090 = vunpack.c.l.b16 %v646
        %v2091 = vunpack.c.h.b16 %v646
        %v2092 = vunpack.c.l.b16 %v647
        %v2093 = vunpack.c.h.b16 %v647
        %v2094 = vunpack.c.l.b16 %v648
        %v2095 = vunpack.c.h.b16 %v648
        %v2096 = vunpack.c.l.b16 %v649
        %v2097 = vunpack.c.h.b16 %v649
        %v2098 = vunpack.c.l.b16 %v650
        %v2099 = vunpack.c.h.b16 %v650
        %v2100 = vunpack.c.l.b16 %v651
        %v2101 = vunpack.c.h.b16 %v651
        %v2102 = vunpack.c.l.b16 %v652
        %v2103 = vunpack.c.h.b16 %v652
        %v2104 = vunpack.c.l.b16 %v653
        %v2105 = vunpack.c.h.b16 %v653
        %v2106 = vunpack.c.l.b16 %v654
        %v2107 = vunpack.c.h.b16 %v654
        %v2108 = vunpack.c.l.b16 %v655
        %v2109 = vunpack.c.h.b16 %v655
        %v2110 = vunpack.c.l.b16 %v656
        %v2111 = vunpack.c.h.b16 %v656
        %v2112 = vunpack.c.l.b16 %v657
        %v2113 = vunpack.c.h.b16 %v657
        %v2114 = vunpack.c.l.b16 %v658
        %v2115 = vunpack.c.h.b16 %v658
        %v2116 = vunpack.c.l.b16 %v659
        %v2117 = vunpack.c.h.b16 %v659
        %v2118 = vunpack.c.l.b16 %v660
        %v2119 = vunpack.c.h.b16 %v660
        %v2120 = vunpack.c.l.b16 %v661
        %v2121 = vunpack.c.h.b16 %v661
        %v2122 = vunpack.c.l.b16 %v662
        %v2123 = vunpack.c.h.b16 %v662
        %v2124 = vunpack.c.l.b16 %v663
        %v2125 = vunpack.c.h.b16 %v663
        %v2126 = vunpack.c.l.b16 %v664
        %v2127 = vunpack.c.h.b16 %v664
        %v2128 = vunpack.c.l.b16 %v665
        %v2129 = vunpack.c.h.b16 %v665
        %v2130 = vunpack.c.l.b16 %v666
        %v2131 = vunpack.c.h.b16 %v666
        %v2132 = vunpack.c.l.b16 %v667
        %v2133 = vunpack.c.h.b16 %v667
        %v2134 = vunpack.c.l.b16 %v668
        %v2135 = vunpack.c.h.b16 %v668
        %v2136 = vunpack.c.l.b16 %v669
        %v2137 = vunpack.c.h.b16 %v669
        %v2138 = vunpack.c.l.b16 %v670
        %v2139 = vunpack.c.h.b16 %v670
        %v2140 = vunpack.c.l.b16 %v671
        %v2141 = vunpack.c.h.b16 %v671
        %v2142 = vunpack.c.l.b16 %v672
        %v2143 = vunpack.c.h.b16 %v672
        %v2144 = vunpack.c.l.b16 %v673
        %v2145 = vunpack.c.h.b16 %v673
        %v2146 = vunpack.c.l.b16 %v674
        %v2147 = vunpack.c.h.b16 %v674
        %v2148 = vunpack.c.l.b16 %v675
        %v2149 = vunpack.c.h.b16 %v675
        %v2150 = vunpack.c.l.b16 %v676
        %v2151 = vunpack.c.h.b16 %v676
        %v2152 = vunpack.c.l.b16 %v677
        %v2153 = vunpack.c.h.b16 %v677
        %v2154 = vunpack.c.l.b16 %v678
        %v2155 = vunpack.c.h.b16 %v678
        %v2156 = vunpack.c.l.b16 %v679
        %v2157 = vunpack.c.h.b16 %v679
        %v2158 = vunpack.c.l.b16 %v680
        %v2159 = vunpack.c.h.b16 %v680
        %v2160 = vunpack.c.l.b16 %v681
        %v2161 = vunpack.c.h.b16 %v681
        %v2162 = vunpack.c.l.b16 %v682
        %v2163 = vunpack.c.h.b16 %v682
        %v2164 = vunpack.c.l.b16 %v683
        %v2165 = vunpack.c.h.b16 %v683
        %v2166 = vunpack.c.l.b16 %v684
        %v2167 = vunpack.c.h.b16 %v684
        %v2168 = vunpack.c.l.b16 %v685
        %v2169 = vunpack.c.h.b16 %v685
        %v2170 = vunpack.c.l.b16 %v686
        %v2171 = vunpack.c.h.b16 %v686
        %v2172 = vunpack.c.l.b16 %v687
        %v2173 = vunpack.c.h.b16 %v687
        %v2174 = vunpack.c.l.b16 %v688
        %v2175 = vunpack.c.h.b16 %v688
        %v2176 = vunpack.c.l.b16 %v689
        %v2177 = vunpack.c.h.b16 %v689
        %v2178 = vunpack.c.l.b16 %v690
        %v2179 = vunpack.c.h.b16 %v690
        %v2180 = vunpack.c.l.b16 %v691
        %v2181 = vunpack.c.h.b16 %v691
        %v2182 = vunpack.c.l.b16 %v692
        %v2183 = vunpack.c.h.b16 %v692
        %v2184 = vunpack.c.l.b16 %v693
        %v2185 = vunpack.c.h.b16 %v693
        %v2186 = vunpack.c.l.b16 %v694
        %v2187 = vunpack.c.h.b16 %v694
        %v2188 = vunpack.c.l.b16 %v695
        %v2189 = vunpack.c.h.b16 %v695
        %v2190 = vunpack.c.l.b16 %v696
        %v2191 = vunpack.c.h.b16 %v696
        %v2192 = vunpack.c.l.b16 %v697
        %v2193 = vunpack.c.h.b16 %v697
        %v2194 = vunpack.c.l.b16 %v698
        %v2195 = vunpack.c.h.b16 %v698
        %v2196 = vunpack.c.l.b16 %v699
        %v2197 = vunpack.c.h.b16 %v699
        %v2198 = vunpack.c.l.b16 %v700
        %v2199 = vunpack.c.h.b16 %v700
        %v2200 = vunpack.c.l.b16 %v701
        %v2201 = vunpack.c.h.b16 %v701
        %v2202 = vunpack.c.l.b16 %v702
        %v2203 = vunpack.c.h.b16 %v702
        %v2204 = vunpack.c.l.b16 %v703
        %v2205 = vunpack.c.h.b16 %v703
        %v2206 = vunpack.c.l.b16 %v704
        %v2207 = vunpack.c.h.b16 %v704
        %v2208 = vunpack.c.l.b16 %v705
        %v2209 = vunpack.c.h.b16 %v705
        %v2210 = vunpack.c.l.b16 %v706
        %v2211 = vunpack.c.h.b16 %v706
        %v2212 = vunpack.c.l.b16 %v707
        %v2213 = vunpack.c.h.b16 %v707
        %v2214 = vunpack.c.l.b16 %v708
        %v2215 = vunpack.c.h.b16 %v708
        %v2216 = vunpack.c.l.b16 %v709
        %v2217 = vunpack.c.h.b16 %v709
        %v2218 = vunpack.c.l.b16 %v710
        %v2219 = vunpack.c.h.b16 %v710
        %v2220 = vunpack.c.l.b16 %v711
        %v2221 = vunpack.c.h.b16 %v711
        %v2222 = vunpack.c.l.b16 %v712
        %v2223 = vunpack.c.h.b16 %v712
        %v2224 = vunpack.c.l.b16 %v713
        %v2225 = vunpack.c.h.b16 %v713
        %v2226 = vunpack.c.l.b16 %v714
        %v2227 = vunpack.c.h.b16 %v714
        %v2228 = vunpack.c.l.b16 %v715
        %v2229 = vunpack.c.h.b16 %v715
        %v2230 = vunpack.c.l.b16 %v716
        %v2231 = vunpack.c.h.b16 %v716
        %v2232 = vunpack.c.l.b16 %v717
        %v2233 = vunpack.c.h.b16 %v717
        %v2234 = vunpack.c.l.b16 %v718
        %v2235 = vunpack.c.h.b16 %v718
        %v2236 = vunpack.c.l.b16 %v719
        %v2237 = vunpack.c.h.b16 %v719
        %v2238 = vunpack.c.l.b16 %v720
        %v2239 = vunpack.c.h.b16 %v720
        %v2240 = vunpack.c.l.b16 %v721
        %v2241 = vunpack.c.h.b16 %v721
        %v2242 = vunpack.c.l.b16 %v722
        %v2243 = vunpack.c.h.b16 %v722
        %v2244 = vunpack.c.l.b16 %v723
        %v2245 = vunpack.c.h.b16 %v723
        %v2246 = vunpack.c.l.b16 %v724
        %v2247 = vunpack.c.h.b16 %v724
        %v2248 = vunpack.c.l.b16 %v725
        %v2249 = vunpack.c.h.b16 %v725
        %v2250 = vunpack.c.l.b16 %v726
        %v2251 = vunpack.c.h.b16 %v726
        %v2252 = vunpack.c.l.b16 %v727
        %v2253 = vunpack.c.h.b16 %v727
        %v2254 = vunpack.c.l.b16 %v728
        %v2255 = vunpack.c.h.b16 %v728
        %v2256 = vunpack.c.l.b16 %v729
        %v2257 = vunpack.c.h.b16 %v729
        %v2258 = vunpack.c.l.b16 %v730
        %v2259 = vunpack.c.h.b16 %v730
        %v2260 = vunpack.c.l.b16 %v731
        %v2261 = vunpack.c.h.b16 %v731
        %v2262 = vunpack.c.l.b16 %v732
        %v2263 = vunpack.c.h.b16 %v732
        %v2264 = vunpack.c.l.b16 %v733
        %v2265 = vunpack.c.h.b16 %v733
        %v2266 = vunpack.c.l.b16 %v734
        %v2267 = vunpack.c.h.b16 %v734
        %v2268 = vunpack.c.l.b16 %v735
        %v2269 = vunpack.c.h.b16 %v735
        %v2270 = vunpack.c.l.b16 %v736
        %v2271 = vunpack.c.h.b16 %v736
        %v2272 = vunpack.c.l.b16 %v737
        %v2273 = vunpack.c.h.b16 %v737
        %v2274 = vunpack.c.l.b16 %v738
        %v2275 = vunpack.c.h.b16 %v738
        %v2276 = vunpack.c.l.b16 %v739
        %v2277 = vunpack.c.h.b16 %v739
        %v2278 = vunpack.c.l.b16 %v740
        %v2279 = vunpack.c.h.b16 %v740
        %v2280 = vunpack.c.l.b16 %v741
        %v2281 = vunpack.c.h.b16 %v741
        %v2282 = vunpack.c.l.b16 %v742
        %v2283 = vunpack.c.h.b16 %v742
        %v2284 = vunpack.c.l.b16 %v743
        %v2285 = vunpack.c.h.b16 %v743
        %v2286 = vunpack.c.l.b16 %v744
        %v2287 = vunpack.c.h.b16 %v744
        %v2288 = vunpack.c.l.b16 %v745
        %v2289 = vunpack.c.h.b16 %v745
        %v2290 = vunpack.c.l.b16 %v746
        %v2291 = vunpack.c.h.b16 %v746
        %v2292 = vunpack.c.l.b16 %v747
        %v2293 = vunpack.c.h.b16 %v747
        %v2294 = vunpack.c.l.b16 %v748
        %v2295 = vunpack.c.h.b16 %v748
        %v2296 = vunpack.c.l.b16 %v749
        %v2297 = vunpack.c.h.b16 %v749
        %v2298 = vunpack.c.l.b16 %v750
        %v2299 = vunpack.c.h.b16 %v750
        %v2300 = vunpack.c.l.b16 %v751
        %v2301 = vunpack.c.h.b16 %v751
        %v2302 = vunpack.c.l.b16 %v752
        %v2303 = vunpack.c.h.b16 %v752
        %v2304 = vunpack.c.l.b16 %v753
        %v2305 = vunpack.c.h.b16 %v753
        %v2306 = vunpack.c.l.b16 %v754
        %v2307 = vunpack.c.h.b16 %v754
        %v2308 = vunpack.c.l.b16 %v755
        %v2309 = vunpack.c.h.b16 %v755
        %v2310 = vunpack.c.l.b16 %v756
        %v2311 = vunpack.c.h.b16 %v756
        %v2312 = vunpack.c.l.b16 %v757
        %v2313 = vunpack.c.h.b16 %v757
        %v2314 = vunpack.c.l.b16 %v758
        %v2315 = vunpack.c.h.b16 %v758
        %v2316 = vunpack.c.l.b16 %v759
        %v2317 = vunpack.c.h.b16 %v759
        %v2318 = vunpack.c.l.b16 %v760
        %v2319 = vunpack.c.h.b16 %v760
        %v2320 = vunpack.c.l.b16 %v761
        %v2321 = vunpack.c.h.b16 %v761
        %v2322 = vunpack.c.l.b16 %v762
        %v2323 = vunpack.c.h.b16 %v762
        %v2324 = vunpack.c.l.b16 %v763
        %v2325 = vunpack.c.h.b16 %v763
        %v2326 = vunpack.c.l.b16 %v764
        %v2327 = vunpack.c.h.b16 %v764
        %v2328 = vunpack.c.l.b16 %v765
        %v2329 = vunpack.c.h.b16 %v765
        %v2330 = vunpack.c.l.b16 %v766
        %v2331 = vunpack.c.h.b16 %v766
        %v2332 = vunpack.c.l.b16 %v767
        %v2333 = vunpack.c.h.b16 %v767
        %v2334 = vunpack.c.l.b16 %v768
        %v2335 = vunpack.c.h.b16 %v768
        %v2336 = vunpack.c.l.b16 %v769
        %v2337 = vunpack.c.h.b16 %v769
        %v2338 = vunpack.c.l.b16 %v770
        %v2339 = vunpack.c.h.b16 %v770
        %v2340 = vunpack.c.l.b16 %v771
        %v2341 = vunpack.c.h.b16 %v771
        %v2342 = vunpack.c.l.b16 %v772
        %v2343 = vunpack.c.h.b16 %v772
        %v2344 = vunpack.c.l.b16 %v773
        %v2345 = vunpack.c.h.b16 %v773
        %v2346 = vunpack.c.l.b16 %v774
        %v2347 = vunpack.c.h.b16 %v774
        %v2348 = vunpack.c.l.b16 %v775
        %v2349 = vunpack.c.h.b16 %v775
        %v2350 = vunpack.c.l.b16 %v776
        %v2351 = vunpack.c.h.b16 %v776
        %v2352 = vunpack.c.l.b16 %v777
        %v2353 = vunpack.c.h.b16 %v777
        %v2354 = vunpack.c.l.b16 %v778
        %v2355 = vunpack.c.h.b16 %v778
        %v2356 = vunpack.c.l.b16 %v779
        %v2357 = vunpack.c.h.b16 %v779
        %v2358 = vunpack.c.l.b16 %v780
        %v2359 = vunpack.c.h.b16 %v780
        %v2360 = vunpack.c.l.b16 %v781
        %v2361 = vunpack.c.h.b16 %v781
        %v2362 = vunpack.c.l.b16 %v782
        %v2363 = vunpack.c.h.b16 %v782
        %v2364 = vunpack.c.l.b16 %v783
        %v2365 = vunpack.c.h.b16 %v783
        %v2366 = vunpack.c.l.b16 %v784
        %v2367 = vunpack.c.h.b16 %v784
        %v2368 = vunpack.c.l.b16 %v785
        %v2369 = vunpack.c.h.b16 %v785
        %v2370 = vunpack.c.l.b16 %v786
        %v2371 = vunpack.c.h.b16 %v786
        %v2372 = vunpack.c.l.b16 %v787
        %v2373 = vunpack.c.h.b16 %v787
        %v2374 = vunpack.c.l.b16 %v788
        %v2375 = vunpack.c.h.b16 %v788
        %v2376 = vunpack.c.l.b16 %v789
        %v2377 = vunpack.c.h.b16 %v789
        %v2378 = vunpack.c.l.b16 %v790
        %v2379 = vunpack.c.h.b16 %v790
        %v2380 = vunpack.c.l.b16 %v791
        %v2381 = vunpack.c.h.b16 %v791
        %v2382 = vunpack.c.l.b16 %v792
        %v2383 = vunpack.c.h.b16 %v792
        %v2384 = vunpack.c.l.b16 %v793
        %v2385 = vunpack.c.h.b16 %v793
        %v2386 = vunpack.c.l.b16 %v794
        %v2387 = vunpack.c.h.b16 %v794
        %v2388 = vunpack.c.l.b16 %v795
        %v2389 = vunpack.c.h.b16 %v795
        %v2390 = vunpack.c.l.b16 %v796
        %v2391 = vunpack.c.h.b16 %v796
        %v2392 = vunpack.c.l.b16 %v797
        %v2393 = vunpack.c.h.b16 %v797
        %v2394 = vunpack.c.l.b16 %v798
        %v2395 = vunpack.c.h.b16 %v798
        %v2396 = vunpack.c.l.b16 %v799
        %v2397 = vunpack.c.h.b16 %v799
        %v2398 = vunpack.c.l.b16 %v800
        %v2399 = vunpack.c.h.b16 %v800
        %v2400 = vunpack.c.l.b16 %v801
        %v2401 = vunpack.c.h.b16 %v801
        %v2402 = vunpack.c.l.b16 %v802
        %v2403 = vunpack.c.h.b16 %v802
        %v2404 = vunpack.c.l.b16 %v803
        %v2405 = vunpack.c.h.b16 %v803
        %v2406 = vunpack.c.l.b16 %v804
        %v2407 = vunpack.c.h.b16 %v804
        %v2408 = vunpack.c.l.b16 %v805
        %v2409 = vunpack.c.h.b16 %v805
        %v2410 = vunpack.c.l.b16 %v806
        %v2411 = vunpack.c.h.b16 %v806
        %v2412 = vunpack.c.l.b16 %v807
        %v2413 = vunpack.c.h.b16 %v807
        %v2414 = vunpack.c.l.b16 %v808
        %v2415 = vunpack.c.h.b16 %v808
        %v2416 = vunpack.c.l.b16 %v809
        %v2417 = vunpack.c.h.b16 %v809
        %v2418 = vunpack.c.l.b16 %v810
        %v2419 = vunpack.c.h.b16 %v810
        %v2420 = vunpack.c.l.b16 %v811
        %v2421 = vunpack.c.h.b16 %v811
        %v2422 = vunpack.c.l.b16 %v812
        %v2423 = vunpack.c.h.b16 %v812
        %v2424 = vunpack.c.l.b16 %v813
        %v2425 = vunpack.c.h.b16 %v813
        %v2426 = vunpack.c.l.b16 %v814
        %v2427 = vunpack.c.h.b16 %v814
        %v2428 = vunpack.c.l.b16 %v815
        %v2429 = vunpack.c.h.b16 %v815
        %v2430 = vunpack.c.l.b16 %v816
        %v2431 = vunpack.c.h.b16 %v816
        %v2432 = vunpack.c.l.b16 %v817
        %v2433 = vunpack.c.h.b16 %v817
        %v2434 = vunpack.c.l.b16 %v818
        %v2435 = vunpack.c.h.b16 %v818
        %v2436 = vunpack.c.l.b16 %v819
        %v2437 = vunpack.c.h.b16 %v819
        %v2438 = vunpack.c.l.b16 %v820
        %v2439 = vunpack.c.h.b16 %v820
        %v2440 = vunpack.c.l.b16 %v821
        %v2441 = vunpack.c.h.b16 %v821
        %v2442 = vunpack.c.l.b16 %v822
        %v2443 = vunpack.c.h.b16 %v822
        %v2444 = vunpack.c.l.b16 %v823
        %v2445 = vunpack.c.h.b16 %v823
        %v2446 = vunpack.c.l.b16 %v824
        %v2447 = vunpack.c.h.b16 %v824
        %v2448 = vunpack.c.l.b16 %v825
        %v2449 = vunpack.c.h.b16 %v825
        %v2450 = vunpack.c.l.b16 %v826
        %v2451 = vunpack.c.h.b16 %v826
        %v2452 = vunpack.c.l.b16 %v827
        %v2453 = vunpack.c.h.b16 %v827
        %v2454 = vunpack.c.l.b16 %v828
        %v2455 = vunpack.c.h.b16 %v828
        %v2456 = vunpack.c.l.b16 %v829
        %v2457 = vunpack.c.h.b16 %v829
        %v2458 = vunpack.c.l.b16 %v830
        %v2459 = vunpack.c.h.b16 %v830
        %v2460 = vunpack.c.l.b16 %v831
        %v2461 = vunpack.c.h.b16 %v831
        %v2462 = vunpack.c.l.b16 %v832
        %v2463 = vunpack.c.h.b16 %v832
        %v2464 = vunpack.c.l.b16 %v833
        %v2465 = vunpack.c.h.b16 %v833
        %v2466 = vunpack.c.l.b16 %v834
        %v2467 = vunpack.c.h.b16 %v834
        %v2468 = vunpack.c.l.b16 %v835
        %v2469 = vunpack.c.h.b16 %v835
        %v2470 = vunpack.c.l.b16 %v836
        %v2471 = vunpack.c.h.b16 %v836
        %v2472 = vunpack.c.l.b16 %v837
        %v2473 = vunpack.c.h.b16 %v837
        %v2474 = vunpack.c.l.b16 %v838
        %v2475 = vunpack.c.h.b16 %v838
        %v2476 = vunpack.c.l.b16 %v839
        %v2477 = vunpack.c.h.b16 %v839
        %v2478 = vunpack.c.l.b16 %v840
        %v2479 = vunpack.c.h.b16 %v840
        %v2480 = vunpack.c.l.b16 %v841
        %v2481 = vunpack.c.h.b16 %v841
        %v2482 = vunpack.c.l.b16 %v842
        %v2483 = vunpack.c.h.b16 %v842
        %v2484 = vunpack.c.l.b16 %v843
        %v2485 = vunpack.c.h.b16 %v843
        %v2486 = vunpack.c.l.b16 %v844
        %v2487 = vunpack.c.h.b16 %v844
        %v2488 = vunpack.c.l.b16 %v845
        %v2489 = vunpack.c.h.b16 %v845
        %v2490 = vunpack.c.l.b16 %v846
        %v2491 = vunpack.c.h.b16 %v846
        %v2492 = vunpack.c.l.b16 %v847
        %v2493 = vunpack.c.h.b16 %v847
        %v2494 = vunpack.c.l.b16 %v848
        %v2495 = vunpack.c.h.b16 %v848
        %v2496 = vunpack.c.l.b16 %v849
        %v2497 = vunpack.c.h.b16 %v849
        %v2498 = vunpack.c.l.b16 %v850
        %v2499 = vunpack.c.h.b16 %v850
        %v2500 = vunpack.c.l.b16 %v851
        %v2501 = vunpack.c.h.b16 %v851
        %v2502 = vunpack.c.l.b16 %v852
        %v2503 = vunpack.c.h.b16 %v852
        %v2504 = vunpack.c.l.b16 %v853
        %v2505 = vunpack.c.h.b16 %v853
        %v2506 = vunpack.c.l.b16 %v854
        %v2507 = vunpack.c.h.b16 %v854
        %v2508 = vunpack.c.l.b16 %v855
        %v2509 = vunpack.c.h.b16 %v855
        %v2510 = vunpack.c.l.b16 %v856
        %v2511 = vunpack.c.h.b16 %v856
        %v2512 = vunpack.c.l.b16 %v857
        %v2513 = vunpack.c.h.b16 %v857
        %v2514 = vunpack.c.l.b16 %v858
        %v2515 = vunpack.c.h.b16 %v858
        %v2516 = vunpack.c.l.b16 %v859
        %v2517 = vunpack.c.h.b16 %v859
        %v2518 = vunpack.c.l.b16 %v860
        %v2519 = vunpack.c.h.b16 %v860
        %v2520 = vunpack.c.l.b16 %v861
        %v2521 = vunpack.c.h.b16 %v861
        %v2522 = vunpack.c.l.b16 %v862
        %v2523 = vunpack.c.h.b16 %v862
        %v2524 = vunpack.c.l.b16 %v863
        %v2525 = vunpack.c.h.b16 %v863
        %v2526 = vunpack.c.l.b16 %v864
        %v2527 = vunpack.c.h.b16 %v864
        %v2528 = vunpack.c.l.b16 %v865
        %v2529 = vunpack.c.h.b16 %v865
        %v2530 = vunpack.c.l.b16 %v866
        %v2531 = vunpack.c.h.b16 %v866
        %v2532 = vunpack.c.l.b16 %v867
        %v2533 = vunpack.c.h.b16 %v867
        %v2534 = vunpack.c.l.b16 %v868
        %v2535 = vunpack.c.h.b16 %v868
        %v2536 = vunpack.c.l.b16 %v869
        %v2537 = vunpack.c.h.b16 %v869
        %v2538 = vunpack.c.l.b16 %v870
        %v2539 = vunpack.c.h.b16 %v870
        %v2540 = vunpack.c.l.b16 %v871
        %v2541 = vunpack.c.h.b16 %v871
        %v2542 = vunpack.c.l.b16 %v872
        %v2543 = vunpack.c.h.b16 %v872
        %v2544 = vunpack.c.l.b16 %v873
        %v2545 = vunpack.c.h.b16 %v873
        %v2546 = vunpack.c.l.b16 %v874
        %v2547 = vunpack.c.h.b16 %v874
        %v2548 = vunpack.c.l.b16 %v875
        %v2549 = vunpack.c.h.b16 %v875
        %v2550 = vunpack.c.l.b16 %v876
        %v2551 = vunpack.c.h.b16 %v876
        %v2552 = vunpack.c.l.b16 %v877
        %v2553 = vunpack.c.h.b16 %v877
        %v2554 = vunpack.c.l.b16 %v878
        %v2555 = vunpack.c.h.b16 %v878
        %v2556 = vunpack.c.l.b16 %v879
        %v2557 = vunpack.c.h.b16 %v879
        %v2558 = vunpack.c.l.b16 %v880
        %v2559 = vunpack.c.h.b16 %v880
        %v2560 = vunpack.c.l.b16 %v881
        %v2561 = vunpack.c.h.b16 %v881
        %v2562 = vunpack.c.l.b16 %v882
        %v2563 = vunpack.c.h.b16 %v882
        %v2564 = vunpack.c.l.b16 %v883
        %v2565 = vunpack.c.h.b16 %v883
        %v2566 = vunpack.c.l.b16 %v884
        %v2567 = vunpack.c.h.b16 %v884
        %v2568 = vunpack.c.l.b16 %v885
        %v2569 = vunpack.c.h.b16 %v885
        %v2570 = vunpack.c.l.b16 %v886
        %v2571 = vunpack.c.h.b16 %v886
        %v2572 = vunpack.c.l.b16 %v887
        %v2573 = vunpack.c.h.b16 %v887
        %v2574 = vunpack.c.l.b16 %v888
        %v2575 = vunpack.c.h.b16 %v888
        %v2576 = vunpack.c.l.b16 %v889
        %v2577 = vunpack.c.h.b16 %v889
        %v2578 = vunpack.c.l.b16 %v890
        %v2579 = vunpack.c.h.b16 %v890
        %v2580 = vunpack.c.l.b16 %v891
        %v2581 = vunpack.c.h.b16 %v891
        %v2582 = vunpack.c.l.b16 %v892
        %v2583 = vunpack.c.h.b16 %v892
        %v2584 = vunpack.c.l.b16 %v893
        %v2585 = vunpack.c.h.b16 %v893
        %v2586 = vunpack.c.l.b16 %v894
        %v2587 = vunpack.c.h.b16 %v894
        %v2588 = vunpack.c.l.b16 %v895
        %v2589 = vunpack.c.h.b16 %v895
        %v2590 = vunpack.c.l.b16 %v896
        %v2591 = vunpack.c.h.b16 %v896
        %v2592 = vunpack.c.l.b16 %v897
        %v2593 = vunpack.c.h.b16 %v897
        %v2594 = vpack.c.b16 %v1574, %v1570
        %v2595 = vpack.c.b16 %v1575, %v1571
        %v2596 = vpack.c.b16 %v1576, %v1572
        %v2597 = vpack.c.b16 %v1577, %v1573
        %v2598 = vpack.c.b16 %v1582, %v1578
        %v2599 = vpack.c.b16 %v1583, %v1579
        %v2600 = vpack.c.b16 %v1584, %v1580
        %v2601 = vpack.c.b16 %v1585, %v1581
        %v2602 = vpack.c.b16 %v1590, %v1586
        %v2603 = vpack.c.b16 %v1591, %v1587
        %v2604 = vpack.c.b16 %v1592, %v1588
        %v2605 = vpack.c.b16 %v1593, %v1589
        %v2606 = vpack.c.b16 %v1598, %v1594
        %v2607 = vpack.c.b16 %v1599, %v1595
        %v2608 = vpack.c.b16 %v1600, %v1596
        %v2609 = vpack.c.b16 %v1601, %v1597
        %v2610 = vpack.c.b16 %v1606, %v1602
        %v2611 = vpack.c.b16 %v1607, %v1603
        %v2612 = vpack.c.b16 %v1608, %v1604
        %v2613 = vpack.c.b16 %v1609, %v1605
        %v2614 = vpack.c.b16 %v1614, %v1610
        %v2615 = vpack.c.b16 %v1615, %v1611
        %v2616 = vpack.c.b16 %v1616, %v1612
        %v2617 = vpack.c.b16 %v1617, %v1613
        %v2618 = vpack.c.b16 %v1622, %v1618
        %v2619 = vpack.c.b16 %v1623, %v1619
        %v2620 = vpack.c.b16 %v1624, %v1620
        %v2621 = vpack.c.b16 %v1625, %v1621
        %v2622 = vpack.c.b16 %v1630, %v1626
        %v2623 = vpack.c.b16 %v1631, %v1627
        %v2624 = vpack.c.b16 %v1632, %v1628
        %v2625 = vpack.c.b16 %v1633, %v1629
        %v2626 = vpack.c.b16 %v1638, %v1634
        %v2627 = vpack.c.b16 %v1639, %v1635
        %v2628 = vpack.c.b16 %v1640, %v1636
        %v2629 = vpack.c.b16 %v1641, %v1637
        %v2630 = vpack.c.b16 %v1646, %v1642
        %v2631 = vpack.c.b16 %v1647, %v1643
        %v2632 = vpack.c.b16 %v1648, %v1644
        %v2633 = vpack.c.b16 %v1649, %v1645
        %v2634 = vpack.c.b16 %v1654, %v1650
        %v2635 = vpack.c.b16 %v1655, %v1651
        %v2636 = vpack.c.b16 %v1656, %v1652
        %v2637 = vpack.c.b16 %v1657, %v1653
        %v2638 = vpack.c.b16 %v1662, %v1658
        %v2639 = vpack.c.b16 %v1663, %v1659
        %v2640 = vpack.c.b16 %v1664, %v1660
        %v2641 = vpack.c.b16 %v1665, %v1661
        %v2642 = vpack.c.b16 %v1670, %v1666
        %v2643 = vpack.c.b16 %v1671, %v1667
        %v2644 = vpack.c.b16 %v1672, %v1668
        %v2645 = vpack.c.b16 %v1673, %v1669
        %v2646 = vpack.c.b16 %v1678, %v1674
        %v2647 = vpack.c.b16 %v1679, %v1675
        %v2648 = vpack.c.b16 %v1680, %v1676
        %v2649 = vpack.c.b16 %v1681, %v1677
        %v2650 = vpack.c.b16 %v1686, %v1682
        %v2651 = vpack.c.b16 %v1687, %v1683
        %v2652 = vpack.c.b16 %v1688, %v1684
        %v2653 = vpack.c.b16 %v1689, %v1685
        %v2654 = vpack.c.b16 %v1694, %v1690
        %v2655 = vpack.c.b16 %v1695, %v1691
        %v2656 = vpack.c.b16 %v1696, %v1692
        %v2657 = vpack.c.b16 %v1697, %v1693
        %v2658 = vpack.c.b16 %v1702, %v1698
        %v2659 = vpack.c.b16 %v1703, %v1699
        %v2660 = vpack.c.b16 %v1704, %v1700
        %v2661 = vpack.c.b16 %v1705, %v1701
        %v2662 = vpack.c.b16 %v1710, %v1706
        %v2663 = vpack.c.b16 %v1711, %v1707
        %v2664 = vpack.c.b16 %v1712, %v1708
        %v2665 = vpack.c.b16 %v1713, %v1709
        %v2666 = vpack.c.b16 %v1718, %v1714
        %v2667 = vpack.c.b16 %v1719, %v1715
        %v2668 = vpack.c.b16 %v1720, %v1716
        %v2669 = vpack.c.b16 %v1721, %v1717
        %v2670 = vpack.c.b16 %v1726, %v1722
        %v2671 = vpack.c.b16 %v1727, %v1723
        %v2672 = vpack.c.b16 %v1728, %v1724
        %v2673 = vpack.c.b16 %v1729, %v1725
        %v2674 = vpack.c.b16 %v1734, %v1730
        %v2675 = vpack.c.b16 %v1735, %v1731
        %v2676 = vpack.c.b16 %v1736, %v1732
        %v2677 = vpack.c.b16 %v1737, %v1733
        %v2678 = vpack.c.b16 %v1742, %v1738
        %v2679 = vpack.c.b16 %v1743, %v1739
        %v2680 = vpack.c.b16 %v1744, %v1740
        %v2681 = vpack.c.b16 %v1745, %v1741
        %v2682 = vpack.c.b16 %v1750, %v1746
        %v2683 = vpack.c.b16 %v1751, %v1747
        %v2684 = vpack.c.b16 %v1752, %v1748
        %v2685 = vpack.c.b16 %v1753, %v1749
        %v2686 = vpack.c.b16 %v1758, %v1754
        %v2687 = vpack.c.b16 %v1759, %v1755
        %v2688 = vpack.c.b16 %v1760, %v1756
        %v2689 = vpack.c.b16 %v1761, %v1757
        %v2690 = vpack.c.b16 %v1766, %v1762
        %v2691 = vpack.c.b16 %v1767, %v1763
        %v2692 = vpack.c.b16 %v1768, %v1764
        %v2693 = vpack.c.b16 %v1769, %v1765
        %v2694 = vpack.c.b16 %v1774, %v1770
        %v2695 = vpack.c.b16 %v1775, %v1771
        %v2696 = vpack.c.b16 %v1776, %v1772
        %v2697 = vpack.c.b16 %v1777, %v1773
        %v2698 = vpack.c.b16 %v1782, %v1778
        %v2699 = vpack.c.b16 %v1783, %v1779
        %v2700 = vpack.c.b16 %v1784, %v1780
        %v2701 = vpack.c.b16 %v1785, %v1781
        %v2702 = vpack.c.b16 %v1790, %v1786
        %v2703 = vpack.c.b16 %v1791, %v1787
        %v2704 = vpack.c.b16 %v1792, %v1788
        %v2705 = vpack.c.b16 %v1793, %v1789
        %v2706 = vpack.c.b16 %v1798, %v1794
        %v2707 = vpack.c.b16 %v1799, %v1795
        %v2708 = vpack.c.b16 %v1800, %v1796
        %v2709 = vpack.c.b16 %v1801, %v1797
        %v2710 = vpack.c.b16 %v1806, %v1802
        %v2711 = vpack.c.b16 %v1807, %v1803
        %v2712 = vpack.c.b16 %v1808, %v1804
        %v2713 = vpack.c.b16 %v1809, %v1805
        %v2714 = vpack.c.b16 %v1814, %v1810
        %v2715 = vpack.c.b16 %v1815, %v1811
        %v2716 = vpack.c.b16 %v1816, %v1812
        %v2717 = vpack.c.b16 %v1817, %v1813
        %v2718 = vpack.c.b16 %v1822, %v1818
        %v2719 = vpack.c.b16 %v1823, %v1819
        %v2720 = vpack.c.b16 %v1824, %v1820
        %v2721 = vpack.c.b16 %v1825, %v1821
        %v2722 = vpack.c.b16 %v1830, %v1826
        %v2723 = vpack.c.b16 %v1831, %v1827
        %v2724 = vpack.c.b16 %v1832, %v1828
        %v2725 = vpack.c.b16 %v1833, %v1829
        %v2726 = vpack.c.b16 %v1838, %v1834
        %v2727 = vpack.c.b16 %v1839, %v1835
        %v2728 = vpack.c.b16 %v1840, %v1836
        %v2729 = vpack.c.b16 %v1841, %v1837
        %v2730 = vpack.c.b16 %v1846, %v1842
        %v2731 = vpack.c.b16 %v1847, %v1843
        %v2732 = vpack.c.b16 %v1848, %v1844
        %v2733 = vpack.c.b16 %v1849, %v1845
        %v2734 = vpack.c.b16 %v1854, %v1850
        %v2735 = vpack.c.b16 %v1855, %v1851
        %v2736 = vpack.c.b16 %v1856, %v1852
        %v2737 = vpack.c.b16 %v1857, %v1853
        %v2738 = vpack.c.b16 %v1862, %v1858
        %v2739 = vpack.c.b16 %v1863, %v1859
        %v2740 = vpack.c.b16 %v1864, %v1860
        %v2741 = vpack.c.b16 %v1865, %v1861
        %v2742 = vpack.c.b16 %v1870, %v1866
        %v2743 = vpack.c.b16 %v1871, %v1867
        %v2744 = vpack.c.b16 %v1872, %v1868
        %v2745 = vpack.c.b16 %v1873, %v1869
        %v2746 = vpack.c.b16 %v1878, %v1874
        %v2747 = vpack.c.b16 %v1879, %v1875
        %v2748 = vpack.c.b16 %v1880, %v1876
        %v2749 = vpack.c.b16 %v1881, %v1877
        %v2750 = vpack.c.b16 %v1886, %v1882
        %v2751 = vpack.c.b16 %v1887, %v1883
        %v2752 = vpack.c.b16 %v1888, %v1884
        %v2753 = vpack.c.b16 %v1889, %v1885
        %v2754 = vpack.c.b16 %v1894, %v1890
        %v2755 = vpack.c.b16 %v1895, %v1891
        %v2756 = vpack.c.b16 %v1896, %v1892
        %v2757 = vpack.c.b16 %v1897, %v1893
        %v2758 = vpack.c.b16 %v1902, %v1898
        %v2759 = vpack.c.b16 %v1903, %v1899
        %v2760 = vpack.c.b16 %v1904, %v1900
        %v2761 = vpack.c.b16 %v1905, %v1901
        %v2762 = vpack.c.b16 %v1910, %v1906
        %v2763 = vpack.c.b16 %v1911, %v1907
        %v2764 = vpack.c.b16 %v1912, %v1908
        %v2765 = vpack.c.b16 %v1913, %v1909
        %v2766 = vpack.c.b16 %v1918, %v1914
        %v2767 = vpack.c.b16 %v1919, %v1915
        %v2768 = vpack.c.b16 %v1920, %v1916
        %v2769 = vpack.c.b16 %v1921, %v1917
        %v2770 = vpack.c.b16 %v1926, %v1922
        %v2771 = vpack.c.b16 %v1927, %v1923
        %v2772 = vpack.c.b16 %v1928, %v1924
        %v2773 = vpack.c.b16 %v1929, %v1925
        %v2774 = vpack.c.b16 %v1934, %v1930
        %v2775 = vpack.c.b16 %v1935, %v1931
        %v2776 = vpack.c.b16 %v1936, %v1932
        %v2777 = vpack.c.b16 %v1937, %v1933
        %v2778 = vpack.c.b16 %v1942, %v1938
        %v2779 = vpack.c.b16 %v1943, %v1939
        %v2780 = vpack.c.b16 %v1944, %v1940
        %v2781 = vpack.c.b16 %v1945, %v1941
        %v2782 = vpack.c.b16 %v1950, %v1946
        %v2783 = vpack.c.b16 %v1951, %v1947
        %v2784 = vpack.c.b16 %v1952, %v1948
        %v2785 = vpack.c.b16 %v1953, %v1949
        %v2786 = vpack.c.b16 %v1958, %v1954
        %v2787 = vpack.c.b16 %v1959, %v1955
        %v2788 = vpack.c.b16 %v1960, %v1956
        %v2789 = vpack.c.b16 %v1961, %v1957
        %v2790 = vpack.c.b16 %v1966, %v1962
        %v2791 = vpack.c.b16 %v1967, %v1963
        %v2792 = vpack.c.b16 %v1968, %v1964
        %v2793 = vpack.c.b16 %v1969, %v1965
        %v2794 = vpack.c.b16 %v1974, %v1970
        %v2795 = vpack.c.b16 %v1975, %v1971
        %v2796 = vpack.c.b16 %v1976, %v1972
        %v2797 = vpack.c.b16 %v1977, %v1973
        %v2798 = vpack.c.b16 %v1982, %v1978
        %v2799 = vpack.c.b16 %v1983, %v1979
        %v2800 = vpack.c.b16 %v1984, %v1980
        %v2801 = vpack.c.b16 %v1985, %v1981
        %v2802 = vpack.c.b16 %v1990, %v1986
        %v2803 = vpack.c.b16 %v1991, %v1987
        %v2804 = vpack.c.b16 %v1992, %v1988
        %v2805 = vpack.c.b16 %v1993, %v1989
        %v2806 = vpack.c.b16 %v1998, %v1994
        %v2807 = vpack.c.b16 %v1999, %v1995
        %v2808 = vpack.c.b16 %v2000, %v1996
        %v2809 = vpack.c.b16 %v2001, %v1997
        %v2810 = vpack.c.b16 %v2006, %v2002
        %v2811 = vpack.c.b16 %v2007, %v2003
        %v2812 = vpack.c.b16 %v2008, %v2004
        %v2813 = vpack.c.b16 %v2009, %v2005
        %v2814 = vpack.c.b16 %v2014, %v2010
        %v2815 = vpack.c.b16 %v2015, %v2011
        %v2816 = vpack.c.b16 %v2016, %v2012
        %v2817 = vpack.c.b16 %v2017, %v2013
        %v2818 = vpack.c.b16 %v2022, %v2018
        %v2819 = vpack.c.b16 %v2023, %v2019
        %v2820 = vpack.c.b16 %v2024, %v2020
        %v2821 = vpack.c.b16 %v2025, %v2021
        %v2822 = vpack.c.b16 %v2030, %v2026
        %v2823 = vpack.c.b16 %v2031, %v2027
        %v2824 = vpack.c.b16 %v2032, %v2028
        %v2825 = vpack.c.b16 %v2033, %v2029
        %v2826 = vpack.c.b16 %v2038, %v2034
        %v2827 = vpack.c.b16 %v2039, %v2035
        %v2828 = vpack.c.b16 %v2040, %v2036
        %v2829 = vpack.c.b16 %v2041, %v2037
        %v2830 = vpack.c.b16 %v2046, %v2042
        %v2831 = vpack.c.b16 %v2047, %v2043
        %v2832 = vpack.c.b16 %v2048, %v2044
        %v2833 = vpack.c.b16 %v2049, %v2045
        %v2834 = vpack.c.b16 %v2054, %v2050
        %v2835 = vpack.c.b16 %v2055, %v2051
        %v2836 = vpack.c.b16 %v2056, %v2052
        %v2837 = vpack.c.b16 %v2057, %v2053
        %v2838 = vpack.c.b16 %v2062, %v2058
        %v2839 = vpack.c.b16 %v2063, %v2059
        %v2840 = vpack.c.b16 %v2064, %v2060
        %v2841 = vpack.c.b16 %v2065, %v2061
        %v2842 = vpack.c.b16 %v2070, %v2066
        %v2843 = vpack.c.b16 %v2071, %v2067
        %v2844 = vpack.c.b16 %v2072, %v2068
        %v2845 = vpack.c.b16 %v2073, %v2069
        %v2846 = vpack.c.b16 %v2078, %v2074
        %v2847 = vpack.c.b16 %v2079, %v2075
        %v2848 = vpack.c.b16 %v2080, %v2076
        %v2849 = vpack.c.b16 %v2081, %v2077
        %v2850 = vpack.c.b16 %v2086, %v2082
        %v2851 = vpack.c.b16 %v2087, %v2083
        %v2852 = vpack.c.b16 %v2088, %v2084
        %v2853 = vpack.c.b16 %v2089, %v2085
        %v2854 = vpack.c.b16 %v2094, %v2090
        %v2855 = vpack.c.b16 %v2095, %v2091
        %v2856 = vpack.c.b16 %v2096, %v2092
        %v2857 = vpack.c.b16 %v2097, %v2093
        %v2858 = vpack.c.b16 %v2102, %v2098
        %v2859 = vpack.c.b16 %v2103, %v2099
        %v2860 = vpack.c.b16 %v2104, %v2100
        %v2861 = vpack.c.b16 %v2105, %v2101
        %v2862 = vpack.c.b16 %v2110, %v2106
        %v2863 = vpack.c.b16 %v2111, %v2107
        %v2864 = vpack.c.b16 %v2112, %v2108
        %v2865 = vpack.c.b16 %v2113, %v2109
        %v2866 = vpack.c.b16 %v2118, %v2114
        %v2867 = vpack.c.b16 %v2119, %v2115
        %v2868 = vpack.c.b16 %v2120, %v2116
        %v2869 = vpack.c.b16 %v2121, %v2117
        %v2870 = vpack.c.b16 %v2126, %v2122
        %v2871 = vpack.c.b16 %v2127, %v2123
        %v2872 = vpack.c.b16 %v2128, %v2124
        %v2873 = vpack.c.b16 %v2129, %v2125
        %v2874 = vpack.c.b16 %v2134, %v2130
        %v2875 = vpack.c.b16 %v2135, %v2131
        %v2876 = vpack.c.b16 %v2136, %v2132
        %v2877 = vpack.c.b16 %v2137, %v2133
        %v2878 = vpack.c.b16 %v2142, %v2138
        %v2879 = vpack.c.b16 %v2143, %v2139
        %v2880 = vpack.c.b16 %v2144, %v2140
        %v2881 = vpack.c.b16 %v2145, %v2141
        %v2882 = vpack.c.b16 %v2150, %v2146
        %v2883 = vpack.c.b16 %v2151, %v2147
        %v2884 = vpack.c.b16 %v2152, %v2148
        %v2885 = vpack.c.b16 %v2153, %v2149
        %v2886 = vpack.c.b16 %v2158, %v2154
        %v2887 = vpack.c.b16 %v2159, %v2155
        %v2888 = vpack.c.b16 %v2160, %v2156
        %v2889 = vpack.c.b16 %v2161, %v2157
        %v2890 = vpack.c.b16 %v2166, %v2162
        %v2891 = vpack.c.b16 %v2167, %v2163
        %v2892 = vpack.c.b16 %v2168, %v2164
        %v2893 = vpack.c.b16 %v2169, %v2165
        %v2894 = vpack.c.b16 %v2174, %v2170
        %v2895 = vpack.c.b16 %v2175, %v2171
        %v2896 = vpack.c.b16 %v2176, %v2172
        %v2897 = vpack.c.b16 %v2177, %v2173
        %v2898 = vpack.c.b16 %v2182, %v2178
        %v2899 = vpack.c.b16 %v2183, %v2179
        %v2900 = vpack.c.b16 %v2184, %v2180
        %v2901 = vpack.c.b16 %v2185, %v2181
        %v2902 = vpack.c.b16 %v2190, %v2186
        %v2903 = vpack.c.b16 %v2191, %v2187
        %v2904 = vpack.c.b16 %v2192, %v2188
        %v2905 = vpack.c.b16 %v2193, %v2189
        %v2906 = vpack.c.b16 %v2198, %v2194
        %v2907 = vpack.c.b16 %v2199, %v2195
        %v2908 = vpack.c.b16 %v2200, %v2196
        %v2909 = vpack.c.b16 %v2201, %v2197
        %v2910 = vpack.c.b16 %v2206, %v2202
        %v2911 = vpack.c.b16 %v2207, %v2203
        %v2912 = vpack.c.b16 %v2208, %v2204
        %v2913 = vpack.c.b16 %v2209, %v2205
        %v2914 = vpack.c.b16 %v2214, %v2210
        %v2915 = vpack.c.b16 %v2215, %v2211
        %v2916 = vpack.c.b16 %v2216, %v2212
        %v2917 = vpack.c.b16 %v2217, %v2213
        %v2918 = vpack.c.b16 %v2222, %v2218
        %v2919 = vpack.c.b16 %v2223, %v2219
        %v2920 = vpack.c.b16 %v2224, %v2220
        %v2921 = vpack.c.b16 %v2225, %v2221
        %v2922 = vpack.c.b16 %v2230, %v2226
        %v2923 = vpack.c.b16 %v2231, %v2227
        %v2924 = vpack.c.b16 %v2232, %v2228
        %v2925 = vpack.c.b16 %v2233, %v2229
        %v2926 = vpack.c.b16 %v2238, %v2234
        %v2927 = vpack.c.b16 %v2239, %v2235
        %v2928 = vpack.c.b16 %v2240, %v2236
        %v2929 = vpack.c.b16 %v2241, %v2237
        %v2930 = vpack.c.b16 %v2246, %v2242
        %v2931 = vpack.c.b16 %v2247, %v2243
        %v2932 = vpack.c.b16 %v2248, %v2244
        %v2933 = vpack.c.b16 %v2249, %v2245
        %v2934 = vpack.c.b16 %v2254, %v2250
        %v2935 = vpack.c.b16 %v2255, %v2251
        %v2936 = vpack.c.b16 %v2256, %v2252
        %v2937 = vpack.c.b16 %v2257, %v2253
        %v2938 = vpack.c.b16 %v2262, %v2258
        %v2939 = vpack.c.b16 %v2263, %v2259
        %v2940 = vpack.c.b16 %v2264, %v2260
        %v2941 = vpack.c.b16 %v2265, %v2261
        %v2942 = vpack.c.b16 %v2270, %v2266
        %v2943 = vpack.c.b16 %v2271, %v2267
        %v2944 = vpack.c.b16 %v2272, %v2268
        %v2945 = vpack.c.b16 %v2273, %v2269
        %v2946 = vpack.c.b16 %v2278, %v2274
        %v2947 = vpack.c.b16 %v2279, %v2275
        %v2948 = vpack.c.b16 %v2280, %v2276
        %v2949 = vpack.c.b16 %v2281, %v2277
        %v2950 = vpack.c.b16 %v2286, %v2282
        %v2951 = vpack.c.b16 %v2287, %v2283
        %v2952 = vpack.c.b16 %v2288, %v2284
        %v2953 = vpack.c.b16 %v2289, %v2285
        %v2954 = vpack.c.b16 %v2294, %v2290
        %v2955 = vpack.c.b16 %v2295, %v2291
        %v2956 = vpack.c.b16 %v2296, %v2292
        %v2957 = vpack.c.b16 %v2297, %v2293
        %v2958 = vpack.c.b16 %v2302, %v2298
        %v2959 = vpack.c.b16 %v2303, %v2299
        %v2960 = vpack.c.b16 %v2304, %v2300
        %v2961 = vpack.c.b16 %v2305, %v2301
        %v2962 = vpack.c.b16 %v2310, %v2306
        %v2963 = vpack.c.b16 %v2311, %v2307
        %v2964 = vpack.c.b16 %v2312, %v2308
        %v2965 = vpack.c.b16 %v2313, %v2309
        %v2966 = vpack.c.b16 %v2318, %v2314
        %v2967 = vpack.c.b16 %v2319, %v2315
        %v2968 = vpack.c.b16 %v2320, %v2316
        %v2969 = vpack.c.b16 %v2321, %v2317
        %v2970 = vpack.c.b16 %v2326, %v2322
        %v2971 = vpack.c.b16 %v2327, %v2323
        %v2972 = vpack.c.b16 %v2328, %v2324
        %v2973 = vpack.c.b16 %v2329, %v2325
        %v2974 = vpack.c.b16 %v2334, %v2330
        %v2975 = vpack.c.b16 %v2335, %v2331
        %v2976 = vpack.c.b16 %v2336, %v2332
        %v2977 = vpack.c.b16 %v2337, %v2333
        %v2978 = vpack.c.b16 %v2342, %v2338
        %v2979 = vpack.c.b16 %v2343, %v2339
        %v2980 = vpack.c.b16 %v2344, %v2340
        %v2981 = vpack.c.b16 %v2345, %v2341
        %v2982 = vpack.c.b16 %v2350, %v2346
        %v2983 = vpack.c.b16 %v2351, %v2347
        %v2984 = vpack.c.b16 %v2352, %v2348
        %v2985 = vpack.c.b16 %v2353, %v2349
        %v2986 = vpack.c.b16 %v2358, %v2354
        %v2987 = vpack.c.b16 %v2359, %v2355
        %v2988 = vpack.c.b16 %v2360, %v2356
        %v2989 = vpack.c.b16 %v2361, %v2357
        %v2990 = vpack.c.b16 %v2366, %v2362
        %v2991 = vpack.c.b16 %v2367, %v2363
        %v2992 = vpack.c.b16 %v2368, %v2364
        %v2993 = vpack.c.b16 %v2369, %v2365
        %v2994 = vpack.c.b16 %v2374, %v2370
        %v2995 = vpack.c.b16 %v2375, %v2371
        %v2996 = vpack.c.b16 %v2376, %v2372
        %v2997 = vpack.c.b16 %v2377, %v2373
        %v2998 = vpack.c.b16 %v2382, %v2378
        %v2999 = vpack.c.b16 %v2383, %v2379
        %v3000 = vpack.c.b16 %v2384, %v2380
        %v3001 = vpack.c.b16 %v2385, %v2381
        %v3002 = vpack.c.b16 %v2390, %v2386
        %v3003 = vpack.c.b16 %v2391, %v2387
        %v3004 = vpack.c.b16 %v2392, %v2388
        %v3005 = vpack.c.b16 %v2393, %v2389
        %v3006 = vpack.c.b16 %v2398, %v2394
        %v3007 = vpack.c.b16 %v2399, %v2395
        %v3008 = vpack.c.b16 %v2400, %v2396
        %v3009 = vpack.c.b16 %v2401, %v2397
        %v3010 = vpack.c.b16 %v2406, %v2402
        %v3011 = vpack.c.b16 %v2407, %v2403
        %v3012 = vpack.c.b16 %v2408, %v2404
        %v3013 = vpack.c.b16 %v2409, %v2405
        %v3014 = vpack.c.b16 %v2414, %v2410
        %v3015 = vpack.c.b16 %v2415, %v2411
        %v3016 = vpack.c.b16 %v2416, %v2412
        %v3017 = vpack.c.b16 %v2417, %v2413
        %v3018 = vpack.c.b16 %v2422, %v2418
        %v3019 = vpack.c.b16 %v2423, %v2419
        %v3020 = vpack.c.b16 %v2424, %v2420
        %v3021 = vpack.c.b16 %v2425, %v2421
        %v3022 = vpack.c.b16 %v2430, %v2426
        %v3023 = vpack.c.b16 %v2431, %v2427
        %v3024 = vpack.c.b16 %v2432, %v2428
        %v3025 = vpack.c.b16 %v2433, %v2429
        %v3026 = vpack.c.b16 %v2438, %v2434
        %v3027 = vpack.c.b16 %v2439, %v2435
        %v3028 = vpack.c.b16 %v2440, %v2436
        %v3029 = vpack.c.b16 %v2441, %v2437
        %v3030 = vpack.c.b16 %v2446, %v2442
        %v3031 = vpack.c.b16 %v2447, %v2443
        %v3032 = vpack.c.b16 %v2448, %v2444
        %v3033 = vpack.c.b16 %v2449, %v2445
        %v3034 = vpack.c.b16 %v2454, %v2450
        %v3035 = vpack.c.b16 %v2455, %v2451
        %v3036 = vpack.c.b16 %v2456, %v2452
        %v3037 = vpack.c.b16 %v2457, %v2453
        %v3038 = vpack.c.b16 %v2462, %v2458
        %v3039 = vpack.c.b16 %v2463, %v2459
        %v3040 = vpack.c.b16 %v2464, %v2460
        %v3041 = vpack.c.b16 %v2465, %v2461
        %v3042 = vpack.c.b16 %v2470, %v2466
        %v3043 = vpack.c.b16 %v2471, %v2467
        %v3044 = vpack.c.b16 %v2472, %v2468
        %v3045 = vpack.c.b16 %v2473, %v2469
        %v3046 = vpack.c.b16 %v2478, %v2474
        %v3047 = vpack.c.b16 %v2479, %v2475
        %v3048 = vpack.c.b16 %v2480, %v2476
        %v3049 = vpack.c.b16 %v2481, %v2477
        %v3050 = vpack.c.b16 %v2486, %v2482
        %v3051 = vpack.c.b16 %v2487, %v2483
        %v3052 = vpack.c.b16 %v2488, %v2484
        %v3053 = vpack.c.b16 %v2489, %v2485
        %v3054 = vpack.c.b16 %v2494, %v2490
        %v3055 = vpack.c.b16 %v2495, %v2491
        %v3056 = vpack.c.b16 %v2496, %v2492
        %v3057 = vpack.c.b16 %v2497, %v2493
        %v3058 = vpack.c.b16 %v2502, %v2498
        %v3059 = vpack.c.b16 %v2503, %v2499
        %v3060 = vpack.c.b16 %v2504, %v2500
        %v3061 = vpack.c.b16 %v2505, %v2501
        %v3062 = vpack.c.b16 %v2510, %v2506
        %v3063 = vpack.c.b16 %v2511, %v2507
        %v3064 = vpack.c.b16 %v2512, %v2508
        %v3065 = vpack.c.b16 %v2513, %v2509
        %v3066 = vpack.c.b16 %v2518, %v2514
        %v3067 = vpack.c.b16 %v2519, %v2515
        %v3068 = vpack.c.b16 %v2520, %v2516
        %v3069 = vpack.c.b16 %v2521, %v2517
        %v3070 = vpack.c.b16 %v2526, %v2522
        %v3071 = vpack.c.b16 %v2527, %v2523
        %v3072 = vpack.c.b16 %v2528, %v2524
        %v3073 = vpack.c.b16 %v2529, %v2525
        %v3074 = vpack.c.b16 %v2534, %v2530
        %v3075 = vpack.c.b16 %v2535, %v2531
        %v3076 = vpack.c.b16 %v2536, %v2532
        %v3077 = vpack.c.b16 %v2537, %v2533
        %v3078 = vpack.c.b16 %v2542, %v2538
        %v3079 = vpack.c.b16 %v2543, %v2539
        %v3080 = vpack.c.b16 %v2544, %v2540
        %v3081 = vpack.c.b16 %v2545, %v2541
        %v3082 = vpack.c.b16 %v2550, %v2546
        %v3083 = vpack.c.b16 %v2551, %v2547
        %v3084 = vpack.c.b16 %v2552, %v2548
        %v3085 = vpack.c.b16 %v2553, %v2549
        %v3086 = vpack.c.b16 %v2558, %v2554
        %v3087 = vpack.c.b16 %v2559, %v2555
        %v3088 = vpack.c.b16 %v2560, %v2556
        %v3089 = vpack.c.b16 %v2561, %v2557
        %v3090 = vpack.c.b16 %v2566, %v2562
        %v3091 = vpack.c.b16 %v2567, %v2563
        %v3092 = vpack.c.b16 %v2568, %v2564
        %v3093 = vpack.c.b16 %v2569, %v2565
        %v3094 = vpack.c.b16 %v2574, %v2570
        %v3095 = vpack.c.b16 %v2575, %v2571
        %v3096 = vpack.c.b16 %v2576, %v2572
        %v3097 = vpack.c.b16 %v2577, %v2573
        %v3098 = vpack.c.b16 %v2582, %v2578
        %v3099 = vpack.c.b16 %v2583, %v2579
        %v3100 = vpack.c.b16 %v2584, %v2580
        %v3101 = vpack.c.b16 %v2585, %v2581
        %v3102 = vpack.c.b16 %v2590, %v2586
        %v3103 = vpack.c.b16 %v2591, %v2587
        %v3104 = vpack.c.b16 %v2592, %v2588
        %v3105 = vpack.c.b16 %v2593, %v2589
        %3618 = vmatprep.subr.bf16.mxu0 %v2595
        %3619 = vmatpush1.bf16.msra.mxu0 %v2594
        %3620 = vmatprep.subr.bf16.mxu0 %v2599
        %3621 = vmatpush1.bf16.msra.mxu0 %v2598
        %3622 = vmatprep.subr.bf16.mxu0 %v2603
        %3623 = vmatpush1.bf16.msra.mxu0 %v2602
        %3624 = vmatprep.subr.bf16.mxu0 %v2607
        %3625 = vmatpush1.bf16.msra.mxu0 %v2606
        %3626 = vmatprep.subr.bf16.mxu0 %v2611
        %3627 = vmatpush1.bf16.msra.mxu0 %v2610
        %3628 = vmatprep.subr.bf16.mxu0 %v2615
        %3629 = vmatpush1.bf16.msra.mxu0 %v2614
        %3630 = vmatprep.subr.bf16.mxu0 %v2619
        %3631 = vmatpush1.bf16.msra.mxu0 %v2618
        %3632 = vmatprep.subr.bf16.mxu0 %v2623
        %3633 = vmatpush1.bf16.msra.mxu0 %v2622
        %3634 = vmatprep.subr.bf16.mxu0 %v2627
        %3635 = vmatpush1.bf16.msra.mxu0 %v2626
        %3636 = vmatprep.subr.bf16.mxu0 %v2631
        %3637 = vmatpush1.bf16.msra.mxu0 %v2630
        %3638 = vmatprep.subr.bf16.mxu0 %v2635
        %3639 = vmatpush1.bf16.msra.mxu0 %v2634
        %3640 = vmatprep.subr.bf16.mxu0 %v2639
        %3641 = vmatpush1.bf16.msra.mxu0 %v2638
        %3642 = vmatprep.subr.bf16.mxu0 %v2643
        %3643 = vmatpush1.bf16.msra.mxu0 %v2642
        %3644 = vmatprep.subr.bf16.mxu0 %v2647
        %3645 = vmatpush1.bf16.msra.mxu0 %v2646
        %3646 = vmatprep.subr.bf16.mxu0 %v2651
        %3647 = vmatpush1.bf16.msra.mxu0 %v2650
        %3648 = vmatprep.subr.bf16.mxu0 %v2655
        %3649 = vmatpush1.bf16.msra.mxu0 %v2654
        %3650 = vmatprep.mubr.bf16.mxu0 %v995
        %3651 = vmatmul.mubr.bf16.gmra.mrb[0].mxu0 %v994
        %v3652 = vpop.f32.mrb[0].mxu0
        %v3653 = vadd.f32 0.0, %v3652
        %v3654 = vpop.f32.mrb[0].mxu0
        %v3655 = vadd.f32 0.0, %v3654
        %v3656 = vpop.f32.mrb[0].mxu0
        %v3657 = vadd.f32 0.0, %v3656
        %v3658 = vpop.f32.mrb[0].mxu0
        %v3659 = vadd.f32 0.0, %v3658
        %3660 = vmatprep.mubr.bf16.mxu0 %v1011
        %3661 = vmatmul.mubr.bf16.gmra.mrb[0].mxu0 %v1010
        %v3662 = vpop.f32.mrb[0].mxu0
        %v3663 = vadd.f32 0.0, %v3662
        %v3664 = vpop.f32.mrb[0].mxu0
        %v3665 = vadd.f32 0.0, %v3664
        %v3666 = vpop.f32.mrb[0].mxu0
        %v3667 = vadd.f32 0.0, %v3666
        %v3668 = vpop.f32.mrb[0].mxu0
        %v3669 = vadd.f32 0.0, %v3668
        %3670 = vdwg.mxu0
        %3671 = vmatprep.subr.bf16.mxu0 %v2659
        %3672 = vmatpush1.bf16.msra.mxu0 %v2658
        %3673 = vmatprep.subr.bf16.mxu0 %v2663
        %3674 = vmatpush1.bf16.msra.mxu0 %v2662
        %3675 = vmatprep.subr.bf16.mxu0 %v2667
        %3676 = vmatpush1.bf16.msra.mxu0 %v2666
        %3677 = vmatprep.subr.bf16.mxu0 %v2671
        %3678 = vmatpush1.bf16.msra.mxu0 %v2670
        %3679 = vmatprep.subr.bf16.mxu0 %v2675
        %3680 = vmatpush1.bf16.msra.mxu0 %v2674
        %3681 = vmatprep.subr.bf16.mxu0 %v2679
        %3682 = vmatpush1.bf16.msra.mxu0 %v2678
        %3683 = vmatprep.subr.bf16.mxu0 %v2683
        %3684 = vmatpush1.bf16.msra.mxu0 %v2682
        %3685 = vmatprep.subr.bf16.mxu0 %v2687
        %3686 = vmatpush1.bf16.msra.mxu0 %v2686
        %3687 = vmatprep.subr.bf16.mxu0 %v2691
        %3688 = vmatpush1.bf16.msra.mxu0 %v2690
        %3689 = vmatprep.subr.bf16.mxu0 %v2695
        %3690 = vmatpush1.bf16.msra.mxu0 %v2694
        %3691 = vmatprep.subr.bf16.mxu0 %v2699
        %3692 = vmatpush1.bf16.msra.mxu0 %v2698
        %3693 = vmatprep.subr.bf16.mxu0 %v2703
        %3694 = vmatpush1.bf16.msra.mxu0 %v2702
        %3695 = vmatprep.subr.bf16.mxu0 %v2707
        %3696 = vmatpush1.bf16.msra.mxu0 %v2706
        %3697 = vmatprep.subr.bf16.mxu0 %v2711
        %3698 = vmatpush1.bf16.msra.mxu0 %v2710
        %3699 = vmatprep.subr.bf16.mxu0 %v2715
        %3700 = vmatpush1.bf16.msra.mxu0 %v2714
        %3701 = vmatprep.subr.bf16.mxu0 %v2719
        %3702 = vmatpush1.bf16.msra.mxu0 %v2718
        %3703 = vmatprep.mubr.bf16.mxu0 %v997
        %3704 = vmatmul.mubr.bf16.gmra.mrb[0].mxu0 %v996
        %v3705 = vpop.f32.mrb[0].mxu0
        %v3706 = vadd.f32 %v3653, %v3705
        %v3707 = vpop.f32.mrb[0].mxu0
        %v3708 = vadd.f32 %v3655, %v3707
        %v3709 = vpop.f32.mrb[0].mxu0
        %v3710 = vadd.f32 %v3657, %v3709
        %v3711 = vpop.f32.mrb[0].mxu0
        %v3712 = vadd.f32 %v3659, %v3711
        %3713 = vmatprep.mubr.bf16.mxu0 %v1013
        %3714 = vmatmul.mubr.bf16.gmra.mrb[0].mxu0 %v1012
        %v3715 = vpop.f32.mrb[0].mxu0
        %v3716 = vadd.f32 %v3663, %v3715
        %v3717 = vpop.f32.mrb[0].mxu0
        %v3718 = vadd.f32 %v3665, %v3717
        %v3719 = vpop.f32.mrb[0].mxu0
        %v3720 = vadd.f32 %v3667, %v3719
        %v3721 = vpop.f32.mrb[0].mxu0
        %v3722 = vadd.f32 %v3669, %v3721
        %3723 = vdwg.mxu0
        %3724 = vmatprep.subr.bf16.mxu0 %v2723
        %3725 = vmatpush1.bf16.msra.mxu0 %v2722
        %3726 = vmatprep.subr.bf16.mxu0 %v2727
        %3727 = vmatpush1.bf16.msra.mxu0 %v2726
        %3728 = vmatprep.subr.bf16.mxu0 %v2731
        %3729 = vmatpush1.bf16.msra.mxu0 %v2730
        %3730 = vmatprep.subr.bf16.mxu0 %v2735
        %3731 = vmatpush1.bf16.msra.mxu0 %v2734
        %3732 = vmatprep.subr.bf16.mxu0 %v2739
        %3733 = vmatpush1.bf16.msra.mxu0 %v2738
        %3734 = vmatprep.subr.bf16.mxu0 %v2743
        %3735 = vmatpush1.bf16.msra.mxu0 %v2742
        %3736 = vmatprep.subr.bf16.mxu0 %v2747
        %3737 = vmatpush1.bf16.msra.mxu0 %v2746
        %3738 = vmatprep.subr.bf16.mxu0 %v2751
        %3739 = vmatpush1.bf16.msra.mxu0 %v2750
        %3740 = vmatprep.subr.bf16.mxu0 %v2755
        %3741 = vmatpush1.bf16.msra.mxu0 %v2754
        %3742 = vmatprep.subr.bf16.mxu0 %v2759
        %3743 = vmatpush1.bf16.msra.mxu0 %v2758
        %3744 = vmatprep.subr.bf16.mxu0 %v2763
        %3745 = vmatpush1.bf16.msra.mxu0 %v2762
        %3746 = vmatprep.subr.bf16.mxu0 %v2767
        %3747 = vmatpush1.bf16.msra.mxu0 %v2766
        %3748 = vmatprep.subr.bf16.mxu0 %v2771
        %3749 = vmatpush1.bf16.msra.mxu0 %v2770
        %3750 = vmatprep.subr.bf16.mxu0 %v2775
        %3751 = vmatpush1.bf16.msra.mxu0 %v2774
        %3752 = vmatprep.subr.bf16.mxu0 %v2779
        %3753 = vmatpush1.bf16.msra.mxu0 %v2778
        %3754 = vmatprep.subr.bf16.mxu0 %v2783
        %3755 = vmatpush1.bf16.msra.mxu0 %v2782
        %3756 = vmatprep.mubr.bf16.mxu0 %v999
        %3757 = vmatmul.mubr.bf16.gmra.mrb[0].mxu0 %v998
        %v3758 = vpop.f32.mrb[0].mxu0
        %v3759 = vadd.f32 %v3706, %v3758
        %v3760 = vpop.f32.mrb[0].mxu0
        %v3761 = vadd.f32 %v3708, %v3760
        %v3762 = vpop.f32.mrb[0].mxu0
        %v3763 = vadd.f32 %v3710, %v3762
        %v3764 = vpop.f32.mrb[0].mxu0
        %v3765 = vadd.f32 %v3712, %v3764
        %3766 = vmatprep.mubr.bf16.mxu0 %v1015
        %3767 = vmatmul.mubr.bf16.gmra.mrb[0].mxu0 %v1014
        %v3768 = vpop.f32.mrb[0].mxu0
        %v3769 = vadd.f32 %v3716, %v3768
        %v3770 = vpop.f32.mrb[0].mxu0
        %v3771 = vadd.f32 %v3718, %v3770
        %v3772 = vpop.f32.mrb[0].mxu0
        %v3773 = vadd.f32 %v3720, %v3772
        %v3774 = vpop.f32.mrb[0].mxu0
        %v3775 = vadd.f32 %v3722, %v3774
        %3776 = vdwg.mxu0
        %3777 = vmatprep.subr.bf16.mxu0 %v2787
        %3778 = vmatpush1.bf16.msra.mxu0 %v2786
        %3779 = vmatprep.subr.bf16.mxu0 %v2791
        %3780 = vmatpush1.bf16.msra.mxu0 %v2790
        %3781 = vmatprep.subr.bf16.mxu0 %v2795
        %3782 = vmatpush1.bf16.msra.mxu0 %v2794
        %3783 = vmatprep.subr.bf16.mxu0 %v2799
        %3784 = vmatpush1.bf16.msra.mxu0 %v2798
        %3785 = vmatprep.subr.bf16.mxu0 %v2803
        %3786 = vmatpush1.bf16.msra.mxu0 %v2802
        %3787 = vmatprep.subr.bf16.mxu0 %v2807
        %3788 = vmatpush1.bf16.msra.mxu0 %v2806
        %3789 = vmatprep.subr.bf16.mxu0 %v2811
        %3790 = vmatpush1.bf16.msra.mxu0 %v2810
        %3791 = vmatprep.subr.bf16.mxu0 %v2815
        %3792 = vmatpush1.bf16.msra.mxu0 %v2814
        %3793 = vmatprep.subr.bf16.mxu0 %v2819
        %3794 = vmatpush1.bf16.msra.mxu0 %v2818
        %3795 = vmatprep.subr.bf16.mxu0 %v2823
        %3796 = vmatpush1.bf16.msra.mxu0 %v2822
        %3797 = vmatprep.subr.bf16.mxu0 %v2827
        %3798 = vmatpush1.bf16.msra.mxu0 %v2826
        %3799 = vmatprep.subr.bf16.mxu0 %v2831
        %3800 = vmatpush1.bf16.msra.mxu0 %v2830
        %3801 = vmatprep.subr.bf16.mxu0 %v2835
        %3802 = vmatpush1.bf16.msra.mxu0 %v2834
        %3803 = vmatprep.subr.bf16.mxu0 %v2839
        %3804 = vmatpush1.bf16.msra.mxu0 %v2838
        %3805 = vmatprep.subr.bf16.mxu0 %v2843
        %3806 = vmatpush1.bf16.msra.mxu0 %v2842
        %3807 = vmatprep.subr.bf16.mxu0 %v2847
        %3808 = vmatpush1.bf16.msra.mxu0 %v2846
        %3809 = vmatprep.mubr.bf16.mxu0 %v1001
        %3810 = vmatmul.mubr.bf16.gmra.mrb[0].mxu0 %v1000
        %v3811 = vpop.f32.mrb[0].mxu0
        %v3812 = vadd.f32 %v3759, %v3811
        %v3813 = vpop.f32.mrb[0].mxu0
        %v3814 = vadd.f32 %v3761, %v3813
        %v3815 = vpop.f32.mrb[0].mxu0
        %v3816 = vadd.f32 %v3763, %v3815
        %v3817 = vpop.f32.mrb[0].mxu0
        %v3818 = vadd.f32 %v3765, %v3817
        %3819 = vmatprep.mubr.bf16.mxu0 %v1017
        %3820 = vmatmul.mubr.bf16.gmra.mrb[0].mxu0 %v1016
        %v3821 = vpop.f32.mrb[0].mxu0
        %v3822 = vadd.f32 %v3769, %v3821
        %v3823 = vpop.f32.mrb[0].mxu0
        %v3824 = vadd.f32 %v3771, %v3823
        %v3825 = vpop.f32.mrb[0].mxu0
        %v3826 = vadd.f32 %v3773, %v3825
        %v3827 = vpop.f32.mrb[0].mxu0
        %v3828 = vadd.f32 %v3775, %v3827
        %3829 = vdwg.mxu0
        %3830 = vmatprep.subr.bf16.mxu0 %v2851
        %3831 = vmatpush1.bf16.msra.mxu0 %v2850
        %3832 = vmatprep.subr.bf16.mxu0 %v2855
        %3833 = vmatpush1.bf16.msra.mxu0 %v2854
        %3834 = vmatprep.subr.bf16.mxu0 %v2859
        %3835 = vmatpush1.bf16.msra.mxu0 %v2858
        %3836 = vmatprep.subr.bf16.mxu0 %v2863
        %3837 = vmatpush1.bf16.msra.mxu0 %v2862
        %3838 = vmatprep.subr.bf16.mxu0 %v2867
        %3839 = vmatpush1.bf16.msra.mxu0 %v2866
        %3840 = vmatprep.subr.bf16.mxu0 %v2871
        %3841 = vmatpush1.bf16.msra.mxu0 %v2870
        %3842 = vmatprep.subr.bf16.mxu0 %v2875
        %3843 = vmatpush1.bf16.msra.mxu0 %v2874
        %3844 = vmatprep.subr.bf16.mxu0 %v2879
        %3845 = vmatpush1.bf16.msra.mxu0 %v2878
        %3846 = vmatprep.subr.bf16.mxu0 %v2883
        %3847 = vmatpush1.bf16.msra.mxu0 %v2882
        %3848 = vmatprep.subr.bf16.mxu0 %v2887
        %3849 = vmatpush1.bf16.msra.mxu0 %v2886
        %3850 = vmatprep.subr.bf16.mxu0 %v2891
        %3851 = vmatpush1.bf16.msra.mxu0 %v2890
        %3852 = vmatprep.subr.bf16.mxu0 %v2895
        %3853 = vmatpush1.bf16.msra.mxu0 %v2894
        %3854 = vmatprep.subr.bf16.mxu0 %v2899
        %3855 = vmatpush1.bf16.msra.mxu0 %v2898
        %3856 = vmatprep.subr.bf16.mxu0 %v2903
        %3857 = vmatpush1.bf16.msra.mxu0 %v2902
        %3858 = vmatprep.subr.bf16.mxu0 %v2907
        %3859 = vmatpush1.bf16.msra.mxu0 %v2906
        %3860 = vmatprep.subr.bf16.mxu0 %v2911
        %3861 = vmatpush1.bf16.msra.mxu0 %v2910
        %3862 = vmatprep.mubr.bf16.mxu0 %v1003
        %3863 = vmatmul.mubr.bf16.gmra.mrb[0].mxu0 %v1002
        %v3864 = vpop.f32.mrb[0].mxu0
        %v3865 = vadd.f32 %v3812, %v3864
        %v3866 = vpop.f32.mrb[0].mxu0
        %v3867 = vadd.f32 %v3814, %v3866
        %v3868 = vpop.f32.mrb[0].mxu0
        %v3869 = vadd.f32 %v3816, %v3868
        %v3870 = vpop.f32.mrb[0].mxu0
        %v3871 = vadd.f32 %v3818, %v3870
        %3872 = vmatprep.mubr.bf16.mxu0 %v1019
        %3873 = vmatmul.mubr.bf16.gmra.mrb[0].mxu0 %v1018
        %v3874 = vpop.f32.mrb[0].mxu0
        %v3875 = vadd.f32 %v3822, %v3874
        %v3876 = vpop.f32.mrb[0].mxu0
        %v3877 = vadd.f32 %v3824, %v3876
        %v3878 = vpop.f32.mrb[0].mxu0
        %v3879 = vadd.f32 %v3826, %v3878
        %v3880 = vpop.f32.mrb[0].mxu0
        %v3881 = vadd.f32 %v3828, %v3880
        %3882 = vdwg.mxu0
        %3883 = vmatprep.subr.bf16.mxu0 %v2915
        %3884 = vmatpush1.bf16.msra.mxu0 %v2914
        %3885 = vmatprep.subr.bf16.mxu0 %v2919
        %3886 = vmatpush1.bf16.msra.mxu0 %v2918
        %3887 = vmatprep.subr.bf16.mxu0 %v2923
        %3888 = vmatpush1.bf16.msra.mxu0 %v2922
        %3889 = vmatprep.subr.bf16.mxu0 %v2927
        %3890 = vmatpush1.bf16.msra.mxu0 %v2926
        %3891 = vmatprep.subr.bf16.mxu0 %v2931
        %3892 = vmatpush1.bf16.msra.mxu0 %v2930
        %3893 = vmatprep.subr.bf16.mxu0 %v2935
        %3894 = vmatpush1.bf16.msra.mxu0 %v2934
        %3895 = vmatprep.subr.bf16.mxu0 %v2939
        %3896 = vmatpush1.bf16.msra.mxu0 %v2938
        %3897 = vmatprep.subr.bf16.mxu0 %v2943
        %3898 = vmatpush1.bf16.msra.mxu0 %v2942
        %3899 = vmatprep.subr.bf16.mxu0 %v2947
        %3900 = vmatpush1.bf16.msra.mxu0 %v2946
        %3901 = vmatprep.subr.bf16.mxu0 %v2951
        %3902 = vmatpush1.bf16.msra.mxu0 %v2950
        %3903 = vmatprep.subr.bf16.mxu0 %v2955
        %3904 = vmatpush1.bf16.msra.mxu0 %v2954
        %3905 = vmatprep.subr.bf16.mxu0 %v2959
        %3906 = vmatpush1.bf16.msra.mxu0 %v2958
        %3907 = vmatprep.subr.bf16.mxu0 %v2963
        %3908 = vmatpush1.bf16.msra.mxu0 %v2962
        %3909 = vmatprep.subr.bf16.mxu0 %v2967
        %3910 = vmatpush1.bf16.msra.mxu0 %v2966
        %3911 = vmatprep.subr.bf16.mxu0 %v2971
        %3912 = vmatpush1.bf16.msra.mxu0 %v2970
        %3913 = vmatprep.subr.bf16.mxu0 %v2975
        %3914 = vmatpush1.bf16.msra.mxu0 %v2974
        %3915 = vmatprep.mubr.bf16.mxu0 %v1005
        %3916 = vmatmul.mubr.bf16.gmra.mrb[0].mxu0 %v1004
        %v3917 = vpop.f32.mrb[0].mxu0
        %v3918 = vadd.f32 %v3865, %v3917
        %v3919 = vpop.f32.mrb[0].mxu0
        %v3920 = vadd.f32 %v3867, %v3919
        %v3921 = vpop.f32.mrb[0].mxu0
        %v3922 = vadd.f32 %v3869, %v3921
        %v3923 = vpop.f32.mrb[0].mxu0
        %v3924 = vadd.f32 %v3871, %v3923
        %3925 = vmatprep.mubr.bf16.mxu0 %v1021
        %3926 = vmatmul.mubr.bf16.gmra.mrb[0].mxu0 %v1020
        %v3927 = vpop.f32.mrb[0].mxu0
        %v3928 = vadd.f32 %v3875, %v3927
        %v3929 = vpop.f32.mrb[0].mxu0
        %v3930 = vadd.f32 %v3877, %v3929
        %v3931 = vpop.f32.mrb[0].mxu0
        %v3932 = vadd.f32 %v3879, %v3931
        %v3933 = vpop.f32.mrb[0].mxu0
        %v3934 = vadd.f32 %v3881, %v3933
        %3935 = vdwg.mxu0
        %3936 = vmatprep.subr.bf16.mxu0 %v2979
        %3937 = vmatpush1.bf16.msra.mxu0 %v2978
        %3938 = vmatprep.subr.bf16.mxu0 %v2983
        %3939 = vmatpush1.bf16.msra.mxu0 %v2982
        %3940 = vmatprep.subr.bf16.mxu0 %v2987
        %3941 = vmatpush1.bf16.msra.mxu0 %v2986
        %3942 = vmatprep.subr.bf16.mxu0 %v2991
        %3943 = vmatpush1.bf16.msra.mxu0 %v2990
        %3944 = vmatprep.subr.bf16.mxu0 %v2995
        %3945 = vmatpush1.bf16.msra.mxu0 %v2994
        %3946 = vmatprep.subr.bf16.mxu0 %v2999
        %3947 = vmatpush1.bf16.msra.mxu0 %v2998
        %3948 = vmatprep.subr.bf16.mxu0 %v3003
        %3949 = vmatpush1.bf16.msra.mxu0 %v3002
        %3950 = vmatprep.subr.bf16.mxu0 %v3007
        %3951 = vmatpush1.bf16.msra.mxu0 %v3006
        %3952 = vmatprep.subr.bf16.mxu0 %v3011
        %3953 = vmatpush1.bf16.msra.mxu0 %v3010
        %3954 = vmatprep.subr.bf16.mxu0 %v3015
        %3955 = vmatpush1.bf16.msra.mxu0 %v3014
        %3956 = vmatprep.subr.bf16.mxu0 %v3019
        %3957 = vmatpush1.bf16.msra.mxu0 %v3018
        %3958 = vmatprep.subr.bf16.mxu0 %v3023
        %3959 = vmatpush1.bf16.msra.mxu0 %v3022
        %3960 = vmatprep.subr.bf16.mxu0 %v3027
        %3961 = vmatpush1.bf16.msra.mxu0 %v3026
        %3962 = vmatprep.subr.bf16.mxu0 %v3031
        %3963 = vmatpush1.bf16.msra.mxu0 %v3030
        %3964 = vmatprep.subr.bf16.mxu0 %v3035
        %3965 = vmatpush1.bf16.msra.mxu0 %v3034
        %3966 = vmatprep.subr.bf16.mxu0 %v3039
        %3967 = vmatpush1.bf16.msra.mxu0 %v3038
        %3968 = vmatprep.mubr.bf16.mxu0 %v1007
        %3969 = vmatmul.mubr.bf16.gmra.mrb[0].mxu0 %v1006
        %v3970 = vpop.f32.mrb[0].mxu0
        %v3971 = vadd.f32 %v3918, %v3970
        %v3972 = vpop.f32.mrb[0].mxu0
        %v3973 = vadd.f32 %v3920, %v3972
        %v3974 = vpop.f32.mrb[0].mxu0
        %v3975 = vadd.f32 %v3922, %v3974
        %v3976 = vpop.f32.mrb[0].mxu0
        %v3977 = vadd.f32 %v3924, %v3976
        %3978 = vmatprep.mubr.bf16.mxu0 %v1023
        %3979 = vmatmul.mubr.bf16.gmra.mrb[0].mxu0 %v1022
        %v3980 = vpop.f32.mrb[0].mxu0
        %v3981 = vadd.f32 %v3928, %v3980
        %v3982 = vpop.f32.mrb[0].mxu0
        %v3983 = vadd.f32 %v3930, %v3982
        %v3984 = vpop.f32.mrb[0].mxu0
        %v3985 = vadd.f32 %v3932, %v3984
        %v3986 = vpop.f32.mrb[0].mxu0
        %v3987 = vadd.f32 %v3934, %v3986
        %3988 = vdwg.mxu0
        %3989 = vmatprep.subr.bf16.mxu0 %v3043
        %3990 = vmatpush1.bf16.msra.mxu0 %v3042
        %3991 = vmatprep.subr.bf16.mxu0 %v3047
        %3992 = vmatpush1.bf16.msra.mxu0 %v3046
        %3993 = vmatprep.subr.bf16.mxu0 %v3051
        %3994 = vmatpush1.bf16.msra.mxu0 %v3050
        %3995 = vmatprep.subr.bf16.mxu0 %v3055
        %3996 = vmatpush1.bf16.msra.mxu0 %v3054
        %3997 = vmatprep.subr.bf16.mxu0 %v3059
        %3998 = vmatpush1.bf16.msra.mxu0 %v3058
        %3999 = vmatprep.subr.bf16.mxu0 %v3063
        %4000 = vmatpush1.bf16.msra.mxu0 %v3062
        %4001 = vmatprep.subr.bf16.mxu0 %v3067
        %4002 = vmatpush1.bf16.msra.mxu0 %v3066
        %4003 = vmatprep.subr.bf16.mxu0 %v3071
        %4004 = vmatpush1.bf16.msra.mxu0 %v3070
        %4005 = vmatprep.subr.bf16.mxu0 %v3075
        %4006 = vmatpush1.bf16.msra.mxu0 %v3074
        %4007 = vmatprep.subr.bf16.mxu0 %v3079
        %4008 = vmatpush1.bf16.msra.mxu0 %v3078
        %4009 = vmatprep.subr.bf16.mxu0 %v3083
        %4010 = vmatpush1.bf16.msra.mxu0 %v3082
        %4011 = vmatprep.subr.bf16.mxu0 %v3087
        %4012 = vmatpush1.bf16.msra.mxu0 %v3086
        %4013 = vmatprep.subr.bf16.mxu0 %v3091
        %4014 = vmatpush1.bf16.msra.mxu0 %v3090
        %4015 = vmatprep.subr.bf16.mxu0 %v3095
        %4016 = vmatpush1.bf16.msra.mxu0 %v3094
        %4017 = vmatprep.subr.bf16.mxu0 %v3099
        %4018 = vmatpush1.bf16.msra.mxu0 %v3098
        %4019 = vmatprep.subr.bf16.mxu0 %v3103
        %4020 = vmatpush1.bf16.msra.mxu0 %v3102
        %4021 = vmatprep.mubr.bf16.mxu0 %v1009
        %4022 = vmatmul.mubr.bf16.gmra.mrb[0].mxu0 %v1008
        %v4023 = vpop.f32.mrb[0].mxu0
        %v4024 = vadd.f32 %v3971, %v4023
        %v4025 = vpop.f32.mrb[0].mxu0
        %v4026 = vadd.f32 %v3973, %v4025
        %v4027 = vpop.f32.mrb[0].mxu0
        %v4028 = vadd.f32 %v3975, %v4027
        %v4029 = vpop.f32.mrb[0].mxu0
        %v4030 = vadd.f32 %v3977, %v4029
        %4031 = vmatprep.mubr.bf16.mxu0 %v1025
        %4032 = vmatmul.mubr.bf16.gmra.mrb[0].mxu0 %v1024
        %v4033 = vpop.f32.mrb[0].mxu0
        %v4034 = vadd.f32 %v3981, %v4033
        %v4035 = vpop.f32.mrb[0].mxu0
        %v4036 = vadd.f32 %v3983, %v4035
        %v4037 = vpop.f32.mrb[0].mxu0
        %v4038 = vadd.f32 %v3985, %v4037
        %v4039 = vpop.f32.mrb[0].mxu0
        %v4040 = vadd.f32 %v3987, %v4039
        %4041 = vdwg.mxu0
        %4042 = vmatprep.subr.bf16.mxu0 %v2597
        %4043 = vmatpush1.bf16.msra.mxu0 %v2596
        %4044 = vmatprep.subr.bf16.mxu0 %v2601
        %4045 = vmatpush1.bf16.msra.mxu0 %v2600
        %4046 = vmatprep.subr.bf16.mxu0 %v2605
        %4047 = vmatpush1.bf16.msra.mxu0 %v2604
        %4048 = vmatprep.subr.bf16.mxu0 %v2609
        %4049 = vmatpush1.bf16.msra.mxu0 %v2608
        %4050 = vmatprep.subr.bf16.mxu0 %v2613
        %4051 = vmatpush1.bf16.msra.mxu0 %v2612
        %4052 = vmatprep.subr.bf16.mxu0 %v2617
        %4053 = vmatpush1.bf16.msra.mxu0 %v2616
        %4054 = vmatprep.subr.bf16.mxu0 %v2621
        %4055 = vmatpush1.bf16.msra.mxu0 %v2620
        %4056 = vmatprep.subr.bf16.mxu0 %v2625
        %4057 = vmatpush1.bf16.msra.mxu0 %v2624
        %4058 = vmatprep.subr.bf16.mxu0 %v2629
        %4059 = vmatpush1.bf16.msra.mxu0 %v2628
        %4060 = vmatprep.subr.bf16.mxu0 %v2633
        %4061 = vmatpush1.bf16.msra.mxu0 %v2632
        %4062 = vmatprep.subr.bf16.mxu0 %v2637
        %4063 = vmatpush1.bf16.msra.mxu0 %v2636
        %4064 = vmatprep.subr.bf16.mxu0 %v2641
        %4065 = vmatpush1.bf16.msra.mxu0 %v2640
        %4066 = vmatprep.subr.bf16.mxu0 %v2645
        %4067 = vmatpush1.bf16.msra.mxu0 %v2644
        %4068 = vmatprep.subr.bf16.mxu0 %v2649
        %4069 = vmatpush1.bf16.msra.mxu0 %v2648
        %4070 = vmatprep.subr.bf16.mxu0 %v2653
        %4071 = vmatpush1.bf16.msra.mxu0 %v2652
        %4072 = vmatprep.subr.bf16.mxu0 %v2657
        %4073 = vmatpush1.bf16.msra.mxu0 %v2656
        %4074 = vmatprep.mubr.bf16.mxu0 %v995
        %4075 = vmatmul.mubr.bf16.gmra.mrb[0].mxu0 %v994
        %v4076 = vpop.f32.mrb[0].mxu0
        %v4077 = vadd.f32 0.0, %v4076
        %v4078 = vpop.f32.mrb[0].mxu0
        %v4079 = vadd.f32 0.0, %v4078
        %v4080 = vpop.f32.mrb[0].mxu0
        %v4081 = vadd.f32 0.0, %v4080
        %v4082 = vpop.f32.mrb[0].mxu0
        %v4083 = vadd.f32 0.0, %v4082
        %4084 = vmatprep.mubr.bf16.mxu0 %v1011
        %4085 = vmatmul.mubr.bf16.gmra.mrb[0].mxu0 %v1010
        %v4086 = vpop.f32.mrb[0].mxu0
        %v4087 = vadd.f32 0.0, %v4086
        %v4088 = vpop.f32.mrb[0].mxu0
        %v4089 = vadd.f32 0.0, %v4088
        %v4090 = vpop.f32.mrb[0].mxu0
        %v4091 = vadd.f32 0.0, %v4090
        %v4092 = vpop.f32.mrb[0].mxu0
        %v4093 = vadd.f32 0.0, %v4092
        %4094 = vdwg.mxu0
        %4095 = vmatprep.subr.bf16.mxu0 %v2661
        %4096 = vmatpush1.bf16.msra.mxu0 %v2660
        %4097 = vmatprep.subr.bf16.mxu0 %v2665
        %4098 = vmatpush1.bf16.msra.mxu0 %v2664
        %4099 = vmatprep.subr.bf16.mxu0 %v2669
        %4100 = vmatpush1.bf16.msra.mxu0 %v2668
        %4101 = vmatprep.subr.bf16.mxu0 %v2673
        %4102 = vmatpush1.bf16.msra.mxu0 %v2672
        %4103 = vmatprep.subr.bf16.mxu0 %v2677
        %4104 = vmatpush1.bf16.msra.mxu0 %v2676
        %4105 = vmatprep.subr.bf16.mxu0 %v2681
        %4106 = vmatpush1.bf16.msra.mxu0 %v2680
        %4107 = vmatprep.subr.bf16.mxu0 %v2685
        %4108 = vmatpush1.bf16.msra.mxu0 %v2684
        %4109 = vmatprep.subr.bf16.mxu0 %v2689
        %4110 = vmatpush1.bf16.msra.mxu0 %v2688
        %4111 = vmatprep.subr.bf16.mxu0 %v2693
        %4112 = vmatpush1.bf16.msra.mxu0 %v2692
        %4113 = vmatprep.subr.bf16.mxu0 %v2697
        %4114 = vmatpush1.bf16.msra.mxu0 %v2696
        %4115 = vmatprep.subr.bf16.mxu0 %v2701
        %4116 = vmatpush1.bf16.msra.mxu0 %v2700
        %4117 = vmatprep.subr.bf16.mxu0 %v2705
        %4118 = vmatpush1.bf16.msra.mxu0 %v2704
        %4119 = vmatprep.subr.bf16.mxu0 %v2709
        %4120 = vmatpush1.bf16.msra.mxu0 %v2708
        %4121 = vmatprep.subr.bf16.mxu0 %v2713
        %4122 = vmatpush1.bf16.msra.mxu0 %v2712
        %4123 = vmatprep.subr.bf16.mxu0 %v2717
        %4124 = vmatpush1.bf16.msra.mxu0 %v2716
        %4125 = vmatprep.subr.bf16.mxu0 %v2721
        %4126 = vmatpush1.bf16.msra.mxu0 %v2720
        %4127 = vmatprep.mubr.bf16.mxu0 %v997
        %4128 = vmatmul.mubr.bf16.gmra.mrb[0].mxu0 %v996
        %v4129 = vpop.f32.mrb[0].mxu0
        %v4130 = vadd.f32 %v4077, %v4129
        %v4131 = vpop.f32.mrb[0].mxu0
        %v4132 = vadd.f32 %v4079, %v4131
        %v4133 = vpop.f32.mrb[0].mxu0
        %v4134 = vadd.f32 %v4081, %v4133
        %v4135 = vpop.f32.mrb[0].mxu0
        %v4136 = vadd.f32 %v4083, %v4135
        %4137 = vmatprep.mubr.bf16.mxu0 %v1013
        %4138 = vmatmul.mubr.bf16.gmra.mrb[0].mxu0 %v1012
        %v4139 = vpop.f32.mrb[0].mxu0
        %v4140 = vadd.f32 %v4087, %v4139
        %v4141 = vpop.f32.mrb[0].mxu0
        %v4142 = vadd.f32 %v4089, %v4141
        %v4143 = vpop.f32.mrb[0].mxu0
        %v4144 = vadd.f32 %v4091, %v4143
        %v4145 = vpop.f32.mrb[0].mxu0
        %v4146 = vadd.f32 %v4093, %v4145
        %4147 = vdwg.mxu0
        %4148 = vmatprep.subr.bf16.mxu0 %v2725
        %4149 = vmatpush1.bf16.msra.mxu0 %v2724
        %4150 = vmatprep.subr.bf16.mxu0 %v2729
        %4151 = vmatpush1.bf16.msra.mxu0 %v2728
        %4152 = vmatprep.subr.bf16.mxu0 %v2733
        %4153 = vmatpush1.bf16.msra.mxu0 %v2732
        %4154 = vmatprep.subr.bf16.mxu0 %v2737
        %4155 = vmatpush1.bf16.msra.mxu0 %v2736
        %4156 = vmatprep.subr.bf16.mxu0 %v2741
        %4157 = vmatpush1.bf16.msra.mxu0 %v2740
        %4158 = vmatprep.subr.bf16.mxu0 %v2745
        %4159 = vmatpush1.bf16.msra.mxu0 %v2744
        %4160 = vmatprep.subr.bf16.mxu0 %v2749
        %4161 = vmatpush1.bf16.msra.mxu0 %v2748
        %4162 = vmatprep.subr.bf16.mxu0 %v2753
        %4163 = vmatpush1.bf16.msra.mxu0 %v2752
        %4164 = vmatprep.subr.bf16.mxu0 %v2757
        %4165 = vmatpush1.bf16.msra.mxu0 %v2756
        %4166 = vmatprep.subr.bf16.mxu0 %v2761
        %4167 = vmatpush1.bf16.msra.mxu0 %v2760
        %4168 = vmatprep.subr.bf16.mxu0 %v2765
        %4169 = vmatpush1.bf16.msra.mxu0 %v2764
        %4170 = vmatprep.subr.bf16.mxu0 %v2769
        %4171 = vmatpush1.bf16.msra.mxu0 %v2768
        %4172 = vmatprep.subr.bf16.mxu0 %v2773
        %4173 = vmatpush1.bf16.msra.mxu0 %v2772
        %4174 = vmatprep.subr.bf16.mxu0 %v2777
        %4175 = vmatpush1.bf16.msra.mxu0 %v2776
        %4176 = vmatprep.subr.bf16.mxu0 %v2781
        %4177 = vmatpush1.bf16.msra.mxu0 %v2780
        %4178 = vmatprep.subr.bf16.mxu0 %v2785
        %4179 = vmatpush1.bf16.msra.mxu0 %v2784
        %4180 = vmatprep.mubr.bf16.mxu0 %v999
        %4181 = vmatmul.mubr.bf16.gmra.mrb[0].mxu0 %v998
        %v4182 = vpop.f32.mrb[0].mxu0
        %v4183 = vadd.f32 %v4130, %v4182
        %v4184 = vpop.f32.mrb[0].mxu0
        %v4185 = vadd.f32 %v4132, %v4184
        %v4186 = vpop.f32.mrb[0].mxu0
        %v4187 = vadd.f32 %v4134, %v4186
        %v4188 = vpop.f32.mrb[0].mxu0
        %v4189 = vadd.f32 %v4136, %v4188
        %4190 = vmatprep.mubr.bf16.mxu0 %v1015
        %4191 = vmatmul.mubr.bf16.gmra.mrb[0].mxu0 %v1014
        %v4192 = vpop.f32.mrb[0].mxu0
        %v4193 = vadd.f32 %v4140, %v4192
        %v4194 = vpop.f32.mrb[0].mxu0
        %v4195 = vadd.f32 %v4142, %v4194
        %v4196 = vpop.f32.mrb[0].mxu0
        %v4197 = vadd.f32 %v4144, %v4196
        %v4198 = vpop.f32.mrb[0].mxu0
        %v4199 = vadd.f32 %v4146, %v4198
        %4200 = vdwg.mxu0
        %4201 = vmatprep.subr.bf16.mxu0 %v2789
        %4202 = vmatpush1.bf16.msra.mxu0 %v2788
        %4203 = vmatprep.subr.bf16.mxu0 %v2793
        %4204 = vmatpush1.bf16.msra.mxu0 %v2792
        %4205 = vmatprep.subr.bf16.mxu0 %v2797
        %4206 = vmatpush1.bf16.msra.mxu0 %v2796
        %4207 = vmatprep.subr.bf16.mxu0 %v2801
        %4208 = vmatpush1.bf16.msra.mxu0 %v2800
        %4209 = vmatprep.subr.bf16.mxu0 %v2805
        %4210 = vmatpush1.bf16.msra.mxu0 %v2804
        %4211 = vmatprep.subr.bf16.mxu0 %v2809
        %4212 = vmatpush1.bf16.msra.mxu0 %v2808
        %4213 = vmatprep.subr.bf16.mxu0 %v2813
        %4214 = vmatpush1.bf16.msra.mxu0 %v2812
        %4215 = vmatprep.subr.bf16.mxu0 %v2817
        %4216 = vmatpush1.bf16.msra.mxu0 %v2816
        %4217 = vmatprep.subr.bf16.mxu0 %v2821
        %4218 = vmatpush1.bf16.msra.mxu0 %v2820
        %4219 = vmatprep.subr.bf16.mxu0 %v2825
        %4220 = vmatpush1.bf16.msra.mxu0 %v2824
        %4221 = vmatprep.subr.bf16.mxu0 %v2829
        %4222 = vmatpush1.bf16.msra.mxu0 %v2828
        %4223 = vmatprep.subr.bf16.mxu0 %v2833
        %4224 = vmatpush1.bf16.msra.mxu0 %v2832
        %4225 = vmatprep.subr.bf16.mxu0 %v2837
        %4226 = vmatpush1.bf16.msra.mxu0 %v2836
        %4227 = vmatprep.subr.bf16.mxu0 %v2841
        %4228 = vmatpush1.bf16.msra.mxu0 %v2840
        %4229 = vmatprep.subr.bf16.mxu0 %v2845
        %4230 = vmatpush1.bf16.msra.mxu0 %v2844
        %4231 = vmatprep.subr.bf16.mxu0 %v2849
        %4232 = vmatpush1.bf16.msra.mxu0 %v2848
        %4233 = vmatprep.mubr.bf16.mxu0 %v1001
        %4234 = vmatmul.mubr.bf16.gmra.mrb[0].mxu0 %v1000
        %v4235 = vpop.f32.mrb[0].mxu0
        %v4236 = vadd.f32 %v4183, %v4235
        %v4237 = vpop.f32.mrb[0].mxu0
        %v4238 = vadd.f32 %v4185, %v4237
        %v4239 = vpop.f32.mrb[0].mxu0
        %v4240 = vadd.f32 %v4187, %v4239
        %v4241 = vpop.f32.mrb[0].mxu0
        %v4242 = vadd.f32 %v4189, %v4241
        %4243 = vmatprep.mubr.bf16.mxu0 %v1017
        %4244 = vmatmul.mubr.bf16.gmra.mrb[0].mxu0 %v1016
        %v4245 = vpop.f32.mrb[0].mxu0
        %v4246 = vadd.f32 %v4193, %v4245
        %v4247 = vpop.f32.mrb[0].mxu0
        %v4248 = vadd.f32 %v4195, %v4247
        %v4249 = vpop.f32.mrb[0].mxu0
        %v4250 = vadd.f32 %v4197, %v4249
        %v4251 = vpop.f32.mrb[0].mxu0
        %v4252 = vadd.f32 %v4199, %v4251
        %4253 = vdwg.mxu0
        %4254 = vmatprep.subr.bf16.mxu0 %v2853
        %4255 = vmatpush1.bf16.msra.mxu0 %v2852
        %4256 = vmatprep.subr.bf16.mxu0 %v2857
        %4257 = vmatpush1.bf16.msra.mxu0 %v2856
        %4258 = vmatprep.subr.bf16.mxu0 %v2861
        %4259 = vmatpush1.bf16.msra.mxu0 %v2860
        %4260 = vmatprep.subr.bf16.mxu0 %v2865
        %4261 = vmatpush1.bf16.msra.mxu0 %v2864
        %4262 = vmatprep.subr.bf16.mxu0 %v2869
        %4263 = vmatpush1.bf16.msra.mxu0 %v2868
        %4264 = vmatprep.subr.bf16.mxu0 %v2873
        %4265 = vmatpush1.bf16.msra.mxu0 %v2872
        %4266 = vmatprep.subr.bf16.mxu0 %v2877
        %4267 = vmatpush1.bf16.msra.mxu0 %v2876
        %4268 = vmatprep.subr.bf16.mxu0 %v2881
        %4269 = vmatpush1.bf16.msra.mxu0 %v2880
        %4270 = vmatprep.subr.bf16.mxu0 %v2885
        %4271 = vmatpush1.bf16.msra.mxu0 %v2884
        %4272 = vmatprep.subr.bf16.mxu0 %v2889
        %4273 = vmatpush1.bf16.msra.mxu0 %v2888
        %4274 = vmatprep.subr.bf16.mxu0 %v2893
        %4275 = vmatpush1.bf16.msra.mxu0 %v2892
        %4276 = vmatprep.subr.bf16.mxu0 %v2897
        %4277 = vmatpush1.bf16.msra.mxu0 %v2896
        %4278 = vmatprep.subr.bf16.mxu0 %v2901
        %4279 = vmatpush1.bf16.msra.mxu0 %v2900
        %4280 = vmatprep.subr.bf16.mxu0 %v2905
        %4281 = vmatpush1.bf16.msra.mxu0 %v2904
        %4282 = vmatprep.subr.bf16.mxu0 %v2909
        %4283 = vmatpush1.bf16.msra.mxu0 %v2908
        %4284 = vmatprep.subr.bf16.mxu0 %v2913
        %4285 = vmatpush1.bf16.msra.mxu0 %v2912
        %4286 = vmatprep.mubr.bf16.mxu0 %v1003
        %4287 = vmatmul.mubr.bf16.gmra.mrb[0].mxu0 %v1002
        %v4288 = vpop.f32.mrb[0].mxu0
        %v4289 = vadd.f32 %v4236, %v4288
        %v4290 = vpop.f32.mrb[0].mxu0
        %v4291 = vadd.f32 %v4238, %v4290
        %v4292 = vpop.f32.mrb[0].mxu0
        %v4293 = vadd.f32 %v4240, %v4292
        %v4294 = vpop.f32.mrb[0].mxu0
        %v4295 = vadd.f32 %v4242, %v4294
        %4296 = vmatprep.mubr.bf16.mxu0 %v1019
        %4297 = vmatmul.mubr.bf16.gmra.mrb[0].mxu0 %v1018
        %v4298 = vpop.f32.mrb[0].mxu0
        %v4299 = vadd.f32 %v4246, %v4298
        %v4300 = vpop.f32.mrb[0].mxu0
        %v4301 = vadd.f32 %v4248, %v4300
        %v4302 = vpop.f32.mrb[0].mxu0
        %v4303 = vadd.f32 %v4250, %v4302
        %v4304 = vpop.f32.mrb[0].mxu0
        %v4305 = vadd.f32 %v4252, %v4304
        %4306 = vdwg.mxu0
        %4307 = vmatprep.subr.bf16.mxu0 %v2917
        %4308 = vmatpush1.bf16.msra.mxu0 %v2916
        %4309 = vmatprep.subr.bf16.mxu0 %v2921
        %4310 = vmatpush1.bf16.msra.mxu0 %v2920
        %4311 = vmatprep.subr.bf16.mxu0 %v2925
        %4312 = vmatpush1.bf16.msra.mxu0 %v2924
        %4313 = vmatprep.subr.bf16.mxu0 %v2929
        %4314 = vmatpush1.bf16.msra.mxu0 %v2928
        %4315 = vmatprep.subr.bf16.mxu0 %v2933
        %4316 = vmatpush1.bf16.msra.mxu0 %v2932
        %4317 = vmatprep.subr.bf16.mxu0 %v2937
        %4318 = vmatpush1.bf16.msra.mxu0 %v2936
        %4319 = vmatprep.subr.bf16.mxu0 %v2941
        %4320 = vmatpush1.bf16.msra.mxu0 %v2940
        %4321 = vmatprep.subr.bf16.mxu0 %v2945
        %4322 = vmatpush1.bf16.msra.mxu0 %v2944
        %4323 = vmatprep.subr.bf16.mxu0 %v2949
        %4324 = vmatpush1.bf16.msra.mxu0 %v2948
        %4325 = vmatprep.subr.bf16.mxu0 %v2953
        %4326 = vmatpush1.bf16.msra.mxu0 %v2952
        %4327 = vmatprep.subr.bf16.mxu0 %v2957
        %4328 = vmatpush1.bf16.msra.mxu0 %v2956
        %4329 = vmatprep.subr.bf16.mxu0 %v2961
        %4330 = vmatpush1.bf16.msra.mxu0 %v2960
        %4331 = vmatprep.subr.bf16.mxu0 %v2965
        %4332 = vmatpush1.bf16.msra.mxu0 %v2964
        %4333 = vmatprep.subr.bf16.mxu0 %v2969
        %4334 = vmatpush1.bf16.msra.mxu0 %v2968
        %4335 = vmatprep.subr.bf16.mxu0 %v2973
        %4336 = vmatpush1.bf16.msra.mxu0 %v2972
        %4337 = vmatprep.subr.bf16.mxu0 %v2977
        %4338 = vmatpush1.bf16.msra.mxu0 %v2976
        %4339 = vmatprep.mubr.bf16.mxu0 %v1005
        %4340 = vmatmul.mubr.bf16.gmra.mrb[0].mxu0 %v1004
        %v4341 = vpop.f32.mrb[0].mxu0
        %v4342 = vadd.f32 %v4289, %v4341
        %v4343 = vpop.f32.mrb[0].mxu0
        %v4344 = vadd.f32 %v4291, %v4343
        %v4345 = vpop.f32.mrb[0].mxu0
        %v4346 = vadd.f32 %v4293, %v4345
        %v4347 = vpop.f32.mrb[0].mxu0
        %v4348 = vadd.f32 %v4295, %v4347
        %4349 = vmatprep.mubr.bf16.mxu0 %v1021
        %4350 = vmatmul.mubr.bf16.gmra.mrb[0].mxu0 %v1020
        %v4351 = vpop.f32.mrb[0].mxu0
        %v4352 = vadd.f32 %v4299, %v4351
        %v4353 = vpop.f32.mrb[0].mxu0
        %v4354 = vadd.f32 %v4301, %v4353
        %v4355 = vpop.f32.mrb[0].mxu0
        %v4356 = vadd.f32 %v4303, %v4355
        %v4357 = vpop.f32.mrb[0].mxu0
        %v4358 = vadd.f32 %v4305, %v4357
        %4359 = vdwg.mxu0
        %4360 = vmatprep.subr.bf16.mxu0 %v2981
        %4361 = vmatpush1.bf16.msra.mxu0 %v2980
        %4362 = vmatprep.subr.bf16.mxu0 %v2985
        %4363 = vmatpush1.bf16.msra.mxu0 %v2984
        %4364 = vmatprep.subr.bf16.mxu0 %v2989
        %4365 = vmatpush1.bf16.msra.mxu0 %v2988
        %4366 = vmatprep.subr.bf16.mxu0 %v2993
        %4367 = vmatpush1.bf16.msra.mxu0 %v2992
        %4368 = vmatprep.subr.bf16.mxu0 %v2997
        %4369 = vmatpush1.bf16.msra.mxu0 %v2996
        %4370 = vmatprep.subr.bf16.mxu0 %v3001
        %4371 = vmatpush1.bf16.msra.mxu0 %v3000
        %4372 = vmatprep.subr.bf16.mxu0 %v3005
        %4373 = vmatpush1.bf16.msra.mxu0 %v3004
        %4374 = vmatprep.subr.bf16.mxu0 %v3009
        %4375 = vmatpush1.bf16.msra.mxu0 %v3008
        %4376 = vmatprep.subr.bf16.mxu0 %v3013
        %4377 = vmatpush1.bf16.msra.mxu0 %v3012
        %4378 = vmatprep.subr.bf16.mxu0 %v3017
        %4379 = vmatpush1.bf16.msra.mxu0 %v3016
        %4380 = vmatprep.subr.bf16.mxu0 %v3021
        %4381 = vmatpush1.bf16.msra.mxu0 %v3020
        %4382 = vmatprep.subr.bf16.mxu0 %v3025
        %4383 = vmatpush1.bf16.msra.mxu0 %v3024
        %4384 = vmatprep.subr.bf16.mxu0 %v3029
        %4385 = vmatpush1.bf16.msra.mxu0 %v3028
        %4386 = vmatprep.subr.bf16.mxu0 %v3033
        %4387 = vmatpush1.bf16.msra.mxu0 %v3032
        %4388 = vmatprep.subr.bf16.mxu0 %v3037
        %4389 = vmatpush1.bf16.msra.mxu0 %v3036
        %4390 = vmatprep.subr.bf16.mxu0 %v3041
        %4391 = vmatpush1.bf16.msra.mxu0 %v3040
        %4392 = vmatprep.mubr.bf16.mxu0 %v1007
        %4393 = vmatmul.mubr.bf16.gmra.mrb[0].mxu0 %v1006
        %v4394 = vpop.f32.mrb[0].mxu0
        %v4395 = vadd.f32 %v4342, %v4394
        %v4396 = vpop.f32.mrb[0].mxu0
        %v4397 = vadd.f32 %v4344, %v4396
        %v4398 = vpop.f32.mrb[0].mxu0
        %v4399 = vadd.f32 %v4346, %v4398
        %v4400 = vpop.f32.mrb[0].mxu0
        %v4401 = vadd.f32 %v4348, %v4400
        %4402 = vmatprep.mubr.bf16.mxu0 %v1023
        %4403 = vmatmul.mubr.bf16.gmra.mrb[0].mxu0 %v1022
        %v4404 = vpop.f32.mrb[0].mxu0
        %v4405 = vadd.f32 %v4352, %v4404
        %v4406 = vpop.f32.mrb[0].mxu0
        %v4407 = vadd.f32 %v4354, %v4406
        %v4408 = vpop.f32.mrb[0].mxu0
        %v4409 = vadd.f32 %v4356, %v4408
        %v4410 = vpop.f32.mrb[0].mxu0
        %v4411 = vadd.f32 %v4358, %v4410
        %4412 = vdwg.mxu0
        %4413 = vmatprep.subr.bf16.mxu0 %v3045
        %4414 = vmatpush1.bf16.msra.mxu0 %v3044
        %4415 = vmatprep.subr.bf16.mxu0 %v3049
        %4416 = vmatpush1.bf16.msra.mxu0 %v3048
        %4417 = vmatprep.subr.bf16.mxu0 %v3053
        %4418 = vmatpush1.bf16.msra.mxu0 %v3052
        %4419 = vmatprep.subr.bf16.mxu0 %v3057
        %4420 = vmatpush1.bf16.msra.mxu0 %v3056
        %4421 = vmatprep.subr.bf16.mxu0 %v3061
        %4422 = vmatpush1.bf16.msra.mxu0 %v3060
        %4423 = vmatprep.subr.bf16.mxu0 %v3065
        %4424 = vmatpush1.bf16.msra.mxu0 %v3064
        %4425 = vmatprep.subr.bf16.mxu0 %v3069
        %4426 = vmatpush1.bf16.msra.mxu0 %v3068
        %4427 = vmatprep.subr.bf16.mxu0 %v3073
        %4428 = vmatpush1.bf16.msra.mxu0 %v3072
        %4429 = vmatprep.subr.bf16.mxu0 %v3077
        %4430 = vmatpush1.bf16.msra.mxu0 %v3076
        %4431 = vmatprep.subr.bf16.mxu0 %v3081
        %4432 = vmatpush1.bf16.msra.mxu0 %v3080
        %4433 = vmatprep.subr.bf16.mxu0 %v3085
        %4434 = vmatpush1.bf16.msra.mxu0 %v3084
        %4435 = vmatprep.subr.bf16.mxu0 %v3089
        %4436 = vmatpush1.bf16.msra.mxu0 %v3088
        %4437 = vmatprep.subr.bf16.mxu0 %v3093
        %4438 = vmatpush1.bf16.msra.mxu0 %v3092
        %4439 = vmatprep.subr.bf16.mxu0 %v3097
        %4440 = vmatpush1.bf16.msra.mxu0 %v3096
        %4441 = vmatprep.subr.bf16.mxu0 %v3101
        %4442 = vmatpush1.bf16.msra.mxu0 %v3100
        %4443 = vmatprep.subr.bf16.mxu0 %v3105
        %4444 = vmatpush1.bf16.msra.mxu0 %v3104
        %4445 = vmatprep.mubr.bf16.mxu0 %v1009
        %4446 = vmatmul.mubr.bf16.gmra.mrb[0].mxu0 %v1008
        %v4447 = vpop.f32.mrb[0].mxu0
        %v4448 = vadd.f32 %v4395, %v4447
        %v4449 = vpop.f32.mrb[0].mxu0
        %v4450 = vadd.f32 %v4397, %v4449
        %v4451 = vpop.f32.mrb[0].mxu0
        %v4452 = vadd.f32 %v4399, %v4451
        %v4453 = vpop.f32.mrb[0].mxu0
        %v4454 = vadd.f32 %v4401, %v4453
        %4455 = vmatprep.mubr.bf16.mxu0 %v1025
        %4456 = vmatmul.mubr.bf16.gmra.mrb[0].mxu0 %v1024
        %v4457 = vpop.f32.mrb[0].mxu0
        %v4458 = vadd.f32 %v4405, %v4457
        %v4459 = vpop.f32.mrb[0].mxu0
        %v4460 = vadd.f32 %v4407, %v4459
        %v4461 = vpop.f32.mrb[0].mxu0
        %v4462 = vadd.f32 %v4409, %v4461
        %v4463 = vpop.f32.mrb[0].mxu0
        %v4464 = vadd.f32 %v4411, %v4463
        %4465 = vdwg.mxu0
        %v4466 = vadd.f32 %v338, %v4024
        %v4467 = vadd.f32 %v339, %v4026
        %v4468 = vadd.f32 %v340, %v4448
        %v4469 = vadd.f32 %v341, %v4450
        %v4470 = vadd.f32 %v342, %v4028
        %v4471 = vadd.f32 %v343, %v4030
        %v4472 = vadd.f32 %v344, %v4452
        %v4473 = vadd.f32 %v345, %v4454
        %v4474 = vadd.f32 %v346, %v4034
        %v4475 = vadd.f32 %v347, %v4036
        %v4476 = vadd.f32 %v348, %v4458
        %v4477 = vadd.f32 %v349, %v4460
        %v4478 = vadd.f32 %v350, %v4038
        %v4479 = vadd.f32 %v351, %v4040
        %v4480 = vadd.f32 %v352, %v4462
        %v4481 = vadd.f32 %v353, %v4464
        %4482 = vst [vmem:[#allocation2] sm:$0xff] %v4466
        %4483 = vst [vmem:[#allocation2 + $0x8] sm:$0xff] %v4467
        %4484 = vst [vmem:[#allocation2 + $0x10] sm:$0xff] %v4468
        %4485 = vst [vmem:[#allocation2 + $0x18] sm:$0xff] %v4469
        %4486 = vst [vmem:[#allocation2 + $0x20] sm:$0xff] %v4470
        %4487 = vst [vmem:[#allocation2 + $0x28] sm:$0xff] %v4471
        %4488 = vst [vmem:[#allocation2 + $0x30] sm:$0xff] %v4472
        %4489 = vst [vmem:[#allocation2 + $0x38] sm:$0xff] %v4473
        %4490 = vst [vmem:[#allocation2 + $0x40] sm:$0xff] %v4474
        %4491 = vst [vmem:[#allocation2 + $0x48] sm:$0xff] %v4475
        %4492 = vst [vmem:[#allocation2 + $0x50] sm:$0xff] %v4476
        %4493 = vst [vmem:[#allocation2 + $0x58] sm:$0xff] %v4477
        %4494 = vst [vmem:[#allocation2 + $0x60] sm:$0xff] %v4478
        %4495 = vst [vmem:[#allocation2 + $0x68] sm:$0xff] %v4479
        %4496 = vst [vmem:[#allocation2 + $0x70] sm:$0xff] %v4480
        %4497 = vst [vmem:[#allocation2 + $0x78] sm:$0xff] %v4481
        %p4498 = scmp.eq.s32.totalorder %s16, 1
        // Predicated region
        $region68: #{cnn_discriminator_forward.5} parent=58 // pred_check
          %p4499 = pneg %p4498
        $region69: #{cnn_discriminator_forward.5} parent=58 // pred_check_branch
          %4501 = sbr.rel (%p4499) target = $region71
        $region70: #{cnn_discriminator_forward.5} parent=58 // pred_region
          %v4502 = vld [vmem:[#allocation2] sm:$0xff]
          %v4503 = vld [vmem:[#allocation2 + $0x8] sm:$0xff]
          %v4504 = vld [vmem:[#allocation2 + $0x10] sm:$0xff]
          %v4505 = vld [vmem:[#allocation2 + $0x18] sm:$0xff]
          %v4506 = vld [vmem:[#allocation2 + $0x20] sm:$0xff]
          %v4507 = vld [vmem:[#allocation2 + $0x28] sm:$0xff]
          %v4508 = vld [vmem:[#allocation2 + $0x30] sm:$0xff]
          %v4509 = vld [vmem:[#allocation2 + $0x38] sm:$0xff]
          %v4510 = vld [vmem:[#allocation2 + $0x40] sm:$0xff]
          %v4511 = vld [vmem:[#allocation2 + $0x48] sm:$0xff]
          %v4512 = vld [vmem:[#allocation2 + $0x50] sm:$0xff]
          %v4513 = vld [vmem:[#allocation2 + $0x58] sm:$0xff]
          %v4514 = vld [vmem:[#allocation2 + $0x60] sm:$0xff]
          %v4515 = vld [vmem:[#allocation2 + $0x68] sm:$0xff]
          %v4516 = vld [vmem:[#allocation2 + $0x70] sm:$0xff]
          %v4517 = vld [vmem:[#allocation2 + $0x78] sm:$0xff]
          %v4518 = vld [vmem:[%s2] sm:$0xf]
          %v4519 = vld [vmem:[%s3] sm:$0xf]
          %v4520 = vadd.f32 %v4502, %v4506
          %v4521 = vadd.f32 %v4520, %v4510
          %v4522 = vadd.f32 %v4521, %v4514
          %v4523 = vrot.slane %v4522, 4
          %v4524 = vadd.f32 %v4522, %v4523
          %v4525 = vrot.slane %v4524, 2
          %v4526 = vadd.f32 %v4524, %v4525
          %v4527 = vrot.slane %v4526, 1
          %v4528 = vadd.f32 %v4526, %v4527
          %v4529 = vadd.f32 %v4503, %v4507
          %v4530 = vadd.f32 %v4529, %v4511
          %v4531 = vadd.f32 %v4530, %v4515
          %v4532 = vrot.slane %v4531, 4
          %v4533 = vadd.f32 %v4531, %v4532
          %v4534 = vrot.slane %v4533, 2
          %v4535 = vadd.f32 %v4533, %v4534
          %v4536 = vrot.slane %v4535, 1
          %v4537 = vadd.f32 %v4535, %v4536
          %v4538 = vadd.f32 %v4504, %v4508
          %v4539 = vadd.f32 %v4538, %v4512
          %v4540 = vadd.f32 %v4539, %v4516
          %v4541 = vrot.slane %v4540, 4
          %v4542 = vadd.f32 %v4540, %v4541
          %v4543 = vrot.slane %v4542, 2
          %v4544 = vadd.f32 %v4542, %v4543
          %v4545 = vrot.slane %v4544, 1
          %v4546 = vadd.f32 %v4544, %v4545
          %v4547 = vadd.f32 %v4505, %v4509
          %v4548 = vadd.f32 %v4547, %v4513
          %v4549 = vadd.f32 %v4548, %v4517
          %v4550 = vrot.slane %v4549, 4
          %v4551 = vadd.f32 %v4549, %v4550
          %v4552 = vrot.slane %v4551, 2
          %v4553 = vadd.f32 %v4551, %v4552
          %v4554 = vrot.slane %v4553, 1
          %v4555 = vadd.f32 %v4553, %v4554
          %v4556 = vmul.f32 %v4528, 0.03125
          %v4557 = vmul.f32 %v4537, 0.03125
          %v4558 = vmul.f32 %v4546, 0.03125
          %v4559 = vmul.f32 %v4555, 0.03125
          %v4560 = vmul.f32 %v4502, %v4502
          %v4561 = vmul.f32 %v4503, %v4503
          %v4562 = vmul.f32 %v4504, %v4504
          %v4563 = vmul.f32 %v4505, %v4505
          %v4564 = vmul.f32 %v4506, %v4506
          %v4565 = vmul.f32 %v4507, %v4507
          %v4566 = vmul.f32 %v4508, %v4508
          %v4567 = vmul.f32 %v4509, %v4509
          %v4568 = vmul.f32 %v4510, %v4510
          %v4569 = vmul.f32 %v4511, %v4511
          %v4570 = vmul.f32 %v4512, %v4512
          %v4571 = vmul.f32 %v4513, %v4513
          %v4572 = vmul.f32 %v4514, %v4514
          %v4573 = vmul.f32 %v4515, %v4515
          %v4574 = vmul.f32 %v4516, %v4516
          %v4575 = vmul.f32 %v4517, %v4517
          %v4576 = vadd.f32 %v4560, %v4564
          %v4577 = vadd.f32 %v4576, %v4568
          %v4578 = vadd.f32 %v4577, %v4572
          %v4579 = vrot.slane %v4578, 4
          %v4580 = vadd.f32 %v4578, %v4579
          %v4581 = vrot.slane %v4580, 2
          %v4582 = vadd.f32 %v4580, %v4581
          %v4583 = vrot.slane %v4582, 1
          %v4584 = vadd.f32 %v4582, %v4583
          %v4585 = vadd.f32 %v4561, %v4565
          %v4586 = vadd.f32 %v4585, %v4569
          %v4587 = vadd.f32 %v4586, %v4573
          %v4588 = vrot.slane %v4587, 4
          %v4589 = vadd.f32 %v4587, %v4588
          %v4590 = vrot.slane %v4589, 2
          %v4591 = vadd.f32 %v4589, %v4590
          %v4592 = vrot.slane %v4591, 1
          %v4593 = vadd.f32 %v4591, %v4592
          %v4594 = vadd.f32 %v4562, %v4566
          %v4595 = vadd.f32 %v4594, %v4570
          %v4596 = vadd.f32 %v4595, %v4574
          %v4597 = vrot.slane %v4596, 4
          %v4598 = vadd.f32 %v4596, %v4597
          %v4599 = vrot.slane %v4598, 2
          %v4600 = vadd.f32 %v4598, %v4599
          %v4601 = vrot.slane %v4600, 1
          %v4602 = vadd.f32 %v4600, %v4601
          %v4603 = vadd.f32 %v4563, %v4567
          %v4604 = vadd.f32 %v4603, %v4571
          %v4605 = vadd.f32 %v4604, %v4575
          %v4606 = vrot.slane %v4605, 4
          %v4607 = vadd.f32 %v4605, %v4606
          %v4608 = vrot.slane %v4607, 2
          %v4609 = vadd.f32 %v4607, %v4608
          %v4610 = vrot.slane %v4609, 1
          %v4611 = vadd.f32 %v4609, %v4610
          %v4612 = vmul.f32 %v4584, 0.03125
          %v4613 = vmul.f32 %v4593, 0.03125
          %v4614 = vmul.f32 %v4602, 0.03125
          %v4615 = vmul.f32 %v4611, 0.03125
          %v4616 = vmul.f32 %v4556, %v4556
          %v4617 = vmul.f32 %v4557, %v4557
          %v4618 = vmul.f32 %v4558, %v4558
          %v4619 = vmul.f32 %v4559, %v4559
          %v4620 = vsub.f32 %v4612, %v4616
          %v4621 = vsub.f32 %v4613, %v4617
          %v4622 = vsub.f32 %v4614, %v4618
          %v4623 = vsub.f32 %v4615, %v4619
          %v4624 = vmax.f32 %v4620, 0.0
          %v4625 = vmax.f32 %v4621, 0.0
          %v4626 = vmax.f32 %v4622, 0.0
          %v4627 = vmax.f32 %v4623, 0.0
          %v4628 = vadd.f32 %v4624, 1e-05
          %v4629 = vadd.f32 %v4625, 1e-05
          %v4630 = vadd.f32 %v4626, 1e-05
          %v4631 = vadd.f32 %v4627, 1e-05
          %v4632 = vrsqrt.pop %v4628
          %v4633 = vrsqrt.pop %v4629
          %v4634 = vrsqrt.pop %v4630
          %v4635 = vrsqrt.pop %v4631
          %v4640 = vcombine.low %v4632, %v4633
          %v4641 = vcombine.low %v4634, %v4635
          %v4643 = vunpack.c.l.s4 1966171168
          %v4644 = vunpack.c.0.s8 %v4643
          %v4645 = vlaneseq
          %v4646 = vshrl.u32 %v4645, 7
          %v4647 = vsub.s32 %v4644, %v4646
          %v4648 = vrot.slane %v4640, %v4647
          %v4650 = vunpack.c.l.s4 1966171168
          %v4651 = vunpack.c.0.s8 %v4650
          %v4652 = vlaneseq
          %v4653 = vshrl.u32 %v4652, 7
          %v4654 = vsub.s32 %v4651, %v4653
          %v4655 = vrot.slane %v4641, %v4654
          %v4656 = vcombine.low %v4648, %v4655
          %v4658 = vunpack.c.l.s4 1966171168
          %v4659 = vunpack.c.0.s8 %v4658
          %v4660 = vlaneseq
          %v4661 = vshrl.u32 %v4660, 7
          %v4662 = vsub.s32 %v4659, %v4661
          %v4663 = vrot.slane %v4656, %v4662
          %v4665 = vmul.f32 %v4518, %v4663
          %v4667 = vlaneseq
          %v4668 = vshrl.u32 %v4667, 7
          %v4669 = vsub.s32 0, %v4668
          %v4670 = vrot.slane %v4665, %v4669
          %v4671 = vlaneseq
          %v4672 = vshrl.u32 %v4671, 7
          %v4673 = vsub.s32 1, %v4672
          %v4674 = vrot.slane %v4665, %v4673
          %v4675 = vlaneseq
          %v4676 = vshrl.u32 %v4675, 7
          %v4677 = vsub.s32 2, %v4676
          %v4678 = vrot.slane %v4665, %v4677
          %v4679 = vlaneseq
          %v4680 = vshrl.u32 %v4679, 7
          %v4681 = vsub.s32 3, %v4680
          %v4682 = vrot.slane %v4665, %v4681
          %v4687 = vmul.f32 %v4556, %v4670
          %v4688 = vmul.f32 %v4557, %v4674
          %v4689 = vmul.f32 %v4558, %v4678
          %v4690 = vmul.f32 %v4559, %v4682
          %v4695 = vcombine.low %v4687, %v4688
          %v4696 = vcombine.low %v4689, %v4690
          %v4698 = vunpack.c.l.s4 1966171168
          %v4699 = vunpack.c.0.s8 %v4698
          %v4700 = vlaneseq
          %v4701 = vshrl.u32 %v4700, 7
          %v4702 = vsub.s32 %v4699, %v4701
          %v4703 = vrot.slane %v4695, %v4702
          %v4705 = vunpack.c.l.s4 1966171168
          %v4706 = vunpack.c.0.s8 %v4705
          %v4707 = vlaneseq
          %v4708 = vshrl.u32 %v4707, 7
          %v4709 = vsub.s32 %v4706, %v4708
          %v4710 = vrot.slane %v4696, %v4709
          %v4711 = vcombine.low %v4703, %v4710
          %v4713 = vunpack.c.l.s4 1966171168
          %v4714 = vunpack.c.0.s8 %v4713
          %v4715 = vlaneseq
          %v4716 = vshrl.u32 %v4715, 7
          %v4717 = vsub.s32 %v4714, %v4716
          %v4718 = vrot.slane %v4711, %v4717
          %v4720 = vsub.f32 %v4519, %v4718
          %v4721 = vmul.f32 %v4502, %v4670
          %v4722 = vmul.f32 %v4503, %v4674
          %v4723 = vmul.f32 %v4504, %v4678
          %v4724 = vmul.f32 %v4505, %v4682
          %v4725 = vmul.f32 %v4506, %v4670
          %v4726 = vmul.f32 %v4507, %v4674
          %v4727 = vmul.f32 %v4508, %v4678
          %v4728 = vmul.f32 %v4509, %v4682
          %v4729 = vmul.f32 %v4510, %v4670
          %v4730 = vmul.f32 %v4511, %v4674
          %v4731 = vmul.f32 %v4512, %v4678
          %v4732 = vmul.f32 %v4513, %v4682
          %v4733 = vmul.f32 %v4514, %v4670
          %v4734 = vmul.f32 %v4515, %v4674
          %v4735 = vmul.f32 %v4516, %v4678
          %v4736 = vmul.f32 %v4517, %v4682
          %v4738 = vlaneseq
          %v4739 = vshrl.u32 %v4738, 7
          %v4740 = vsub.s32 0, %v4739
          %v4741 = vrot.slane %v4720, %v4740
          %v4742 = vlaneseq
          %v4743 = vshrl.u32 %v4742, 7
          %v4744 = vsub.s32 1, %v4743
          %v4745 = vrot.slane %v4720, %v4744
          %v4746 = vlaneseq
          %v4747 = vshrl.u32 %v4746, 7
          %v4748 = vsub.s32 2, %v4747
          %v4749 = vrot.slane %v4720, %v4748
          %v4750 = vlaneseq
          %v4751 = vshrl.u32 %v4750, 7
          %v4752 = vsub.s32 3, %v4751
          %v4753 = vrot.slane %v4720, %v4752
          %v4758 = vadd.f32 %v4721, %v4741
          %v4759 = vadd.f32 %v4722, %v4745
          %v4760 = vadd.f32 %v4723, %v4749
          %v4761 = vadd.f32 %v4724, %v4753
          %v4762 = vadd.f32 %v4725, %v4741
          %v4763 = vadd.f32 %v4726, %v4745
          %v4764 = vadd.f32 %v4727, %v4749
          %v4765 = vadd.f32 %v4728, %v4753
          %v4766 = vadd.f32 %v4729, %v4741
          %v4767 = vadd.f32 %v4730, %v4745
          %v4768 = vadd.f32 %v4731, %v4749
          %v4769 = vadd.f32 %v4732, %v4753
          %v4770 = vadd.f32 %v4733, %v4741
          %v4771 = vadd.f32 %v4734, %v4745
          %v4772 = vadd.f32 %v4735, %v4749
          %v4773 = vadd.f32 %v4736, %v4753
          %vm4774 = vcmp.gt.f32.partialorder %v4758, 0.0
          %vm4775 = vcmp.gt.f32.partialorder %v4759, 0.0
          %vm4776 = vcmp.gt.f32.partialorder %v4760, 0.0
          %vm4777 = vcmp.gt.f32.partialorder %v4761, 0.0
          %vm4778 = vcmp.gt.f32.partialorder %v4762, 0.0
          %vm4779 = vcmp.gt.f32.partialorder %v4763, 0.0
          %vm4780 = vcmp.gt.f32.partialorder %v4764, 0.0
          %vm4781 = vcmp.gt.f32.partialorder %v4765, 0.0
          %vm4782 = vcmp.gt.f32.partialorder %v4766, 0.0
          %vm4783 = vcmp.gt.f32.partialorder %v4767, 0.0
          %vm4784 = vcmp.gt.f32.partialorder %v4768, 0.0
          %vm4785 = vcmp.gt.f32.partialorder %v4769, 0.0
          %vm4786 = vcmp.gt.f32.partialorder %v4770, 0.0
          %vm4787 = vcmp.gt.f32.partialorder %v4771, 0.0
          %vm4788 = vcmp.gt.f32.partialorder %v4772, 0.0
          %vm4789 = vcmp.gt.f32.partialorder %v4773, 0.0
          %v4790 = vmul.f32 %v4758, 0.2
          %v4791 = vmul.f32 %v4759, 0.2
          %v4792 = vmul.f32 %v4760, 0.2
          %v4793 = vmul.f32 %v4761, 0.2
          %v4794 = vmul.f32 %v4762, 0.2
          %v4795 = vmul.f32 %v4763, 0.2
          %v4796 = vmul.f32 %v4764, 0.2
          %v4797 = vmul.f32 %v4765, 0.2
          %v4798 = vmul.f32 %v4766, 0.2
          %v4799 = vmul.f32 %v4767, 0.2
          %v4800 = vmul.f32 %v4768, 0.2
          %v4801 = vmul.f32 %v4769, 0.2
          %v4802 = vmul.f32 %v4770, 0.2
          %v4803 = vmul.f32 %v4771, 0.2
          %v4804 = vmul.f32 %v4772, 0.2
          %v4805 = vmul.f32 %v4773, 0.2
          %v4806 = vsel %vm4774, %v4758, %v4790
          %v4807 = vsel %vm4775, %v4759, %v4791
          %v4808 = vsel %vm4776, %v4760, %v4792
          %v4809 = vsel %vm4777, %v4761, %v4793
          %v4810 = vsel %vm4778, %v4762, %v4794
          %v4811 = vsel %vm4779, %v4763, %v4795
          %v4812 = vsel %vm4780, %v4764, %v4796
          %v4813 = vsel %vm4781, %v4765, %v4797
          %v4814 = vsel %vm4782, %v4766, %v4798
          %v4815 = vsel %vm4783, %v4767, %v4799
          %v4816 = vsel %vm4784, %v4768, %v4800
          %v4817 = vsel %vm4785, %v4769, %v4801
          %v4818 = vsel %vm4786, %v4770, %v4802
          %v4819 = vsel %vm4787, %v4771, %v4803
          %v4820 = vsel %vm4788, %v4772, %v4804
          %v4821 = vsel %vm4789, %v4773, %v4805
          %v4822 = vld [vmem:[%s4] sm:$0xff]
          %v4823 = vld [vmem:[%s4 + $0x8] sm:$0xff]
          %v4824 = vld [vmem:[%s4 + $0x10] sm:$0xff]
          %v4825 = vld [vmem:[%s4 + $0x18] sm:$0xff]
          %v4826 = vld [vmem:[%s4 + $0x20] sm:$0xff]
          %v4827 = vld [vmem:[%s4 + $0x28] sm:$0xff]
          %v4828 = vld [vmem:[%s4 + $0x30] sm:$0xff]
          %v4829 = vld [vmem:[%s4 + $0x38] sm:$0xff]
          %v4830 = vmul.f32 %v4806, %v4822
          %v4831 = vmul.f32 %v4807, %v4823
          %v4832 = vmul.f32 %v4808, %v4824
          %v4833 = vmul.f32 %v4809, %v4825
          %v4834 = vmul.f32 %v4810, %v4826
          %v4835 = vmul.f32 %v4811, %v4827
          %v4836 = vmul.f32 %v4812, %v4828
          %v4837 = vmul.f32 %v4813, %v4829
          %v4838 = vmul.f32 %v4814, %v4822
          %v4839 = vmul.f32 %v4815, %v4823
          %v4840 = vmul.f32 %v4816, %v4824
          %v4841 = vmul.f32 %v4817, %v4825
          %v4842 = vmul.f32 %v4818, %v4826
          %v4843 = vmul.f32 %v4819, %v4827
          %v4844 = vmul.f32 %v4820, %v4828
          %v4845 = vmul.f32 %v4821, %v4829
          %v4846 = vadd.f32 %v4830, %v4834
          %v4847 = vrot.slane %v4846, 4
          %v4848 = vadd.f32 %v4846, %v4847
          %v4849 = vrot.slane %v4848, 2
          %v4850 = vadd.f32 %v4848, %v4849
          %v4851 = vrot.slane %v4850, 1
          %v4852 = vadd.f32 %v4850, %v4851
          %v4853 = vadd.f32 %v4831, %v4835
          %v4854 = vrot.slane %v4853, 4
          %v4855 = vadd.f32 %v4853, %v4854
          %v4856 = vrot.slane %v4855, 2
          %v4857 = vadd.f32 %v4855, %v4856
          %v4858 = vrot.slane %v4857, 1
          %v4859 = vadd.f32 %v4857, %v4858
          %v4860 = vadd.f32 %v4832, %v4836
          %v4861 = vrot.slane %v4860, 4
          %v4862 = vadd.f32 %v4860, %v4861
          %v4863 = vrot.slane %v4862, 2
          %v4864 = vadd.f32 %v4862, %v4863
          %v4865 = vrot.slane %v4864, 1
          %v4866 = vadd.f32 %v4864, %v4865
          %v4867 = vadd.f32 %v4833, %v4837
          %v4868 = vrot.slane %v4867, 4
          %v4869 = vadd.f32 %v4867, %v4868
          %v4870 = vrot.slane %v4869, 2
          %v4871 = vadd.f32 %v4869, %v4870
          %v4872 = vrot.slane %v4871, 1
          %v4873 = vadd.f32 %v4871, %v4872
          %v4874 = vadd.f32 %v4838, %v4842
          %v4875 = vrot.slane %v4874, 4
          %v4876 = vadd.f32 %v4874, %v4875
          %v4877 = vrot.slane %v4876, 2
          %v4878 = vadd.f32 %v4876, %v4877
          %v4879 = vrot.slane %v4878, 1
          %v4880 = vadd.f32 %v4878, %v4879
          %v4881 = vadd.f32 %v4839, %v4843
          %v4882 = vrot.slane %v4881, 4
          %v4883 = vadd.f32 %v4881, %v4882
          %v4884 = vrot.slane %v4883, 2
          %v4885 = vadd.f32 %v4883, %v4884
          %v4886 = vrot.slane %v4885, 1
          %v4887 = vadd.f32 %v4885, %v4886
          %v4888 = vadd.f32 %v4840, %v4844
          %v4889 = vrot.slane %v4888, 4
          %v4890 = vadd.f32 %v4888, %v4889
          %v4891 = vrot.slane %v4890, 2
          %v4892 = vadd.f32 %v4890, %v4891
          %v4893 = vrot.slane %v4892, 1
          %v4894 = vadd.f32 %v4892, %v4893
          %v4895 = vadd.f32 %v4841, %v4845
          %v4896 = vrot.slane %v4895, 4
          %v4897 = vadd.f32 %v4895, %v4896
          %v4898 = vrot.slane %v4897, 2
          %v4899 = vadd.f32 %v4897, %v4898
          %v4900 = vrot.slane %v4899, 1
          %v4901 = vadd.f32 %v4899, %v4900
          %vm4910 = vcmask 1041409
          %v4911 = vsel %vm4910, %v4880, %v4852
          %v4912 = vsel %vm4910, %v4887, %v4859
          %v4913 = vsel %vm4910, %v4894, %v4866
          %v4914 = vsel %vm4910, %v4901, %v4873
          %vm4919 = vcmask 1041408
          %v4920 = vsel %vm4919, %v4911, 0.0
          %v4921 = vsel %vm4919, %v4912, 0.0
          %v4922 = vadd.f32 %v4920, %v4921
          %v4923 = vsel %vm4919, %v4913, 0.0
          %v4924 = vadd.f32 %v4922, %v4923
          %v4925 = vsel %vm4919, %v4914, 0.0
          %v4926 = vadd.f32 %v4924, %v4925
          %4927 = vadd.xlane.f32.xlu0 %v4926
          %v4928 = vpop.xlane.xlu0 %4927
          %v4929 = vxor.u32 %v4928, 2147483648
          %v4930 = vmul.f32 %v4929, 1.442695
          %v4931 = vpow.pop %v4930
          %v4932 = vadd.f32 %v4931, 1.0
          %v4933 = vrcp.pop %v4932
          %v4934 = vmul.f32 1.0, %v4933
          %vm4935 = vcmask 1024
          %4936 = vst.msk [vmem:[%s5] sm:$0x3] %vm4935, %v4934
        $region71: #{cnn_discriminator_forward.5} parent=58 // pred_fallthru
          _
        // Predicated region
        $region72: #{cnn_discriminator_forward.5} parent=58 // pred_check
          %p4937 = pneg %p144
        $region73: #{cnn_discriminator_forward.5} parent=58 // pred_check_branch
          %4939 = sbr.rel (%p4937) target = $region75
        $region74: #{cnn_discriminator_forward.5} parent=58 // pred_region
          _
        $region75: #{cnn_discriminator_forward.5} parent=58 // pred_fallthru
          _
        // Predicated region
        $region76: #{cnn_discriminator_forward.5} parent=58 // pred_check
          %p4940 = pneg %p144
        $region77: #{cnn_discriminator_forward.5} parent=58 // pred_check_branch
          %4942 = sbr.rel (%p4940) target = $region79
        $region78: #{cnn_discriminator_forward.5} parent=58 // pred_region
          _
        $region79: #{cnn_discriminator_forward.5} parent=58 // pred_fallthru
          _
      $region59: #{cnn_discriminator_forward.5} parent=5 // pred_fallthru
        _
      %p4943 = scmp.le.s32.totalorder 2, %s11
      // Predicated region
      $region80: #{cnn_discriminator_forward.5} parent=5 // pred_check
        %p4944 = pneg %p4943
      $region81: #{cnn_discriminator_forward.5} parent=5 // pred_check_branch
        %4946 = sbr.rel (%p4944) target = $region83
      $region82: #{cnn_discriminator_forward.5} parent=5 // pred_region
        %s4947 = ssub.s32 %s11, 2
      $region83: #{cnn_discriminator_forward.5} parent=5 // pred_fallthru
        _
    $region6: #{cnn_discriminator_forward.5} parent=1 // loop_footer
      %s15 = sadd.s32 1, %s11
    $region7: #{cnn_discriminator_forward.5} parent=1 // loop_footer_branch
      %10 = sbr.rel target = $region3
    $region8: #{cnn_discriminator_forward.5} parent=1 // loop_exit
      _

</llo_original>
